<compile_context>
chip_gen: v7x
topology: tpu7x:2x2x1
jax: 0.10.0
libtpu: 0.0.40
codegen_flags: <defaults>
</compile_context>

<pallas_src>
import functools
import math

import jax
import jax.numpy as jnp
from jax import lax
from jax.experimental import pallas as pl
from jax.experimental.pallas import tpu as pltpu

# ---------------- model hyper-parameters (small synthetic config) ----------------
D_MODEL = 32          # hidden_size
HEADS = 8             # head_count
DIM_PER_HEAD = D_MODEL // HEADS
FFN_HIDDEN = 64       # PositionwiseFeedForward hidden size
NUM_LAYERS = 2
VOCAB = 20
PAD_IDX = 0           # embeddings.word_padding_idx
EPS = 1e-6            # onmt.modules.LayerNorm eps
MAX_SIZE = 64         # subsequent-mask buffer (MAX_SIZE=5000 in onmt; small here)


# ================================ Pallas kernels =================================

def _decoder_layer_kernel(
    # data
    x_ref, mem_ref, tpad_ref, spad_ref,
    # stacked weights: self-attn [q,k,v,o], ctx-attn [q,k,v,o], LN [ln1,ln2,ffn_ln]
    sw_ref, sb_ref, cw_ref, cb_ref, lng_ref, lnb_ref,
    # feed-forward
    w1_ref, b1_ref, w2_ref, b2_ref,
    # outputs
    out_ref, attn_ref, allin_ref, mid_ref,
    *, heads, dh, eps):
    """One full TransformerDecoderLayer for one batch element (grid over batch)."""
    d = x_ref.shape[-1]
    t = x_ref.shape[-2]
    s = mem_ref.shape[-2]
    scale = 1.0 / math.sqrt(dh)

    x = x_ref[0]          # (t, d)  layer input
    mem = mem_ref[0]      # (s, d)  encoder memory bank
    tpad = tpad_ref[0]    # (1, t)  1.0 where tgt token is PAD
    spad = spad_ref[0]    # (1, s)  1.0 where src token is PAD

    def layer_norm(v, g, b):
        # onmt LayerNorm: a_2*(x-mean)/(std+eps)+b_2 with torch's unbiased std (N-1).
        mean = jnp.mean(v, axis=-1, keepdims=True)
        c = v - mean
        var = jnp.sum(c * c, axis=-1, keepdims=True) * (1.0 / (d - 1))
        inv = pl.reciprocal(jnp.sqrt(var) + eps, approx=True)   # EUP, frees the VPU
        return g * (c * inv) + b

    def bf(v):
        return v.astype(jnp.bfloat16)

    def mmw(a, w_bf16):   # f32 activation x resident bf16 weight -> f32 accumulate
        return jnp.dot(bf(a), w_bf16, preferred_element_type=jnp.float32)

    # Per-head channel selectors built from an iota: head h owns lanes [h*dh, (h+1)*dh).
    # This lets us keep every matmul at full D width (no sub-tile slicing / concat):
    #   scores_h = q @ (k*mask_h)^T ,  ctx = sum_h softmax(scores_h) @ (v*mask_h)
    lane = lax.broadcasted_iota(jnp.int32, (1, d), 1)
    head_masks = [
        jnp.logical_and(lane >= h * dh, lane < (h + 1) * dh).astype(jnp.float32)
        for h in range(heads)
    ]

    def mha(query_in, kv_in, w_ref, b_ref, mask, attn_out_ref):
        """onmt MultiHeadedAttention; all heads in-kernel; probs of head 0 only."""
        q = (mmw(query_in, w_ref[0]) + b_ref[0]) * scale
        k = mmw(kv_in, w_ref[1]) + b_ref[1]
        v = mmw(kv_in, w_ref[2]) + b_ref[2]
        ctx = jnp.zeros_like(q)
        for h in range(heads):
            hm = head_masks[h]
            sc = lax.dot_general(bf(q), bf(k * hm), (((1,), (1,)), ((), ())),
                                 preferred_element_type=jnp.float32)
            sc = jnp.where(mask, -1e18, sc)
            smax = jnp.max(sc, axis=-1, keepdims=True)
            e = jnp.exp(sc - smax)
            p = e * pl.reciprocal(jnp.sum(e, axis=-1, keepdims=True), approx=True)
            if h == 0 and attn_out_ref is not None:
                attn_out_ref[0] = p               # head-0 attention (what onmt returns)
            ctx = ctx + jnp.dot(bf(p), bf(v * hm), preferred_element_type=jnp.float32)
        return mmw(ctx, w_ref[3]) + b_ref[3]      # merged-head output projection

    # ---- LN1 + masked multi-head self-attention + residual ----
    input_norm = layer_norm(x, lng_ref[0], lnb_ref[0])
    allin_ref[0] = input_norm                     # previous_input is None -> all_input

    row = lax.broadcasted_iota(jnp.int32, (t, t), 0)
    col = lax.broadcasted_iota(jnp.int32, (t, t), 1)
    subsequent = (col > row).astype(jnp.float32)
    dec_mask = (jnp.broadcast_to(tpad, (t, t)) + subsequent) > 0.0

    query = mha(input_norm, input_norm, sw_ref, sb_ref, dec_mask, None) + x  # drop = id

    # ---- LN2 + context (encoder-decoder) attention ----
    query_norm = layer_norm(query, lng_ref[1], lnb_ref[1])
    src_mask = jnp.broadcast_to(spad, (t, s)) > 0.0
    mid = mha(query_norm, mem, cw_ref, cb_ref, src_mask, attn_ref)
    mid_ref[0] = mid

    # ---- PositionwiseFeedForward: w_2(relu(w_1(LN(x)))) + x  (dropout = identity) ----
    ffn_in = mid + query
    lnf = layer_norm(ffn_in, lng_ref[2], lnb_ref[2])
    h1 = jnp.maximum(mmw(lnf, w1_ref[...]) + b1_ref[...], 0.0)
    out_ref[0] = mmw(h1, w2_ref[...]) + b2_ref[...] + ffn_in


def _final_norm_kernel(x_ref, m_ref, g1_ref, b1_ref, g2_ref, b2_ref,
                       xo_ref, mo_ref, *, eps):
    d = x_ref.shape[-1]

    def ln(v, g, b):
        mean = jnp.mean(v, axis=-1, keepdims=True)
        c = v - mean
        var = jnp.sum(c * c, axis=-1, keepdims=True) * (1.0 / (d - 1))
        return g * (c * pl.reciprocal(jnp.sqrt(var) + eps, approx=True)) + b

    xo_ref[...] = ln(x_ref[...], g1_ref[...], b1_ref[...])
    mo_ref[...] = ln(m_ref[...], g2_ref[...], b2_ref[...])


# ================================ kernel wrappers =================================

def decoder_layer(lp, x, mem, tgt_pad, src_pad):
    """One fused TransformerDecoderLayer. x: (B,T,D), mem: (B,S,D),
    tgt_pad: (B,1,T), src_pad: (B,1,S). Returns (output, top_attn, all_input, mid)."""
    B, T, D = x.shape
    S = mem.shape[1]

    def full(arr):   # resident (weight) block, constant index map
        return pl.BlockSpec(arr.shape, lambda b, _r=arr.ndim: (0,) * _r)

    kernel = functools.partial(_decoder_layer_kernel,
                               heads=HEADS, dh=DIM_PER_HEAD, eps=EPS)
    out, attn, allin, mid = pl.pallas_call(
        kernel,
        grid=(B,),
        out_shape=(
            jax.ShapeDtypeStruct((B, T, D), jnp.float32),   # layer output
            jax.ShapeDtypeStruct((B, T, S), jnp.float32),   # head-0 ctx attention
            jax.ShapeDtypeStruct((B, T, D), jnp.float32),   # all_input (= input_norm)
            jax.ShapeDtypeStruct((B, T, D), jnp.float32),   # mid
        ),
        in_specs=[
            pl.BlockSpec((1, T, D), lambda b: (b, 0, 0)),   # x
            pl.BlockSpec((1, S, D), lambda b: (b, 0, 0)),   # memory bank
            pl.BlockSpec((1, 1, T), lambda b: (b, 0, 0)),   # tgt pad flags
            pl.BlockSpec((1, 1, S), lambda b: (b, 0, 0)),   # src pad flags
            full(lp["self_w"]), full(lp["self_b"]),
            full(lp["ctx_w"]), full(lp["ctx_b"]),
            full(lp["ln_g"]), full(lp["ln_b"]),
            full(lp["w1"]), full(lp["b1"]),
            full(lp["w2"]), full(lp["b2"]),
        ],
        out_specs=(
            pl.BlockSpec((1, T, D), lambda b: (b, 0, 0)),
            pl.BlockSpec((1, T, S), lambda b: (b, 0, 0)),
            pl.BlockSpec((1, T, D), lambda b: (b, 0, 0)),
            pl.BlockSpec((1, T, D), lambda b: (b, 0, 0)),
        ),
        compiler_params=pltpu.CompilerParams(
            dimension_semantics=("parallel",)),  # batch grid splits across TCs on v7x
    )(x, mem, tgt_pad, src_pad,
      lp["self_w"], lp["self_b"], lp["ctx_w"], lp["ctx_b"],
      lp["ln_g"], lp["ln_b"],
      lp["w1"], lp["b1"], lp["w2"], lp["b2"])
    return out, attn, allin, mid


def final_norms(params, output, mid):
    """Both final LayerNorms (layer_norm, layer_norm_c) in a single pallas_call."""
    B, T, D = output.shape
    M = B * T
    ln_out, ln_mid = pl.pallas_call(
        functools.partial(_final_norm_kernel, eps=EPS),
        grid=(1,),
        out_shape=(jax.ShapeDtypeStruct((M, D), jnp.float32),
                   jax.ShapeDtypeStruct((M, D), jnp.float32)),
        in_specs=[
            pl.BlockSpec((M, D), lambda i: (0, 0)),
            pl.BlockSpec((M, D), lambda i: (0, 0)),
            pl.BlockSpec((1, D), lambda i: (0, 0)),
            pl.BlockSpec((1, D), lambda i: (0, 0)),
            pl.BlockSpec((1, D), lambda i: (0, 0)),
            pl.BlockSpec((1, D), lambda i: (0, 0)),
        ],
        out_specs=(pl.BlockSpec((M, D), lambda i: (0, 0)),
                   pl.BlockSpec((M, D), lambda i: (0, 0))),
    )(output.reshape(M, D), mid.reshape(M, D),
      params["ln_g"].reshape(1, D), params["ln_b"].reshape(1, D),
      params["lnc_g"].reshape(1, D), params["lnc_b"].reshape(1, D))
    return ln_out.reshape(B, T, D), ln_mid.reshape(B, T, D)


# ============================ embeddings / decoder ================================

def embed(ep, tgt):
    # onmt Embeddings with positional encoding: table[id]*sqrt(D) + PE (pad row zero).
    ids = tgt[:, :, 0]                     # (tgt_len, B)
    e = ep["table"][ids] * math.sqrt(D_MODEL)
    pe = ep["pe"][: ids.shape[0]]          # (tgt_len, D)
    return e + pe[:, None, :]


def transformer_decoder_forward(params, tgt, memory_bank, src):
    """tgt: (tgt_len, B, 1) int32; memory_bank: (src_len, B, D) f32; src: (src_len, B, 1)."""
    tgt_len, B, _ = tgt.shape

    src_words = src[:, :, 0].T             # (B, src_len)
    tgt_words = tgt[:, :, 0].T             # (B, tgt_len)

    emb = embed(params["emb"], tgt)                         # (tgt_len, B, D)
    output = jnp.transpose(emb, (1, 0, 2))                  # (B, tgt_len, D)
    src_memory_bank = jnp.transpose(memory_bank, (1, 0, 2))  # (B, src_len, D)

    # Only tiny 1-D pad flags cross the kernel boundary; full (B,T,T)/(B,T,S) masks
    # are rebuilt in-kernel from iotas.
    tgt_pad = (tgt_words == PAD_IDX).astype(jnp.float32)[:, None, :]   # (B,1,tgt_len)
    src_pad = (src_words == PAD_IDX).astype(jnp.float32)[:, None, :]   # (B,1,src_len)

    saved_inputs = []
    attn = None
    mid = None
    for i in range(NUM_LAYERS):
        output, attn, all_input, mid = decoder_layer(
            params["layers"][i], output, src_memory_bank, tgt_pad, src_pad)
        saved_inputs.append(all_input)
    saved_inputs = jnp.stack(saved_inputs)   # (num_layers, B, tgt_len, D) decoder state

    output, mid = final_norms(params, output, mid)

    outputs = jnp.transpose(output, (1, 0, 2))   # (tgt_len, B, D)
    attn_std = jnp.transpose(attn, (1, 0, 2))    # (tgt_len, B, src_len)
    mids = jnp.transpose(mid, (1, 0, 2))         # (tgt_len, B, D)
    return outputs, attn_std, mids, saved_inputs


# ================================ parameter init ==================================

def _dense(key, fan_in, fan_out, scale=0.05):
    kw, kb = jax.random.split(key)
    w = jax.random.normal(kw, (fan_in, fan_out), jnp.float32) * scale
    b = jax.random.normal(kb, (fan_out,), jnp.float32) * scale
    return w, b


def _attn_block(key, d):
    # Stacked [q, k, v, o] projection weights: one contiguous bf16 tensor per block
    # (single DMA per attention block; matmul operands are bf16, accumulation f32).
    ks = jax.random.split(key, 4)
    ws, bs = zip(*[_dense(k, d, d) for k in ks])
    w = jnp.stack(ws).astype(jnp.bfloat16)                # (4, d, d)
    b = jnp.stack([bb.reshape(1, d) for bb in bs])        # (4, 1, d) f32
    return w, b


def _layer_params(key, d, hf):
    k_self, k_ctx, k1, k2 = jax.random.split(key, 4)
    self_w, self_b = _attn_block(k_self, d)
    ctx_w, ctx_b = _attn_block(k_ctx, d)
    w1, b1 = _dense(k1, d, hf)
    w2, b2 = _dense(k2, hf, d)
    return dict(
        self_w=self_w, self_b=self_b,
        ctx_w=ctx_w, ctx_b=ctx_b,
        ln_g=jnp.ones((3, 1, d), jnp.float32),   # [layer_norm_1, layer_norm_2, ffn LN]
        ln_b=jnp.zeros((3, 1, d), jnp.float32),
        w1=w1.astype(jnp.bfloat16), b1=b1.reshape(1, hf),
        w2=w2.astype(jnp.bfloat16), b2=b2.reshape(1, d),
    )


def _positional_encoding(max_len, d):
    pos = jnp.arange(max_len, dtype=jnp.float32)[:, None]
    div = jnp.exp(jnp.arange(0, d, 2, dtype=jnp.float32) * -(math.log(10000.0) / d))
    pe = jnp.zeros((max_len, d), jnp.float32)
    pe = pe.at[:, 0::2].set(jnp.sin(pos * div))
    pe = pe.at[:, 1::2].set(jnp.cos(pos * div))
    return pe


def init_params(key):
    keys = jax.random.split(key, NUM_LAYERS + 1)
    table = jax.random.normal(keys[0], (VOCAB, D_MODEL), jnp.float32) * 0.1
    table = table.at[PAD_IDX].set(0.0)  # nn.Embedding padding_idx row is zero
    return dict(
        emb=dict(table=table, pe=_positional_encoding(MAX_SIZE, D_MODEL)),
        layers=[_layer_params(keys[i + 1], D_MODEL, FFN_HIDDEN) for i in range(NUM_LAYERS)],
        ln_g=jnp.ones((D_MODEL,), jnp.float32), ln_b=jnp.zeros((D_MODEL,), jnp.float32),
        lnc_g=jnp.ones((D_MODEL,), jnp.float32), lnc_b=jnp.zeros((D_MODEL,), jnp.float32),
    )


# ===================================== main ======================================

if __name__ == "__main__":
    root = jax.random.PRNGKey(0)
    k_par, k_tgt, k_src, k_mem = jax.random.split(root, 4)

    params = init_params(k_par)

    B, TGT_LEN, SRC_LEN = 2, 8, 8
    tgt = jax.random.randint(k_tgt, (TGT_LEN, B, 1), 1, VOCAB, dtype=jnp.int32)
    src = jax.random.randint(k_src, (SRC_LEN, B, 1), 1, VOCAB, dtype=jnp.int32)
    src = src.at[-1, :, :].set(PAD_IDX)  # exercise src padding mask
    memory_bank = jax.random.normal(k_mem, (SRC_LEN, B, D_MODEL), jnp.float32)

    fwd = jax.jit(functools.partial(transformer_decoder_forward, params))
    outputs, attn_std, mids, saved_inputs = fwd(tgt, memory_bank, src)
    jax.block_until_ready((outputs, attn_std, mids, saved_inputs))

    assert outputs.shape == (TGT_LEN, B, D_MODEL)
    assert attn_std.shape == (TGT_LEN, B, SRC_LEN)
    assert mids.shape == (TGT_LEN, B, D_MODEL)
    assert saved_inputs.shape == (NUM_LAYERS, B, TGT_LEN, D_MODEL)
    assert bool(jnp.all(jnp.isfinite(outputs)))
    assert bool(jnp.all(jnp.isfinite(attn_std)))

    print("KERNEL_OK")
</pallas_src>

<mosaic_0001>
module attributes {stable_mosaic.version = 11 : i64} {
  func.func @_final_norm_kernel(%arg0: i32, %arg1: memref<16x32xf32, #tpu.memory_space<vmem>>, %arg2: memref<16x32xf32, #tpu.memory_space<vmem>>, %arg3: memref<1x32xf32, #tpu.memory_space<vmem>>, %arg4: memref<1x32xf32, #tpu.memory_space<vmem>>, %arg5: memref<1x32xf32, #tpu.memory_space<vmem>>, %arg6: memref<1x32xf32, #tpu.memory_space<vmem>>, %arg7: memref<16x32xf32, #tpu.memory_space<vmem>>, %arg8: memref<16x32xf32, #tpu.memory_space<vmem>>) attributes {dimension_semantics = [#tpu.dimension_semantics<arbitrary>], iteration_bounds = array<i64: 1>, scalar_prefetch = 0 : i64, scratch_operands = 0 : i64, tpu.core_type = #tpu.core_type<tc>, window_params = [{pipeline_mode = #tpu.pipeline_mode<synchronous>, transform_indices = @transform_0, window_bounds = array<i64: 16, 32>}, {pipeline_mode = #tpu.pipeline_mode<synchronous>, transform_indices = @transform_1, window_bounds = array<i64: 16, 32>}, {pipeline_mode = #tpu.pipeline_mode<synchronous>, transform_indices = @transform_2, window_bounds = array<i64: 1, 32>}, {pipeline_mode = #tpu.pipeline_mode<synchronous>, transform_indices = @transform_3, window_bounds = array<i64: 1, 32>}, {pipeline_mode = #tpu.pipeline_mode<synchronous>, transform_indices = @transform_4, window_bounds = array<i64: 1, 32>}, {pipeline_mode = #tpu.pipeline_mode<synchronous>, transform_indices = @transform_5, window_bounds = array<i64: 1, 32>}, {pipeline_mode = #tpu.pipeline_mode<synchronous>, transform_indices = @transform_6, window_bounds = array<i64: 16, 32>}, {pipeline_mode = #tpu.pipeline_mode<synchronous>, transform_indices = @transform_7, window_bounds = array<i64: 16, 32>}]} {
    %c0 = arith.constant 0 : index
    %c0_0 = arith.constant 0 : index
    %0 = vector.load %arg1[%c0, %c0_0] : memref<16x32xf32, #tpu.memory_space<vmem>>, vector<16x32xf32>
    %c0_1 = arith.constant 0 : index
    %c0_2 = arith.constant 0 : index
    %1 = vector.load %arg3[%c0_1, %c0_2] : memref<1x32xf32, #tpu.memory_space<vmem>>, vector<1x32xf32>
    %c0_3 = arith.constant 0 : index
    %c0_4 = arith.constant 0 : index
    %2 = vector.load %arg4[%c0_3, %c0_4] : memref<1x32xf32, #tpu.memory_space<vmem>>, vector<1x32xf32>
    %cst = arith.constant dense<0.000000e+00> : vector<16xf32>
    %3 = vector.multi_reduction <add>, %0, %cst [1] : vector<16x32xf32> to vector<16xf32>
    %4 = vector.shape_cast %3 : vector<16xf32> to vector<16x1xf32>
    %cst_5 = arith.constant 3.200000e+01 : f32
    %5 = vector.broadcast %cst_5 : f32 to vector<16x1xf32>
    %6 = arith.divf %4, %5 : vector<16x1xf32>
    %7 = vector.broadcast %6 : vector<16x1xf32> to vector<16x32xf32>
    %8 = arith.subf %0, %7 : vector<16x32xf32>
    %9 = arith.mulf %8, %8 : vector<16x32xf32>
    %cst_6 = arith.constant dense<0.000000e+00> : vector<16xf32>
    %10 = vector.multi_reduction <add>, %9, %cst_6 [1] : vector<16x32xf32> to vector<16xf32>
    %11 = vector.shape_cast %10 : vector<16xf32> to vector<16x1xf32>
    %cst_7 = arith.constant 0.0322580636 : f32
    %12 = vector.broadcast %cst_7 : f32 to vector<16x1xf32>
    %13 = arith.mulf %11, %12 : vector<16x1xf32>
    %14 = math.sqrt %13 : vector<16x1xf32>
    %cst_8 = arith.constant 9.99999997E-7 : f32
    %15 = vector.broadcast %cst_8 : f32 to vector<16x1xf32>
    %16 = arith.addf %14, %15 : vector<16x1xf32>
    %17 = tpu.reciprocal %16 {approx = true} : vector<16x1xf32> -> vector<16x1xf32>
    %18 = vector.broadcast %17 : vector<16x1xf32> to vector<16x32xf32>
    %19 = arith.mulf %8, %18 : vector<16x32xf32>
    %20 = vector.broadcast %1 : vector<1x32xf32> to vector<16x32xf32>
    %21 = arith.mulf %20, %19 : vector<16x32xf32>
    %22 = vector.broadcast %2 : vector<1x32xf32> to vector<16x32xf32>
    %23 = arith.addf %21, %22 : vector<16x32xf32>
    %c0_9 = arith.constant 0 : index
    %c0_10 = arith.constant 0 : index
    %24 = vector.load %arg7[%c0_9, %c0_10] : memref<16x32xf32, #tpu.memory_space<vmem>>, vector<16x32xf32>
    tpu.vector_store %arg7[%c0_9, %c0_10], %23 {strides = array<i32>} : memref<16x32xf32, #tpu.memory_space<vmem>>, vector<16x32xf32>,
    %c0_11 = arith.constant 0 : index
    %c0_12 = arith.constant 0 : index
    %25 = vector.load %arg2[%c0_11, %c0_12] : memref<16x32xf32, #tpu.memory_space<vmem>>, vector<16x32xf32>
    %c0_13 = arith.constant 0 : index
    %c0_14 = arith.constant 0 : index
    %26 = vector.load %arg5[%c0_13, %c0_14] : memref<1x32xf32, #tpu.memory_space<vmem>>, vector<1x32xf32>
    %c0_15 = arith.constant 0 : index
    %c0_16 = arith.constant 0 : index
    %27 = vector.load %arg6[%c0_15, %c0_16] : memref<1x32xf32, #tpu.memory_space<vmem>>, vector<1x32xf32>
    %cst_17 = arith.constant dense<0.000000e+00> : vector<16xf32>
    %28 = vector.multi_reduction <add>, %25, %cst_17 [1] : vector<16x32xf32> to vector<16xf32>
    %29 = vector.shape_cast %28 : vector<16xf32> to vector<16x1xf32>
    %cst_18 = arith.constant 3.200000e+01 : f32
    %30 = vector.broadcast %cst_18 : f32 to vector<16x1xf32>
    %31 = arith.divf %29, %30 : vector<16x1xf32>
    %32 = vector.broadcast %31 : vector<16x1xf32> to vector<16x32xf32>
    %33 = arith.subf %25, %32 : vector<16x32xf32>
    %34 = arith.mulf %33, %33 : vector<16x32xf32>
    %cst_19 = arith.constant dense<0.000000e+00> : vector<16xf32>
    %35 = vector.multi_reduction <add>, %34, %cst_19 [1] : vector<16x32xf32> to vector<16xf32>
    %36 = vector.shape_cast %35 : vector<16xf32> to vector<16x1xf32>
    %cst_20 = arith.constant 0.0322580636 : f32
    %37 = vector.broadcast %cst_20 : f32 to vector<16x1xf32>
    %38 = arith.mulf %36, %37 : vector<16x1xf32>
    %39 = math.sqrt %38 : vector<16x1xf32>
    %cst_21 = arith.constant 9.99999997E-7 : f32
    %40 = vector.broadcast %cst_21 : f32 to vector<16x1xf32>
    %41 = arith.addf %39, %40 : vector<16x1xf32>
    %42 = tpu.reciprocal %41 {approx = true} : vector<16x1xf32> -> vector<16x1xf32>
    %43 = vector.broadcast %42 : vector<16x1xf32> to vector<16x32xf32>
    %44 = arith.mulf %33, %43 : vector<16x32xf32>
    %45 = vector.broadcast %26 : vector<1x32xf32> to vector<16x32xf32>
    %46 = arith.mulf %45, %44 : vector<16x32xf32>
    %47 = vector.broadcast %27 : vector<1x32xf32> to vector<16x32xf32>
    %48 = arith.addf %46, %47 : vector<16x32xf32>
    %c0_22 = arith.constant 0 : index
    %c0_23 = arith.constant 0 : index
    %49 = vector.load %arg8[%c0_22, %c0_23] : memref<16x32xf32, #tpu.memory_space<vmem>>, vector<16x32xf32>
    tpu.vector_store %arg8[%c0_22, %c0_23], %48 {strides = array<i32>} : memref<16x32xf32, #tpu.memory_space<vmem>>, vector<16x32xf32>,
    return
  }
  func.func @transform_0(%arg0: i32) -> (i32, i32) {
    %c0_i32 = arith.constant 0 : i32
    %c0_i32_0 = arith.constant 0 : i32
    %c0_i32_1 = arith.constant 0 : i32
    return %c0_i32, %c0_i32_0 : i32, i32
  }
  func.func @transform_1(%arg0: i32) -> (i32, i32) {
    %c0_i32 = arith.constant 0 : i32
    %c0_i32_0 = arith.constant 0 : i32
    %c0_i32_1 = arith.constant 0 : i32
    return %c0_i32, %c0_i32_0 : i32, i32
  }
  func.func @transform_2(%arg0: i32) -> (i32, i32) {
    %c0_i32 = arith.constant 0 : i32
    %c0_i32_0 = arith.constant 0 : i32
    %c0_i32_1 = arith.constant 0 : i32
    return %c0_i32, %c0_i32_0 : i32, i32
  }
  func.func @transform_3(%arg0: i32) -> (i32, i32) {
    %c0_i32 = arith.constant 0 : i32
    %c0_i32_0 = arith.constant 0 : i32
    %c0_i32_1 = arith.constant 0 : i32
    return %c0_i32, %c0_i32_0 : i32, i32
  }
  func.func @transform_4(%arg0: i32) -> (i32, i32) {
    %c0_i32 = arith.constant 0 : i32
    %c0_i32_0 = arith.constant 0 : i32
    %c0_i32_1 = arith.constant 0 : i32
    return %c0_i32, %c0_i32_0 : i32, i32
  }
  func.func @transform_5(%arg0: i32) -> (i32, i32) {
    %c0_i32 = arith.constant 0 : i32
    %c0_i32_0 = arith.constant 0 : i32
    %c0_i32_1 = arith.constant 0 : i32
    return %c0_i32, %c0_i32_0 : i32, i32
  }
  func.func @transform_6(%arg0: i32) -> (i32, i32) {
    %c0_i32 = arith.constant 0 : i32
    %c0_i32_0 = arith.constant 0 : i32
    %c0_i32_1 = arith.constant 0 : i32
    return %c0_i32, %c0_i32_0 : i32, i32
  }
  func.func @transform_7(%arg0: i32) -> (i32, i32) {
    %c0_i32 = arith.constant 0 : i32
    %c0_i32_0 = arith.constant 0 : i32
    %c0_i32_1 = arith.constant 0 : i32
    return %c0_i32, %c0_i32_0 : i32, i32
  }
}

module attributes {stable_mosaic.version = 11 : i64} {
  func.func @_decoder_layer_kernel(%arg0: i32, %arg1: memref<1x8x32xf32, #tpu.memory_space<vmem>>, %arg2: memref<1x8x32xf32, #tpu.memory_space<vmem>>, %arg3: memref<1x1x8xf32, #tpu.memory_space<vmem>>, %arg4: memref<1x1x8xf32, #tpu.memory_space<vmem>>, %arg5: memref<4x32x32xbf16, #tpu.memory_space<vmem>>, %arg6: memref<4x1x32xf32, #tpu.memory_space<vmem>>, %arg7: memref<4x32x32xbf16, #tpu.memory_space<vmem>>, %arg8: memref<4x1x32xf32, #tpu.memory_space<vmem>>, %arg9: memref<3x1x32xf32, #tpu.memory_space<vmem>>, %arg10: memref<3x1x32xf32, #tpu.memory_space<vmem>>, %arg11: memref<32x64xbf16, #tpu.memory_space<vmem>>, %arg12: memref<1x64xf32, #tpu.memory_space<vmem>>, %arg13: memref<64x32xbf16, #tpu.memory_space<vmem>>, %arg14: memref<1x32xf32, #tpu.memory_space<vmem>>, %arg15: memref<1x8x32xf32, #tpu.memory_space<vmem>>, %arg16: memref<1x8x8xf32, #tpu.memory_space<vmem>>, %arg17: memref<1x8x32xf32, #tpu.memory_space<vmem>>, %arg18: memref<1x8x32xf32, #tpu.memory_space<vmem>>) attributes {dimension_semantics = [#tpu.dimension_semantics<parallel>], iteration_bounds = array<i64: 2>, scalar_prefetch = 0 : i64, scratch_operands = 0 : i64, tpu.core_type = #tpu.core_type<tc>, window_params = [{transform_indices = @transform_0, window_bounds = array<i64: 1, 8, 32>}, {transform_indices = @transform_1, window_bounds = array<i64: 1, 8, 32>}, {transform_indices = @transform_2, window_bounds = array<i64: 1, 1, 8>}, {transform_indices = @transform_3, window_bounds = array<i64: 1, 1, 8>}, {pipeline_mode = #tpu.pipeline_mode<synchronous>, transform_indices = @transform_4, window_bounds = array<i64: 4, 32, 32>}, {pipeline_mode = #tpu.pipeline_mode<synchronous>, transform_indices = @transform_5, window_bounds = array<i64: 4, 1, 32>}, {pipeline_mode = #tpu.pipeline_mode<synchronous>, transform_indices = @transform_6, window_bounds = array<i64: 4, 32, 32>}, {pipeline_mode = #tpu.pipeline_mode<synchronous>, transform_indices = @transform_7, window_bounds = array<i64: 4, 1, 32>}, {pipeline_mode = #tpu.pipeline_mode<synchronous>, transform_indices = @transform_8, window_bounds = array<i64: 3, 1, 32>}, {pipeline_mode = #tpu.pipeline_mode<synchronous>, transform_indices = @transform_9, window_bounds = array<i64: 3, 1, 32>}, {pipeline_mode = #tpu.pipeline_mode<synchronous>, transform_indices = @transform_10, window_bounds = array<i64: 32, 64>}, {pipeline_mode = #tpu.pipeline_mode<synchronous>, transform_indices = @transform_11, window_bounds = array<i64: 1, 64>}, {pipeline_mode = #tpu.pipeline_mode<synchronous>, transform_indices = @transform_12, window_bounds = array<i64: 64, 32>}, {pipeline_mode = #tpu.pipeline_mode<synchronous>, transform_indices = @transform_13, window_bounds = array<i64: 1, 32>}, {transform_indices = @transform_14, window_bounds = array<i64: 1, 8, 32>}, {transform_indices = @transform_15, window_bounds = array<i64: 1, 8, 8>}, {transform_indices = @transform_16, window_bounds = array<i64: 1, 8, 32>}, {transform_indices = @transform_17, window_bounds = array<i64: 1, 8, 32>}]} {
    %c0 = arith.constant 0 : index
    %c0_0 = arith.constant 0 : index
    %c0_1 = arith.constant 0 : index
    %0 = vector.load %arg1[%c0, %c0_0, %c0_1] : memref<1x8x32xf32, #tpu.memory_space<vmem>>, vector<1x8x32xf32>
    %1 = vector.shape_cast %0 : vector<1x8x32xf32> to vector<8x32xf32>
    %c0_2 = arith.constant 0 : index
    %c0_3 = arith.constant 0 : index
    %c0_4 = arith.constant 0 : index
    %2 = vector.load %arg2[%c0_2, %c0_3, %c0_4] : memref<1x8x32xf32, #tpu.memory_space<vmem>>, vector<1x8x32xf32>
    %3 = vector.shape_cast %2 : vector<1x8x32xf32> to vector<8x32xf32>
    %c0_5 = arith.constant 0 : index
    %c0_6 = arith.constant 0 : index
    %c0_7 = arith.constant 0 : index
    %4 = vector.load %arg3[%c0_5, %c0_6, %c0_7] : memref<1x1x8xf32, #tpu.memory_space<vmem>>, vector<1x1x8xf32>
    %5 = vector.shape_cast %4 : vector<1x1x8xf32> to vector<1x8xf32>
    %c0_8 = arith.constant 0 : index
    %c0_9 = arith.constant 0 : index
    %c0_10 = arith.constant 0 : index
    %6 = vector.load %arg4[%c0_8, %c0_9, %c0_10] : memref<1x1x8xf32, #tpu.memory_space<vmem>>, vector<1x1x8xf32>
    %7 = vector.shape_cast %6 : vector<1x1x8xf32> to vector<1x8xf32>
    %8 = tpu.iota {dimensions = array<i32: 1>} : vector<1x32xi32>
    %c0_i32 = arith.constant 0 : i32
    %9 = vector.broadcast %c0_i32 : i32 to vector<1x32xi32>
    %10 = arith.cmpi sge, %8, %9 : vector<1x32xi32>
    %c4_i32 = arith.constant 4 : i32
    %11 = vector.broadcast %c4_i32 : i32 to vector<1x32xi32>
    %12 = arith.cmpi slt, %8, %11 : vector<1x32xi32>
    %13 = arith.andi %10, %12 : vector<1x32xi1>
    %14 = arith.extui %13 : vector<1x32xi1> to vector<1x32xi32>
    %15 = arith.sitofp %14 : vector<1x32xi32> to vector<1x32xf32>
    %c4_i32_11 = arith.constant 4 : i32
    %16 = vector.broadcast %c4_i32_11 : i32 to vector<1x32xi32>
    %17 = arith.cmpi sge, %8, %16 : vector<1x32xi32>
    %c8_i32 = arith.constant 8 : i32
    %18 = vector.broadcast %c8_i32 : i32 to vector<1x32xi32>
    %19 = arith.cmpi slt, %8, %18 : vector<1x32xi32>
    %20 = arith.andi %17, %19 : vector<1x32xi1>
    %21 = arith.extui %20 : vector<1x32xi1> to vector<1x32xi32>
    %22 = arith.sitofp %21 : vector<1x32xi32> to vector<1x32xf32>
    %c8_i32_12 = arith.constant 8 : i32
    %23 = vector.broadcast %c8_i32_12 : i32 to vector<1x32xi32>
    %24 = arith.cmpi sge, %8, %23 : vector<1x32xi32>
    %c12_i32 = arith.constant 12 : i32
    %25 = vector.broadcast %c12_i32 : i32 to vector<1x32xi32>
    %26 = arith.cmpi slt, %8, %25 : vector<1x32xi32>
    %27 = arith.andi %24, %26 : vector<1x32xi1>
    %28 = arith.extui %27 : vector<1x32xi1> to vector<1x32xi32>
    %29 = arith.sitofp %28 : vector<1x32xi32> to vector<1x32xf32>
    %c12_i32_13 = arith.constant 12 : i32
    %30 = vector.broadcast %c12_i32_13 : i32 to vector<1x32xi32>
    %31 = arith.cmpi sge, %8, %30 : vector<1x32xi32>
    %c16_i32 = arith.constant 16 : i32
    %32 = vector.broadcast %c16_i32 : i32 to vector<1x32xi32>
    %33 = arith.cmpi slt, %8, %32 : vector<1x32xi32>
    %34 = arith.andi %31, %33 : vector<1x32xi1>
    %35 = arith.extui %34 : vector<1x32xi1> to vector<1x32xi32>
    %36 = arith.sitofp %35 : vector<1x32xi32> to vector<1x32xf32>
    %c16_i32_14 = arith.constant 16 : i32
    %37 = vector.broadcast %c16_i32_14 : i32 to vector<1x32xi32>
    %38 = arith.cmpi sge, %8, %37 : vector<1x32xi32>
    %c20_i32 = arith.constant 20 : i32
    %39 = vector.broadcast %c20_i32 : i32 to vector<1x32xi32>
    %40 = arith.cmpi slt, %8, %39 : vector<1x32xi32>
    %41 = arith.andi %38, %40 : vector<1x32xi1>
    %42 = arith.extui %41 : vector<1x32xi1> to vector<1x32xi32>
    %43 = arith.sitofp %42 : vector<1x32xi32> to vector<1x32xf32>
    %c20_i32_15 = arith.constant 20 : i32
    %44 = vector.broadcast %c20_i32_15 : i32 to vector<1x32xi32>
    %45 = arith.cmpi sge, %8, %44 : vector<1x32xi32>
    %c24_i32 = arith.constant 24 : i32
    %46 = vector.broadcast %c24_i32 : i32 to vector<1x32xi32>
    %47 = arith.cmpi slt, %8, %46 : vector<1x32xi32>
    %48 = arith.andi %45, %47 : vector<1x32xi1>
    %49 = arith.extui %48 : vector<1x32xi1> to vector<1x32xi32>
    %50 = arith.sitofp %49 : vector<1x32xi32> to vector<1x32xf32>
    %c24_i32_16 = arith.constant 24 : i32
    %51 = vector.broadcast %c24_i32_16 : i32 to vector<1x32xi32>
    %52 = arith.cmpi sge, %8, %51 : vector<1x32xi32>
    %c28_i32 = arith.constant 28 : i32
    %53 = vector.broadcast %c28_i32 : i32 to vector<1x32xi32>
    %54 = arith.cmpi slt, %8, %53 : vector<1x32xi32>
    %55 = arith.andi %52, %54 : vector<1x32xi1>
    %56 = arith.extui %55 : vector<1x32xi1> to vector<1x32xi32>
    %57 = arith.sitofp %56 : vector<1x32xi32> to vector<1x32xf32>
    %c28_i32_17 = arith.constant 28 : i32
    %58 = vector.broadcast %c28_i32_17 : i32 to vector<1x32xi32>
    %59 = arith.cmpi sge, %8, %58 : vector<1x32xi32>
    %c32_i32 = arith.constant 32 : i32
    %60 = vector.broadcast %c32_i32 : i32 to vector<1x32xi32>
    %61 = arith.cmpi slt, %8, %60 : vector<1x32xi32>
    %62 = arith.andi %59, %61 : vector<1x32xi1>
    %63 = arith.extui %62 : vector<1x32xi1> to vector<1x32xi32>
    %64 = arith.sitofp %63 : vector<1x32xi32> to vector<1x32xf32>
    %c0_18 = arith.constant 0 : index
    %c0_19 = arith.constant 0 : index
    %c0_20 = arith.constant 0 : index
    %65 = vector.load %arg9[%c0_18, %c0_19, %c0_20] : memref<3x1x32xf32, #tpu.memory_space<vmem>>, vector<1x1x32xf32>
    %66 = vector.shape_cast %65 : vector<1x1x32xf32> to vector<1x32xf32>
    %c0_21 = arith.constant 0 : index
    %c0_22 = arith.constant 0 : index
    %c0_23 = arith.constant 0 : index
    %67 = vector.load %arg10[%c0_21, %c0_22, %c0_23] : memref<3x1x32xf32, #tpu.memory_space<vmem>>, vector<1x1x32xf32>
    %68 = vector.shape_cast %67 : vector<1x1x32xf32> to vector<1x32xf32>
    %cst = arith.constant dense<0.000000e+00> : vector<8xf32>
    %69 = vector.multi_reduction <add>, %1, %cst [1] : vector<8x32xf32> to vector<8xf32>
    %70 = vector.shape_cast %69 : vector<8xf32> to vector<8x1xf32>
    %cst_24 = arith.constant 3.200000e+01 : f32
    %71 = vector.broadcast %cst_24 : f32 to vector<8x1xf32>
    %72 = arith.divf %70, %71 : vector<8x1xf32>
    %73 = vector.broadcast %72 : vector<8x1xf32> to vector<8x32xf32>
    %74 = arith.subf %1, %73 : vector<8x32xf32>
    %75 = arith.mulf %74, %74 : vector<8x32xf32>
    %cst_25 = arith.constant dense<0.000000e+00> : vector<8xf32>
    %76 = vector.multi_reduction <add>, %75, %cst_25 [1] : vector<8x32xf32> to vector<8xf32>
    %77 = vector.shape_cast %76 : vector<8xf32> to vector<8x1xf32>
    %cst_26 = arith.constant 0.0322580636 : f32
    %78 = vector.broadcast %cst_26 : f32 to vector<8x1xf32>
    %79 = arith.mulf %77, %78 : vector<8x1xf32>
    %80 = math.sqrt %79 : vector<8x1xf32>
    %cst_27 = arith.constant 9.99999997E-7 : f32
    %81 = vector.broadcast %cst_27 : f32 to vector<8x1xf32>
    %82 = arith.addf %80, %81 : vector<8x1xf32>
    %83 = tpu.reciprocal %82 {approx = true} : vector<8x1xf32> -> vector<8x1xf32>
    %84 = vector.broadcast %83 : vector<8x1xf32> to vector<8x32xf32>
    %85 = arith.mulf %74, %84 : vector<8x32xf32>
    %86 = vector.broadcast %66 : vector<1x32xf32> to vector<8x32xf32>
    %87 = arith.mulf %86, %85 : vector<8x32xf32>
    %88 = vector.broadcast %68 : vector<1x32xf32> to vector<8x32xf32>
    %89 = arith.addf %87, %88 : vector<8x32xf32>
    %c0_28 = arith.constant 0 : index
    %c0_29 = arith.constant 0 : index
    %c0_30 = arith.constant 0 : index
    %90 = vector.load %arg17[%c0_28, %c0_29, %c0_30] : memref<1x8x32xf32, #tpu.memory_space<vmem>>, vector<1x8x32xf32>
    %91 = vector.shape_cast %90 : vector<1x8x32xf32> to vector<8x32xf32>
    %92 = vector.shape_cast %89 : vector<8x32xf32> to vector<1x8x32xf32>
    tpu.vector_store %arg17[%c0_28, %c0_29, %c0_30], %92 {strides = array<i32>} : memref<1x8x32xf32, #tpu.memory_space<vmem>>, vector<1x8x32xf32>,
    %93 = tpu.iota {dimensions = array<i32: 0>} : vector<8x8xi32>
    %94 = tpu.iota {dimensions = array<i32: 1>} : vector<8x8xi32>
    %95 = arith.cmpi sgt, %94, %93 : vector<8x8xi32>
    %96 = arith.extui %95 : vector<8x8xi1> to vector<8x8xi32>
    %97 = arith.sitofp %96 : vector<8x8xi32> to vector<8x8xf32>
    %98 = vector.shape_cast %5 : vector<1x8xf32> to vector<1x8xf32>
    %99 = vector.broadcast %98 : vector<1x8xf32> to vector<8x8xf32>
    %100 = arith.addf %99, %97 : vector<8x8xf32>
    %cst_31 = arith.constant 0.000000e+00 : f32
    %101 = vector.broadcast %cst_31 : f32 to vector<8x8xf32>
    %102 = arith.cmpf ogt, %100, %101 : vector<8x8xf32>
    %c0_32 = arith.constant 0 : index
    %c0_33 = arith.constant 0 : index
    %c0_34 = arith.constant 0 : index
    %103 = vector.load %arg5[%c0_32, %c0_33, %c0_34] : memref<4x32x32xbf16, #tpu.memory_space<vmem>>, vector<1x32x32xbf16>
    %104 = vector.shape_cast %103 : vector<1x32x32xbf16> to vector<32x32xbf16>
    %105 = arith.truncf %89 : vector<8x32xf32> to vector<8x32xbf16>
    %cst_35 = arith.constant dense<0.000000e+00> : vector<8x32xf32>
    %106 = tpu.matmul %105, %104, %cst_35 {dimension_numbers = #tpu.dot_dimension_numbers<[1], [0], [0], [1], [0, 0, 1, 1], [], []>} : vector<8x32xbf16>, vector<32x32xbf16>, vector<8x32xf32> -> vector<8x32xf32>
    %c0_36 = arith.constant 0 : index
    %c0_37 = arith.constant 0 : index
    %c0_38 = arith.constant 0 : index
    %107 = vector.load %arg6[%c0_36, %c0_37, %c0_38] : memref<4x1x32xf32, #tpu.memory_space<vmem>>, vector<1x1x32xf32>
    %108 = vector.shape_cast %107 : vector<1x1x32xf32> to vector<1x32xf32>
    %109 = vector.broadcast %108 : vector<1x32xf32> to vector<8x32xf32>
    %110 = arith.addf %106, %109 : vector<8x32xf32>
    %cst_39 = arith.constant 5.000000e-01 : f32
    %111 = vector.broadcast %cst_39 : f32 to vector<8x32xf32>
    %112 = arith.mulf %110, %111 : vector<8x32xf32>
    %c1 = arith.constant 1 : index
    %c0_40 = arith.constant 0 : index
    %c0_41 = arith.constant 0 : index
    %113 = vector.load %arg5[%c1, %c0_40, %c0_41] : memref<4x32x32xbf16, #tpu.memory_space<vmem>>, vector<1x32x32xbf16>
    %114 = vector.shape_cast %113 : vector<1x32x32xbf16> to vector<32x32xbf16>
    %115 = arith.truncf %89 : vector<8x32xf32> to vector<8x32xbf16>
    %cst_42 = arith.constant dense<0.000000e+00> : vector<8x32xf32>
    %116 = tpu.matmul %115, %114, %cst_42 {dimension_numbers = #tpu.dot_dimension_numbers<[1], [0], [0], [1], [0, 0, 1, 1], [], []>} : vector<8x32xbf16>, vector<32x32xbf16>, vector<8x32xf32> -> vector<8x32xf32>
    %c1_43 = arith.constant 1 : index
    %c0_44 = arith.constant 0 : index
    %c0_45 = arith.constant 0 : index
    %117 = vector.load %arg6[%c1_43, %c0_44, %c0_45] : memref<4x1x32xf32, #tpu.memory_space<vmem>>, vector<1x1x32xf32>
    %118 = vector.shape_cast %117 : vector<1x1x32xf32> to vector<1x32xf32>
    %119 = vector.broadcast %118 : vector<1x32xf32> to vector<8x32xf32>
    %120 = arith.addf %116, %119 : vector<8x32xf32>
    %c2 = arith.constant 2 : index
    %c0_46 = arith.constant 0 : index
    %c0_47 = arith.constant 0 : index
    %121 = vector.load %arg5[%c2, %c0_46, %c0_47] : memref<4x32x32xbf16, #tpu.memory_space<vmem>>, vector<1x32x32xbf16>
    %122 = vector.shape_cast %121 : vector<1x32x32xbf16> to vector<32x32xbf16>
    %123 = arith.truncf %89 : vector<8x32xf32> to vector<8x32xbf16>
    %cst_48 = arith.constant dense<0.000000e+00> : vector<8x32xf32>
    %124 = tpu.matmul %123, %122, %cst_48 {dimension_numbers = #tpu.dot_dimension_numbers<[1], [0], [0], [1], [0, 0, 1, 1], [], []>} : vector<8x32xbf16>, vector<32x32xbf16>, vector<8x32xf32> -> vector<8x32xf32>
    %c2_49 = arith.constant 2 : index
    %c0_50 = arith.constant 0 : index
    %c0_51 = arith.constant 0 : index
    %125 = vector.load %arg6[%c2_49, %c0_50, %c0_51] : memref<4x1x32xf32, #tpu.memory_space<vmem>>, vector<1x1x32xf32>
    %126 = vector.shape_cast %125 : vector<1x1x32xf32> to vector<1x32xf32>
    %127 = vector.broadcast %126 : vector<1x32xf32> to vector<8x32xf32>
    %128 = arith.addf %124, %127 : vector<8x32xf32>
    %cst_52 = arith.constant 0.000000e+00 : f32
    %129 = vector.broadcast %cst_52 : f32 to vector<8x32xf32>
    %130 = arith.truncf %112 : vector<8x32xf32> to vector<8x32xbf16>
    %131 = vector.broadcast %15 : vector<1x32xf32> to vector<8x32xf32>
    %132 = arith.mulf %120, %131 : vector<8x32xf32>
    %133 = arith.truncf %132 : vector<8x32xf32> to vector<8x32xbf16>
    %cst_53 = arith.constant dense<0.000000e+00> : vector<8x8xf32>
    %134 = tpu.matmul %130, %133, %cst_53 {dimension_numbers = #tpu.dot_dimension_numbers<[1], [1], [0], [0], [0, 0, 1, 0], [], []>} : vector<8x32xbf16>, vector<8x32xbf16>, vector<8x8xf32> -> vector<8x8xf32>
    %cst_54 = arith.constant -9.99999984E+17 : f32
    %135 = vector.broadcast %cst_54 : f32 to vector<8x8xf32>
    %136 = arith.select %102, %135, %134 : vector<8x8xi1>, vector<8x8xf32>
    %cst_55 = arith.constant dense<0xFF800000> : vector<8xf32>
    %137 = vector.multi_reduction <maximumf>, %136, %cst_55 [1] : vector<8x8xf32> to vector<8xf32>
    %138 = vector.shape_cast %137 : vector<8xf32> to vector<8x1xf32>
    %139 = vector.broadcast %138 : vector<8x1xf32> to vector<8x8xf32>
    %140 = arith.subf %136, %139 : vector<8x8xf32>
    %141 = math.exp %140 : vector<8x8xf32>
    %cst_56 = arith.constant dense<0.000000e+00> : vector<8xf32>
    %142 = vector.multi_reduction <add>, %141, %cst_56 [1] : vector<8x8xf32> to vector<8xf32>
    %143 = vector.shape_cast %142 : vector<8xf32> to vector<8x1xf32>
    %144 = tpu.reciprocal %143 {approx = true} : vector<8x1xf32> -> vector<8x1xf32>
    %145 = vector.broadcast %144 : vector<8x1xf32> to vector<8x8xf32>
    %146 = arith.mulf %141, %145 : vector<8x8xf32>
    %147 = arith.truncf %146 : vector<8x8xf32> to vector<8x8xbf16>
    %148 = vector.broadcast %15 : vector<1x32xf32> to vector<8x32xf32>
    %149 = arith.mulf %128, %148 : vector<8x32xf32>
    %150 = arith.truncf %149 : vector<8x32xf32> to vector<8x32xbf16>
    %cst_57 = arith.constant dense<0.000000e+00> : vector<8x32xf32>
    %151 = tpu.matmul %147, %150, %cst_57 {dimension_numbers = #tpu.dot_dimension_numbers<[1], [0], [0], [1], [0, 0, 1, 1], [], []>} : vector<8x8xbf16>, vector<8x32xbf16>, vector<8x32xf32> -> vector<8x32xf32>
    %152 = arith.addf %129, %151 : vector<8x32xf32>
    %153 = arith.truncf %112 : vector<8x32xf32> to vector<8x32xbf16>
    %154 = vector.broadcast %22 : vector<1x32xf32> to vector<8x32xf32>
    %155 = arith.mulf %120, %154 : vector<8x32xf32>
    %156 = arith.truncf %155 : vector<8x32xf32> to vector<8x32xbf16>
    %cst_58 = arith.constant dense<0.000000e+00> : vector<8x8xf32>
    %157 = tpu.matmul %153, %156, %cst_58 {dimension_numbers = #tpu.dot_dimension_numbers<[1], [1], [0], [0], [0, 0, 1, 0], [], []>} : vector<8x32xbf16>, vector<8x32xbf16>, vector<8x8xf32> -> vector<8x8xf32>
    %cst_59 = arith.constant -9.99999984E+17 : f32
    %158 = vector.broadcast %cst_59 : f32 to vector<8x8xf32>
    %159 = arith.select %102, %158, %157 : vector<8x8xi1>, vector<8x8xf32>
    %cst_60 = arith.constant dense<0xFF800000> : vector<8xf32>
    %160 = vector.multi_reduction <maximumf>, %159, %cst_60 [1] : vector<8x8xf32> to vector<8xf32>
    %161 = vector.shape_cast %160 : vector<8xf32> to vector<8x1xf32>
    %162 = vector.broadcast %161 : vector<8x1xf32> to vector<8x8xf32>
    %163 = arith.subf %159, %162 : vector<8x8xf32>
    %164 = math.exp %163 : vector<8x8xf32>
    %cst_61 = arith.constant dense<0.000000e+00> : vector<8xf32>
    %165 = vector.multi_reduction <add>, %164, %cst_61 [1] : vector<8x8xf32> to vector<8xf32>
    %166 = vector.shape_cast %165 : vector<8xf32> to vector<8x1xf32>
    %167 = tpu.reciprocal %166 {approx = true} : vector<8x1xf32> -> vector<8x1xf32>
    %168 = vector.broadcast %167 : vector<8x1xf32> to vector<8x8xf32>
    %169 = arith.mulf %164, %168 : vector<8x8xf32>
    %170 = arith.truncf %169 : vector<8x8xf32> to vector<8x8xbf16>
    %171 = vector.broadcast %22 : vector<1x32xf32> to vector<8x32xf32>
    %172 = arith.mulf %128, %171 : vector<8x32xf32>
    %173 = arith.truncf %172 : vector<8x32xf32> to vector<8x32xbf16>
    %cst_62 = arith.constant dense<0.000000e+00> : vector<8x32xf32>
    %174 = tpu.matmul %170, %173, %cst_62 {dimension_numbers = #tpu.dot_dimension_numbers<[1], [0], [0], [1], [0, 0, 1, 1], [], []>} : vector<8x8xbf16>, vector<8x32xbf16>, vector<8x32xf32> -> vector<8x32xf32>
    %175 = arith.addf %152, %174 : vector<8x32xf32>
    %176 = arith.truncf %112 : vector<8x32xf32> to vector<8x32xbf16>
    %177 = vector.broadcast %29 : vector<1x32xf32> to vector<8x32xf32>
    %178 = arith.mulf %120, %177 : vector<8x32xf32>
    %179 = arith.truncf %178 : vector<8x32xf32> to vector<8x32xbf16>
    %cst_63 = arith.constant dense<0.000000e+00> : vector<8x8xf32>
    %180 = tpu.matmul %176, %179, %cst_63 {dimension_numbers = #tpu.dot_dimension_numbers<[1], [1], [0], [0], [0, 0, 1, 0], [], []>} : vector<8x32xbf16>, vector<8x32xbf16>, vector<8x8xf32> -> vector<8x8xf32>
    %cst_64 = arith.constant -9.99999984E+17 : f32
    %181 = vector.broadcast %cst_64 : f32 to vector<8x8xf32>
    %182 = arith.select %102, %181, %180 : vector<8x8xi1>, vector<8x8xf32>
    %cst_65 = arith.constant dense<0xFF800000> : vector<8xf32>
    %183 = vector.multi_reduction <maximumf>, %182, %cst_65 [1] : vector<8x8xf32> to vector<8xf32>
    %184 = vector.shape_cast %183 : vector<8xf32> to vector<8x1xf32>
    %185 = vector.broadcast %184 : vector<8x1xf32> to vector<8x8xf32>
    %186 = arith.subf %182, %185 : vector<8x8xf32>
    %187 = math.exp %186 : vector<8x8xf32>
    %cst_66 = arith.constant dense<0.000000e+00> : vector<8xf32>
    %188 = vector.multi_reduction <add>, %187, %cst_66 [1] : vector<8x8xf32> to vector<8xf32>
    %189 = vector.shape_cast %188 : vector<8xf32> to vector<8x1xf32>
    %190 = tpu.reciprocal %189 {approx = true} : vector<8x1xf32> -> vector<8x1xf32>
    %191 = vector.broadcast %190 : vector<8x1xf32> to vector<8x8xf32>
    %192 = arith.mulf %187, %191 : vector<8x8xf32>
    %193 = arith.truncf %192 : vector<8x8xf32> to vector<8x8xbf16>
    %194 = vector.broadcast %29 : vector<1x32xf32> to vector<8x32xf32>
    %195 = arith.mulf %128, %194 : vector<8x32xf32>
    %196 = arith.truncf %195 : vector<8x32xf32> to vector<8x32xbf16>
    %cst_67 = arith.constant dense<0.000000e+00> : vector<8x32xf32>
    %197 = tpu.matmul %193, %196, %cst_67 {dimension_numbers = #tpu.dot_dimension_numbers<[1], [0], [0], [1], [0, 0, 1, 1], [], []>} : vector<8x8xbf16>, vector<8x32xbf16>, vector<8x32xf32> -> vector<8x32xf32>
    %198 = arith.addf %175, %197 : vector<8x32xf32>
    %199 = arith.truncf %112 : vector<8x32xf32> to vector<8x32xbf16>
    %200 = vector.broadcast %36 : vector<1x32xf32> to vector<8x32xf32>
    %201 = arith.mulf %120, %200 : vector<8x32xf32>
    %202 = arith.truncf %201 : vector<8x32xf32> to vector<8x32xbf16>
    %cst_68 = arith.constant dense<0.000000e+00> : vector<8x8xf32>
    %203 = tpu.matmul %199, %202, %cst_68 {dimension_numbers = #tpu.dot_dimension_numbers<[1], [1], [0], [0], [0, 0, 1, 0], [], []>} : vector<8x32xbf16>, vector<8x32xbf16>, vector<8x8xf32> -> vector<8x8xf32>
    %cst_69 = arith.constant -9.99999984E+17 : f32
    %204 = vector.broadcast %cst_69 : f32 to vector<8x8xf32>
    %205 = arith.select %102, %204, %203 : vector<8x8xi1>, vector<8x8xf32>
    %cst_70 = arith.constant dense<0xFF800000> : vector<8xf32>
    %206 = vector.multi_reduction <maximumf>, %205, %cst_70 [1] : vector<8x8xf32> to vector<8xf32>
    %207 = vector.shape_cast %206 : vector<8xf32> to vector<8x1xf32>
    %208 = vector.broadcast %207 : vector<8x1xf32> to vector<8x8xf32>
    %209 = arith.subf %205, %208 : vector<8x8xf32>
    %210 = math.exp %209 : vector<8x8xf32>
    %cst_71 = arith.constant dense<0.000000e+00> : vector<8xf32>
    %211 = vector.multi_reduction <add>, %210, %cst_71 [1] : vector<8x8xf32> to vector<8xf32>
    %212 = vector.shape_cast %211 : vector<8xf32> to vector<8x1xf32>
    %213 = tpu.reciprocal %212 {approx = true} : vector<8x1xf32> -> vector<8x1xf32>
    %214 = vector.broadcast %213 : vector<8x1xf32> to vector<8x8xf32>
    %215 = arith.mulf %210, %214 : vector<8x8xf32>
    %216 = arith.truncf %215 : vector<8x8xf32> to vector<8x8xbf16>
    %217 = vector.broadcast %36 : vector<1x32xf32> to vector<8x32xf32>
    %218 = arith.mulf %128, %217 : vector<8x32xf32>
    %219 = arith.truncf %218 : vector<8x32xf32> to vector<8x32xbf16>
    %cst_72 = arith.constant dense<0.000000e+00> : vector<8x32xf32>
    %220 = tpu.matmul %216, %219, %cst_72 {dimension_numbers = #tpu.dot_dimension_numbers<[1], [0], [0], [1], [0, 0, 1, 1], [], []>} : vector<8x8xbf16>, vector<8x32xbf16>, vector<8x32xf32> -> vector<8x32xf32>
    %221 = arith.addf %198, %220 : vector<8x32xf32>
    %222 = arith.truncf %112 : vector<8x32xf32> to vector<8x32xbf16>
    %223 = vector.broadcast %43 : vector<1x32xf32> to vector<8x32xf32>
    %224 = arith.mulf %120, %223 : vector<8x32xf32>
    %225 = arith.truncf %224 : vector<8x32xf32> to vector<8x32xbf16>
    %cst_73 = arith.constant dense<0.000000e+00> : vector<8x8xf32>
    %226 = tpu.matmul %222, %225, %cst_73 {dimension_numbers = #tpu.dot_dimension_numbers<[1], [1], [0], [0], [0, 0, 1, 0], [], []>} : vector<8x32xbf16>, vector<8x32xbf16>, vector<8x8xf32> -> vector<8x8xf32>
    %cst_74 = arith.constant -9.99999984E+17 : f32
    %227 = vector.broadcast %cst_74 : f32 to vector<8x8xf32>
    %228 = arith.select %102, %227, %226 : vector<8x8xi1>, vector<8x8xf32>
    %cst_75 = arith.constant dense<0xFF800000> : vector<8xf32>
    %229 = vector.multi_reduction <maximumf>, %228, %cst_75 [1] : vector<8x8xf32> to vector<8xf32>
    %230 = vector.shape_cast %229 : vector<8xf32> to vector<8x1xf32>
    %231 = vector.broadcast %230 : vector<8x1xf32> to vector<8x8xf32>
    %232 = arith.subf %228, %231 : vector<8x8xf32>
    %233 = math.exp %232 : vector<8x8xf32>
    %cst_76 = arith.constant dense<0.000000e+00> : vector<8xf32>
    %234 = vector.multi_reduction <add>, %233, %cst_76 [1] : vector<8x8xf32> to vector<8xf32>
    %235 = vector.shape_cast %234 : vector<8xf32> to vector<8x1xf32>
    %236 = tpu.reciprocal %235 {approx = true} : vector<8x1xf32> -> vector<8x1xf32>
    %237 = vector.broadcast %236 : vector<8x1xf32> to vector<8x8xf32>
    %238 = arith.mulf %233, %237 : vector<8x8xf32>
    %239 = arith.truncf %238 : vector<8x8xf32> to vector<8x8xbf16>
    %240 = vector.broadcast %43 : vector<1x32xf32> to vector<8x32xf32>
    %241 = arith.mulf %128, %240 : vector<8x32xf32>
    %242 = arith.truncf %241 : vector<8x32xf32> to vector<8x32xbf16>
    %cst_77 = arith.constant dense<0.000000e+00> : vector<8x32xf32>
    %243 = tpu.matmul %239, %242, %cst_77 {dimension_numbers = #tpu.dot_dimension_numbers<[1], [0], [0], [1], [0, 0, 1, 1], [], []>} : vector<8x8xbf16>, vector<8x32xbf16>, vector<8x32xf32> -> vector<8x32xf32>
    %244 = arith.addf %221, %243 : vector<8x32xf32>
    %245 = arith.truncf %112 : vector<8x32xf32> to vector<8x32xbf16>
    %246 = vector.broadcast %50 : vector<1x32xf32> to vector<8x32xf32>
    %247 = arith.mulf %120, %246 : vector<8x32xf32>
    %248 = arith.truncf %247 : vector<8x32xf32> to vector<8x32xbf16>
    %cst_78 = arith.constant dense<0.000000e+00> : vector<8x8xf32>
    %249 = tpu.matmul %245, %248, %cst_78 {dimension_numbers = #tpu.dot_dimension_numbers<[1], [1], [0], [0], [0, 0, 1, 0], [], []>} : vector<8x32xbf16>, vector<8x32xbf16>, vector<8x8xf32> -> vector<8x8xf32>
    %cst_79 = arith.constant -9.99999984E+17 : f32
    %250 = vector.broadcast %cst_79 : f32 to vector<8x8xf32>
    %251 = arith.select %102, %250, %249 : vector<8x8xi1>, vector<8x8xf32>
    %cst_80 = arith.constant dense<0xFF800000> : vector<8xf32>
    %252 = vector.multi_reduction <maximumf>, %251, %cst_80 [1] : vector<8x8xf32> to vector<8xf32>
    %253 = vector.shape_cast %252 : vector<8xf32> to vector<8x1xf32>
    %254 = vector.broadcast %253 : vector<8x1xf32> to vector<8x8xf32>
    %255 = arith.subf %251, %254 : vector<8x8xf32>
    %256 = math.exp %255 : vector<8x8xf32>
    %cst_81 = arith.constant dense<0.000000e+00> : vector<8xf32>
    %257 = vector.multi_reduction <add>, %256, %cst_81 [1] : vector<8x8xf32> to vector<8xf32>
    %258 = vector.shape_cast %257 : vector<8xf32> to vector<8x1xf32>
    %259 = tpu.reciprocal %258 {approx = true} : vector<8x1xf32> -> vector<8x1xf32>
    %260 = vector.broadcast %259 : vector<8x1xf32> to vector<8x8xf32>
    %261 = arith.mulf %256, %260 : vector<8x8xf32>
    %262 = arith.truncf %261 : vector<8x8xf32> to vector<8x8xbf16>
    %263 = vector.broadcast %50 : vector<1x32xf32> to vector<8x32xf32>
    %264 = arith.mulf %128, %263 : vector<8x32xf32>
    %265 = arith.truncf %264 : vector<8x32xf32> to vector<8x32xbf16>
    %cst_82 = arith.constant dense<0.000000e+00> : vector<8x32xf32>
    %266 = tpu.matmul %262, %265, %cst_82 {dimension_numbers = #tpu.dot_dimension_numbers<[1], [0], [0], [1], [0, 0, 1, 1], [], []>} : vector<8x8xbf16>, vector<8x32xbf16>, vector<8x32xf32> -> vector<8x32xf32>
    %267 = arith.addf %244, %266 : vector<8x32xf32>
    %268 = arith.truncf %112 : vector<8x32xf32> to vector<8x32xbf16>
    %269 = vector.broadcast %57 : vector<1x32xf32> to vector<8x32xf32>
    %270 = arith.mulf %120, %269 : vector<8x32xf32>
    %271 = arith.truncf %270 : vector<8x32xf32> to vector<8x32xbf16>
    %cst_83 = arith.constant dense<0.000000e+00> : vector<8x8xf32>
    %272 = tpu.matmul %268, %271, %cst_83 {dimension_numbers = #tpu.dot_dimension_numbers<[1], [1], [0], [0], [0, 0, 1, 0], [], []>} : vector<8x32xbf16>, vector<8x32xbf16>, vector<8x8xf32> -> vector<8x8xf32>
    %cst_84 = arith.constant -9.99999984E+17 : f32
    %273 = vector.broadcast %cst_84 : f32 to vector<8x8xf32>
    %274 = arith.select %102, %273, %272 : vector<8x8xi1>, vector<8x8xf32>
    %cst_85 = arith.constant dense<0xFF800000> : vector<8xf32>
    %275 = vector.multi_reduction <maximumf>, %274, %cst_85 [1] : vector<8x8xf32> to vector<8xf32>
    %276 = vector.shape_cast %275 : vector<8xf32> to vector<8x1xf32>
    %277 = vector.broadcast %276 : vector<8x1xf32> to vector<8x8xf32>
    %278 = arith.subf %274, %277 : vector<8x8xf32>
    %279 = math.exp %278 : vector<8x8xf32>
    %cst_86 = arith.constant dense<0.000000e+00> : vector<8xf32>
    %280 = vector.multi_reduction <add>, %279, %cst_86 [1] : vector<8x8xf32> to vector<8xf32>
    %281 = vector.shape_cast %280 : vector<8xf32> to vector<8x1xf32>
    %282 = tpu.reciprocal %281 {approx = true} : vector<8x1xf32> -> vector<8x1xf32>
    %283 = vector.broadcast %282 : vector<8x1xf32> to vector<8x8xf32>
    %284 = arith.mulf %279, %283 : vector<8x8xf32>
    %285 = arith.truncf %284 : vector<8x8xf32> to vector<8x8xbf16>
    %286 = vector.broadcast %57 : vector<1x32xf32> to vector<8x32xf32>
    %287 = arith.mulf %128, %286 : vector<8x32xf32>
    %288 = arith.truncf %287 : vector<8x32xf32> to vector<8x32xbf16>
    %cst_87 = arith.constant dense<0.000000e+00> : vector<8x32xf32>
    %289 = tpu.matmul %285, %288, %cst_87 {dimension_numbers = #tpu.dot_dimension_numbers<[1], [0], [0], [1], [0, 0, 1, 1], [], []>} : vector<8x8xbf16>, vector<8x32xbf16>, vector<8x32xf32> -> vector<8x32xf32>
    %290 = arith.addf %267, %289 : vector<8x32xf32>
    %291 = arith.truncf %112 : vector<8x32xf32> to vector<8x32xbf16>
    %292 = vector.broadcast %64 : vector<1x32xf32> to vector<8x32xf32>
    %293 = arith.mulf %120, %292 : vector<8x32xf32>
    %294 = arith.truncf %293 : vector<8x32xf32> to vector<8x32xbf16>
    %cst_88 = arith.constant dense<0.000000e+00> : vector<8x8xf32>
    %295 = tpu.matmul %291, %294, %cst_88 {dimension_numbers = #tpu.dot_dimension_numbers<[1], [1], [0], [0], [0, 0, 1, 0], [], []>} : vector<8x32xbf16>, vector<8x32xbf16>, vector<8x8xf32> -> vector<8x8xf32>
    %cst_89 = arith.constant -9.99999984E+17 : f32
    %296 = vector.broadcast %cst_89 : f32 to vector<8x8xf32>
    %297 = arith.select %102, %296, %295 : vector<8x8xi1>, vector<8x8xf32>
    %cst_90 = arith.constant dense<0xFF800000> : vector<8xf32>
    %298 = vector.multi_reduction <maximumf>, %297, %cst_90 [1] : vector<8x8xf32> to vector<8xf32>
    %299 = vector.shape_cast %298 : vector<8xf32> to vector<8x1xf32>
    %300 = vector.broadcast %299 : vector<8x1xf32> to vector<8x8xf32>
    %301 = arith.subf %297, %300 : vector<8x8xf32>
    %302 = math.exp %301 : vector<8x8xf32>
    %cst_91 = arith.constant dense<0.000000e+00> : vector<8xf32>
    %303 = vector.multi_reduction <add>, %302, %cst_91 [1] : vector<8x8xf32> to vector<8xf32>
    %304 = vector.shape_cast %303 : vector<8xf32> to vector<8x1xf32>
    %305 = tpu.reciprocal %304 {approx = true} : vector<8x1xf32> -> vector<8x1xf32>
    %306 = vector.broadcast %305 : vector<8x1xf32> to vector<8x8xf32>
    %307 = arith.mulf %302, %306 : vector<8x8xf32>
    %308 = arith.truncf %307 : vector<8x8xf32> to vector<8x8xbf16>
    %309 = vector.broadcast %64 : vector<1x32xf32> to vector<8x32xf32>
    %310 = arith.mulf %128, %309 : vector<8x32xf32>
    %311 = arith.truncf %310 : vector<8x32xf32> to vector<8x32xbf16>
    %cst_92 = arith.constant dense<0.000000e+00> : vector<8x32xf32>
    %312 = tpu.matmul %308, %311, %cst_92 {dimension_numbers = #tpu.dot_dimension_numbers<[1], [0], [0], [1], [0, 0, 1, 1], [], []>} : vector<8x8xbf16>, vector<8x32xbf16>, vector<8x32xf32> -> vector<8x32xf32>
    %313 = arith.addf %290, %312 : vector<8x32xf32>
    %c3 = arith.constant 3 : index
    %c0_93 = arith.constant 0 : index
    %c0_94 = arith.constant 0 : index
    %314 = vector.load %arg5[%c3, %c0_93, %c0_94] : memref<4x32x32xbf16, #tpu.memory_space<vmem>>, vector<1x32x32xbf16>
    %315 = vector.shape_cast %314 : vector<1x32x32xbf16> to vector<32x32xbf16>
    %316 = arith.truncf %313 : vector<8x32xf32> to vector<8x32xbf16>
    %cst_95 = arith.constant dense<0.000000e+00> : vector<8x32xf32>
    %317 = tpu.matmul %316, %315, %cst_95 {dimension_numbers = #tpu.dot_dimension_numbers<[1], [0], [0], [1], [0, 0, 1, 1], [], []>} : vector<8x32xbf16>, vector<32x32xbf16>, vector<8x32xf32> -> vector<8x32xf32>
    %c3_96 = arith.constant 3 : index
    %c0_97 = arith.constant 0 : index
    %c0_98 = arith.constant 0 : index
    %318 = vector.load %arg6[%c3_96, %c0_97, %c0_98] : memref<4x1x32xf32, #tpu.memory_space<vmem>>, vector<1x1x32xf32>
    %319 = vector.shape_cast %318 : vector<1x1x32xf32> to vector<1x32xf32>
    %320 = vector.broadcast %319 : vector<1x32xf32> to vector<8x32xf32>
    %321 = arith.addf %317, %320 : vector<8x32xf32>
    %322 = arith.addf %321, %1 : vector<8x32xf32>
    %c1_99 = arith.constant 1 : index
    %c0_100 = arith.constant 0 : index
    %c0_101 = arith.constant 0 : index
    %323 = vector.load %arg9[%c1_99, %c0_100, %c0_101] : memref<3x1x32xf32, #tpu.memory_space<vmem>>, vector<1x1x32xf32>
    %324 = vector.shape_cast %323 : vector<1x1x32xf32> to vector<1x32xf32>
    %c1_102 = arith.constant 1 : index
    %c0_103 = arith.constant 0 : index
    %c0_104 = arith.constant 0 : index
    %325 = vector.load %arg10[%c1_102, %c0_103, %c0_104] : memref<3x1x32xf32, #tpu.memory_space<vmem>>, vector<1x1x32xf32>
    %326 = vector.shape_cast %325 : vector<1x1x32xf32> to vector<1x32xf32>
    %cst_105 = arith.constant dense<0.000000e+00> : vector<8xf32>
    %327 = vector.multi_reduction <add>, %322, %cst_105 [1] : vector<8x32xf32> to vector<8xf32>
    %328 = vector.shape_cast %327 : vector<8xf32> to vector<8x1xf32>
    %cst_106 = arith.constant 3.200000e+01 : f32
    %329 = vector.broadcast %cst_106 : f32 to vector<8x1xf32>
    %330 = arith.divf %328, %329 : vector<8x1xf32>
    %331 = vector.broadcast %330 : vector<8x1xf32> to vector<8x32xf32>
    %332 = arith.subf %322, %331 : vector<8x32xf32>
    %333 = arith.mulf %332, %332 : vector<8x32xf32>
    %cst_107 = arith.constant dense<0.000000e+00> : vector<8xf32>
    %334 = vector.multi_reduction <add>, %333, %cst_107 [1] : vector<8x32xf32> to vector<8xf32>
    %335 = vector.shape_cast %334 : vector<8xf32> to vector<8x1xf32>
    %cst_108 = arith.constant 0.0322580636 : f32
    %336 = vector.broadcast %cst_108 : f32 to vector<8x1xf32>
    %337 = arith.mulf %335, %336 : vector<8x1xf32>
    %338 = math.sqrt %337 : vector<8x1xf32>
    %cst_109 = arith.constant 9.99999997E-7 : f32
    %339 = vector.broadcast %cst_109 : f32 to vector<8x1xf32>
    %340 = arith.addf %338, %339 : vector<8x1xf32>
    %341 = tpu.reciprocal %340 {approx = true} : vector<8x1xf32> -> vector<8x1xf32>
    %342 = vector.broadcast %341 : vector<8x1xf32> to vector<8x32xf32>
    %343 = arith.mulf %332, %342 : vector<8x32xf32>
    %344 = vector.broadcast %324 : vector<1x32xf32> to vector<8x32xf32>
    %345 = arith.mulf %344, %343 : vector<8x32xf32>
    %346 = vector.broadcast %326 : vector<1x32xf32> to vector<8x32xf32>
    %347 = arith.addf %345, %346 : vector<8x32xf32>
    %348 = vector.shape_cast %7 : vector<1x8xf32> to vector<1x8xf32>
    %349 = vector.broadcast %348 : vector<1x8xf32> to vector<8x8xf32>
    %cst_110 = arith.constant 0.000000e+00 : f32
    %350 = vector.broadcast %cst_110 : f32 to vector<8x8xf32>
    %351 = arith.cmpf ogt, %349, %350 : vector<8x8xf32>
    %c0_111 = arith.constant 0 : index
    %c0_112 = arith.constant 0 : index
    %c0_113 = arith.constant 0 : index
    %352 = vector.load %arg7[%c0_111, %c0_112, %c0_113] : memref<4x32x32xbf16, #tpu.memory_space<vmem>>, vector<1x32x32xbf16>
    %353 = vector.shape_cast %352 : vector<1x32x32xbf16> to vector<32x32xbf16>
    %354 = arith.truncf %347 : vector<8x32xf32> to vector<8x32xbf16>
    %cst_114 = arith.constant dense<0.000000e+00> : vector<8x32xf32>
    %355 = tpu.matmul %354, %353, %cst_114 {dimension_numbers = #tpu.dot_dimension_numbers<[1], [0], [0], [1], [0, 0, 1, 1], [], []>} : vector<8x32xbf16>, vector<32x32xbf16>, vector<8x32xf32> -> vector<8x32xf32>
    %c0_115 = arith.constant 0 : index
    %c0_116 = arith.constant 0 : index
    %c0_117 = arith.constant 0 : index
    %356 = vector.load %arg8[%c0_115, %c0_116, %c0_117] : memref<4x1x32xf32, #tpu.memory_space<vmem>>, vector<1x1x32xf32>
    %357 = vector.shape_cast %356 : vector<1x1x32xf32> to vector<1x32xf32>
    %358 = vector.broadcast %357 : vector<1x32xf32> to vector<8x32xf32>
    %359 = arith.addf %355, %358 : vector<8x32xf32>
    %cst_118 = arith.constant 5.000000e-01 : f32
    %360 = vector.broadcast %cst_118 : f32 to vector<8x32xf32>
    %361 = arith.mulf %359, %360 : vector<8x32xf32>
    %c1_119 = arith.constant 1 : index
    %c0_120 = arith.constant 0 : index
    %c0_121 = arith.constant 0 : index
    %362 = vector.load %arg7[%c1_119, %c0_120, %c0_121] : memref<4x32x32xbf16, #tpu.memory_space<vmem>>, vector<1x32x32xbf16>
    %363 = vector.shape_cast %362 : vector<1x32x32xbf16> to vector<32x32xbf16>
    %364 = arith.truncf %3 : vector<8x32xf32> to vector<8x32xbf16>
    %cst_122 = arith.constant dense<0.000000e+00> : vector<8x32xf32>
    %365 = tpu.matmul %364, %363, %cst_122 {dimension_numbers = #tpu.dot_dimension_numbers<[1], [0], [0], [1], [0, 0, 1, 1], [], []>} : vector<8x32xbf16>, vector<32x32xbf16>, vector<8x32xf32> -> vector<8x32xf32>
    %c1_123 = arith.constant 1 : index
    %c0_124 = arith.constant 0 : index
    %c0_125 = arith.constant 0 : index
    %366 = vector.load %arg8[%c1_123, %c0_124, %c0_125] : memref<4x1x32xf32, #tpu.memory_space<vmem>>, vector<1x1x32xf32>
    %367 = vector.shape_cast %366 : vector<1x1x32xf32> to vector<1x32xf32>
    %368 = vector.broadcast %367 : vector<1x32xf32> to vector<8x32xf32>
    %369 = arith.addf %365, %368 : vector<8x32xf32>
    %c2_126 = arith.constant 2 : index
    %c0_127 = arith.constant 0 : index
    %c0_128 = arith.constant 0 : index
    %370 = vector.load %arg7[%c2_126, %c0_127, %c0_128] : memref<4x32x32xbf16, #tpu.memory_space<vmem>>, vector<1x32x32xbf16>
    %371 = vector.shape_cast %370 : vector<1x32x32xbf16> to vector<32x32xbf16>
    %372 = arith.truncf %3 : vector<8x32xf32> to vector<8x32xbf16>
    %cst_129 = arith.constant dense<0.000000e+00> : vector<8x32xf32>
    %373 = tpu.matmul %372, %371, %cst_129 {dimension_numbers = #tpu.dot_dimension_numbers<[1], [0], [0], [1], [0, 0, 1, 1], [], []>} : vector<8x32xbf16>, vector<32x32xbf16>, vector<8x32xf32> -> vector<8x32xf32>
    %c2_130 = arith.constant 2 : index
    %c0_131 = arith.constant 0 : index
    %c0_132 = arith.constant 0 : index
    %374 = vector.load %arg8[%c2_130, %c0_131, %c0_132] : memref<4x1x32xf32, #tpu.memory_space<vmem>>, vector<1x1x32xf32>
    %375 = vector.shape_cast %374 : vector<1x1x32xf32> to vector<1x32xf32>
    %376 = vector.broadcast %375 : vector<1x32xf32> to vector<8x32xf32>
    %377 = arith.addf %373, %376 : vector<8x32xf32>
    %cst_133 = arith.constant 0.000000e+00 : f32
    %378 = vector.broadcast %cst_133 : f32 to vector<8x32xf32>
    %379 = arith.truncf %361 : vector<8x32xf32> to vector<8x32xbf16>
    %380 = vector.broadcast %15 : vector<1x32xf32> to vector<8x32xf32>
    %381 = arith.mulf %369, %380 : vector<8x32xf32>
    %382 = arith.truncf %381 : vector<8x32xf32> to vector<8x32xbf16>
    %cst_134 = arith.constant dense<0.000000e+00> : vector<8x8xf32>
    %383 = tpu.matmul %379, %382, %cst_134 {dimension_numbers = #tpu.dot_dimension_numbers<[1], [1], [0], [0], [0, 0, 1, 0], [], []>} : vector<8x32xbf16>, vector<8x32xbf16>, vector<8x8xf32> -> vector<8x8xf32>
    %cst_135 = arith.constant -9.99999984E+17 : f32
    %384 = vector.broadcast %cst_135 : f32 to vector<8x8xf32>
    %385 = arith.select %351, %384, %383 : vector<8x8xi1>, vector<8x8xf32>
    %cst_136 = arith.constant dense<0xFF800000> : vector<8xf32>
    %386 = vector.multi_reduction <maximumf>, %385, %cst_136 [1] : vector<8x8xf32> to vector<8xf32>
    %387 = vector.shape_cast %386 : vector<8xf32> to vector<8x1xf32>
    %388 = vector.broadcast %387 : vector<8x1xf32> to vector<8x8xf32>
    %389 = arith.subf %385, %388 : vector<8x8xf32>
    %390 = math.exp %389 : vector<8x8xf32>
    %cst_137 = arith.constant dense<0.000000e+00> : vector<8xf32>
    %391 = vector.multi_reduction <add>, %390, %cst_137 [1] : vector<8x8xf32> to vector<8xf32>
    %392 = vector.shape_cast %391 : vector<8xf32> to vector<8x1xf32>
    %393 = tpu.reciprocal %392 {approx = true} : vector<8x1xf32> -> vector<8x1xf32>
    %394 = vector.broadcast %393 : vector<8x1xf32> to vector<8x8xf32>
    %395 = arith.mulf %390, %394 : vector<8x8xf32>
    %c0_138 = arith.constant 0 : index
    %c0_139 = arith.constant 0 : index
    %c0_140 = arith.constant 0 : index
    %396 = vector.load %arg16[%c0_138, %c0_139, %c0_140] : memref<1x8x8xf32, #tpu.memory_space<vmem>>, vector<1x8x8xf32>
    %397 = vector.shape_cast %396 : vector<1x8x8xf32> to vector<8x8xf32>
    %398 = vector.shape_cast %395 : vector<8x8xf32> to vector<1x8x8xf32>
    tpu.vector_store %arg16[%c0_138, %c0_139, %c0_140], %398 {strides = array<i32>} : memref<1x8x8xf32, #tpu.memory_space<vmem>>, vector<1x8x8xf32>,
    %399 = arith.truncf %395 : vector<8x8xf32> to vector<8x8xbf16>
    %400 = vector.broadcast %15 : vector<1x32xf32> to vector<8x32xf32>
    %401 = arith.mulf %377, %400 : vector<8x32xf32>
    %402 = arith.truncf %401 : vector<8x32xf32> to vector<8x32xbf16>
    %cst_141 = arith.constant dense<0.000000e+00> : vector<8x32xf32>
    %403 = tpu.matmul %399, %402, %cst_141 {dimension_numbers = #tpu.dot_dimension_numbers<[1], [0], [0], [1], [0, 0, 1, 1], [], []>} : vector<8x8xbf16>, vector<8x32xbf16>, vector<8x32xf32> -> vector<8x32xf32>
    %404 = arith.addf %378, %403 : vector<8x32xf32>
    %405 = arith.truncf %361 : vector<8x32xf32> to vector<8x32xbf16>
    %406 = vector.broadcast %22 : vector<1x32xf32> to vector<8x32xf32>
    %407 = arith.mulf %369, %406 : vector<8x32xf32>
    %408 = arith.truncf %407 : vector<8x32xf32> to vector<8x32xbf16>
    %cst_142 = arith.constant dense<0.000000e+00> : vector<8x8xf32>
    %409 = tpu.matmul %405, %408, %cst_142 {dimension_numbers = #tpu.dot_dimension_numbers<[1], [1], [0], [0], [0, 0, 1, 0], [], []>} : vector<8x32xbf16>, vector<8x32xbf16>, vector<8x8xf32> -> vector<8x8xf32>
    %cst_143 = arith.constant -9.99999984E+17 : f32
    %410 = vector.broadcast %cst_143 : f32 to vector<8x8xf32>
    %411 = arith.select %351, %410, %409 : vector<8x8xi1>, vector<8x8xf32>
    %cst_144 = arith.constant dense<0xFF800000> : vector<8xf32>
    %412 = vector.multi_reduction <maximumf>, %411, %cst_144 [1] : vector<8x8xf32> to vector<8xf32>
    %413 = vector.shape_cast %412 : vector<8xf32> to vector<8x1xf32>
    %414 = vector.broadcast %413 : vector<8x1xf32> to vector<8x8xf32>
    %415 = arith.subf %411, %414 : vector<8x8xf32>
    %416 = math.exp %415 : vector<8x8xf32>
    %cst_145 = arith.constant dense<0.000000e+00> : vector<8xf32>
    %417 = vector.multi_reduction <add>, %416, %cst_145 [1] : vector<8x8xf32> to vector<8xf32>
    %418 = vector.shape_cast %417 : vector<8xf32> to vector<8x1xf32>
    %419 = tpu.reciprocal %418 {approx = true} : vector<8x1xf32> -> vector<8x1xf32>
    %420 = vector.broadcast %419 : vector<8x1xf32> to vector<8x8xf32>
    %421 = arith.mulf %416, %420 : vector<8x8xf32>
    %422 = arith.truncf %421 : vector<8x8xf32> to vector<8x8xbf16>
    %423 = vector.broadcast %22 : vector<1x32xf32> to vector<8x32xf32>
    %424 = arith.mulf %377, %423 : vector<8x32xf32>
    %425 = arith.truncf %424 : vector<8x32xf32> to vector<8x32xbf16>
    %cst_146 = arith.constant dense<0.000000e+00> : vector<8x32xf32>
    %426 = tpu.matmul %422, %425, %cst_146 {dimension_numbers = #tpu.dot_dimension_numbers<[1], [0], [0], [1], [0, 0, 1, 1], [], []>} : vector<8x8xbf16>, vector<8x32xbf16>, vector<8x32xf32> -> vector<8x32xf32>
    %427 = arith.addf %404, %426 : vector<8x32xf32>
    %428 = arith.truncf %361 : vector<8x32xf32> to vector<8x32xbf16>
    %429 = vector.broadcast %29 : vector<1x32xf32> to vector<8x32xf32>
    %430 = arith.mulf %369, %429 : vector<8x32xf32>
    %431 = arith.truncf %430 : vector<8x32xf32> to vector<8x32xbf16>
    %cst_147 = arith.constant dense<0.000000e+00> : vector<8x8xf32>
    %432 = tpu.matmul %428, %431, %cst_147 {dimension_numbers = #tpu.dot_dimension_numbers<[1], [1], [0], [0], [0, 0, 1, 0], [], []>} : vector<8x32xbf16>, vector<8x32xbf16>, vector<8x8xf32> -> vector<8x8xf32>
    %cst_148 = arith.constant -9.99999984E+17 : f32
    %433 = vector.broadcast %cst_148 : f32 to vector<8x8xf32>
    %434 = arith.select %351, %433, %432 : vector<8x8xi1>, vector<8x8xf32>
    %cst_149 = arith.constant dense<0xFF800000> : vector<8xf32>
    %435 = vector.multi_reduction <maximumf>, %434, %cst_149 [1] : vector<8x8xf32> to vector<8xf32>
    %436 = vector.shape_cast %435 : vector<8xf32> to vector<8x1xf32>
    %437 = vector.broadcast %436 : vector<8x1xf32> to vector<8x8xf32>
    %438 = arith.subf %434, %437 : vector<8x8xf32>
    %439 = math.exp %438 : vector<8x8xf32>
    %cst_150 = arith.constant dense<0.000000e+00> : vector<8xf32>
    %440 = vector.multi_reduction <add>, %439, %cst_150 [1] : vector<8x8xf32> to vector<8xf32>
    %441 = vector.shape_cast %440 : vector<8xf32> to vector<8x1xf32>
    %442 = tpu.reciprocal %441 {approx = true} : vector<8x1xf32> -> vector<8x1xf32>
    %443 = vector.broadcast %442 : vector<8x1xf32> to vector<8x8xf32>
    %444 = arith.mulf %439, %443 : vector<8x8xf32>
    %445 = arith.truncf %444 : vector<8x8xf32> to vector<8x8xbf16>
    %446 = vector.broadcast %29 : vector<1x32xf32> to vector<8x32xf32>
    %447 = arith.mulf %377, %446 : vector<8x32xf32>
    %448 = arith.truncf %447 : vector<8x32xf32> to vector<8x32xbf16>
    %cst_151 = arith.constant dense<0.000000e+00> : vector<8x32xf32>
    %449 = tpu.matmul %445, %448, %cst_151 {dimension_numbers = #tpu.dot_dimension_numbers<[1], [0], [0], [1], [0, 0, 1, 1], [], []>} : vector<8x8xbf16>, vector<8x32xbf16>, vector<8x32xf32> -> vector<8x32xf32>
    %450 = arith.addf %427, %449 : vector<8x32xf32>
    %451 = arith.truncf %361 : vector<8x32xf32> to vector<8x32xbf16>
    %452 = vector.broadcast %36 : vector<1x32xf32> to vector<8x32xf32>
    %453 = arith.mulf %369, %452 : vector<8x32xf32>
    %454 = arith.truncf %453 : vector<8x32xf32> to vector<8x32xbf16>
    %cst_152 = arith.constant dense<0.000000e+00> : vector<8x8xf32>
    %455 = tpu.matmul %451, %454, %cst_152 {dimension_numbers = #tpu.dot_dimension_numbers<[1], [1], [0], [0], [0, 0, 1, 0], [], []>} : vector<8x32xbf16>, vector<8x32xbf16>, vector<8x8xf32> -> vector<8x8xf32>
    %cst_153 = arith.constant -9.99999984E+17 : f32
    %456 = vector.broadcast %cst_153 : f32 to vector<8x8xf32>
    %457 = arith.select %351, %456, %455 : vector<8x8xi1>, vector<8x8xf32>
    %cst_154 = arith.constant dense<0xFF800000> : vector<8xf32>
    %458 = vector.multi_reduction <maximumf>, %457, %cst_154 [1] : vector<8x8xf32> to vector<8xf32>
    %459 = vector.shape_cast %458 : vector<8xf32> to vector<8x1xf32>
    %460 = vector.broadcast %459 : vector<8x1xf32> to vector<8x8xf32>
    %461 = arith.subf %457, %460 : vector<8x8xf32>
    %462 = math.exp %461 : vector<8x8xf32>
    %cst_155 = arith.constant dense<0.000000e+00> : vector<8xf32>
    %463 = vector.multi_reduction <add>, %462, %cst_155 [1] : vector<8x8xf32> to vector<8xf32>
    %464 = vector.shape_cast %463 : vector<8xf32> to vector<8x1xf32>
    %465 = tpu.reciprocal %464 {approx = true} : vector<8x1xf32> -> vector<8x1xf32>
    %466 = vector.broadcast %465 : vector<8x1xf32> to vector<8x8xf32>
    %467 = arith.mulf %462, %466 : vector<8x8xf32>
    %468 = arith.truncf %467 : vector<8x8xf32> to vector<8x8xbf16>
    %469 = vector.broadcast %36 : vector<1x32xf32> to vector<8x32xf32>
    %470 = arith.mulf %377, %469 : vector<8x32xf32>
    %471 = arith.truncf %470 : vector<8x32xf32> to vector<8x32xbf16>
    %cst_156 = arith.constant dense<0.000000e+00> : vector<8x32xf32>
    %472 = tpu.matmul %468, %471, %cst_156 {dimension_numbers = #tpu.dot_dimension_numbers<[1], [0], [0], [1], [0, 0, 1, 1], [], []>} : vector<8x8xbf16>, vector<8x32xbf16>, vector<8x32xf32> -> vector<8x32xf32>
    %473 = arith.addf %450, %472 : vector<8x32xf32>
    %474 = arith.truncf %361 : vector<8x32xf32> to vector<8x32xbf16>
    %475 = vector.broadcast %43 : vector<1x32xf32> to vector<8x32xf32>
    %476 = arith.mulf %369, %475 : vector<8x32xf32>
    %477 = arith.truncf %476 : vector<8x32xf32> to vector<8x32xbf16>
    %cst_157 = arith.constant dense<0.000000e+00> : vector<8x8xf32>
    %478 = tpu.matmul %474, %477, %cst_157 {dimension_numbers = #tpu.dot_dimension_numbers<[1], [1], [0], [0], [0, 0, 1, 0], [], []>} : vector<8x32xbf16>, vector<8x32xbf16>, vector<8x8xf32> -> vector<8x8xf32>
    %cst_158 = arith.constant -9.99999984E+17 : f32
    %479 = vector.broadcast %cst_158 : f32 to vector<8x8xf32>
    %480 = arith.select %351, %479, %478 : vector<8x8xi1>, vector<8x8xf32>
    %cst_159 = arith.constant dense<0xFF800000> : vector<8xf32>
    %481 = vector.multi_reduction <maximumf>, %480, %cst_159 [1] : vector<8x8xf32> to vector<8xf32>
    %482 = vector.shape_cast %481 : vector<8xf32> to vector<8x1xf32>
    %483 = vector.broadcast %482 : vector<8x1xf32> to vector<8x8xf32>
    %484 = arith.subf %480, %483 : vector<8x8xf32>
    %485 = math.exp %484 : vector<8x8xf32>
    %cst_160 = arith.constant dense<0.000000e+00> : vector<8xf32>
    %486 = vector.multi_reduction <add>, %485, %cst_160 [1] : vector<8x8xf32> to vector<8xf32>
    %487 = vector.shape_cast %486 : vector<8xf32> to vector<8x1xf32>
    %488 = tpu.reciprocal %487 {approx = true} : vector<8x1xf32> -> vector<8x1xf32>
    %489 = vector.broadcast %488 : vector<8x1xf32> to vector<8x8xf32>
    %490 = arith.mulf %485, %489 : vector<8x8xf32>
    %491 = arith.truncf %490 : vector<8x8xf32> to vector<8x8xbf16>
    %492 = vector.broadcast %43 : vector<1x32xf32> to vector<8x32xf32>
    %493 = arith.mulf %377, %492 : vector<8x32xf32>
    %494 = arith.truncf %493 : vector<8x32xf32> to vector<8x32xbf16>
    %cst_161 = arith.constant dense<0.000000e+00> : vector<8x32xf32>
    %495 = tpu.matmul %491, %494, %cst_161 {dimension_numbers = #tpu.dot_dimension_numbers<[1], [0], [0], [1], [0, 0, 1, 1], [], []>} : vector<8x8xbf16>, vector<8x32xbf16>, vector<8x32xf32> -> vector<8x32xf32>
    %496 = arith.addf %473, %495 : vector<8x32xf32>
    %497 = arith.truncf %361 : vector<8x32xf32> to vector<8x32xbf16>
    %498 = vector.broadcast %50 : vector<1x32xf32> to vector<8x32xf32>
    %499 = arith.mulf %369, %498 : vector<8x32xf32>
    %500 = arith.truncf %499 : vector<8x32xf32> to vector<8x32xbf16>
    %cst_162 = arith.constant dense<0.000000e+00> : vector<8x8xf32>
    %501 = tpu.matmul %497, %500, %cst_162 {dimension_numbers = #tpu.dot_dimension_numbers<[1], [1], [0], [0], [0, 0, 1, 0], [], []>} : vector<8x32xbf16>, vector<8x32xbf16>, vector<8x8xf32> -> vector<8x8xf32>
    %cst_163 = arith.constant -9.99999984E+17 : f32
    %502 = vector.broadcast %cst_163 : f32 to vector<8x8xf32>
    %503 = arith.select %351, %502, %501 : vector<8x8xi1>, vector<8x8xf32>
    %cst_164 = arith.constant dense<0xFF800000> : vector<8xf32>
    %504 = vector.multi_reduction <maximumf>, %503, %cst_164 [1] : vector<8x8xf32> to vector<8xf32>
    %505 = vector.shape_cast %504 : vector<8xf32> to vector<8x1xf32>
    %506 = vector.broadcast %505 : vector<8x1xf32> to vector<8x8xf32>
    %507 = arith.subf %503, %506 : vector<8x8xf32>
    %508 = math.exp %507 : vector<8x8xf32>
    %cst_165 = arith.constant dense<0.000000e+00> : vector<8xf32>
    %509 = vector.multi_reduction <add>, %508, %cst_165 [1] : vector<8x8xf32> to vector<8xf32>
    %510 = vector.shape_cast %509 : vector<8xf32> to vector<8x1xf32>
    %511 = tpu.reciprocal %510 {approx = true} : vector<8x1xf32> -> vector<8x1xf32>
    %512 = vector.broadcast %511 : vector<8x1xf32> to vector<8x8xf32>
    %513 = arith.mulf %508, %512 : vector<8x8xf32>
    %514 = arith.truncf %513 : vector<8x8xf32> to vector<8x8xbf16>
    %515 = vector.broadcast %50 : vector<1x32xf32> to vector<8x32xf32>
    %516 = arith.mulf %377, %515 : vector<8x32xf32>
    %517 = arith.truncf %516 : vector<8x32xf32> to vector<8x32xbf16>
    %cst_166 = arith.constant dense<0.000000e+00> : vector<8x32xf32>
    %518 = tpu.matmul %514, %517, %cst_166 {dimension_numbers = #tpu.dot_dimension_numbers<[1], [0], [0], [1], [0, 0, 1, 1], [], []>} : vector<8x8xbf16>, vector<8x32xbf16>, vector<8x32xf32> -> vector<8x32xf32>
    %519 = arith.addf %496, %518 : vector<8x32xf32>
    %520 = arith.truncf %361 : vector<8x32xf32> to vector<8x32xbf16>
    %521 = vector.broadcast %57 : vector<1x32xf32> to vector<8x32xf32>
    %522 = arith.mulf %369, %521 : vector<8x32xf32>
    %523 = arith.truncf %522 : vector<8x32xf32> to vector<8x32xbf16>
    %cst_167 = arith.constant dense<0.000000e+00> : vector<8x8xf32>
    %524 = tpu.matmul %520, %523, %cst_167 {dimension_numbers = #tpu.dot_dimension_numbers<[1], [1], [0], [0], [0, 0, 1, 0], [], []>} : vector<8x32xbf16>, vector<8x32xbf16>, vector<8x8xf32> -> vector<8x8xf32>
    %cst_168 = arith.constant -9.99999984E+17 : f32
    %525 = vector.broadcast %cst_168 : f32 to vector<8x8xf32>
    %526 = arith.select %351, %525, %524 : vector<8x8xi1>, vector<8x8xf32>
    %cst_169 = arith.constant dense<0xFF800000> : vector<8xf32>
    %527 = vector.multi_reduction <maximumf>, %526, %cst_169 [1] : vector<8x8xf32> to vector<8xf32>
    %528 = vector.shape_cast %527 : vector<8xf32> to vector<8x1xf32>
    %529 = vector.broadcast %528 : vector<8x1xf32> to vector<8x8xf32>
    %530 = arith.subf %526, %529 : vector<8x8xf32>
    %531 = math.exp %530 : vector<8x8xf32>
    %cst_170 = arith.constant dense<0.000000e+00> : vector<8xf32>
    %532 = vector.multi_reduction <add>, %531, %cst_170 [1] : vector<8x8xf32> to vector<8xf32>
    %533 = vector.shape_cast %532 : vector<8xf32> to vector<8x1xf32>
    %534 = tpu.reciprocal %533 {approx = true} : vector<8x1xf32> -> vector<8x1xf32>
    %535 = vector.broadcast %534 : vector<8x1xf32> to vector<8x8xf32>
    %536 = arith.mulf %531, %535 : vector<8x8xf32>
    %537 = arith.truncf %536 : vector<8x8xf32> to vector<8x8xbf16>
    %538 = vector.broadcast %57 : vector<1x32xf32> to vector<8x32xf32>
    %539 = arith.mulf %377, %538 : vector<8x32xf32>
    %540 = arith.truncf %539 : vector<8x32xf32> to vector<8x32xbf16>
    %cst_171 = arith.constant dense<0.000000e+00> : vector<8x32xf32>
    %541 = tpu.matmul %537, %540, %cst_171 {dimension_numbers = #tpu.dot_dimension_numbers<[1], [0], [0], [1], [0, 0, 1, 1], [], []>} : vector<8x8xbf16>, vector<8x32xbf16>, vector<8x32xf32> -> vector<8x32xf32>
    %542 = arith.addf %519, %541 : vector<8x32xf32>
    %543 = arith.truncf %361 : vector<8x32xf32> to vector<8x32xbf16>
    %544 = vector.broadcast %64 : vector<1x32xf32> to vector<8x32xf32>
    %545 = arith.mulf %369, %544 : vector<8x32xf32>
    %546 = arith.truncf %545 : vector<8x32xf32> to vector<8x32xbf16>
    %cst_172 = arith.constant dense<0.000000e+00> : vector<8x8xf32>
    %547 = tpu.matmul %543, %546, %cst_172 {dimension_numbers = #tpu.dot_dimension_numbers<[1], [1], [0], [0], [0, 0, 1, 0], [], []>} : vector<8x32xbf16>, vector<8x32xbf16>, vector<8x8xf32> -> vector<8x8xf32>
    %cst_173 = arith.constant -9.99999984E+17 : f32
    %548 = vector.broadcast %cst_173 : f32 to vector<8x8xf32>
    %549 = arith.select %351, %548, %547 : vector<8x8xi1>, vector<8x8xf32>
    %cst_174 = arith.constant dense<0xFF800000> : vector<8xf32>
    %550 = vector.multi_reduction <maximumf>, %549, %cst_174 [1] : vector<8x8xf32> to vector<8xf32>
    %551 = vector.shape_cast %550 : vector<8xf32> to vector<8x1xf32>
    %552 = vector.broadcast %551 : vector<8x1xf32> to vector<8x8xf32>
    %553 = arith.subf %549, %552 : vector<8x8xf32>
    %554 = math.exp %553 : vector<8x8xf32>
    %cst_175 = arith.constant dense<0.000000e+00> : vector<8xf32>
    %555 = vector.multi_reduction <add>, %554, %cst_175 [1] : vector<8x8xf32> to vector<8xf32>
    %556 = vector.shape_cast %555 : vector<8xf32> to vector<8x1xf32>
    %557 = tpu.reciprocal %556 {approx = true} : vector<8x1xf32> -> vector<8x1xf32>
    %558 = vector.broadcast %557 : vector<8x1xf32> to vector<8x8xf32>
    %559 = arith.mulf %554, %558 : vector<8x8xf32>
    %560 = arith.truncf %559 : vector<8x8xf32> to vector<8x8xbf16>
    %561 = vector.broadcast %64 : vector<1x32xf32> to vector<8x32xf32>
    %562 = arith.mulf %377, %561 : vector<8x32xf32>
    %563 = arith.truncf %562 : vector<8x32xf32> to vector<8x32xbf16>
    %cst_176 = arith.constant dense<0.000000e+00> : vector<8x32xf32>
    %564 = tpu.matmul %560, %563, %cst_176 {dimension_numbers = #tpu.dot_dimension_numbers<[1], [0], [0], [1], [0, 0, 1, 1], [], []>} : vector<8x8xbf16>, vector<8x32xbf16>, vector<8x32xf32> -> vector<8x32xf32>
    %565 = arith.addf %542, %564 : vector<8x32xf32>
    %c3_177 = arith.constant 3 : index
    %c0_178 = arith.constant 0 : index
    %c0_179 = arith.constant 0 : index
    %566 = vector.load %arg7[%c3_177, %c0_178, %c0_179] : memref<4x32x32xbf16, #tpu.memory_space<vmem>>, vector<1x32x32xbf16>
    %567 = vector.shape_cast %566 : vector<1x32x32xbf16> to vector<32x32xbf16>
    %568 = arith.truncf %565 : vector<8x32xf32> to vector<8x32xbf16>
    %cst_180 = arith.constant dense<0.000000e+00> : vector<8x32xf32>
    %569 = tpu.matmul %568, %567, %cst_180 {dimension_numbers = #tpu.dot_dimension_numbers<[1], [0], [0], [1], [0, 0, 1, 1], [], []>} : vector<8x32xbf16>, vector<32x32xbf16>, vector<8x32xf32> -> vector<8x32xf32>
    %c3_181 = arith.constant 3 : index
    %c0_182 = arith.constant 0 : index
    %c0_183 = arith.constant 0 : index
    %570 = vector.load %arg8[%c3_181, %c0_182, %c0_183] : memref<4x1x32xf32, #tpu.memory_space<vmem>>, vector<1x1x32xf32>
    %571 = vector.shape_cast %570 : vector<1x1x32xf32> to vector<1x32xf32>
    %572 = vector.broadcast %571 : vector<1x32xf32> to vector<8x32xf32>
    %573 = arith.addf %569, %572 : vector<8x32xf32>
    %c0_184 = arith.constant 0 : index
    %c0_185 = arith.constant 0 : index
    %c0_186 = arith.constant 0 : index
    %574 = vector.load %arg18[%c0_184, %c0_185, %c0_186] : memref<1x8x32xf32, #tpu.memory_space<vmem>>, vector<1x8x32xf32>
    %575 = vector.shape_cast %574 : vector<1x8x32xf32> to vector<8x32xf32>
    %576 = vector.shape_cast %573 : vector<8x32xf32> to vector<1x8x32xf32>
    tpu.vector_store %arg18[%c0_184, %c0_185, %c0_186], %576 {strides = array<i32>} : memref<1x8x32xf32, #tpu.memory_space<vmem>>, vector<1x8x32xf32>,
    %577 = arith.addf %573, %322 : vector<8x32xf32>
    %c2_187 = arith.constant 2 : index
    %c0_188 = arith.constant 0 : index
    %c0_189 = arith.constant 0 : index
    %578 = vector.load %arg9[%c2_187, %c0_188, %c0_189] : memref<3x1x32xf32, #tpu.memory_space<vmem>>, vector<1x1x32xf32>
    %579 = vector.shape_cast %578 : vector<1x1x32xf32> to vector<1x32xf32>
    %c2_190 = arith.constant 2 : index
    %c0_191 = arith.constant 0 : index
    %c0_192 = arith.constant 0 : index
    %580 = vector.load %arg10[%c2_190, %c0_191, %c0_192] : memref<3x1x32xf32, #tpu.memory_space<vmem>>, vector<1x1x32xf32>
    %581 = vector.shape_cast %580 : vector<1x1x32xf32> to vector<1x32xf32>
    %cst_193 = arith.constant dense<0.000000e+00> : vector<8xf32>
    %582 = vector.multi_reduction <add>, %577, %cst_193 [1] : vector<8x32xf32> to vector<8xf32>
    %583 = vector.shape_cast %582 : vector<8xf32> to vector<8x1xf32>
    %cst_194 = arith.constant 3.200000e+01 : f32
    %584 = vector.broadcast %cst_194 : f32 to vector<8x1xf32>
    %585 = arith.divf %583, %584 : vector<8x1xf32>
    %586 = vector.broadcast %585 : vector<8x1xf32> to vector<8x32xf32>
    %587 = arith.subf %577, %586 : vector<8x32xf32>
    %588 = arith.mulf %587, %587 : vector<8x32xf32>
    %cst_195 = arith.constant dense<0.000000e+00> : vector<8xf32>
    %589 = vector.multi_reduction <add>, %588, %cst_195 [1] : vector<8x32xf32> to vector<8xf32>
    %590 = vector.shape_cast %589 : vector<8xf32> to vector<8x1xf32>
    %cst_196 = arith.constant 0.0322580636 : f32
    %591 = vector.broadcast %cst_196 : f32 to vector<8x1xf32>
    %592 = arith.mulf %590, %591 : vector<8x1xf32>
    %593 = math.sqrt %592 : vector<8x1xf32>
    %cst_197 = arith.constant 9.99999997E-7 : f32
    %594 = vector.broadcast %cst_197 : f32 to vector<8x1xf32>
    %595 = arith.addf %593, %594 : vector<8x1xf32>
    %596 = tpu.reciprocal %595 {approx = true} : vector<8x1xf32> -> vector<8x1xf32>
    %597 = vector.broadcast %596 : vector<8x1xf32> to vector<8x32xf32>
    %598 = arith.mulf %587, %597 : vector<8x32xf32>
    %599 = vector.broadcast %579 : vector<1x32xf32> to vector<8x32xf32>
    %600 = arith.mulf %599, %598 : vector<8x32xf32>
    %601 = vector.broadcast %581 : vector<1x32xf32> to vector<8x32xf32>
    %602 = arith.addf %600, %601 : vector<8x32xf32>
    %c0_198 = arith.constant 0 : index
    %c0_199 = arith.constant 0 : index
    %603 = vector.load %arg11[%c0_198, %c0_199] : memref<32x64xbf16, #tpu.memory_space<vmem>>, vector<32x64xbf16>
    %604 = arith.truncf %602 : vector<8x32xf32> to vector<8x32xbf16>
    %cst_200 = arith.constant dense<0.000000e+00> : vector<8x64xf32>
    %605 = tpu.matmul %604, %603, %cst_200 {dimension_numbers = #tpu.dot_dimension_numbers<[1], [0], [0], [1], [0, 0, 1, 1], [], []>} : vector<8x32xbf16>, vector<32x64xbf16>, vector<8x64xf32> -> vector<8x64xf32>
    %c0_201 = arith.constant 0 : index
    %c0_202 = arith.constant 0 : index
    %606 = vector.load %arg12[%c0_201, %c0_202] : memref<1x64xf32, #tpu.memory_space<vmem>>, vector<1x64xf32>
    %607 = vector.broadcast %606 : vector<1x64xf32> to vector<8x64xf32>
    %608 = arith.addf %605, %607 : vector<8x64xf32>
    %cst_203 = arith.constant 0.000000e+00 : f32
    %609 = vector.broadcast %cst_203 : f32 to vector<8x64xf32>
    %610 = arith.maximumf %608, %609 : vector<8x64xf32>
    %c0_204 = arith.constant 0 : index
    %c0_205 = arith.constant 0 : index
    %611 = vector.load %arg13[%c0_204, %c0_205] : memref<64x32xbf16, #tpu.memory_space<vmem>>, vector<64x32xbf16>
    %612 = arith.truncf %610 : vector<8x64xf32> to vector<8x64xbf16>
    %cst_206 = arith.constant dense<0.000000e+00> : vector<8x32xf32>
    %613 = tpu.matmul %612, %611, %cst_206 {dimension_numbers = #tpu.dot_dimension_numbers<[1], [0], [0], [1], [0, 0, 1, 1], [], []>} : vector<8x64xbf16>, vector<64x32xbf16>, vector<8x32xf32> -> vector<8x32xf32>
    %c0_207 = arith.constant 0 : index
    %c0_208 = arith.constant 0 : index
    %614 = vector.load %arg14[%c0_207, %c0_208] : memref<1x32xf32, #tpu.memory_space<vmem>>, vector<1x32xf32>
    %615 = vector.broadcast %614 : vector<1x32xf32> to vector<8x32xf32>
    %616 = arith.addf %613, %615 : vector<8x32xf32>
    %617 = arith.addf %616, %577 : vector<8x32xf32>
    %c0_209 = arith.constant 0 : index
    %c0_210 = arith.constant 0 : index
    %c0_211 = arith.constant 0 : index
    %618 = vector.load %arg15[%c0_209, %c0_210, %c0_211] : memref<1x8x32xf32, #tpu.memory_space<vmem>>, vector<1x8x32xf32>
    %619 = vector.shape_cast %618 : vector<1x8x32xf32> to vector<8x32xf32>
    %620 = vector.shape_cast %617 : vector<8x32xf32> to vector<1x8x32xf32>
    tpu.vector_store %arg15[%c0_209, %c0_210, %c0_211], %620 {strides = array<i32>} : memref<1x8x32xf32, #tpu.memory_space<vmem>>, vector<1x8x32xf32>,
    return
  }
  func.func @transform_0(%arg0: i32) -> (i32, i32, i32) {
    %c0_i32 = arith.constant 0 : i32
    %c0_i32_0 = arith.constant 0 : i32
    %c0_i32_1 = arith.constant 0 : i32
    return %arg0, %c0_i32, %c0_i32_0 : i32, i32, i32
  }
  func.func @transform_1(%arg0: i32) -> (i32, i32, i32) {
    %c0_i32 = arith.constant 0 : i32
    %c0_i32_0 = arith.constant 0 : i32
    %c0_i32_1 = arith.constant 0 : i32
    return %arg0, %c0_i32, %c0_i32_0 : i32, i32, i32
  }
  func.func @transform_2(%arg0: i32) -> (i32, i32, i32) {
    %c0_i32 = arith.constant 0 : i32
    %c0_i32_0 = arith.constant 0 : i32
    %c0_i32_1 = arith.constant 0 : i32
    return %arg0, %c0_i32, %c0_i32_0 : i32, i32, i32
  }
  func.func @transform_3(%arg0: i32) -> (i32, i32, i32) {
    %c0_i32 = arith.constant 0 : i32
    %c0_i32_0 = arith.constant 0 : i32
    %c0_i32_1 = arith.constant 0 : i32
    return %arg0, %c0_i32, %c0_i32_0 : i32, i32, i32
  }
  func.func @transform_4(%arg0: i32) -> (i32, i32, i32) {
    %c0_i32 = arith.constant 0 : i32
    %c0_i32_0 = arith.constant 0 : i32
    %c0_i32_1 = arith.constant 0 : i32
    %c0_i32_2 = arith.constant 0 : i32
    return %c0_i32, %c0_i32_0, %c0_i32_1 : i32, i32, i32
  }
  func.func @transform_5(%arg0: i32) -> (i32, i32, i32) {
    %c0_i32 = arith.constant 0 : i32
    %c0_i32_0 = arith.constant 0 : i32
    %c0_i32_1 = arith.constant 0 : i32
    %c0_i32_2 = arith.constant 0 : i32
    return %c0_i32, %c0_i32_0, %c0_i32_1 : i32, i32, i32
  }
  func.func @transform_6(%arg0: i32) -> (i32, i32, i32) {
    %c0_i32 = arith.constant 0 : i32
    %c0_i32_0 = arith.constant 0 : i32
    %c0_i32_1 = arith.constant 0 : i32
    %c0_i32_2 = arith.constant 0 : i32
    return %c0_i32, %c0_i32_0, %c0_i32_1 : i32, i32, i32
  }
  func.func @transform_7(%arg0: i32) -> (i32, i32, i32) {
    %c0_i32 = arith.constant 0 : i32
    %c0_i32_0 = arith.constant 0 : i32
    %c0_i32_1 = arith.constant 0 : i32
    %c0_i32_2 = arith.constant 0 : i32
    return %c0_i32, %c0_i32_0, %c0_i32_1 : i32, i32, i32
  }
  func.func @transform_8(%arg0: i32) -> (i32, i32, i32) {
    %c0_i32 = arith.constant 0 : i32
    %c0_i32_0 = arith.constant 0 : i32
    %c0_i32_1 = arith.constant 0 : i32
    %c0_i32_2 = arith.constant 0 : i32
    return %c0_i32, %c0_i32_0, %c0_i32_1 : i32, i32, i32
  }
  func.func @transform_9(%arg0: i32) -> (i32, i32, i32) {
    %c0_i32 = arith.constant 0 : i32
    %c0_i32_0 = arith.constant 0 : i32
    %c0_i32_1 = arith.constant 0 : i32
    %c0_i32_2 = arith.constant 0 : i32
    return %c0_i32, %c0_i32_0, %c0_i32_1 : i32, i32, i32
  }
  func.func @transform_10(%arg0: i32) -> (i32, i32) {
    %c0_i32 = arith.constant 0 : i32
    %c0_i32_0 = arith.constant 0 : i32
    %c0_i32_1 = arith.constant 0 : i32
    return %c0_i32, %c0_i32_0 : i32, i32
  }
  func.func @transform_11(%arg0: i32) -> (i32, i32) {
    %c0_i32 = arith.constant 0 : i32
    %c0_i32_0 = arith.constant 0 : i32
    %c0_i32_1 = arith.constant 0 : i32
    return %c0_i32, %c0_i32_0 : i32, i32
  }
  func.func @transform_12(%arg0: i32) -> (i32, i32) {
    %c0_i32 = arith.constant 0 : i32
    %c0_i32_0 = arith.constant 0 : i32
    %c0_i32_1 = arith.constant 0 : i32
    return %c0_i32, %c0_i32_0 : i32, i32
  }
  func.func @transform_13(%arg0: i32) -> (i32, i32) {
    %c0_i32 = arith.constant 0 : i32
    %c0_i32_0 = arith.constant 0 : i32
    %c0_i32_1 = arith.constant 0 : i32
    return %c0_i32, %c0_i32_0 : i32, i32
  }
  func.func @transform_14(%arg0: i32) -> (i32, i32, i32) {
    %c0_i32 = arith.constant 0 : i32
    %c0_i32_0 = arith.constant 0 : i32
    %c0_i32_1 = arith.constant 0 : i32
    return %arg0, %c0_i32, %c0_i32_0 : i32, i32, i32
  }
  func.func @transform_15(%arg0: i32) -> (i32, i32, i32) {
    %c0_i32 = arith.constant 0 : i32
    %c0_i32_0 = arith.constant 0 : i32
    %c0_i32_1 = arith.constant 0 : i32
    return %arg0, %c0_i32, %c0_i32_0 : i32, i32, i32
  }
  func.func @transform_16(%arg0: i32) -> (i32, i32, i32) {
    %c0_i32 = arith.constant 0 : i32
    %c0_i32_0 = arith.constant 0 : i32
    %c0_i32_1 = arith.constant 0 : i32
    return %arg0, %c0_i32, %c0_i32_0 : i32, i32, i32
  }
  func.func @transform_17(%arg0: i32) -> (i32, i32, i32) {
    %c0_i32 = arith.constant 0 : i32
    %c0_i32_0 = arith.constant 0 : i32
    %c0_i32_1 = arith.constant 0 : i32
    return %arg0, %c0_i32, %c0_i32_0 : i32, i32, i32
  }
}

module attributes {stable_mosaic.version = 11 : i64} {
  func.func @_decoder_layer_kernel(%arg0: i32, %arg1: memref<1x8x32xf32, #tpu.memory_space<vmem>>, %arg2: memref<1x8x32xf32, #tpu.memory_space<vmem>>, %arg3: memref<1x1x8xf32, #tpu.memory_space<vmem>>, %arg4: memref<1x1x8xf32, #tpu.memory_space<vmem>>, %arg5: memref<4x32x32xbf16, #tpu.memory_space<vmem>>, %arg6: memref<4x1x32xf32, #tpu.memory_space<vmem>>, %arg7: memref<4x32x32xbf16, #tpu.memory_space<vmem>>, %arg8: memref<4x1x32xf32, #tpu.memory_space<vmem>>, %arg9: memref<3x1x32xf32, #tpu.memory_space<vmem>>, %arg10: memref<3x1x32xf32, #tpu.memory_space<vmem>>, %arg11: memref<32x64xbf16, #tpu.memory_space<vmem>>, %arg12: memref<1x64xf32, #tpu.memory_space<vmem>>, %arg13: memref<64x32xbf16, #tpu.memory_space<vmem>>, %arg14: memref<1x32xf32, #tpu.memory_space<vmem>>, %arg15: memref<1x8x32xf32, #tpu.memory_space<vmem>>, %arg16: memref<1x8x8xf32, #tpu.memory_space<vmem>>, %arg17: memref<1x8x32xf32, #tpu.memory_space<vmem>>, %arg18: memref<1x8x32xf32, #tpu.memory_space<vmem>>) attributes {dimension_semantics = [#tpu.dimension_semantics<parallel>], iteration_bounds = array<i64: 2>, scalar_prefetch = 0 : i64, scratch_operands = 0 : i64, tpu.core_type = #tpu.core_type<tc>, window_params = [{transform_indices = @transform_0, window_bounds = array<i64: 1, 8, 32>}, {transform_indices = @transform_1, window_bounds = array<i64: 1, 8, 32>}, {transform_indices = @transform_2, window_bounds = array<i64: 1, 1, 8>}, {transform_indices = @transform_3, window_bounds = array<i64: 1, 1, 8>}, {pipeline_mode = #tpu.pipeline_mode<synchronous>, transform_indices = @transform_4, window_bounds = array<i64: 4, 32, 32>}, {pipeline_mode = #tpu.pipeline_mode<synchronous>, transform_indices = @transform_5, window_bounds = array<i64: 4, 1, 32>}, {pipeline_mode = #tpu.pipeline_mode<synchronous>, transform_indices = @transform_6, window_bounds = array<i64: 4, 32, 32>}, {pipeline_mode = #tpu.pipeline_mode<synchronous>, transform_indices = @transform_7, window_bounds = array<i64: 4, 1, 32>}, {pipeline_mode = #tpu.pipeline_mode<synchronous>, transform_indices = @transform_8, window_bounds = array<i64: 3, 1, 32>}, {pipeline_mode = #tpu.pipeline_mode<synchronous>, transform_indices = @transform_9, window_bounds = array<i64: 3, 1, 32>}, {pipeline_mode = #tpu.pipeline_mode<synchronous>, transform_indices = @transform_10, window_bounds = array<i64: 32, 64>}, {pipeline_mode = #tpu.pipeline_mode<synchronous>, transform_indices = @transform_11, window_bounds = array<i64: 1, 64>}, {pipeline_mode = #tpu.pipeline_mode<synchronous>, transform_indices = @transform_12, window_bounds = array<i64: 64, 32>}, {pipeline_mode = #tpu.pipeline_mode<synchronous>, transform_indices = @transform_13, window_bounds = array<i64: 1, 32>}, {transform_indices = @transform_14, window_bounds = array<i64: 1, 8, 32>}, {transform_indices = @transform_15, window_bounds = array<i64: 1, 8, 8>}, {transform_indices = @transform_16, window_bounds = array<i64: 1, 8, 32>}, {transform_indices = @transform_17, window_bounds = array<i64: 1, 8, 32>}]} {
    %c0 = arith.constant 0 : index
    %c0_0 = arith.constant 0 : index
    %c0_1 = arith.constant 0 : index
    %0 = vector.load %arg1[%c0, %c0_0, %c0_1] : memref<1x8x32xf32, #tpu.memory_space<vmem>>, vector<1x8x32xf32>
    %1 = vector.shape_cast %0 : vector<1x8x32xf32> to vector<8x32xf32>
    %c0_2 = arith.constant 0 : index
    %c0_3 = arith.constant 0 : index
    %c0_4 = arith.constant 0 : index
    %2 = vector.load %arg2[%c0_2, %c0_3, %c0_4] : memref<1x8x32xf32, #tpu.memory_space<vmem>>, vector<1x8x32xf32>
    %3 = vector.shape_cast %2 : vector<1x8x32xf32> to vector<8x32xf32>
    %c0_5 = arith.constant 0 : index
    %c0_6 = arith.constant 0 : index
    %c0_7 = arith.constant 0 : index
    %4 = vector.load %arg3[%c0_5, %c0_6, %c0_7] : memref<1x1x8xf32, #tpu.memory_space<vmem>>, vector<1x1x8xf32>
    %5 = vector.shape_cast %4 : vector<1x1x8xf32> to vector<1x8xf32>
    %c0_8 = arith.constant 0 : index
    %c0_9 = arith.constant 0 : index
    %c0_10 = arith.constant 0 : index
    %6 = vector.load %arg4[%c0_8, %c0_9, %c0_10] : memref<1x1x8xf32, #tpu.memory_space<vmem>>, vector<1x1x8xf32>
    %7 = vector.shape_cast %6 : vector<1x1x8xf32> to vector<1x8xf32>
    %8 = tpu.iota {dimensions = array<i32: 1>} : vector<1x32xi32>
    %c0_i32 = arith.constant 0 : i32
    %9 = vector.broadcast %c0_i32 : i32 to vector<1x32xi32>
    %10 = arith.cmpi sge, %8, %9 : vector<1x32xi32>
    %c4_i32 = arith.constant 4 : i32
    %11 = vector.broadcast %c4_i32 : i32 to vector<1x32xi32>
    %12 = arith.cmpi slt, %8, %11 : vector<1x32xi32>
    %13 = arith.andi %10, %12 : vector<1x32xi1>
    %14 = arith.extui %13 : vector<1x32xi1> to vector<1x32xi32>
    %15 = arith.sitofp %14 : vector<1x32xi32> to vector<1x32xf32>
    %c4_i32_11 = arith.constant 4 : i32
    %16 = vector.broadcast %c4_i32_11 : i32 to vector<1x32xi32>
    %17 = arith.cmpi sge, %8, %16 : vector<1x32xi32>
    %c8_i32 = arith.constant 8 : i32
    %18 = vector.broadcast %c8_i32 : i32 to vector<1x32xi32>
    %19 = arith.cmpi slt, %8, %18 : vector<1x32xi32>
    %20 = arith.andi %17, %19 : vector<1x32xi1>
    %21 = arith.extui %20 : vector<1x32xi1> to vector<1x32xi32>
    %22 = arith.sitofp %21 : vector<1x32xi32> to vector<1x32xf32>
    %c8_i32_12 = arith.constant 8 : i32
    %23 = vector.broadcast %c8_i32_12 : i32 to vector<1x32xi32>
    %24 = arith.cmpi sge, %8, %23 : vector<1x32xi32>
    %c12_i32 = arith.constant 12 : i32
    %25 = vector.broadcast %c12_i32 : i32 to vector<1x32xi32>
    %26 = arith.cmpi slt, %8, %25 : vector<1x32xi32>
    %27 = arith.andi %24, %26 : vector<1x32xi1>
    %28 = arith.extui %27 : vector<1x32xi1> to vector<1x32xi32>
    %29 = arith.sitofp %28 : vector<1x32xi32> to vector<1x32xf32>
    %c12_i32_13 = arith.constant 12 : i32
    %30 = vector.broadcast %c12_i32_13 : i32 to vector<1x32xi32>
    %31 = arith.cmpi sge, %8, %30 : vector<1x32xi32>
    %c16_i32 = arith.constant 16 : i32
    %32 = vector.broadcast %c16_i32 : i32 to vector<1x32xi32>
    %33 = arith.cmpi slt, %8, %32 : vector<1x32xi32>
    %34 = arith.andi %31, %33 : vector<1x32xi1>
    %35 = arith.extui %34 : vector<1x32xi1> to vector<1x32xi32>
    %36 = arith.sitofp %35 : vector<1x32xi32> to vector<1x32xf32>
    %c16_i32_14 = arith.constant 16 : i32
    %37 = vector.broadcast %c16_i32_14 : i32 to vector<1x32xi32>
    %38 = arith.cmpi sge, %8, %37 : vector<1x32xi32>
    %c20_i32 = arith.constant 20 : i32
    %39 = vector.broadcast %c20_i32 : i32 to vector<1x32xi32>
    %40 = arith.cmpi slt, %8, %39 : vector<1x32xi32>
    %41 = arith.andi %38, %40 : vector<1x32xi1>
    %42 = arith.extui %41 : vector<1x32xi1> to vector<1x32xi32>
    %43 = arith.sitofp %42 : vector<1x32xi32> to vector<1x32xf32>
    %c20_i32_15 = arith.constant 20 : i32
    %44 = vector.broadcast %c20_i32_15 : i32 to vector<1x32xi32>
    %45 = arith.cmpi sge, %8, %44 : vector<1x32xi32>
    %c24_i32 = arith.constant 24 : i32
    %46 = vector.broadcast %c24_i32 : i32 to vector<1x32xi32>
    %47 = arith.cmpi slt, %8, %46 : vector<1x32xi32>
    %48 = arith.andi %45, %47 : vector<1x32xi1>
    %49 = arith.extui %48 : vector<1x32xi1> to vector<1x32xi32>
    %50 = arith.sitofp %49 : vector<1x32xi32> to vector<1x32xf32>
    %c24_i32_16 = arith.constant 24 : i32
    %51 = vector.broadcast %c24_i32_16 : i32 to vector<1x32xi32>
    %52 = arith.cmpi sge, %8, %51 : vector<1x32xi32>
    %c28_i32 = arith.constant 28 : i32
    %53 = vector.broadcast %c28_i32 : i32 to vector<1x32xi32>
    %54 = arith.cmpi slt, %8, %53 : vector<1x32xi32>
    %55 = arith.andi %52, %54 : vector<1x32xi1>
    %56 = arith.extui %55 : vector<1x32xi1> to vector<1x32xi32>
    %57 = arith.sitofp %56 : vector<1x32xi32> to vector<1x32xf32>
    %c28_i32_17 = arith.constant 28 : i32
    %58 = vector.broadcast %c28_i32_17 : i32 to vector<1x32xi32>
    %59 = arith.cmpi sge, %8, %58 : vector<1x32xi32>
    %c32_i32 = arith.constant 32 : i32
    %60 = vector.broadcast %c32_i32 : i32 to vector<1x32xi32>
    %61 = arith.cmpi slt, %8, %60 : vector<1x32xi32>
    %62 = arith.andi %59, %61 : vector<1x32xi1>
    %63 = arith.extui %62 : vector<1x32xi1> to vector<1x32xi32>
    %64 = arith.sitofp %63 : vector<1x32xi32> to vector<1x32xf32>
    %c0_18 = arith.constant 0 : index
    %c0_19 = arith.constant 0 : index
    %c0_20 = arith.constant 0 : index
    %65 = vector.load %arg9[%c0_18, %c0_19, %c0_20] : memref<3x1x32xf32, #tpu.memory_space<vmem>>, vector<1x1x32xf32>
    %66 = vector.shape_cast %65 : vector<1x1x32xf32> to vector<1x32xf32>
    %c0_21 = arith.constant 0 : index
    %c0_22 = arith.constant 0 : index
    %c0_23 = arith.constant 0 : index
    %67 = vector.load %arg10[%c0_21, %c0_22, %c0_23] : memref<3x1x32xf32, #tpu.memory_space<vmem>>, vector<1x1x32xf32>
    %68 = vector.shape_cast %67 : vector<1x1x32xf32> to vector<1x32xf32>
    %cst = arith.constant dense<0.000000e+00> : vector<8xf32>
    %69 = vector.multi_reduction <add>, %1, %cst [1] : vector<8x32xf32> to vector<8xf32>
    %70 = vector.shape_cast %69 : vector<8xf32> to vector<8x1xf32>
    %cst_24 = arith.constant 3.200000e+01 : f32
    %71 = vector.broadcast %cst_24 : f32 to vector<8x1xf32>
    %72 = arith.divf %70, %71 : vector<8x1xf32>
    %73 = vector.broadcast %72 : vector<8x1xf32> to vector<8x32xf32>
    %74 = arith.subf %1, %73 : vector<8x32xf32>
    %75 = arith.mulf %74, %74 : vector<8x32xf32>
    %cst_25 = arith.constant dense<0.000000e+00> : vector<8xf32>
    %76 = vector.multi_reduction <add>, %75, %cst_25 [1] : vector<8x32xf32> to vector<8xf32>
    %77 = vector.shape_cast %76 : vector<8xf32> to vector<8x1xf32>
    %cst_26 = arith.constant 0.0322580636 : f32
    %78 = vector.broadcast %cst_26 : f32 to vector<8x1xf32>
    %79 = arith.mulf %77, %78 : vector<8x1xf32>
    %80 = math.sqrt %79 : vector<8x1xf32>
    %cst_27 = arith.constant 9.99999997E-7 : f32
    %81 = vector.broadcast %cst_27 : f32 to vector<8x1xf32>
    %82 = arith.addf %80, %81 : vector<8x1xf32>
    %83 = tpu.reciprocal %82 {approx = true} : vector<8x1xf32> -> vector<8x1xf32>
    %84 = vector.broadcast %83 : vector<8x1xf32> to vector<8x32xf32>
    %85 = arith.mulf %74, %84 : vector<8x32xf32>
    %86 = vector.broadcast %66 : vector<1x32xf32> to vector<8x32xf32>
    %87 = arith.mulf %86, %85 : vector<8x32xf32>
    %88 = vector.broadcast %68 : vector<1x32xf32> to vector<8x32xf32>
    %89 = arith.addf %87, %88 : vector<8x32xf32>
    %c0_28 = arith.constant 0 : index
    %c0_29 = arith.constant 0 : index
    %c0_30 = arith.constant 0 : index
    %90 = vector.load %arg17[%c0_28, %c0_29, %c0_30] : memref<1x8x32xf32, #tpu.memory_space<vmem>>, vector<1x8x32xf32>
    %91 = vector.shape_cast %90 : vector<1x8x32xf32> to vector<8x32xf32>
    %92 = vector.shape_cast %89 : vector<8x32xf32> to vector<1x8x32xf32>
    tpu.vector_store %arg17[%c0_28, %c0_29, %c0_30], %92 {strides = array<i32>} : memref<1x8x32xf32, #tpu.memory_space<vmem>>, vector<1x8x32xf32>,
    %93 = tpu.iota {dimensions = array<i32: 0>} : vector<8x8xi32>
    %94 = tpu.iota {dimensions = array<i32: 1>} : vector<8x8xi32>
    %95 = arith.cmpi sgt, %94, %93 : vector<8x8xi32>
    %96 = arith.extui %95 : vector<8x8xi1> to vector<8x8xi32>
    %97 = arith.sitofp %96 : vector<8x8xi32> to vector<8x8xf32>
    %98 = vector.shape_cast %5 : vector<1x8xf32> to vector<1x8xf32>
    %99 = vector.broadcast %98 : vector<1x8xf32> to vector<8x8xf32>
    %100 = arith.addf %99, %97 : vector<8x8xf32>
    %cst_31 = arith.constant 0.000000e+00 : f32
    %101 = vector.broadcast %cst_31 : f32 to vector<8x8xf32>
    %102 = arith.cmpf ogt, %100, %101 : vector<8x8xf32>
    %c0_32 = arith.constant 0 : index
    %c0_33 = arith.constant 0 : index
    %c0_34 = arith.constant 0 : index
    %103 = vector.load %arg5[%c0_32, %c0_33, %c0_34] : memref<4x32x32xbf16, #tpu.memory_space<vmem>>, vector<1x32x32xbf16>
    %104 = vector.shape_cast %103 : vector<1x32x32xbf16> to vector<32x32xbf16>
    %105 = arith.truncf %89 : vector<8x32xf32> to vector<8x32xbf16>
    %cst_35 = arith.constant dense<0.000000e+00> : vector<8x32xf32>
    %106 = tpu.matmul %105, %104, %cst_35 {dimension_numbers = #tpu.dot_dimension_numbers<[1], [0], [0], [1], [0, 0, 1, 1], [], []>} : vector<8x32xbf16>, vector<32x32xbf16>, vector<8x32xf32> -> vector<8x32xf32>
    %c0_36 = arith.constant 0 : index
    %c0_37 = arith.constant 0 : index
    %c0_38 = arith.constant 0 : index
    %107 = vector.load %arg6[%c0_36, %c0_37, %c0_38] : memref<4x1x32xf32, #tpu.memory_space<vmem>>, vector<1x1x32xf32>
    %108 = vector.shape_cast %107 : vector<1x1x32xf32> to vector<1x32xf32>
    %109 = vector.broadcast %108 : vector<1x32xf32> to vector<8x32xf32>
    %110 = arith.addf %106, %109 : vector<8x32xf32>
    %cst_39 = arith.constant 5.000000e-01 : f32
    %111 = vector.broadcast %cst_39 : f32 to vector<8x32xf32>
    %112 = arith.mulf %110, %111 : vector<8x32xf32>
    %c1 = arith.constant 1 : index
    %c0_40 = arith.constant 0 : index
    %c0_41 = arith.constant 0 : index
    %113 = vector.load %arg5[%c1, %c0_40, %c0_41] : memref<4x32x32xbf16, #tpu.memory_space<vmem>>, vector<1x32x32xbf16>
    %114 = vector.shape_cast %113 : vector<1x32x32xbf16> to vector<32x32xbf16>
    %115 = arith.truncf %89 : vector<8x32xf32> to vector<8x32xbf16>
    %cst_42 = arith.constant dense<0.000000e+00> : vector<8x32xf32>
    %116 = tpu.matmul %115, %114, %cst_42 {dimension_numbers = #tpu.dot_dimension_numbers<[1], [0], [0], [1], [0, 0, 1, 1], [], []>} : vector<8x32xbf16>, vector<32x32xbf16>, vector<8x32xf32> -> vector<8x32xf32>
    %c1_43 = arith.constant 1 : index
    %c0_44 = arith.constant 0 : index
    %c0_45 = arith.constant 0 : index
    %117 = vector.load %arg6[%c1_43, %c0_44, %c0_45] : memref<4x1x32xf32, #tpu.memory_space<vmem>>, vector<1x1x32xf32>
    %118 = vector.shape_cast %117 : vector<1x1x32xf32> to vector<1x32xf32>
    %119 = vector.broadcast %118 : vector<1x32xf32> to vector<8x32xf32>
    %120 = arith.addf %116, %119 : vector<8x32xf32>
    %c2 = arith.constant 2 : index
    %c0_46 = arith.constant 0 : index
    %c0_47 = arith.constant 0 : index
    %121 = vector.load %arg5[%c2, %c0_46, %c0_47] : memref<4x32x32xbf16, #tpu.memory_space<vmem>>, vector<1x32x32xbf16>
    %122 = vector.shape_cast %121 : vector<1x32x32xbf16> to vector<32x32xbf16>
    %123 = arith.truncf %89 : vector<8x32xf32> to vector<8x32xbf16>
    %cst_48 = arith.constant dense<0.000000e+00> : vector<8x32xf32>
    %124 = tpu.matmul %123, %122, %cst_48 {dimension_numbers = #tpu.dot_dimension_numbers<[1], [0], [0], [1], [0, 0, 1, 1], [], []>} : vector<8x32xbf16>, vector<32x32xbf16>, vector<8x32xf32> -> vector<8x32xf32>
    %c2_49 = arith.constant 2 : index
    %c0_50 = arith.constant 0 : index
    %c0_51 = arith.constant 0 : index
    %125 = vector.load %arg6[%c2_49, %c0_50, %c0_51] : memref<4x1x32xf32, #tpu.memory_space<vmem>>, vector<1x1x32xf32>
    %126 = vector.shape_cast %125 : vector<1x1x32xf32> to vector<1x32xf32>
    %127 = vector.broadcast %126 : vector<1x32xf32> to vector<8x32xf32>
    %128 = arith.addf %124, %127 : vector<8x32xf32>
    %cst_52 = arith.constant 0.000000e+00 : f32
    %129 = vector.broadcast %cst_52 : f32 to vector<8x32xf32>
    %130 = arith.truncf %112 : vector<8x32xf32> to vector<8x32xbf16>
    %131 = vector.broadcast %15 : vector<1x32xf32> to vector<8x32xf32>
    %132 = arith.mulf %120, %131 : vector<8x32xf32>
    %133 = arith.truncf %132 : vector<8x32xf32> to vector<8x32xbf16>
    %cst_53 = arith.constant dense<0.000000e+00> : vector<8x8xf32>
    %134 = tpu.matmul %130, %133, %cst_53 {dimension_numbers = #tpu.dot_dimension_numbers<[1], [1], [0], [0], [0, 0, 1, 0], [], []>} : vector<8x32xbf16>, vector<8x32xbf16>, vector<8x8xf32> -> vector<8x8xf32>
    %cst_54 = arith.constant -9.99999984E+17 : f32
    %135 = vector.broadcast %cst_54 : f32 to vector<8x8xf32>
    %136 = arith.select %102, %135, %134 : vector<8x8xi1>, vector<8x8xf32>
    %cst_55 = arith.constant dense<0xFF800000> : vector<8xf32>
    %137 = vector.multi_reduction <maximumf>, %136, %cst_55 [1] : vector<8x8xf32> to vector<8xf32>
    %138 = vector.shape_cast %137 : vector<8xf32> to vector<8x1xf32>
    %139 = vector.broadcast %138 : vector<8x1xf32> to vector<8x8xf32>
    %140 = arith.subf %136, %139 : vector<8x8xf32>
    %141 = math.exp %140 : vector<8x8xf32>
    %cst_56 = arith.constant dense<0.000000e+00> : vector<8xf32>
    %142 = vector.multi_reduction <add>, %141, %cst_56 [1] : vector<8x8xf32> to vector<8xf32>
    %143 = vector.shape_cast %142 : vector<8xf32> to vector<8x1xf32>
    %144 = tpu.reciprocal %143 {approx = true} : vector<8x1xf32> -> vector<8x1xf32>
    %145 = vector.broadcast %144 : vector<8x1xf32> to vector<8x8xf32>
    %146 = arith.mulf %141, %145 : vector<8x8xf32>
    %147 = arith.truncf %146 : vector<8x8xf32> to vector<8x8xbf16>
    %148 = vector.broadcast %15 : vector<1x32xf32> to vector<8x32xf32>
    %149 = arith.mulf %128, %148 : vector<8x32xf32>
    %150 = arith.truncf %149 : vector<8x32xf32> to vector<8x32xbf16>
    %cst_57 = arith.constant dense<0.000000e+00> : vector<8x32xf32>
    %151 = tpu.matmul %147, %150, %cst_57 {dimension_numbers = #tpu.dot_dimension_numbers<[1], [0], [0], [1], [0, 0, 1, 1], [], []>} : vector<8x8xbf16>, vector<8x32xbf16>, vector<8x32xf32> -> vector<8x32xf32>
    %152 = arith.addf %129, %151 : vector<8x32xf32>
    %153 = arith.truncf %112 : vector<8x32xf32> to vector<8x32xbf16>
    %154 = vector.broadcast %22 : vector<1x32xf32> to vector<8x32xf32>
    %155 = arith.mulf %120, %154 : vector<8x32xf32>
    %156 = arith.truncf %155 : vector<8x32xf32> to vector<8x32xbf16>
    %cst_58 = arith.constant dense<0.000000e+00> : vector<8x8xf32>
    %157 = tpu.matmul %153, %156, %cst_58 {dimension_numbers = #tpu.dot_dimension_numbers<[1], [1], [0], [0], [0, 0, 1, 0], [], []>} : vector<8x32xbf16>, vector<8x32xbf16>, vector<8x8xf32> -> vector<8x8xf32>
    %cst_59 = arith.constant -9.99999984E+17 : f32
    %158 = vector.broadcast %cst_59 : f32 to vector<8x8xf32>
    %159 = arith.select %102, %158, %157 : vector<8x8xi1>, vector<8x8xf32>
    %cst_60 = arith.constant dense<0xFF800000> : vector<8xf32>
    %160 = vector.multi_reduction <maximumf>, %159, %cst_60 [1] : vector<8x8xf32> to vector<8xf32>
    %161 = vector.shape_cast %160 : vector<8xf32> to vector<8x1xf32>
    %162 = vector.broadcast %161 : vector<8x1xf32> to vector<8x8xf32>
    %163 = arith.subf %159, %162 : vector<8x8xf32>
    %164 = math.exp %163 : vector<8x8xf32>
    %cst_61 = arith.constant dense<0.000000e+00> : vector<8xf32>
    %165 = vector.multi_reduction <add>, %164, %cst_61 [1] : vector<8x8xf32> to vector<8xf32>
    %166 = vector.shape_cast %165 : vector<8xf32> to vector<8x1xf32>
    %167 = tpu.reciprocal %166 {approx = true} : vector<8x1xf32> -> vector<8x1xf32>
    %168 = vector.broadcast %167 : vector<8x1xf32> to vector<8x8xf32>
    %169 = arith.mulf %164, %168 : vector<8x8xf32>
    %170 = arith.truncf %169 : vector<8x8xf32> to vector<8x8xbf16>
    %171 = vector.broadcast %22 : vector<1x32xf32> to vector<8x32xf32>
    %172 = arith.mulf %128, %171 : vector<8x32xf32>
    %173 = arith.truncf %172 : vector<8x32xf32> to vector<8x32xbf16>
    %cst_62 = arith.constant dense<0.000000e+00> : vector<8x32xf32>
    %174 = tpu.matmul %170, %173, %cst_62 {dimension_numbers = #tpu.dot_dimension_numbers<[1], [0], [0], [1], [0, 0, 1, 1], [], []>} : vector<8x8xbf16>, vector<8x32xbf16>, vector<8x32xf32> -> vector<8x32xf32>
    %175 = arith.addf %152, %174 : vector<8x32xf32>
    %176 = arith.truncf %112 : vector<8x32xf32> to vector<8x32xbf16>
    %177 = vector.broadcast %29 : vector<1x32xf32> to vector<8x32xf32>
    %178 = arith.mulf %120, %177 : vector<8x32xf32>
    %179 = arith.truncf %178 : vector<8x32xf32> to vector<8x32xbf16>
    %cst_63 = arith.constant dense<0.000000e+00> : vector<8x8xf32>
    %180 = tpu.matmul %176, %179, %cst_63 {dimension_numbers = #tpu.dot_dimension_numbers<[1], [1], [0], [0], [0, 0, 1, 0], [], []>} : vector<8x32xbf16>, vector<8x32xbf16>, vector<8x8xf32> -> vector<8x8xf32>
    %cst_64 = arith.constant -9.99999984E+17 : f32
    %181 = vector.broadcast %cst_64 : f32 to vector<8x8xf32>
    %182 = arith.select %102, %181, %180 : vector<8x8xi1>, vector<8x8xf32>
    %cst_65 = arith.constant dense<0xFF800000> : vector<8xf32>
    %183 = vector.multi_reduction <maximumf>, %182, %cst_65 [1] : vector<8x8xf32> to vector<8xf32>
    %184 = vector.shape_cast %183 : vector<8xf32> to vector<8x1xf32>
    %185 = vector.broadcast %184 : vector<8x1xf32> to vector<8x8xf32>
    %186 = arith.subf %182, %185 : vector<8x8xf32>
    %187 = math.exp %186 : vector<8x8xf32>
    %cst_66 = arith.constant dense<0.000000e+00> : vector<8xf32>
    %188 = vector.multi_reduction <add>, %187, %cst_66 [1] : vector<8x8xf32> to vector<8xf32>
    %189 = vector.shape_cast %188 : vector<8xf32> to vector<8x1xf32>
    %190 = tpu.reciprocal %189 {approx = true} : vector<8x1xf32> -> vector<8x1xf32>
    %191 = vector.broadcast %190 : vector<8x1xf32> to vector<8x8xf32>
    %192 = arith.mulf %187, %191 : vector<8x8xf32>
    %193 = arith.truncf %192 : vector<8x8xf32> to vector<8x8xbf16>
    %194 = vector.broadcast %29 : vector<1x32xf32> to vector<8x32xf32>
    %195 = arith.mulf %128, %194 : vector<8x32xf32>
    %196 = arith.truncf %195 : vector<8x32xf32> to vector<8x32xbf16>
    %cst_67 = arith.constant dense<0.000000e+00> : vector<8x32xf32>
    %197 = tpu.matmul %193, %196, %cst_67 {dimension_numbers = #tpu.dot_dimension_numbers<[1], [0], [0], [1], [0, 0, 1, 1], [], []>} : vector<8x8xbf16>, vector<8x32xbf16>, vector<8x32xf32> -> vector<8x32xf32>
    %198 = arith.addf %175, %197 : vector<8x32xf32>
    %199 = arith.truncf %112 : vector<8x32xf32> to vector<8x32xbf16>
    %200 = vector.broadcast %36 : vector<1x32xf32> to vector<8x32xf32>
    %201 = arith.mulf %120, %200 : vector<8x32xf32>
    %202 = arith.truncf %201 : vector<8x32xf32> to vector<8x32xbf16>
    %cst_68 = arith.constant dense<0.000000e+00> : vector<8x8xf32>
    %203 = tpu.matmul %199, %202, %cst_68 {dimension_numbers = #tpu.dot_dimension_numbers<[1], [1], [0], [0], [0, 0, 1, 0], [], []>} : vector<8x32xbf16>, vector<8x32xbf16>, vector<8x8xf32> -> vector<8x8xf32>
    %cst_69 = arith.constant -9.99999984E+17 : f32
    %204 = vector.broadcast %cst_69 : f32 to vector<8x8xf32>
    %205 = arith.select %102, %204, %203 : vector<8x8xi1>, vector<8x8xf32>
    %cst_70 = arith.constant dense<0xFF800000> : vector<8xf32>
    %206 = vector.multi_reduction <maximumf>, %205, %cst_70 [1] : vector<8x8xf32> to vector<8xf32>
    %207 = vector.shape_cast %206 : vector<8xf32> to vector<8x1xf32>
    %208 = vector.broadcast %207 : vector<8x1xf32> to vector<8x8xf32>
    %209 = arith.subf %205, %208 : vector<8x8xf32>
    %210 = math.exp %209 : vector<8x8xf32>
    %cst_71 = arith.constant dense<0.000000e+00> : vector<8xf32>
    %211 = vector.multi_reduction <add>, %210, %cst_71 [1] : vector<8x8xf32> to vector<8xf32>
    %212 = vector.shape_cast %211 : vector<8xf32> to vector<8x1xf32>
    %213 = tpu.reciprocal %212 {approx = true} : vector<8x1xf32> -> vector<8x1xf32>
    %214 = vector.broadcast %213 : vector<8x1xf32> to vector<8x8xf32>
    %215 = arith.mulf %210, %214 : vector<8x8xf32>
    %216 = arith.truncf %215 : vector<8x8xf32> to vector<8x8xbf16>
    %217 = vector.broadcast %36 : vector<1x32xf32> to vector<8x32xf32>
    %218 = arith.mulf %128, %217 : vector<8x32xf32>
    %219 = arith.truncf %218 : vector<8x32xf32> to vector<8x32xbf16>
    %cst_72 = arith.constant dense<0.000000e+00> : vector<8x32xf32>
    %220 = tpu.matmul %216, %219, %cst_72 {dimension_numbers = #tpu.dot_dimension_numbers<[1], [0], [0], [1], [0, 0, 1, 1], [], []>} : vector<8x8xbf16>, vector<8x32xbf16>, vector<8x32xf32> -> vector<8x32xf32>
    %221 = arith.addf %198, %220 : vector<8x32xf32>
    %222 = arith.truncf %112 : vector<8x32xf32> to vector<8x32xbf16>
    %223 = vector.broadcast %43 : vector<1x32xf32> to vector<8x32xf32>
    %224 = arith.mulf %120, %223 : vector<8x32xf32>
    %225 = arith.truncf %224 : vector<8x32xf32> to vector<8x32xbf16>
    %cst_73 = arith.constant dense<0.000000e+00> : vector<8x8xf32>
    %226 = tpu.matmul %222, %225, %cst_73 {dimension_numbers = #tpu.dot_dimension_numbers<[1], [1], [0], [0], [0, 0, 1, 0], [], []>} : vector<8x32xbf16>, vector<8x32xbf16>, vector<8x8xf32> -> vector<8x8xf32>
    %cst_74 = arith.constant -9.99999984E+17 : f32
    %227 = vector.broadcast %cst_74 : f32 to vector<8x8xf32>
    %228 = arith.select %102, %227, %226 : vector<8x8xi1>, vector<8x8xf32>
    %cst_75 = arith.constant dense<0xFF800000> : vector<8xf32>
    %229 = vector.multi_reduction <maximumf>, %228, %cst_75 [1] : vector<8x8xf32> to vector<8xf32>
    %230 = vector.shape_cast %229 : vector<8xf32> to vector<8x1xf32>
    %231 = vector.broadcast %230 : vector<8x1xf32> to vector<8x8xf32>
    %232 = arith.subf %228, %231 : vector<8x8xf32>
    %233 = math.exp %232 : vector<8x8xf32>
    %cst_76 = arith.constant dense<0.000000e+00> : vector<8xf32>
    %234 = vector.multi_reduction <add>, %233, %cst_76 [1] : vector<8x8xf32> to vector<8xf32>
    %235 = vector.shape_cast %234 : vector<8xf32> to vector<8x1xf32>
    %236 = tpu.reciprocal %235 {approx = true} : vector<8x1xf32> -> vector<8x1xf32>
    %237 = vector.broadcast %236 : vector<8x1xf32> to vector<8x8xf32>
    %238 = arith.mulf %233, %237 : vector<8x8xf32>
    %239 = arith.truncf %238 : vector<8x8xf32> to vector<8x8xbf16>
    %240 = vector.broadcast %43 : vector<1x32xf32> to vector<8x32xf32>
    %241 = arith.mulf %128, %240 : vector<8x32xf32>
    %242 = arith.truncf %241 : vector<8x32xf32> to vector<8x32xbf16>
    %cst_77 = arith.constant dense<0.000000e+00> : vector<8x32xf32>
    %243 = tpu.matmul %239, %242, %cst_77 {dimension_numbers = #tpu.dot_dimension_numbers<[1], [0], [0], [1], [0, 0, 1, 1], [], []>} : vector<8x8xbf16>, vector<8x32xbf16>, vector<8x32xf32> -> vector<8x32xf32>
    %244 = arith.addf %221, %243 : vector<8x32xf32>
    %245 = arith.truncf %112 : vector<8x32xf32> to vector<8x32xbf16>
    %246 = vector.broadcast %50 : vector<1x32xf32> to vector<8x32xf32>
    %247 = arith.mulf %120, %246 : vector<8x32xf32>
    %248 = arith.truncf %247 : vector<8x32xf32> to vector<8x32xbf16>
    %cst_78 = arith.constant dense<0.000000e+00> : vector<8x8xf32>
    %249 = tpu.matmul %245, %248, %cst_78 {dimension_numbers = #tpu.dot_dimension_numbers<[1], [1], [0], [0], [0, 0, 1, 0], [], []>} : vector<8x32xbf16>, vector<8x32xbf16>, vector<8x8xf32> -> vector<8x8xf32>
    %cst_79 = arith.constant -9.99999984E+17 : f32
    %250 = vector.broadcast %cst_79 : f32 to vector<8x8xf32>
    %251 = arith.select %102, %250, %249 : vector<8x8xi1>, vector<8x8xf32>
    %cst_80 = arith.constant dense<0xFF800000> : vector<8xf32>
    %252 = vector.multi_reduction <maximumf>, %251, %cst_80 [1] : vector<8x8xf32> to vector<8xf32>
    %253 = vector.shape_cast %252 : vector<8xf32> to vector<8x1xf32>
    %254 = vector.broadcast %253 : vector<8x1xf32> to vector<8x8xf32>
    %255 = arith.subf %251, %254 : vector<8x8xf32>
    %256 = math.exp %255 : vector<8x8xf32>
    %cst_81 = arith.constant dense<0.000000e+00> : vector<8xf32>
    %257 = vector.multi_reduction <add>, %256, %cst_81 [1] : vector<8x8xf32> to vector<8xf32>
    %258 = vector.shape_cast %257 : vector<8xf32> to vector<8x1xf32>
    %259 = tpu.reciprocal %258 {approx = true} : vector<8x1xf32> -> vector<8x1xf32>
    %260 = vector.broadcast %259 : vector<8x1xf32> to vector<8x8xf32>
    %261 = arith.mulf %256, %260 : vector<8x8xf32>
    %262 = arith.truncf %261 : vector<8x8xf32> to vector<8x8xbf16>
    %263 = vector.broadcast %50 : vector<1x32xf32> to vector<8x32xf32>
    %264 = arith.mulf %128, %263 : vector<8x32xf32>
    %265 = arith.truncf %264 : vector<8x32xf32> to vector<8x32xbf16>
    %cst_82 = arith.constant dense<0.000000e+00> : vector<8x32xf32>
    %266 = tpu.matmul %262, %265, %cst_82 {dimension_numbers = #tpu.dot_dimension_numbers<[1], [0], [0], [1], [0, 0, 1, 1], [], []>} : vector<8x8xbf16>, vector<8x32xbf16>, vector<8x32xf32> -> vector<8x32xf32>
    %267 = arith.addf %244, %266 : vector<8x32xf32>
    %268 = arith.truncf %112 : vector<8x32xf32> to vector<8x32xbf16>
    %269 = vector.broadcast %57 : vector<1x32xf32> to vector<8x32xf32>
    %270 = arith.mulf %120, %269 : vector<8x32xf32>
    %271 = arith.truncf %270 : vector<8x32xf32> to vector<8x32xbf16>
    %cst_83 = arith.constant dense<0.000000e+00> : vector<8x8xf32>
    %272 = tpu.matmul %268, %271, %cst_83 {dimension_numbers = #tpu.dot_dimension_numbers<[1], [1], [0], [0], [0, 0, 1, 0], [], []>} : vector<8x32xbf16>, vector<8x32xbf16>, vector<8x8xf32> -> vector<8x8xf32>
    %cst_84 = arith.constant -9.99999984E+17 : f32
    %273 = vector.broadcast %cst_84 : f32 to vector<8x8xf32>
    %274 = arith.select %102, %273, %272 : vector<8x8xi1>, vector<8x8xf32>
    %cst_85 = arith.constant dense<0xFF800000> : vector<8xf32>
    %275 = vector.multi_reduction <maximumf>, %274, %cst_85 [1] : vector<8x8xf32> to vector<8xf32>
    %276 = vector.shape_cast %275 : vector<8xf32> to vector<8x1xf32>
    %277 = vector.broadcast %276 : vector<8x1xf32> to vector<8x8xf32>
    %278 = arith.subf %274, %277 : vector<8x8xf32>
    %279 = math.exp %278 : vector<8x8xf32>
    %cst_86 = arith.constant dense<0.000000e+00> : vector<8xf32>
    %280 = vector.multi_reduction <add>, %279, %cst_86 [1] : vector<8x8xf32> to vector<8xf32>
    %281 = vector.shape_cast %280 : vector<8xf32> to vector<8x1xf32>
    %282 = tpu.reciprocal %281 {approx = true} : vector<8x1xf32> -> vector<8x1xf32>
    %283 = vector.broadcast %282 : vector<8x1xf32> to vector<8x8xf32>
    %284 = arith.mulf %279, %283 : vector<8x8xf32>
    %285 = arith.truncf %284 : vector<8x8xf32> to vector<8x8xbf16>
    %286 = vector.broadcast %57 : vector<1x32xf32> to vector<8x32xf32>
    %287 = arith.mulf %128, %286 : vector<8x32xf32>
    %288 = arith.truncf %287 : vector<8x32xf32> to vector<8x32xbf16>
    %cst_87 = arith.constant dense<0.000000e+00> : vector<8x32xf32>
    %289 = tpu.matmul %285, %288, %cst_87 {dimension_numbers = #tpu.dot_dimension_numbers<[1], [0], [0], [1], [0, 0, 1, 1], [], []>} : vector<8x8xbf16>, vector<8x32xbf16>, vector<8x32xf32> -> vector<8x32xf32>
    %290 = arith.addf %267, %289 : vector<8x32xf32>
    %291 = arith.truncf %112 : vector<8x32xf32> to vector<8x32xbf16>
    %292 = vector.broadcast %64 : vector<1x32xf32> to vector<8x32xf32>
    %293 = arith.mulf %120, %292 : vector<8x32xf32>
    %294 = arith.truncf %293 : vector<8x32xf32> to vector<8x32xbf16>
    %cst_88 = arith.constant dense<0.000000e+00> : vector<8x8xf32>
    %295 = tpu.matmul %291, %294, %cst_88 {dimension_numbers = #tpu.dot_dimension_numbers<[1], [1], [0], [0], [0, 0, 1, 0], [], []>} : vector<8x32xbf16>, vector<8x32xbf16>, vector<8x8xf32> -> vector<8x8xf32>
    %cst_89 = arith.constant -9.99999984E+17 : f32
    %296 = vector.broadcast %cst_89 : f32 to vector<8x8xf32>
    %297 = arith.select %102, %296, %295 : vector<8x8xi1>, vector<8x8xf32>
    %cst_90 = arith.constant dense<0xFF800000> : vector<8xf32>
    %298 = vector.multi_reduction <maximumf>, %297, %cst_90 [1] : vector<8x8xf32> to vector<8xf32>
    %299 = vector.shape_cast %298 : vector<8xf32> to vector<8x1xf32>
    %300 = vector.broadcast %299 : vector<8x1xf32> to vector<8x8xf32>
    %301 = arith.subf %297, %300 : vector<8x8xf32>
    %302 = math.exp %301 : vector<8x8xf32>
    %cst_91 = arith.constant dense<0.000000e+00> : vector<8xf32>
    %303 = vector.multi_reduction <add>, %302, %cst_91 [1] : vector<8x8xf32> to vector<8xf32>
    %304 = vector.shape_cast %303 : vector<8xf32> to vector<8x1xf32>
    %305 = tpu.reciprocal %304 {approx = true} : vector<8x1xf32> -> vector<8x1xf32>
    %306 = vector.broadcast %305 : vector<8x1xf32> to vector<8x8xf32>
    %307 = arith.mulf %302, %306 : vector<8x8xf32>
    %308 = arith.truncf %307 : vector<8x8xf32> to vector<8x8xbf16>
    %309 = vector.broadcast %64 : vector<1x32xf32> to vector<8x32xf32>
    %310 = arith.mulf %128, %309 : vector<8x32xf32>
    %311 = arith.truncf %310 : vector<8x32xf32> to vector<8x32xbf16>
    %cst_92 = arith.constant dense<0.000000e+00> : vector<8x32xf32>
    %312 = tpu.matmul %308, %311, %cst_92 {dimension_numbers = #tpu.dot_dimension_numbers<[1], [0], [0], [1], [0, 0, 1, 1], [], []>} : vector<8x8xbf16>, vector<8x32xbf16>, vector<8x32xf32> -> vector<8x32xf32>
    %313 = arith.addf %290, %312 : vector<8x32xf32>
    %c3 = arith.constant 3 : index
    %c0_93 = arith.constant 0 : index
    %c0_94 = arith.constant 0 : index
    %314 = vector.load %arg5[%c3, %c0_93, %c0_94] : memref<4x32x32xbf16, #tpu.memory_space<vmem>>, vector<1x32x32xbf16>
    %315 = vector.shape_cast %314 : vector<1x32x32xbf16> to vector<32x32xbf16>
    %316 = arith.truncf %313 : vector<8x32xf32> to vector<8x32xbf16>
    %cst_95 = arith.constant dense<0.000000e+00> : vector<8x32xf32>
    %317 = tpu.matmul %316, %315, %cst_95 {dimension_numbers = #tpu.dot_dimension_numbers<[1], [0], [0], [1], [0, 0, 1, 1], [], []>} : vector<8x32xbf16>, vector<32x32xbf16>, vector<8x32xf32> -> vector<8x32xf32>
    %c3_96 = arith.constant 3 : index
    %c0_97 = arith.constant 0 : index
    %c0_98 = arith.constant 0 : index
    %318 = vector.load %arg6[%c3_96, %c0_97, %c0_98] : memref<4x1x32xf32, #tpu.memory_space<vmem>>, vector<1x1x32xf32>
    %319 = vector.shape_cast %318 : vector<1x1x32xf32> to vector<1x32xf32>
    %320 = vector.broadcast %319 : vector<1x32xf32> to vector<8x32xf32>
    %321 = arith.addf %317, %320 : vector<8x32xf32>
    %322 = arith.addf %321, %1 : vector<8x32xf32>
    %c1_99 = arith.constant 1 : index
    %c0_100 = arith.constant 0 : index
    %c0_101 = arith.constant 0 : index
    %323 = vector.load %arg9[%c1_99, %c0_100, %c0_101] : memref<3x1x32xf32, #tpu.memory_space<vmem>>, vector<1x1x32xf32>
    %324 = vector.shape_cast %323 : vector<1x1x32xf32> to vector<1x32xf32>
    %c1_102 = arith.constant 1 : index
    %c0_103 = arith.constant 0 : index
    %c0_104 = arith.constant 0 : index
    %325 = vector.load %arg10[%c1_102, %c0_103, %c0_104] : memref<3x1x32xf32, #tpu.memory_space<vmem>>, vector<1x1x32xf32>
    %326 = vector.shape_cast %325 : vector<1x1x32xf32> to vector<1x32xf32>
    %cst_105 = arith.constant dense<0.000000e+00> : vector<8xf32>
    %327 = vector.multi_reduction <add>, %322, %cst_105 [1] : vector<8x32xf32> to vector<8xf32>
    %328 = vector.shape_cast %327 : vector<8xf32> to vector<8x1xf32>
    %cst_106 = arith.constant 3.200000e+01 : f32
    %329 = vector.broadcast %cst_106 : f32 to vector<8x1xf32>
    %330 = arith.divf %328, %329 : vector<8x1xf32>
    %331 = vector.broadcast %330 : vector<8x1xf32> to vector<8x32xf32>
    %332 = arith.subf %322, %331 : vector<8x32xf32>
    %333 = arith.mulf %332, %332 : vector<8x32xf32>
    %cst_107 = arith.constant dense<0.000000e+00> : vector<8xf32>
    %334 = vector.multi_reduction <add>, %333, %cst_107 [1] : vector<8x32xf32> to vector<8xf32>
    %335 = vector.shape_cast %334 : vector<8xf32> to vector<8x1xf32>
    %cst_108 = arith.constant 0.0322580636 : f32
    %336 = vector.broadcast %cst_108 : f32 to vector<8x1xf32>
    %337 = arith.mulf %335, %336 : vector<8x1xf32>
    %338 = math.sqrt %337 : vector<8x1xf32>
    %cst_109 = arith.constant 9.99999997E-7 : f32
    %339 = vector.broadcast %cst_109 : f32 to vector<8x1xf32>
    %340 = arith.addf %338, %339 : vector<8x1xf32>
    %341 = tpu.reciprocal %340 {approx = true} : vector<8x1xf32> -> vector<8x1xf32>
    %342 = vector.broadcast %341 : vector<8x1xf32> to vector<8x32xf32>
    %343 = arith.mulf %332, %342 : vector<8x32xf32>
    %344 = vector.broadcast %324 : vector<1x32xf32> to vector<8x32xf32>
    %345 = arith.mulf %344, %343 : vector<8x32xf32>
    %346 = vector.broadcast %326 : vector<1x32xf32> to vector<8x32xf32>
    %347 = arith.addf %345, %346 : vector<8x32xf32>
    %348 = vector.shape_cast %7 : vector<1x8xf32> to vector<1x8xf32>
    %349 = vector.broadcast %348 : vector<1x8xf32> to vector<8x8xf32>
    %cst_110 = arith.constant 0.000000e+00 : f32
    %350 = vector.broadcast %cst_110 : f32 to vector<8x8xf32>
    %351 = arith.cmpf ogt, %349, %350 : vector<8x8xf32>
    %c0_111 = arith.constant 0 : index
    %c0_112 = arith.constant 0 : index
    %c0_113 = arith.constant 0 : index
    %352 = vector.load %arg7[%c0_111, %c0_112, %c0_113] : memref<4x32x32xbf16, #tpu.memory_space<vmem>>, vector<1x32x32xbf16>
    %353 = vector.shape_cast %352 : vector<1x32x32xbf16> to vector<32x32xbf16>
    %354 = arith.truncf %347 : vector<8x32xf32> to vector<8x32xbf16>
    %cst_114 = arith.constant dense<0.000000e+00> : vector<8x32xf32>
    %355 = tpu.matmul %354, %353, %cst_114 {dimension_numbers = #tpu.dot_dimension_numbers<[1], [0], [0], [1], [0, 0, 1, 1], [], []>} : vector<8x32xbf16>, vector<32x32xbf16>, vector<8x32xf32> -> vector<8x32xf32>
    %c0_115 = arith.constant 0 : index
    %c0_116 = arith.constant 0 : index
    %c0_117 = arith.constant 0 : index
    %356 = vector.load %arg8[%c0_115, %c0_116, %c0_117] : memref<4x1x32xf32, #tpu.memory_space<vmem>>, vector<1x1x32xf32>
    %357 = vector.shape_cast %356 : vector<1x1x32xf32> to vector<1x32xf32>
    %358 = vector.broadcast %357 : vector<1x32xf32> to vector<8x32xf32>
    %359 = arith.addf %355, %358 : vector<8x32xf32>
    %cst_118 = arith.constant 5.000000e-01 : f32
    %360 = vector.broadcast %cst_118 : f32 to vector<8x32xf32>
    %361 = arith.mulf %359, %360 : vector<8x32xf32>
    %c1_119 = arith.constant 1 : index
    %c0_120 = arith.constant 0 : index
    %c0_121 = arith.constant 0 : index
    %362 = vector.load %arg7[%c1_119, %c0_120, %c0_121] : memref<4x32x32xbf16, #tpu.memory_space<vmem>>, vector<1x32x32xbf16>
    %363 = vector.shape_cast %362 : vector<1x32x32xbf16> to vector<32x32xbf16>
    %364 = arith.truncf %3 : vector<8x32xf32> to vector<8x32xbf16>
    %cst_122 = arith.constant dense<0.000000e+00> : vector<8x32xf32>
    %365 = tpu.matmul %364, %363, %cst_122 {dimension_numbers = #tpu.dot_dimension_numbers<[1], [0], [0], [1], [0, 0, 1, 1], [], []>} : vector<8x32xbf16>, vector<32x32xbf16>, vector<8x32xf32> -> vector<8x32xf32>
    %c1_123 = arith.constant 1 : index
    %c0_124 = arith.constant 0 : index
    %c0_125 = arith.constant 0 : index
    %366 = vector.load %arg8[%c1_123, %c0_124, %c0_125] : memref<4x1x32xf32, #tpu.memory_space<vmem>>, vector<1x1x32xf32>
    %367 = vector.shape_cast %366 : vector<1x1x32xf32> to vector<1x32xf32>
    %368 = vector.broadcast %367 : vector<1x32xf32> to vector<8x32xf32>
    %369 = arith.addf %365, %368 : vector<8x32xf32>
    %c2_126 = arith.constant 2 : index
    %c0_127 = arith.constant 0 : index
    %c0_128 = arith.constant 0 : index
    %370 = vector.load %arg7[%c2_126, %c0_127, %c0_128] : memref<4x32x32xbf16, #tpu.memory_space<vmem>>, vector<1x32x32xbf16>
    %371 = vector.shape_cast %370 : vector<1x32x32xbf16> to vector<32x32xbf16>
    %372 = arith.truncf %3 : vector<8x32xf32> to vector<8x32xbf16>
    %cst_129 = arith.constant dense<0.000000e+00> : vector<8x32xf32>
    %373 = tpu.matmul %372, %371, %cst_129 {dimension_numbers = #tpu.dot_dimension_numbers<[1], [0], [0], [1], [0, 0, 1, 1], [], []>} : vector<8x32xbf16>, vector<32x32xbf16>, vector<8x32xf32> -> vector<8x32xf32>
    %c2_130 = arith.constant 2 : index
    %c0_131 = arith.constant 0 : index
    %c0_132 = arith.constant 0 : index
    %374 = vector.load %arg8[%c2_130, %c0_131, %c0_132] : memref<4x1x32xf32, #tpu.memory_space<vmem>>, vector<1x1x32xf32>
    %375 = vector.shape_cast %374 : vector<1x1x32xf32> to vector<1x32xf32>
    %376 = vector.broadcast %375 : vector<1x32xf32> to vector<8x32xf32>
    %377 = arith.addf %373, %376 : vector<8x32xf32>
    %cst_133 = arith.constant 0.000000e+00 : f32
    %378 = vector.broadcast %cst_133 : f32 to vector<8x32xf32>
    %379 = arith.truncf %361 : vector<8x32xf32> to vector<8x32xbf16>
    %380 = vector.broadcast %15 : vector<1x32xf32> to vector<8x32xf32>
    %381 = arith.mulf %369, %380 : vector<8x32xf32>
    %382 = arith.truncf %381 : vector<8x32xf32> to vector<8x32xbf16>
    %cst_134 = arith.constant dense<0.000000e+00> : vector<8x8xf32>
    %383 = tpu.matmul %379, %382, %cst_134 {dimension_numbers = #tpu.dot_dimension_numbers<[1], [1], [0], [0], [0, 0, 1, 0], [], []>} : vector<8x32xbf16>, vector<8x32xbf16>, vector<8x8xf32> -> vector<8x8xf32>
    %cst_135 = arith.constant -9.99999984E+17 : f32
    %384 = vector.broadcast %cst_135 : f32 to vector<8x8xf32>
    %385 = arith.select %351, %384, %383 : vector<8x8xi1>, vector<8x8xf32>
    %cst_136 = arith.constant dense<0xFF800000> : vector<8xf32>
    %386 = vector.multi_reduction <maximumf>, %385, %cst_136 [1] : vector<8x8xf32> to vector<8xf32>
    %387 = vector.shape_cast %386 : vector<8xf32> to vector<8x1xf32>
    %388 = vector.broadcast %387 : vector<8x1xf32> to vector<8x8xf32>
    %389 = arith.subf %385, %388 : vector<8x8xf32>
    %390 = math.exp %389 : vector<8x8xf32>
    %cst_137 = arith.constant dense<0.000000e+00> : vector<8xf32>
    %391 = vector.multi_reduction <add>, %390, %cst_137 [1] : vector<8x8xf32> to vector<8xf32>
    %392 = vector.shape_cast %391 : vector<8xf32> to vector<8x1xf32>
    %393 = tpu.reciprocal %392 {approx = true} : vector<8x1xf32> -> vector<8x1xf32>
    %394 = vector.broadcast %393 : vector<8x1xf32> to vector<8x8xf32>
    %395 = arith.mulf %390, %394 : vector<8x8xf32>
    %c0_138 = arith.constant 0 : index
    %c0_139 = arith.constant 0 : index
    %c0_140 = arith.constant 0 : index
    %396 = vector.load %arg16[%c0_138, %c0_139, %c0_140] : memref<1x8x8xf32, #tpu.memory_space<vmem>>, vector<1x8x8xf32>
    %397 = vector.shape_cast %396 : vector<1x8x8xf32> to vector<8x8xf32>
    %398 = vector.shape_cast %395 : vector<8x8xf32> to vector<1x8x8xf32>
    tpu.vector_store %arg16[%c0_138, %c0_139, %c0_140], %398 {strides = array<i32>} : memref<1x8x8xf32, #tpu.memory_space<vmem>>, vector<1x8x8xf32>,
    %399 = arith.truncf %395 : vector<8x8xf32> to vector<8x8xbf16>
    %400 = vector.broadcast %15 : vector<1x32xf32> to vector<8x32xf32>
    %401 = arith.mulf %377, %400 : vector<8x32xf32>
    %402 = arith.truncf %401 : vector<8x32xf32> to vector<8x32xbf16>
    %cst_141 = arith.constant dense<0.000000e+00> : vector<8x32xf32>
    %403 = tpu.matmul %399, %402, %cst_141 {dimension_numbers = #tpu.dot_dimension_numbers<[1], [0], [0], [1], [0, 0, 1, 1], [], []>} : vector<8x8xbf16>, vector<8x32xbf16>, vector<8x32xf32> -> vector<8x32xf32>
    %404 = arith.addf %378, %403 : vector<8x32xf32>
    %405 = arith.truncf %361 : vector<8x32xf32> to vector<8x32xbf16>
    %406 = vector.broadcast %22 : vector<1x32xf32> to vector<8x32xf32>
    %407 = arith.mulf %369, %406 : vector<8x32xf32>
    %408 = arith.truncf %407 : vector<8x32xf32> to vector<8x32xbf16>
    %cst_142 = arith.constant dense<0.000000e+00> : vector<8x8xf32>
    %409 = tpu.matmul %405, %408, %cst_142 {dimension_numbers = #tpu.dot_dimension_numbers<[1], [1], [0], [0], [0, 0, 1, 0], [], []>} : vector<8x32xbf16>, vector<8x32xbf16>, vector<8x8xf32> -> vector<8x8xf32>
    %cst_143 = arith.constant -9.99999984E+17 : f32
    %410 = vector.broadcast %cst_143 : f32 to vector<8x8xf32>
    %411 = arith.select %351, %410, %409 : vector<8x8xi1>, vector<8x8xf32>
    %cst_144 = arith.constant dense<0xFF800000> : vector<8xf32>
    %412 = vector.multi_reduction <maximumf>, %411, %cst_144 [1] : vector<8x8xf32> to vector<8xf32>
    %413 = vector.shape_cast %412 : vector<8xf32> to vector<8x1xf32>
    %414 = vector.broadcast %413 : vector<8x1xf32> to vector<8x8xf32>
    %415 = arith.subf %411, %414 : vector<8x8xf32>
    %416 = math.exp %415 : vector<8x8xf32>
    %cst_145 = arith.constant dense<0.000000e+00> : vector<8xf32>
    %417 = vector.multi_reduction <add>, %416, %cst_145 [1] : vector<8x8xf32> to vector<8xf32>
    %418 = vector.shape_cast %417 : vector<8xf32> to vector<8x1xf32>
    %419 = tpu.reciprocal %418 {approx = true} : vector<8x1xf32> -> vector<8x1xf32>
    %420 = vector.broadcast %419 : vector<8x1xf32> to vector<8x8xf32>
    %421 = arith.mulf %416, %420 : vector<8x8xf32>
    %422 = arith.truncf %421 : vector<8x8xf32> to vector<8x8xbf16>
    %423 = vector.broadcast %22 : vector<1x32xf32> to vector<8x32xf32>
    %424 = arith.mulf %377, %423 : vector<8x32xf32>
    %425 = arith.truncf %424 : vector<8x32xf32> to vector<8x32xbf16>
    %cst_146 = arith.constant dense<0.000000e+00> : vector<8x32xf32>
    %426 = tpu.matmul %422, %425, %cst_146 {dimension_numbers = #tpu.dot_dimension_numbers<[1], [0], [0], [1], [0, 0, 1, 1], [], []>} : vector<8x8xbf16>, vector<8x32xbf16>, vector<8x32xf32> -> vector<8x32xf32>
    %427 = arith.addf %404, %426 : vector<8x32xf32>
    %428 = arith.truncf %361 : vector<8x32xf32> to vector<8x32xbf16>
    %429 = vector.broadcast %29 : vector<1x32xf32> to vector<8x32xf32>
    %430 = arith.mulf %369, %429 : vector<8x32xf32>
    %431 = arith.truncf %430 : vector<8x32xf32> to vector<8x32xbf16>
    %cst_147 = arith.constant dense<0.000000e+00> : vector<8x8xf32>
    %432 = tpu.matmul %428, %431, %cst_147 {dimension_numbers = #tpu.dot_dimension_numbers<[1], [1], [0], [0], [0, 0, 1, 0], [], []>} : vector<8x32xbf16>, vector<8x32xbf16>, vector<8x8xf32> -> vector<8x8xf32>
    %cst_148 = arith.constant -9.99999984E+17 : f32
    %433 = vector.broadcast %cst_148 : f32 to vector<8x8xf32>
    %434 = arith.select %351, %433, %432 : vector<8x8xi1>, vector<8x8xf32>
    %cst_149 = arith.constant dense<0xFF800000> : vector<8xf32>
    %435 = vector.multi_reduction <maximumf>, %434, %cst_149 [1] : vector<8x8xf32> to vector<8xf32>
    %436 = vector.shape_cast %435 : vector<8xf32> to vector<8x1xf32>
    %437 = vector.broadcast %436 : vector<8x1xf32> to vector<8x8xf32>
    %438 = arith.subf %434, %437 : vector<8x8xf32>
    %439 = math.exp %438 : vector<8x8xf32>
    %cst_150 = arith.constant dense<0.000000e+00> : vector<8xf32>
    %440 = vector.multi_reduction <add>, %439, %cst_150 [1] : vector<8x8xf32> to vector<8xf32>
    %441 = vector.shape_cast %440 : vector<8xf32> to vector<8x1xf32>
    %442 = tpu.reciprocal %441 {approx = true} : vector<8x1xf32> -> vector<8x1xf32>
    %443 = vector.broadcast %442 : vector<8x1xf32> to vector<8x8xf32>
    %444 = arith.mulf %439, %443 : vector<8x8xf32>
    %445 = arith.truncf %444 : vector<8x8xf32> to vector<8x8xbf16>
    %446 = vector.broadcast %29 : vector<1x32xf32> to vector<8x32xf32>
    %447 = arith.mulf %377, %446 : vector<8x32xf32>
    %448 = arith.truncf %447 : vector<8x32xf32> to vector<8x32xbf16>
    %cst_151 = arith.constant dense<0.000000e+00> : vector<8x32xf32>
    %449 = tpu.matmul %445, %448, %cst_151 {dimension_numbers = #tpu.dot_dimension_numbers<[1], [0], [0], [1], [0, 0, 1, 1], [], []>} : vector<8x8xbf16>, vector<8x32xbf16>, vector<8x32xf32> -> vector<8x32xf32>
    %450 = arith.addf %427, %449 : vector<8x32xf32>
    %451 = arith.truncf %361 : vector<8x32xf32> to vector<8x32xbf16>
    %452 = vector.broadcast %36 : vector<1x32xf32> to vector<8x32xf32>
    %453 = arith.mulf %369, %452 : vector<8x32xf32>
    %454 = arith.truncf %453 : vector<8x32xf32> to vector<8x32xbf16>
    %cst_152 = arith.constant dense<0.000000e+00> : vector<8x8xf32>
    %455 = tpu.matmul %451, %454, %cst_152 {dimension_numbers = #tpu.dot_dimension_numbers<[1], [1], [0], [0], [0, 0, 1, 0], [], []>} : vector<8x32xbf16>, vector<8x32xbf16>, vector<8x8xf32> -> vector<8x8xf32>
    %cst_153 = arith.constant -9.99999984E+17 : f32
    %456 = vector.broadcast %cst_153 : f32 to vector<8x8xf32>
    %457 = arith.select %351, %456, %455 : vector<8x8xi1>, vector<8x8xf32>
    %cst_154 = arith.constant dense<0xFF800000> : vector<8xf32>
    %458 = vector.multi_reduction <maximumf>, %457, %cst_154 [1] : vector<8x8xf32> to vector<8xf32>
    %459 = vector.shape_cast %458 : vector<8xf32> to vector<8x1xf32>
    %460 = vector.broadcast %459 : vector<8x1xf32> to vector<8x8xf32>
    %461 = arith.subf %457, %460 : vector<8x8xf32>
    %462 = math.exp %461 : vector<8x8xf32>
    %cst_155 = arith.constant dense<0.000000e+00> : vector<8xf32>
    %463 = vector.multi_reduction <add>, %462, %cst_155 [1] : vector<8x8xf32> to vector<8xf32>
    %464 = vector.shape_cast %463 : vector<8xf32> to vector<8x1xf32>
    %465 = tpu.reciprocal %464 {approx = true} : vector<8x1xf32> -> vector<8x1xf32>
    %466 = vector.broadcast %465 : vector<8x1xf32> to vector<8x8xf32>
    %467 = arith.mulf %462, %466 : vector<8x8xf32>
    %468 = arith.truncf %467 : vector<8x8xf32> to vector<8x8xbf16>
    %469 = vector.broadcast %36 : vector<1x32xf32> to vector<8x32xf32>
    %470 = arith.mulf %377, %469 : vector<8x32xf32>
    %471 = arith.truncf %470 : vector<8x32xf32> to vector<8x32xbf16>
    %cst_156 = arith.constant dense<0.000000e+00> : vector<8x32xf32>
    %472 = tpu.matmul %468, %471, %cst_156 {dimension_numbers = #tpu.dot_dimension_numbers<[1], [0], [0], [1], [0, 0, 1, 1], [], []>} : vector<8x8xbf16>, vector<8x32xbf16>, vector<8x32xf32> -> vector<8x32xf32>
    %473 = arith.addf %450, %472 : vector<8x32xf32>
    %474 = arith.truncf %361 : vector<8x32xf32> to vector<8x32xbf16>
    %475 = vector.broadcast %43 : vector<1x32xf32> to vector<8x32xf32>
    %476 = arith.mulf %369, %475 : vector<8x32xf32>
    %477 = arith.truncf %476 : vector<8x32xf32> to vector<8x32xbf16>
    %cst_157 = arith.constant dense<0.000000e+00> : vector<8x8xf32>
    %478 = tpu.matmul %474, %477, %cst_157 {dimension_numbers = #tpu.dot_dimension_numbers<[1], [1], [0], [0], [0, 0, 1, 0], [], []>} : vector<8x32xbf16>, vector<8x32xbf16>, vector<8x8xf32> -> vector<8x8xf32>
    %cst_158 = arith.constant -9.99999984E+17 : f32
    %479 = vector.broadcast %cst_158 : f32 to vector<8x8xf32>
    %480 = arith.select %351, %479, %478 : vector<8x8xi1>, vector<8x8xf32>
    %cst_159 = arith.constant dense<0xFF800000> : vector<8xf32>
    %481 = vector.multi_reduction <maximumf>, %480, %cst_159 [1] : vector<8x8xf32> to vector<8xf32>
    %482 = vector.shape_cast %481 : vector<8xf32> to vector<8x1xf32>
    %483 = vector.broadcast %482 : vector<8x1xf32> to vector<8x8xf32>
    %484 = arith.subf %480, %483 : vector<8x8xf32>
    %485 = math.exp %484 : vector<8x8xf32>
    %cst_160 = arith.constant dense<0.000000e+00> : vector<8xf32>
    %486 = vector.multi_reduction <add>, %485, %cst_160 [1] : vector<8x8xf32> to vector<8xf32>
    %487 = vector.shape_cast %486 : vector<8xf32> to vector<8x1xf32>
    %488 = tpu.reciprocal %487 {approx = true} : vector<8x1xf32> -> vector<8x1xf32>
    %489 = vector.broadcast %488 : vector<8x1xf32> to vector<8x8xf32>
    %490 = arith.mulf %485, %489 : vector<8x8xf32>
    %491 = arith.truncf %490 : vector<8x8xf32> to vector<8x8xbf16>
    %492 = vector.broadcast %43 : vector<1x32xf32> to vector<8x32xf32>
    %493 = arith.mulf %377, %492 : vector<8x32xf32>
    %494 = arith.truncf %493 : vector<8x32xf32> to vector<8x32xbf16>
    %cst_161 = arith.constant dense<0.000000e+00> : vector<8x32xf32>
    %495 = tpu.matmul %491, %494, %cst_161 {dimension_numbers = #tpu.dot_dimension_numbers<[1], [0], [0], [1], [0, 0, 1, 1], [], []>} : vector<8x8xbf16>, vector<8x32xbf16>, vector<8x32xf32> -> vector<8x32xf32>
    %496 = arith.addf %473, %495 : vector<8x32xf32>
    %497 = arith.truncf %361 : vector<8x32xf32> to vector<8x32xbf16>
    %498 = vector.broadcast %50 : vector<1x32xf32> to vector<8x32xf32>
    %499 = arith.mulf %369, %498 : vector<8x32xf32>
    %500 = arith.truncf %499 : vector<8x32xf32> to vector<8x32xbf16>
    %cst_162 = arith.constant dense<0.000000e+00> : vector<8x8xf32>
    %501 = tpu.matmul %497, %500, %cst_162 {dimension_numbers = #tpu.dot_dimension_numbers<[1], [1], [0], [0], [0, 0, 1, 0], [], []>} : vector<8x32xbf16>, vector<8x32xbf16>, vector<8x8xf32> -> vector<8x8xf32>
    %cst_163 = arith.constant -9.99999984E+17 : f32
    %502 = vector.broadcast %cst_163 : f32 to vector<8x8xf32>
    %503 = arith.select %351, %502, %501 : vector<8x8xi1>, vector<8x8xf32>
    %cst_164 = arith.constant dense<0xFF800000> : vector<8xf32>
    %504 = vector.multi_reduction <maximumf>, %503, %cst_164 [1] : vector<8x8xf32> to vector<8xf32>
    %505 = vector.shape_cast %504 : vector<8xf32> to vector<8x1xf32>
    %506 = vector.broadcast %505 : vector<8x1xf32> to vector<8x8xf32>
    %507 = arith.subf %503, %506 : vector<8x8xf32>
    %508 = math.exp %507 : vector<8x8xf32>
    %cst_165 = arith.constant dense<0.000000e+00> : vector<8xf32>
    %509 = vector.multi_reduction <add>, %508, %cst_165 [1] : vector<8x8xf32> to vector<8xf32>
    %510 = vector.shape_cast %509 : vector<8xf32> to vector<8x1xf32>
    %511 = tpu.reciprocal %510 {approx = true} : vector<8x1xf32> -> vector<8x1xf32>
    %512 = vector.broadcast %511 : vector<8x1xf32> to vector<8x8xf32>
    %513 = arith.mulf %508, %512 : vector<8x8xf32>
    %514 = arith.truncf %513 : vector<8x8xf32> to vector<8x8xbf16>
    %515 = vector.broadcast %50 : vector<1x32xf32> to vector<8x32xf32>
    %516 = arith.mulf %377, %515 : vector<8x32xf32>
    %517 = arith.truncf %516 : vector<8x32xf32> to vector<8x32xbf16>
    %cst_166 = arith.constant dense<0.000000e+00> : vector<8x32xf32>
    %518 = tpu.matmul %514, %517, %cst_166 {dimension_numbers = #tpu.dot_dimension_numbers<[1], [0], [0], [1], [0, 0, 1, 1], [], []>} : vector<8x8xbf16>, vector<8x32xbf16>, vector<8x32xf32> -> vector<8x32xf32>
    %519 = arith.addf %496, %518 : vector<8x32xf32>
    %520 = arith.truncf %361 : vector<8x32xf32> to vector<8x32xbf16>
    %521 = vector.broadcast %57 : vector<1x32xf32> to vector<8x32xf32>
    %522 = arith.mulf %369, %521 : vector<8x32xf32>
    %523 = arith.truncf %522 : vector<8x32xf32> to vector<8x32xbf16>
    %cst_167 = arith.constant dense<0.000000e+00> : vector<8x8xf32>
    %524 = tpu.matmul %520, %523, %cst_167 {dimension_numbers = #tpu.dot_dimension_numbers<[1], [1], [0], [0], [0, 0, 1, 0], [], []>} : vector<8x32xbf16>, vector<8x32xbf16>, vector<8x8xf32> -> vector<8x8xf32>
    %cst_168 = arith.constant -9.99999984E+17 : f32
    %525 = vector.broadcast %cst_168 : f32 to vector<8x8xf32>
    %526 = arith.select %351, %525, %524 : vector<8x8xi1>, vector<8x8xf32>
    %cst_169 = arith.constant dense<0xFF800000> : vector<8xf32>
    %527 = vector.multi_reduction <maximumf>, %526, %cst_169 [1] : vector<8x8xf32> to vector<8xf32>
    %528 = vector.shape_cast %527 : vector<8xf32> to vector<8x1xf32>
    %529 = vector.broadcast %528 : vector<8x1xf32> to vector<8x8xf32>
    %530 = arith.subf %526, %529 : vector<8x8xf32>
    %531 = math.exp %530 : vector<8x8xf32>
    %cst_170 = arith.constant dense<0.000000e+00> : vector<8xf32>
    %532 = vector.multi_reduction <add>, %531, %cst_170 [1] : vector<8x8xf32> to vector<8xf32>
    %533 = vector.shape_cast %532 : vector<8xf32> to vector<8x1xf32>
    %534 = tpu.reciprocal %533 {approx = true} : vector<8x1xf32> -> vector<8x1xf32>
    %535 = vector.broadcast %534 : vector<8x1xf32> to vector<8x8xf32>
    %536 = arith.mulf %531, %535 : vector<8x8xf32>
    %537 = arith.truncf %536 : vector<8x8xf32> to vector<8x8xbf16>
    %538 = vector.broadcast %57 : vector<1x32xf32> to vector<8x32xf32>
    %539 = arith.mulf %377, %538 : vector<8x32xf32>
    %540 = arith.truncf %539 : vector<8x32xf32> to vector<8x32xbf16>
    %cst_171 = arith.constant dense<0.000000e+00> : vector<8x32xf32>
    %541 = tpu.matmul %537, %540, %cst_171 {dimension_numbers = #tpu.dot_dimension_numbers<[1], [0], [0], [1], [0, 0, 1, 1], [], []>} : vector<8x8xbf16>, vector<8x32xbf16>, vector<8x32xf32> -> vector<8x32xf32>
    %542 = arith.addf %519, %541 : vector<8x32xf32>
    %543 = arith.truncf %361 : vector<8x32xf32> to vector<8x32xbf16>
    %544 = vector.broadcast %64 : vector<1x32xf32> to vector<8x32xf32>
    %545 = arith.mulf %369, %544 : vector<8x32xf32>
    %546 = arith.truncf %545 : vector<8x32xf32> to vector<8x32xbf16>
    %cst_172 = arith.constant dense<0.000000e+00> : vector<8x8xf32>
    %547 = tpu.matmul %543, %546, %cst_172 {dimension_numbers = #tpu.dot_dimension_numbers<[1], [1], [0], [0], [0, 0, 1, 0], [], []>} : vector<8x32xbf16>, vector<8x32xbf16>, vector<8x8xf32> -> vector<8x8xf32>
    %cst_173 = arith.constant -9.99999984E+17 : f32
    %548 = vector.broadcast %cst_173 : f32 to vector<8x8xf32>
    %549 = arith.select %351, %548, %547 : vector<8x8xi1>, vector<8x8xf32>
    %cst_174 = arith.constant dense<0xFF800000> : vector<8xf32>
    %550 = vector.multi_reduction <maximumf>, %549, %cst_174 [1] : vector<8x8xf32> to vector<8xf32>
    %551 = vector.shape_cast %550 : vector<8xf32> to vector<8x1xf32>
    %552 = vector.broadcast %551 : vector<8x1xf32> to vector<8x8xf32>
    %553 = arith.subf %549, %552 : vector<8x8xf32>
    %554 = math.exp %553 : vector<8x8xf32>
    %cst_175 = arith.constant dense<0.000000e+00> : vector<8xf32>
    %555 = vector.multi_reduction <add>, %554, %cst_175 [1] : vector<8x8xf32> to vector<8xf32>
    %556 = vector.shape_cast %555 : vector<8xf32> to vector<8x1xf32>
    %557 = tpu.reciprocal %556 {approx = true} : vector<8x1xf32> -> vector<8x1xf32>
    %558 = vector.broadcast %557 : vector<8x1xf32> to vector<8x8xf32>
    %559 = arith.mulf %554, %558 : vector<8x8xf32>
    %560 = arith.truncf %559 : vector<8x8xf32> to vector<8x8xbf16>
    %561 = vector.broadcast %64 : vector<1x32xf32> to vector<8x32xf32>
    %562 = arith.mulf %377, %561 : vector<8x32xf32>
    %563 = arith.truncf %562 : vector<8x32xf32> to vector<8x32xbf16>
    %cst_176 = arith.constant dense<0.000000e+00> : vector<8x32xf32>
    %564 = tpu.matmul %560, %563, %cst_176 {dimension_numbers = #tpu.dot_dimension_numbers<[1], [0], [0], [1], [0, 0, 1, 1], [], []>} : vector<8x8xbf16>, vector<8x32xbf16>, vector<8x32xf32> -> vector<8x32xf32>
    %565 = arith.addf %542, %564 : vector<8x32xf32>
    %c3_177 = arith.constant 3 : index
    %c0_178 = arith.constant 0 : index
    %c0_179 = arith.constant 0 : index
    %566 = vector.load %arg7[%c3_177, %c0_178, %c0_179] : memref<4x32x32xbf16, #tpu.memory_space<vmem>>, vector<1x32x32xbf16>
    %567 = vector.shape_cast %566 : vector<1x32x32xbf16> to vector<32x32xbf16>
    %568 = arith.truncf %565 : vector<8x32xf32> to vector<8x32xbf16>
    %cst_180 = arith.constant dense<0.000000e+00> : vector<8x32xf32>
    %569 = tpu.matmul %568, %567, %cst_180 {dimension_numbers = #tpu.dot_dimension_numbers<[1], [0], [0], [1], [0, 0, 1, 1], [], []>} : vector<8x32xbf16>, vector<32x32xbf16>, vector<8x32xf32> -> vector<8x32xf32>
    %c3_181 = arith.constant 3 : index
    %c0_182 = arith.constant 0 : index
    %c0_183 = arith.constant 0 : index
    %570 = vector.load %arg8[%c3_181, %c0_182, %c0_183] : memref<4x1x32xf32, #tpu.memory_space<vmem>>, vector<1x1x32xf32>
    %571 = vector.shape_cast %570 : vector<1x1x32xf32> to vector<1x32xf32>
    %572 = vector.broadcast %571 : vector<1x32xf32> to vector<8x32xf32>
    %573 = arith.addf %569, %572 : vector<8x32xf32>
    %c0_184 = arith.constant 0 : index
    %c0_185 = arith.constant 0 : index
    %c0_186 = arith.constant 0 : index
    %574 = vector.load %arg18[%c0_184, %c0_185, %c0_186] : memref<1x8x32xf32, #tpu.memory_space<vmem>>, vector<1x8x32xf32>
    %575 = vector.shape_cast %574 : vector<1x8x32xf32> to vector<8x32xf32>
    %576 = vector.shape_cast %573 : vector<8x32xf32> to vector<1x8x32xf32>
    tpu.vector_store %arg18[%c0_184, %c0_185, %c0_186], %576 {strides = array<i32>} : memref<1x8x32xf32, #tpu.memory_space<vmem>>, vector<1x8x32xf32>,
    %577 = arith.addf %573, %322 : vector<8x32xf32>
    %c2_187 = arith.constant 2 : index
    %c0_188 = arith.constant 0 : index
    %c0_189 = arith.constant 0 : index
    %578 = vector.load %arg9[%c2_187, %c0_188, %c0_189] : memref<3x1x32xf32, #tpu.memory_space<vmem>>, vector<1x1x32xf32>
    %579 = vector.shape_cast %578 : vector<1x1x32xf32> to vector<1x32xf32>
    %c2_190 = arith.constant 2 : index
    %c0_191 = arith.constant 0 : index
    %c0_192 = arith.constant 0 : index
    %580 = vector.load %arg10[%c2_190, %c0_191, %c0_192] : memref<3x1x32xf32, #tpu.memory_space<vmem>>, vector<1x1x32xf32>
    %581 = vector.shape_cast %580 : vector<1x1x32xf32> to vector<1x32xf32>
    %cst_193 = arith.constant dense<0.000000e+00> : vector<8xf32>
    %582 = vector.multi_reduction <add>, %577, %cst_193 [1] : vector<8x32xf32> to vector<8xf32>
    %583 = vector.shape_cast %582 : vector<8xf32> to vector<8x1xf32>
    %cst_194 = arith.constant 3.200000e+01 : f32
    %584 = vector.broadcast %cst_194 : f32 to vector<8x1xf32>
    %585 = arith.divf %583, %584 : vector<8x1xf32>
    %586 = vector.broadcast %585 : vector<8x1xf32> to vector<8x32xf32>
    %587 = arith.subf %577, %586 : vector<8x32xf32>
    %588 = arith.mulf %587, %587 : vector<8x32xf32>
    %cst_195 = arith.constant dense<0.000000e+00> : vector<8xf32>
    %589 = vector.multi_reduction <add>, %588, %cst_195 [1] : vector<8x32xf32> to vector<8xf32>
    %590 = vector.shape_cast %589 : vector<8xf32> to vector<8x1xf32>
    %cst_196 = arith.constant 0.0322580636 : f32
    %591 = vector.broadcast %cst_196 : f32 to vector<8x1xf32>
    %592 = arith.mulf %590, %591 : vector<8x1xf32>
    %593 = math.sqrt %592 : vector<8x1xf32>
    %cst_197 = arith.constant 9.99999997E-7 : f32
    %594 = vector.broadcast %cst_197 : f32 to vector<8x1xf32>
    %595 = arith.addf %593, %594 : vector<8x1xf32>
    %596 = tpu.reciprocal %595 {approx = true} : vector<8x1xf32> -> vector<8x1xf32>
    %597 = vector.broadcast %596 : vector<8x1xf32> to vector<8x32xf32>
    %598 = arith.mulf %587, %597 : vector<8x32xf32>
    %599 = vector.broadcast %579 : vector<1x32xf32> to vector<8x32xf32>
    %600 = arith.mulf %599, %598 : vector<8x32xf32>
    %601 = vector.broadcast %581 : vector<1x32xf32> to vector<8x32xf32>
    %602 = arith.addf %600, %601 : vector<8x32xf32>
    %c0_198 = arith.constant 0 : index
    %c0_199 = arith.constant 0 : index
    %603 = vector.load %arg11[%c0_198, %c0_199] : memref<32x64xbf16, #tpu.memory_space<vmem>>, vector<32x64xbf16>
    %604 = arith.truncf %602 : vector<8x32xf32> to vector<8x32xbf16>
    %cst_200 = arith.constant dense<0.000000e+00> : vector<8x64xf32>
    %605 = tpu.matmul %604, %603, %cst_200 {dimension_numbers = #tpu.dot_dimension_numbers<[1], [0], [0], [1], [0, 0, 1, 1], [], []>} : vector<8x32xbf16>, vector<32x64xbf16>, vector<8x64xf32> -> vector<8x64xf32>
    %c0_201 = arith.constant 0 : index
    %c0_202 = arith.constant 0 : index
    %606 = vector.load %arg12[%c0_201, %c0_202] : memref<1x64xf32, #tpu.memory_space<vmem>>, vector<1x64xf32>
    %607 = vector.broadcast %606 : vector<1x64xf32> to vector<8x64xf32>
    %608 = arith.addf %605, %607 : vector<8x64xf32>
    %cst_203 = arith.constant 0.000000e+00 : f32
    %609 = vector.broadcast %cst_203 : f32 to vector<8x64xf32>
    %610 = arith.maximumf %608, %609 : vector<8x64xf32>
    %c0_204 = arith.constant 0 : index
    %c0_205 = arith.constant 0 : index
    %611 = vector.load %arg13[%c0_204, %c0_205] : memref<64x32xbf16, #tpu.memory_space<vmem>>, vector<64x32xbf16>
    %612 = arith.truncf %610 : vector<8x64xf32> to vector<8x64xbf16>
    %cst_206 = arith.constant dense<0.000000e+00> : vector<8x32xf32>
    %613 = tpu.matmul %612, %611, %cst_206 {dimension_numbers = #tpu.dot_dimension_numbers<[1], [0], [0], [1], [0, 0, 1, 1], [], []>} : vector<8x64xbf16>, vector<64x32xbf16>, vector<8x32xf32> -> vector<8x32xf32>
    %c0_207 = arith.constant 0 : index
    %c0_208 = arith.constant 0 : index
    %614 = vector.load %arg14[%c0_207, %c0_208] : memref<1x32xf32, #tpu.memory_space<vmem>>, vector<1x32xf32>
    %615 = vector.broadcast %614 : vector<1x32xf32> to vector<8x32xf32>
    %616 = arith.addf %613, %615 : vector<8x32xf32>
    %617 = arith.addf %616, %577 : vector<8x32xf32>
    %c0_209 = arith.constant 0 : index
    %c0_210 = arith.constant 0 : index
    %c0_211 = arith.constant 0 : index
    %618 = vector.load %arg15[%c0_209, %c0_210, %c0_211] : memref<1x8x32xf32, #tpu.memory_space<vmem>>, vector<1x8x32xf32>
    %619 = vector.shape_cast %618 : vector<1x8x32xf32> to vector<8x32xf32>
    %620 = vector.shape_cast %617 : vector<8x32xf32> to vector<1x8x32xf32>
    tpu.vector_store %arg15[%c0_209, %c0_210, %c0_211], %620 {strides = array<i32>} : memref<1x8x32xf32, #tpu.memory_space<vmem>>, vector<1x8x32xf32>,
    return
  }
  func.func @transform_0(%arg0: i32) -> (i32, i32, i32) {
    %c0_i32 = arith.constant 0 : i32
    %c0_i32_0 = arith.constant 0 : i32
    %c0_i32_1 = arith.constant 0 : i32
    return %arg0, %c0_i32, %c0_i32_0 : i32, i32, i32
  }
  func.func @transform_1(%arg0: i32) -> (i32, i32, i32) {
    %c0_i32 = arith.constant 0 : i32
    %c0_i32_0 = arith.constant 0 : i32
    %c0_i32_1 = arith.constant 0 : i32
    return %arg0, %c0_i32, %c0_i32_0 : i32, i32, i32
  }
  func.func @transform_2(%arg0: i32) -> (i32, i32, i32) {
    %c0_i32 = arith.constant 0 : i32
    %c0_i32_0 = arith.constant 0 : i32
    %c0_i32_1 = arith.constant 0 : i32
    return %arg0, %c0_i32, %c0_i32_0 : i32, i32, i32
  }
  func.func @transform_3(%arg0: i32) -> (i32, i32, i32) {
    %c0_i32 = arith.constant 0 : i32
    %c0_i32_0 = arith.constant 0 : i32
    %c0_i32_1 = arith.constant 0 : i32
    return %arg0, %c0_i32, %c0_i32_0 : i32, i32, i32
  }
  func.func @transform_4(%arg0: i32) -> (i32, i32, i32) {
    %c0_i32 = arith.constant 0 : i32
    %c0_i32_0 = arith.constant 0 : i32
    %c0_i32_1 = arith.constant 0 : i32
    %c0_i32_2 = arith.constant 0 : i32
    return %c0_i32, %c0_i32_0, %c0_i32_1 : i32, i32, i32
  }
  func.func @transform_5(%arg0: i32) -> (i32, i32, i32) {
    %c0_i32 = arith.constant 0 : i32
    %c0_i32_0 = arith.constant 0 : i32
    %c0_i32_1 = arith.constant 0 : i32
    %c0_i32_2 = arith.constant 0 : i32
    return %c0_i32, %c0_i32_0, %c0_i32_1 : i32, i32, i32
  }
  func.func @transform_6(%arg0: i32) -> (i32, i32, i32) {
    %c0_i32 = arith.constant 0 : i32
    %c0_i32_0 = arith.constant 0 : i32
    %c0_i32_1 = arith.constant 0 : i32
    %c0_i32_2 = arith.constant 0 : i32
    return %c0_i32, %c0_i32_0, %c0_i32_1 : i32, i32, i32
  }
  func.func @transform_7(%arg0: i32) -> (i32, i32, i32) {
    %c0_i32 = arith.constant 0 : i32
    %c0_i32_0 = arith.constant 0 : i32
    %c0_i32_1 = arith.constant 0 : i32
    %c0_i32_2 = arith.constant 0 : i32
    return %c0_i32, %c0_i32_0, %c0_i32_1 : i32, i32, i32
  }
  func.func @transform_8(%arg0: i32) -> (i32, i32, i32) {
    %c0_i32 = arith.constant 0 : i32
    %c0_i32_0 = arith.constant 0 : i32
    %c0_i32_1 = arith.constant 0 : i32
    %c0_i32_2 = arith.constant 0 : i32
    return %c0_i32, %c0_i32_0, %c0_i32_1 : i32, i32, i32
  }
  func.func @transform_9(%arg0: i32) -> (i32, i32, i32) {
    %c0_i32 = arith.constant 0 : i32
    %c0_i32_0 = arith.constant 0 : i32
    %c0_i32_1 = arith.constant 0 : i32
    %c0_i32_2 = arith.constant 0 : i32
    return %c0_i32, %c0_i32_0, %c0_i32_1 : i32, i32, i32
  }
  func.func @transform_10(%arg0: i32) -> (i32, i32) {
    %c0_i32 = arith.constant 0 : i32
    %c0_i32_0 = arith.constant 0 : i32
    %c0_i32_1 = arith.constant 0 : i32
    return %c0_i32, %c0_i32_0 : i32, i32
  }
  func.func @transform_11(%arg0: i32) -> (i32, i32) {
    %c0_i32 = arith.constant 0 : i32
    %c0_i32_0 = arith.constant 0 : i32
    %c0_i32_1 = arith.constant 0 : i32
    return %c0_i32, %c0_i32_0 : i32, i32
  }
  func.func @transform_12(%arg0: i32) -> (i32, i32) {
    %c0_i32 = arith.constant 0 : i32
    %c0_i32_0 = arith.constant 0 : i32
    %c0_i32_1 = arith.constant 0 : i32
    return %c0_i32, %c0_i32_0 : i32, i32
  }
  func.func @transform_13(%arg0: i32) -> (i32, i32) {
    %c0_i32 = arith.constant 0 : i32
    %c0_i32_0 = arith.constant 0 : i32
    %c0_i32_1 = arith.constant 0 : i32
    return %c0_i32, %c0_i32_0 : i32, i32
  }
  func.func @transform_14(%arg0: i32) -> (i32, i32, i32) {
    %c0_i32 = arith.constant 0 : i32
    %c0_i32_0 = arith.constant 0 : i32
    %c0_i32_1 = arith.constant 0 : i32
    return %arg0, %c0_i32, %c0_i32_0 : i32, i32, i32
  }
  func.func @transform_15(%arg0: i32) -> (i32, i32, i32) {
    %c0_i32 = arith.constant 0 : i32
    %c0_i32_0 = arith.constant 0 : i32
    %c0_i32_1 = arith.constant 0 : i32
    return %arg0, %c0_i32, %c0_i32_0 : i32, i32, i32
  }
  func.func @transform_16(%arg0: i32) -> (i32, i32, i32) {
    %c0_i32 = arith.constant 0 : i32
    %c0_i32_0 = arith.constant 0 : i32
    %c0_i32_1 = arith.constant 0 : i32
    return %arg0, %c0_i32, %c0_i32_0 : i32, i32, i32
  }
  func.func @transform_17(%arg0: i32) -> (i32, i32, i32) {
    %c0_i32 = arith.constant 0 : i32
    %c0_i32_0 = arith.constant 0 : i32
    %c0_i32_1 = arith.constant 0 : i32
    return %arg0, %c0_i32, %c0_i32_0 : i32, i32, i32
  }
}

</mosaic_0001>

<llo_original>
// kernel: transformer_decoder_forward.5
$region0: #{transformer_decoder_forward.5}
  #allocation0 [shape = 'u32[]', space=smem, size = 0x4, offset = 0x4, fixed_abs, tag = 'smem constant byte address 0x4 - core index']
  #allocation1 [shape = 'u32[144,128]{1,0:T(1,128)}', space=vmem, size = 0x12000, scoped, tag = 'internal scratch']
  %s0 = inlined_call_operand.vmem [shape: f32[16,32], index: 0, kind: input, shape index: {}]
  %s1 = inlined_call_operand.vmem [shape: f32[16,32], index: 1, kind: input, shape index: {}]
  %s2 = inlined_call_operand.vmem [shape: f32[1,32], index: 2, kind: input, shape index: {}, may-alias: {2,4}]
  %s3 = inlined_call_operand.vmem [shape: f32[1,32], index: 3, kind: input, shape index: {}, may-alias: {3,5}]
  %s4 = inlined_call_operand.vmem [shape: f32[1,32], index: 4, kind: input, shape index: {}, may-alias: {2,4}]
  %s5 = inlined_call_operand.vmem [shape: f32[1,32], index: 5, kind: input, shape index: {}, may-alias: {3,5}]
  %s6 = inlined_call_operand.vmem [shape: f32[16,32], index: 6, kind: output, shape index: {0}]
  %s7 = inlined_call_operand.vmem [shape: f32[16,32], index: 7, kind: output, shape index: {1}]
  %8 = xla_tuple %s6, %s7
  %s9 = sld [smem:[#allocation0]]
  $region42: #{transformer_decoder_forward.5} parent=0
    _
  %s11 = ssub.s32 1, %s9
  %s12 = scalar_select 0, %s11, %s9
  // Predicated region
  $region2: #{transformer_decoder_forward.5} parent=0 // pred_check
    _
  $region3: #{transformer_decoder_forward.5} parent=0 // pred_check_branch
    %14 = sbr.rel (0) target = $region5
  $region4: #{transformer_decoder_forward.5} parent=0 // pred_region
    _
  $region5: #{transformer_decoder_forward.5} parent=0 // pred_fallthru
    _
  // Predicated region
  $region6: #{transformer_decoder_forward.5} parent=0 // pred_check
    _
  $region7: #{transformer_decoder_forward.5} parent=0 // pred_check_branch
    %16 = sbr.rel (0) target = $region9
  $region8: #{transformer_decoder_forward.5} parent=0 // pred_region
    _
  $region9: #{transformer_decoder_forward.5} parent=0 // pred_fallthru
    _
  // Predicated region
  $region10: #{transformer_decoder_forward.5} parent=0 // pred_check
    _
  $region11: #{transformer_decoder_forward.5} parent=0 // pred_check_branch
    %18 = sbr.rel (0) target = $region13
  $region12: #{transformer_decoder_forward.5} parent=0 // pred_region
    _
  $region13: #{transformer_decoder_forward.5} parent=0 // pred_fallthru
    _
  // Predicated region
  $region14: #{transformer_decoder_forward.5} parent=0 // pred_check
    _
  $region15: #{transformer_decoder_forward.5} parent=0 // pred_check_branch
    %20 = sbr.rel (0) target = $region17
  $region16: #{transformer_decoder_forward.5} parent=0 // pred_region
    _
  $region17: #{transformer_decoder_forward.5} parent=0 // pred_fallthru
    _
  // Predicated region
  $region18: #{transformer_decoder_forward.5} parent=0 // pred_check
    _
  $region19: #{transformer_decoder_forward.5} parent=0 // pred_check_branch
    %22 = sbr.rel (0) target = $region21
  $region20: #{transformer_decoder_forward.5} parent=0 // pred_region
    _
  $region21: #{transformer_decoder_forward.5} parent=0 // pred_fallthru
    _
  // Predicated region
  $region22: #{transformer_decoder_forward.5} parent=0 // pred_check
    _
  $region23: #{transformer_decoder_forward.5} parent=0 // pred_check_branch
    %24 = sbr.rel (0) target = $region25
  $region24: #{transformer_decoder_forward.5} parent=0 // pred_region
    _
  $region25: #{transformer_decoder_forward.5} parent=0 // pred_fallthru
    _
  %v25 = vld [vmem:[%s0] sm:$0xff]
  %v26 = vld [vmem:[%s0 + $0x8] sm:$0xff]
  %v27 = vld [vmem:[%s2] sm:$0x1]
  %v28 = vld [vmem:[%s3] sm:$0x1]
  %vm29 = vcmask 261120
  %v30 = vsel %vm29, %v25, 0.0
  %31 = vadd.xlane.f32.xlu0 %v30
  %v32 = vpop.xlane.xlu0 %31
  %v33 = vsel %vm29, %v26, 0.0
  %34 = vadd.xlane.f32.xlu0 %v33
  %v35 = vpop.xlane.xlu0 %34
  %v36 = vrcp.pop 32.0
  %v37 = vmul.f32 %v32, %v36
  %v38 = vmul.f32 %v35, %v36
  %v39 = vsub.f32 %v25, %v37
  %v40 = vsub.f32 %v26, %v38
  %v41 = vmul.f32 %v39, %v39
  %v42 = vmul.f32 %v40, %v40
  %v43 = vsel %vm29, %v41, 0.0
  %44 = vadd.xlane.f32.xlu0 %v43
  %v45 = vpop.xlane.xlu0 %44
  %v46 = vsel %vm29, %v42, 0.0
  %47 = vadd.xlane.f32.xlu0 %v46
  %v48 = vpop.xlane.xlu0 %47
  %v49 = vmul.f32 %v45, 0.032258064
  %v50 = vmul.f32 %v48, 0.032258064
  %v51 = vrsqrt.pop %v49
  %v52 = vmul.f32 %v49, %v51
  %vm53 = vcmp.eq.f32.partialorder %v49, inf
  %v54 = vsel %vm53, %v49, %v52
  %vm55 = vcmp.eq.f32.partialorder %v49, 0.0
  %v56 = vand.u32 %v49, 2147483648
  %v57 = vsel %vm55, %v56, %v54
  %v58 = vrsqrt.pop %v50
  %v59 = vmul.f32 %v50, %v58
  %vm60 = vcmp.eq.f32.partialorder %v50, inf
  %v61 = vsel %vm60, %v50, %v59
  %vm62 = vcmp.eq.f32.partialorder %v50, 0.0
  %v63 = vand.u32 %v50, 2147483648
  %v64 = vsel %vm62, %v63, %v61
  %v65 = vadd.f32 %v57, 1e-06
  %v66 = vadd.f32 %v64, 1e-06
  %v67 = vrcp.pop %v65
  %v68 = vrcp.pop %v66
  %v69 = vmul.f32 %v39, %v67
  %v70 = vmul.f32 %v40, %v68
  %v72 = vlaneseq
  %v73 = vshrl.u32 %v72, 7
  %v74 = vsub.s32 0, %v73
  %v75 = vrot.slane %v27, %v74
  %v77 = vmul.f32 %v75, %v69
  %v78 = vmul.f32 %v75, %v70
  %v80 = vlaneseq
  %v81 = vshrl.u32 %v80, 7
  %v82 = vsub.s32 0, %v81
  %v83 = vrot.slane %v28, %v82
  %v85 = vadd.f32 %v77, %v83
  %v86 = vadd.f32 %v78, %v83
  %87 = vst.msk [vmem:[%s6] sm:$0xff] %vm29, %v85
  %88 = vst.msk [vmem:[%s6 + $0x8] sm:$0xff] %vm29, %v86
  %v89 = vld [vmem:[%s1] sm:$0xff]
  %v90 = vld [vmem:[%s1 + $0x8] sm:$0xff]
  %v91 = vld [vmem:[%s4] sm:$0x1]
  %v92 = vld [vmem:[%s5] sm:$0x1]
  %v93 = vsel %vm29, %v89, 0.0
  %94 = vadd.xlane.f32.xlu0 %v93
  %v95 = vpop.xlane.xlu0 %94
  %v96 = vsel %vm29, %v90, 0.0
  %97 = vadd.xlane.f32.xlu0 %v96
  %v98 = vpop.xlane.xlu0 %97
  %v99 = vmul.f32 %v95, %v36
  %v100 = vmul.f32 %v98, %v36
  %v101 = vsub.f32 %v89, %v99
  %v102 = vsub.f32 %v90, %v100
  %v103 = vmul.f32 %v101, %v101
  %v104 = vmul.f32 %v102, %v102
  %v105 = vsel %vm29, %v103, 0.0
  %106 = vadd.xlane.f32.xlu0 %v105
  %v107 = vpop.xlane.xlu0 %106
  %v108 = vsel %vm29, %v104, 0.0
  %109 = vadd.xlane.f32.xlu0 %v108
  %v110 = vpop.xlane.xlu0 %109
  %v111 = vmul.f32 %v107, 0.032258064
  %v112 = vmul.f32 %v110, 0.032258064
  %v113 = vrsqrt.pop %v111
  %v114 = vmul.f32 %v111, %v113
  %vm115 = vcmp.eq.f32.partialorder %v111, inf
  %v116 = vsel %vm115, %v111, %v114
  %vm117 = vcmp.eq.f32.partialorder %v111, 0.0
  %v118 = vand.u32 %v111, 2147483648
  %v119 = vsel %vm117, %v118, %v116
  %v120 = vrsqrt.pop %v112
  %v121 = vmul.f32 %v112, %v120
  %vm122 = vcmp.eq.f32.partialorder %v112, inf
  %v123 = vsel %vm122, %v112, %v121
  %vm124 = vcmp.eq.f32.partialorder %v112, 0.0
  %v125 = vand.u32 %v112, 2147483648
  %v126 = vsel %vm124, %v125, %v123
  %v127 = vadd.f32 %v119, 1e-06
  %v128 = vadd.f32 %v126, 1e-06
  %v129 = vrcp.pop %v127
  %v130 = vrcp.pop %v128
  %v131 = vmul.f32 %v101, %v129
  %v132 = vmul.f32 %v102, %v130
  %v134 = vlaneseq
  %v135 = vshrl.u32 %v134, 7
  %v136 = vsub.s32 0, %v135
  %v137 = vrot.slane %v91, %v136
  %v139 = vmul.f32 %v137, %v131
  %v140 = vmul.f32 %v137, %v132
  %v142 = vlaneseq
  %v143 = vshrl.u32 %v142, 7
  %v144 = vsub.s32 0, %v143
  %v145 = vrot.slane %v92, %v144
  %v147 = vadd.f32 %v139, %v145
  %v148 = vadd.f32 %v140, %v145
  %149 = vst.msk [vmem:[%s7] sm:$0xff] %vm29, %v147
  %150 = vst.msk [vmem:[%s7 + $0x8] sm:$0xff] %vm29, %v148
  // Predicated region
  $region26: #{transformer_decoder_forward.5} parent=0 // pred_check
    _
  $region27: #{transformer_decoder_forward.5} parent=0 // pred_check_branch
    %152 = sbr.rel (0) target = $region29
  $region28: #{transformer_decoder_forward.5} parent=0 // pred_region
    _
  $region29: #{transformer_decoder_forward.5} parent=0 // pred_fallthru
    _
  // Predicated region
  $region30: #{transformer_decoder_forward.5} parent=0 // pred_check
    _
  $region31: #{transformer_decoder_forward.5} parent=0 // pred_check_branch
    %154 = sbr.rel (0) target = $region33
  $region32: #{transformer_decoder_forward.5} parent=0 // pred_region
    _
  $region33: #{transformer_decoder_forward.5} parent=0 // pred_fallthru
    _
  // Predicated region
  $region34: #{transformer_decoder_forward.5} parent=0 // pred_check
    _
  $region35: #{transformer_decoder_forward.5} parent=0 // pred_check_branch
    %156 = sbr.rel (0) target = $region37
  $region36: #{transformer_decoder_forward.5} parent=0 // pred_region
    _
  $region37: #{transformer_decoder_forward.5} parent=0 // pred_fallthru
    _
  // Predicated region
  $region38: #{transformer_decoder_forward.5} parent=0 // pred_check
    _
  $region39: #{transformer_decoder_forward.5} parent=0 // pred_check_branch
    %158 = sbr.rel (0) target = $region41
  $region40: #{transformer_decoder_forward.5} parent=0 // pred_region
    _
  $region41: #{transformer_decoder_forward.5} parent=0 // pred_fallthru
    _

// kernel: transformer_decoder_forward.4
$region0: #{transformer_decoder_forward.4}
  #allocation0 [shape = 'u32[]', space=smem, size = 0x4, offset = 0x4, fixed_abs, tag = 'smem constant byte address 0x4 - core index']
  #allocation1 [shape = 'u32[144,128]{1,0:T(1,128)}', space=vmem, size = 0x12000, scoped, tag = 'internal scratch']
  %s0 = inlined_call_operand.vmem [shape: f32[2,8,32], index: 0, kind: input, shape index: {}]
  %s1 = inlined_call_operand.vmem [shape: f32[2,8,32], index: 1, kind: input, shape index: {}]
  %s2 = inlined_call_operand.vmem [shape: f32[2,1,8], index: 2, kind: input, shape index: {}]
  %s3 = inlined_call_operand.vmem [shape: f32[2,1,8], index: 3, kind: input, shape index: {}]
  %s4 = inlined_call_operand.vmem [shape: bf16[4,32,32], index: 4, kind: input, shape index: {}]
  %s5 = inlined_call_operand.vmem [shape: f32[4,1,32], index: 5, kind: input, shape index: {}]
  %s6 = inlined_call_operand.vmem [shape: bf16[4,32,32], index: 6, kind: input, shape index: {}]
  %s7 = inlined_call_operand.vmem [shape: f32[4,1,32], index: 7, kind: input, shape index: {}]
  %s8 = inlined_call_operand.vmem [shape: f32[3,1,32], index: 8, kind: input, shape index: {}]
  %s9 = inlined_call_operand.vmem [shape: f32[3,1,32], index: 9, kind: input, shape index: {}]
  %s10 = inlined_call_operand.vmem [shape: bf16[32,64], index: 10, kind: input, shape index: {}]
  %s11 = inlined_call_operand.vmem [shape: f32[1,64], index: 11, kind: input, shape index: {}]
  %s12 = inlined_call_operand.vmem [shape: bf16[64,32], index: 12, kind: input, shape index: {}]
  %s13 = inlined_call_operand.vmem [shape: f32[1,32], index: 13, kind: input, shape index: {}]
  %s14 = inlined_call_operand.vmem [shape: f32[2,8,32], index: 14, kind: output, shape index: {0}]
  %s15 = inlined_call_operand.vmem [shape: f32[2,8,8], index: 15, kind: output, shape index: {1}]
  %s16 = inlined_call_operand.vmem [shape: f32[2,8,32], index: 16, kind: output, shape index: {2}]
  %s17 = inlined_call_operand.vmem [shape: f32[2,8,32], index: 17, kind: output, shape index: {3}]
  %18 = xla_tuple %s14, %s15, %s16, %s17
  %s19 = sld [smem:[#allocation0]]
  $region113: #{transformer_decoder_forward.4} parent=0
    _
  %s21 = ssub.s32 1, %s19
  %s22 = scalar_select 0, %s21, %s19
  loop: start=0, step=1, limit=4
  $region2: #{transformer_decoder_forward.4} parent=0 // loop_pre_header
    _
  $region3: #{transformer_decoder_forward.4} parent=0 // loop_header
    %s24 = sphi 0, %s28
    %p25 = scmp.ge.s32.totalorder %s24, 4
    %s34 = sphi 0, %s36
    %s37 = sphi 0, %s34
    %s38 = sphi 0, %s37
    %s54 = sphi 0, %s38
    %s60 = sphi 0, %s62
    %s63 = sphi 0, %s60
    %s64 = sphi 0, %s63
    %s80 = sphi 0, %s64
    %s86 = sphi 0, %s88
    %s89 = sphi 0, %s86
    %s90 = sphi 0, %s89
    %s106 = sphi 0, %s90
    %s112 = sphi 0, %s114
    %s115 = sphi 0, %s112
    %s116 = sphi 0, %s115
    %s132 = sphi 0, %s116
    %s136 = sphi 0, %s136
    %s138 = sphi 0, %s136
    %s139 = sphi 0, %s138
    %s153 = sphi 0, %s139
    %s157 = sphi 0, %s157
    %s159 = sphi 0, %s157
    %s160 = sphi 0, %s159
    %s174 = sphi 0, %s160
    %s178 = sphi 0, %s178
    %s180 = sphi 0, %s178
    %s181 = sphi 0, %s180
    %s195 = sphi 0, %s181
    %s199 = sphi 0, %s199
    %s201 = sphi 0, %s199
    %s202 = sphi 0, %s201
    %s216 = sphi 0, %s202
    %s220 = sphi 0, %s220
    %s222 = sphi 0, %s220
    %s223 = sphi 0, %s222
    %s237 = sphi 0, %s223
    %s241 = sphi 0, %s241
    %s243 = sphi 0, %s241
    %s244 = sphi 0, %s243
    %s258 = sphi 0, %s244
    %s262 = sphi 0, %s262
    %s264 = sphi 0, %s262
    %s265 = sphi 0, %s264
    %s279 = sphi 0, %s265
    %s283 = sphi 0, %s283
    %s285 = sphi 0, %s283
    %s286 = sphi 0, %s285
    %s300 = sphi 0, %s286
    %s304 = sphi 0, %s304
    %s306 = sphi 0, %s304
    %s307 = sphi 0, %s306
    %s321 = sphi 0, %s307
    %s325 = sphi 0, %s325
    %s327 = sphi 0, %s325
    %s328 = sphi 0, %s327
    %s342 = sphi 0, %s328
    %s348 = sphi 0, %s350
    %s351 = sphi 0, %s348
    %s352 = sphi 0, %s351
    %s368 = sphi 0, %s352
    %s374 = sphi 0, %s376
    %s377 = sphi 0, %s374
    %s378 = sphi 0, %s377
    %s394 = sphi 0, %s378
    %s400 = sphi 0, %s402
    %s403 = sphi 0, %s400
    %s404 = sphi 0, %s403
    %s420 = sphi 0, %s404
    %s426 = sphi 0, %s428
    %s429 = sphi 0, %s426
    %s430 = sphi 0, %s429
    %s446 = sphi 0, %s430
  $region4: #{transformer_decoder_forward.4} parent=0 // loop_header_branch
    %27 = sbr.rel (%p25) target = $region8
  $region5: #{transformer_decoder_forward.4} parent=0 // loop_body
    %s29 = ssub.s32 %s24, 1
    %s30 = ssub.s32 %s24, 2
    %s31 = sadd.s32 %s24, 1
    %s32 = ssub.s32 %s24, %s31
    %p33 = scmp.eq.s32.totalorder %s32, 0
    %s35 = sadd.s32 %s34, 1
    %s36 = scalar_select %p33, %s34, %s35
    %p39 = pneg %p33
    %p40 = scmp.eq.s32.totalorder %s24, 1
    %p41 = por %p39, %p40
    %p42 = scmp.ne.s32.totalorder %s34, %s37
    %p43 = scmp.eq.s32.totalorder %s24, 0
    %p44 = por %p42, %p43
    %p45 = scmp.ne.s32.totalorder %s34, %s37
    %p46 = scmp.eq.s32.totalorder %s29, 1
    %p47 = por %p45, %p46
    %p48 = scmp.ne.s32.totalorder %s37, %s38
    %p49 = scmp.eq.s32.totalorder %s29, 0
    %p50 = por %p48, %p49
    %p51 = scmp.ne.s32.totalorder %s37, %s38
    %p52 = scmp.eq.s32.totalorder %s30, 1
    %p53 = por %p51, %p52
    %p55 = scmp.ne.s32.totalorder %s38, %s54
    %p56 = scmp.eq.s32.totalorder %s30, 0
    %p57 = por %p55, %p56
    %s58 = ssub.s32 %s24, %s31
    %p59 = scmp.eq.s32.totalorder %s58, 0
    %s61 = sadd.s32 %s60, 1
    %s62 = scalar_select %p59, %s60, %s61
    %p65 = pneg %p59
    %p66 = scmp.eq.s32.totalorder %s24, 1
    %p67 = por %p65, %p66
    %p68 = scmp.ne.s32.totalorder %s60, %s63
    %p69 = scmp.eq.s32.totalorder %s24, 0
    %p70 = por %p68, %p69
    %p71 = scmp.ne.s32.totalorder %s60, %s63
    %p72 = scmp.eq.s32.totalorder %s29, 1
    %p73 = por %p71, %p72
    %p74 = scmp.ne.s32.totalorder %s63, %s64
    %p75 = scmp.eq.s32.totalorder %s29, 0
    %p76 = por %p74, %p75
    %p77 = scmp.ne.s32.totalorder %s63, %s64
    %p78 = scmp.eq.s32.totalorder %s30, 1
    %p79 = por %p77, %p78
    %p81 = scmp.ne.s32.totalorder %s64, %s80
    %p82 = scmp.eq.s32.totalorder %s30, 0
    %p83 = por %p81, %p82
    %s84 = ssub.s32 %s24, %s31
    %p85 = scmp.eq.s32.totalorder %s84, 0
    %s87 = sadd.s32 %s86, 1
    %s88 = scalar_select %p85, %s86, %s87
    %p91 = pneg %p85
    %p92 = scmp.eq.s32.totalorder %s24, 1
    %p93 = por %p91, %p92
    %p94 = scmp.ne.s32.totalorder %s86, %s89
    %p95 = scmp.eq.s32.totalorder %s24, 0
    %p96 = por %p94, %p95
    %p97 = scmp.ne.s32.totalorder %s86, %s89
    %p98 = scmp.eq.s32.totalorder %s29, 1
    %p99 = por %p97, %p98
    %p100 = scmp.ne.s32.totalorder %s89, %s90
    %p101 = scmp.eq.s32.totalorder %s29, 0
    %p102 = por %p100, %p101
    %p103 = scmp.ne.s32.totalorder %s89, %s90
    %p104 = scmp.eq.s32.totalorder %s30, 1
    %p105 = por %p103, %p104
    %p107 = scmp.ne.s32.totalorder %s90, %s106
    %p108 = scmp.eq.s32.totalorder %s30, 0
    %p109 = por %p107, %p108
    %s110 = ssub.s32 %s24, %s31
    %p111 = scmp.eq.s32.totalorder %s110, 0
    %s113 = sadd.s32 %s112, 1
    %s114 = scalar_select %p111, %s112, %s113
    %p117 = pneg %p111
    %p118 = scmp.eq.s32.totalorder %s24, 1
    %p119 = por %p117, %p118
    %p120 = scmp.ne.s32.totalorder %s112, %s115
    %p121 = scmp.eq.s32.totalorder %s24, 0
    %p122 = por %p120, %p121
    %p123 = scmp.ne.s32.totalorder %s112, %s115
    %p124 = scmp.eq.s32.totalorder %s29, 1
    %p125 = por %p123, %p124
    %p126 = scmp.ne.s32.totalorder %s115, %s116
    %p127 = scmp.eq.s32.totalorder %s29, 0
    %p128 = por %p126, %p127
    %p129 = scmp.ne.s32.totalorder %s115, %s116
    %p130 = scmp.eq.s32.totalorder %s30, 1
    %p131 = por %p129, %p130
    %p133 = scmp.ne.s32.totalorder %s116, %s132
    %p134 = scmp.eq.s32.totalorder %s30, 0
    %p135 = por %p133, %p134
    %s137 = sadd.s32 %s136, 1
    %p140 = scmp.eq.s32.totalorder %s24, 1
    %p141 = scmp.ne.s32.totalorder %s136, %s138
    %p142 = scmp.eq.s32.totalorder %s24, 0
    %p143 = por %p141, %p142
    %p144 = scmp.ne.s32.totalorder %s136, %s138
    %p145 = scmp.eq.s32.totalorder %s29, 1
    %p146 = por %p144, %p145
    %p147 = scmp.ne.s32.totalorder %s138, %s139
    %p148 = scmp.eq.s32.totalorder %s29, 0
    %p149 = por %p147, %p148
    %p150 = scmp.ne.s32.totalorder %s138, %s139
    %p151 = scmp.eq.s32.totalorder %s30, 1
    %p152 = por %p150, %p151
    %p154 = scmp.ne.s32.totalorder %s139, %s153
    %p155 = scmp.eq.s32.totalorder %s30, 0
    %p156 = por %p154, %p155
    %s158 = sadd.s32 %s157, 1
    %p161 = scmp.eq.s32.totalorder %s24, 1
    %p162 = scmp.ne.s32.totalorder %s157, %s159
    %p163 = scmp.eq.s32.totalorder %s24, 0
    %p164 = por %p162, %p163
    %p165 = scmp.ne.s32.totalorder %s157, %s159
    %p166 = scmp.eq.s32.totalorder %s29, 1
    %p167 = por %p165, %p166
    %p168 = scmp.ne.s32.totalorder %s159, %s160
    %p169 = scmp.eq.s32.totalorder %s29, 0
    %p170 = por %p168, %p169
    %p171 = scmp.ne.s32.totalorder %s159, %s160
    %p172 = scmp.eq.s32.totalorder %s30, 1
    %p173 = por %p171, %p172
    %p175 = scmp.ne.s32.totalorder %s160, %s174
    %p176 = scmp.eq.s32.totalorder %s30, 0
    %p177 = por %p175, %p176
    %s179 = sadd.s32 %s178, 1
    %p182 = scmp.eq.s32.totalorder %s24, 1
    %p183 = scmp.ne.s32.totalorder %s178, %s180
    %p184 = scmp.eq.s32.totalorder %s24, 0
    %p185 = por %p183, %p184
    %p186 = scmp.ne.s32.totalorder %s178, %s180
    %p187 = scmp.eq.s32.totalorder %s29, 1
    %p188 = por %p186, %p187
    %p189 = scmp.ne.s32.totalorder %s180, %s181
    %p190 = scmp.eq.s32.totalorder %s29, 0
    %p191 = por %p189, %p190
    %p192 = scmp.ne.s32.totalorder %s180, %s181
    %p193 = scmp.eq.s32.totalorder %s30, 1
    %p194 = por %p192, %p193
    %p196 = scmp.ne.s32.totalorder %s181, %s195
    %p197 = scmp.eq.s32.totalorder %s30, 0
    %p198 = por %p196, %p197
    %s200 = sadd.s32 %s199, 1
    %p203 = scmp.eq.s32.totalorder %s24, 1
    %p204 = scmp.ne.s32.totalorder %s199, %s201
    %p205 = scmp.eq.s32.totalorder %s24, 0
    %p206 = por %p204, %p205
    %p207 = scmp.ne.s32.totalorder %s199, %s201
    %p208 = scmp.eq.s32.totalorder %s29, 1
    %p209 = por %p207, %p208
    %p210 = scmp.ne.s32.totalorder %s201, %s202
    %p211 = scmp.eq.s32.totalorder %s29, 0
    %p212 = por %p210, %p211
    %p213 = scmp.ne.s32.totalorder %s201, %s202
    %p214 = scmp.eq.s32.totalorder %s30, 1
    %p215 = por %p213, %p214
    %p217 = scmp.ne.s32.totalorder %s202, %s216
    %p218 = scmp.eq.s32.totalorder %s30, 0
    %p219 = por %p217, %p218
    %s221 = sadd.s32 %s220, 1
    %p224 = scmp.eq.s32.totalorder %s24, 1
    %p225 = scmp.ne.s32.totalorder %s220, %s222
    %p226 = scmp.eq.s32.totalorder %s24, 0
    %p227 = por %p225, %p226
    %p228 = scmp.ne.s32.totalorder %s220, %s222
    %p229 = scmp.eq.s32.totalorder %s29, 1
    %p230 = por %p228, %p229
    %p231 = scmp.ne.s32.totalorder %s222, %s223
    %p232 = scmp.eq.s32.totalorder %s29, 0
    %p233 = por %p231, %p232
    %p234 = scmp.ne.s32.totalorder %s222, %s223
    %p235 = scmp.eq.s32.totalorder %s30, 1
    %p236 = por %p234, %p235
    %p238 = scmp.ne.s32.totalorder %s223, %s237
    %p239 = scmp.eq.s32.totalorder %s30, 0
    %p240 = por %p238, %p239
    %s242 = sadd.s32 %s241, 1
    %p245 = scmp.eq.s32.totalorder %s24, 1
    %p246 = scmp.ne.s32.totalorder %s241, %s243
    %p247 = scmp.eq.s32.totalorder %s24, 0
    %p248 = por %p246, %p247
    %p249 = scmp.ne.s32.totalorder %s241, %s243
    %p250 = scmp.eq.s32.totalorder %s29, 1
    %p251 = por %p249, %p250
    %p252 = scmp.ne.s32.totalorder %s243, %s244
    %p253 = scmp.eq.s32.totalorder %s29, 0
    %p254 = por %p252, %p253
    %p255 = scmp.ne.s32.totalorder %s243, %s244
    %p256 = scmp.eq.s32.totalorder %s30, 1
    %p257 = por %p255, %p256
    %p259 = scmp.ne.s32.totalorder %s244, %s258
    %p260 = scmp.eq.s32.totalorder %s30, 0
    %p261 = por %p259, %p260
    %s263 = sadd.s32 %s262, 1
    %p266 = scmp.eq.s32.totalorder %s24, 1
    %p267 = scmp.ne.s32.totalorder %s262, %s264
    %p268 = scmp.eq.s32.totalorder %s24, 0
    %p269 = por %p267, %p268
    %p270 = scmp.ne.s32.totalorder %s262, %s264
    %p271 = scmp.eq.s32.totalorder %s29, 1
    %p272 = por %p270, %p271
    %p273 = scmp.ne.s32.totalorder %s264, %s265
    %p274 = scmp.eq.s32.totalorder %s29, 0
    %p275 = por %p273, %p274
    %p276 = scmp.ne.s32.totalorder %s264, %s265
    %p277 = scmp.eq.s32.totalorder %s30, 1
    %p278 = por %p276, %p277
    %p280 = scmp.ne.s32.totalorder %s265, %s279
    %p281 = scmp.eq.s32.totalorder %s30, 0
    %p282 = por %p280, %p281
    %s284 = sadd.s32 %s283, 1
    %p287 = scmp.eq.s32.totalorder %s24, 1
    %p288 = scmp.ne.s32.totalorder %s283, %s285
    %p289 = scmp.eq.s32.totalorder %s24, 0
    %p290 = por %p288, %p289
    %p291 = scmp.ne.s32.totalorder %s283, %s285
    %p292 = scmp.eq.s32.totalorder %s29, 1
    %p293 = por %p291, %p292
    %p294 = scmp.ne.s32.totalorder %s285, %s286
    %p295 = scmp.eq.s32.totalorder %s29, 0
    %p296 = por %p294, %p295
    %p297 = scmp.ne.s32.totalorder %s285, %s286
    %p298 = scmp.eq.s32.totalorder %s30, 1
    %p299 = por %p297, %p298
    %p301 = scmp.ne.s32.totalorder %s286, %s300
    %p302 = scmp.eq.s32.totalorder %s30, 0
    %p303 = por %p301, %p302
    %s305 = sadd.s32 %s304, 1
    %p308 = scmp.eq.s32.totalorder %s24, 1
    %p309 = scmp.ne.s32.totalorder %s304, %s306
    %p310 = scmp.eq.s32.totalorder %s24, 0
    %p311 = por %p309, %p310
    %p312 = scmp.ne.s32.totalorder %s304, %s306
    %p313 = scmp.eq.s32.totalorder %s29, 1
    %p314 = por %p312, %p313
    %p315 = scmp.ne.s32.totalorder %s306, %s307
    %p316 = scmp.eq.s32.totalorder %s29, 0
    %p317 = por %p315, %p316
    %p318 = scmp.ne.s32.totalorder %s306, %s307
    %p319 = scmp.eq.s32.totalorder %s30, 1
    %p320 = por %p318, %p319
    %p322 = scmp.ne.s32.totalorder %s307, %s321
    %p323 = scmp.eq.s32.totalorder %s30, 0
    %p324 = por %p322, %p323
    %s326 = sadd.s32 %s325, 1
    %p329 = scmp.eq.s32.totalorder %s24, 1
    %p330 = scmp.ne.s32.totalorder %s325, %s327
    %p331 = scmp.eq.s32.totalorder %s24, 0
    %p332 = por %p330, %p331
    %p333 = scmp.ne.s32.totalorder %s325, %s327
    %p334 = scmp.eq.s32.totalorder %s29, 1
    %p335 = por %p333, %p334
    %p336 = scmp.ne.s32.totalorder %s327, %s328
    %p337 = scmp.eq.s32.totalorder %s29, 0
    %p338 = por %p336, %p337
    %p339 = scmp.ne.s32.totalorder %s327, %s328
    %p340 = scmp.eq.s32.totalorder %s30, 1
    %p341 = por %p339, %p340
    %p343 = scmp.ne.s32.totalorder %s328, %s342
    %p344 = scmp.eq.s32.totalorder %s30, 0
    %p345 = por %p343, %p344
    %s346 = ssub.s32 %s24, %s31
    %p347 = scmp.eq.s32.totalorder %s346, 0
    %s349 = sadd.s32 %s348, 1
    %s350 = scalar_select %p347, %s348, %s349
    %p353 = pneg %p347
    %p354 = scmp.eq.s32.totalorder %s24, 1
    %p355 = por %p353, %p354
    %p356 = scmp.ne.s32.totalorder %s348, %s351
    %p357 = scmp.eq.s32.totalorder %s24, 0
    %p358 = por %p356, %p357
    %p359 = scmp.ne.s32.totalorder %s348, %s351
    %p360 = scmp.eq.s32.totalorder %s29, 1
    %p361 = por %p359, %p360
    %p362 = scmp.ne.s32.totalorder %s351, %s352
    %p363 = scmp.eq.s32.totalorder %s29, 0
    %p364 = por %p362, %p363
    %p365 = scmp.ne.s32.totalorder %s351, %s352
    %p366 = scmp.eq.s32.totalorder %s30, 1
    %p367 = por %p365, %p366
    %p369 = scmp.ne.s32.totalorder %s352, %s368
    %p370 = scmp.eq.s32.totalorder %s30, 0
    %p371 = por %p369, %p370
    %s372 = ssub.s32 %s24, %s31
    %p373 = scmp.eq.s32.totalorder %s372, 0
    %s375 = sadd.s32 %s374, 1
    %s376 = scalar_select %p373, %s374, %s375
    %p379 = pneg %p373
    %p380 = scmp.eq.s32.totalorder %s24, 1
    %p381 = por %p379, %p380
    %p382 = scmp.ne.s32.totalorder %s374, %s377
    %p383 = scmp.eq.s32.totalorder %s24, 0
    %p384 = por %p382, %p383
    %p385 = scmp.ne.s32.totalorder %s374, %s377
    %p386 = scmp.eq.s32.totalorder %s29, 1
    %p387 = por %p385, %p386
    %p388 = scmp.ne.s32.totalorder %s377, %s378
    %p389 = scmp.eq.s32.totalorder %s29, 0
    %p390 = por %p388, %p389
    %p391 = scmp.ne.s32.totalorder %s377, %s378
    %p392 = scmp.eq.s32.totalorder %s30, 1
    %p393 = por %p391, %p392
    %p395 = scmp.ne.s32.totalorder %s378, %s394
    %p396 = scmp.eq.s32.totalorder %s30, 0
    %p397 = por %p395, %p396
    %s398 = ssub.s32 %s24, %s31
    %p399 = scmp.eq.s32.totalorder %s398, 0
    %s401 = sadd.s32 %s400, 1
    %s402 = scalar_select %p399, %s400, %s401
    %p405 = pneg %p399
    %p406 = scmp.eq.s32.totalorder %s24, 1
    %p407 = por %p405, %p406
    %p408 = scmp.ne.s32.totalorder %s400, %s403
    %p409 = scmp.eq.s32.totalorder %s24, 0
    %p410 = por %p408, %p409
    %p411 = scmp.ne.s32.totalorder %s400, %s403
    %p412 = scmp.eq.s32.totalorder %s29, 1
    %p413 = por %p411, %p412
    %p414 = scmp.ne.s32.totalorder %s403, %s404
    %p415 = scmp.eq.s32.totalorder %s29, 0
    %p416 = por %p414, %p415
    %p417 = scmp.ne.s32.totalorder %s403, %s404
    %p418 = scmp.eq.s32.totalorder %s30, 1
    %p419 = por %p417, %p418
    %p421 = scmp.ne.s32.totalorder %s404, %s420
    %p422 = scmp.eq.s32.totalorder %s30, 0
    %p423 = por %p421, %p422
    %s424 = ssub.s32 %s24, %s31
    %p425 = scmp.eq.s32.totalorder %s424, 0
    %s427 = sadd.s32 %s426, 1
    %s428 = scalar_select %p425, %s426, %s427
    %p431 = pneg %p425
    %p432 = scmp.eq.s32.totalorder %s24, 1
    %p433 = por %p431, %p432
    %p434 = scmp.ne.s32.totalorder %s426, %s429
    %p435 = scmp.eq.s32.totalorder %s24, 0
    %p436 = por %p434, %p435
    %p437 = scmp.ne.s32.totalorder %s426, %s429
    %p438 = scmp.eq.s32.totalorder %s29, 1
    %p439 = por %p437, %p438
    %p440 = scmp.ne.s32.totalorder %s429, %s430
    %p441 = scmp.eq.s32.totalorder %s29, 0
    %p442 = por %p440, %p441
    %p443 = scmp.ne.s32.totalorder %s429, %s430
    %p444 = scmp.eq.s32.totalorder %s30, 1
    %p445 = por %p443, %p444
    %p447 = scmp.ne.s32.totalorder %s430, %s446
    %p448 = scmp.eq.s32.totalorder %s30, 0
    %p449 = por %p447, %p448
    %p450 = scmp.le.s32.totalorder 1, %s24
    %p451 = scmp.lt.s32.totalorder %s24, 3
    %p452 = pnand %p450, %p451
    %p453 = pneg %p452
    // Predicated region
    $region9: #{transformer_decoder_forward.4} parent=5 // pred_check
      _
    $region10: #{transformer_decoder_forward.4} parent=5 // pred_check_branch
      %455 = sbr.rel (%p452) target = $region12
    $region11: #{transformer_decoder_forward.4} parent=5 // pred_region
      %s456 = ssub.s32 %s24, 1
      // Predicated region
      $region13: #{transformer_decoder_forward.4} parent=11 // pred_check
        %p457 = pneg %p149
      $region14: #{transformer_decoder_forward.4} parent=11 // pred_check_branch
        %459 = sbr.rel (%p457) target = $region16
      $region15: #{transformer_decoder_forward.4} parent=11 // pred_region
        _
      $region16: #{transformer_decoder_forward.4} parent=11 // pred_fallthru
        _
      // Predicated region
      $region17: #{transformer_decoder_forward.4} parent=11 // pred_check
        %p460 = pneg %p170
      $region18: #{transformer_decoder_forward.4} parent=11 // pred_check_branch
        %462 = sbr.rel (%p460) target = $region20
      $region19: #{transformer_decoder_forward.4} parent=11 // pred_region
        _
      $region20: #{transformer_decoder_forward.4} parent=11 // pred_fallthru
        _
      // Predicated region
      $region21: #{transformer_decoder_forward.4} parent=11 // pred_check
        %p463 = pneg %p191
      $region22: #{transformer_decoder_forward.4} parent=11 // pred_check_branch
        %465 = sbr.rel (%p463) target = $region24
      $region23: #{transformer_decoder_forward.4} parent=11 // pred_region
        _
      $region24: #{transformer_decoder_forward.4} parent=11 // pred_fallthru
        _
      // Predicated region
      $region25: #{transformer_decoder_forward.4} parent=11 // pred_check
        %p466 = pneg %p212
      $region26: #{transformer_decoder_forward.4} parent=11 // pred_check_branch
        %468 = sbr.rel (%p466) target = $region28
      $region27: #{transformer_decoder_forward.4} parent=11 // pred_region
        _
      $region28: #{transformer_decoder_forward.4} parent=11 // pred_fallthru
        _
      // Predicated region
      $region29: #{transformer_decoder_forward.4} parent=11 // pred_check
        %p469 = pneg %p233
      $region30: #{transformer_decoder_forward.4} parent=11 // pred_check_branch
        %471 = sbr.rel (%p469) target = $region32
      $region31: #{transformer_decoder_forward.4} parent=11 // pred_region
        _
      $region32: #{transformer_decoder_forward.4} parent=11 // pred_fallthru
        _
      // Predicated region
      $region33: #{transformer_decoder_forward.4} parent=11 // pred_check
        %p472 = pneg %p254
      $region34: #{transformer_decoder_forward.4} parent=11 // pred_check_branch
        %474 = sbr.rel (%p472) target = $region36
      $region35: #{transformer_decoder_forward.4} parent=11 // pred_region
        _
      $region36: #{transformer_decoder_forward.4} parent=11 // pred_fallthru
        _
      // Predicated region
      $region37: #{transformer_decoder_forward.4} parent=11 // pred_check
        %p475 = pneg %p275
      $region38: #{transformer_decoder_forward.4} parent=11 // pred_check_branch
        %477 = sbr.rel (%p475) target = $region40
      $region39: #{transformer_decoder_forward.4} parent=11 // pred_region
        _
      $region40: #{transformer_decoder_forward.4} parent=11 // pred_fallthru
        _
      // Predicated region
      $region41: #{transformer_decoder_forward.4} parent=11 // pred_check
        %p478 = pneg %p296
      $region42: #{transformer_decoder_forward.4} parent=11 // pred_check_branch
        %480 = sbr.rel (%p478) target = $region44
      $region43: #{transformer_decoder_forward.4} parent=11 // pred_region
        _
      $region44: #{transformer_decoder_forward.4} parent=11 // pred_fallthru
        _
      // Predicated region
      $region45: #{transformer_decoder_forward.4} parent=11 // pred_check
        %p481 = pneg %p317
      $region46: #{transformer_decoder_forward.4} parent=11 // pred_check_branch
        %483 = sbr.rel (%p481) target = $region48
      $region47: #{transformer_decoder_forward.4} parent=11 // pred_region
        _
      $region48: #{transformer_decoder_forward.4} parent=11 // pred_fallthru
        _
      // Predicated region
      $region49: #{transformer_decoder_forward.4} parent=11 // pred_check
        %p484 = pneg %p338
      $region50: #{transformer_decoder_forward.4} parent=11 // pred_check_branch
        %486 = sbr.rel (%p484) target = $region52
      $region51: #{transformer_decoder_forward.4} parent=11 // pred_region
        _
      $region52: #{transformer_decoder_forward.4} parent=11 // pred_fallthru
        _
    $region12: #{transformer_decoder_forward.4} parent=5 // pred_fallthru
      _
    %p487 = scmp.lt.s32.totalorder %s24, 2
    // Predicated region
    $region53: #{transformer_decoder_forward.4} parent=5 // pred_check
      %p488 = pneg %p487
    $region54: #{transformer_decoder_forward.4} parent=5 // pred_check_branch
      %490 = sbr.rel (%p488) target = $region56
    $region55: #{transformer_decoder_forward.4} parent=5 // pred_region
      // Predicated region
      $region57: #{transformer_decoder_forward.4} parent=55 // pred_check
        %p491 = pneg %p44
      $region58: #{transformer_decoder_forward.4} parent=55 // pred_check_branch
        %493 = sbr.rel (%p491) target = $region60
      $region59: #{transformer_decoder_forward.4} parent=55 // pred_region
        %p494 = scmp.lt.s32.totalorder %s24, 1
        %s495 = scalar_select %p494, %s24, 1
        %s496 = smul.addr %s495, 8
        %s497 = scalar_lea.vmem %s0, %s496
      $region60: #{transformer_decoder_forward.4} parent=55 // pred_fallthru
        _
      // Predicated region
      $region61: #{transformer_decoder_forward.4} parent=55 // pred_check
        %p498 = pneg %p70
      $region62: #{transformer_decoder_forward.4} parent=55 // pred_check_branch
        %500 = sbr.rel (%p498) target = $region64
      $region63: #{transformer_decoder_forward.4} parent=55 // pred_region
        %p501 = scmp.lt.s32.totalorder %s24, 1
        %s502 = scalar_select %p501, %s24, 1
        %s503 = smul.addr %s502, 8
        %s504 = scalar_lea.vmem %s1, %s503
      $region64: #{transformer_decoder_forward.4} parent=55 // pred_fallthru
        _
      // Predicated region
      $region65: #{transformer_decoder_forward.4} parent=55 // pred_check
        %p505 = pneg %p96
      $region66: #{transformer_decoder_forward.4} parent=55 // pred_check_branch
        %507 = sbr.rel (%p505) target = $region68
      $region67: #{transformer_decoder_forward.4} parent=55 // pred_region
        %p508 = scmp.lt.s32.totalorder %s24, 1
        %s509 = scalar_select %p508, %s24, 1
        %s510 = scalar_lea.vmem %s2, %s509
      $region68: #{transformer_decoder_forward.4} parent=55 // pred_fallthru
        _
      // Predicated region
      $region69: #{transformer_decoder_forward.4} parent=55 // pred_check
        %p511 = pneg %p122
      $region70: #{transformer_decoder_forward.4} parent=55 // pred_check_branch
        %513 = sbr.rel (%p511) target = $region72
      $region71: #{transformer_decoder_forward.4} parent=55 // pred_region
        %p514 = scmp.lt.s32.totalorder %s24, 1
        %s515 = scalar_select %p514, %s24, 1
        %s516 = scalar_lea.vmem %s3, %s515
      $region72: #{transformer_decoder_forward.4} parent=55 // pred_fallthru
        _
    $region56: #{transformer_decoder_forward.4} parent=5 // pred_fallthru
      _
    %p517 = scmp.le.s32.totalorder 1, %s24
    %p518 = scmp.lt.s32.totalorder %s24, 3
    %p519 = pnand %p517, %p518
    %p520 = pneg %p519
    // Predicated region
    $region73: #{transformer_decoder_forward.4} parent=5 // pred_check
      _
    $region74: #{transformer_decoder_forward.4} parent=5 // pred_check_branch
      %522 = sbr.rel (%p519) target = $region76
    $region75: #{transformer_decoder_forward.4} parent=5 // pred_region
      %s523 = ssub.s32 %s24, 1
      %p524 = scmp.lt.s32.totalorder %s29, 1
      %s525 = scalar_select %p524, %s29, 1
      %s526 = smul.addr %s525, 8
      %s527 = scalar_lea.vmem %s0, %s526
      %p528 = pneg %p50
      %p529 = pneg %p47
      %p530 = scmp.lt.s32.totalorder %s29, 1
      %s531 = scalar_select %p530, %s29, 1
      %s532 = smul.addr %s531, 8
      %s533 = scalar_lea.vmem %s1, %s532
      %p534 = pneg %p76
      %p535 = pneg %p73
      %p536 = scmp.lt.s32.totalorder %s29, 1
      %s537 = scalar_select %p536, %s29, 1
      %s538 = scalar_lea.vmem %s2, %s537
      %p539 = pneg %p102
      %p540 = pneg %p99
      %p541 = scmp.lt.s32.totalorder %s29, 1
      %s542 = scalar_select %p541, %s29, 1
      %s543 = scalar_lea.vmem %s3, %s542
      %p544 = pneg %p128
      %p545 = pneg %p125
      %p546 = pneg %p149
      %p547 = pneg %p146
      %p548 = pneg %p170
      %p549 = pneg %p167
      %p550 = pneg %p191
      %p551 = pneg %p188
      %p552 = pneg %p212
      %p553 = pneg %p209
      %p554 = pneg %p233
      %p555 = pneg %p230
      %p556 = pneg %p254
      %p557 = pneg %p251
      %p558 = pneg %p275
      %p559 = pneg %p272
      %p560 = pneg %p296
      %p561 = pneg %p293
      %p562 = pneg %p317
      %p563 = pneg %p314
      %p564 = pneg %p338
      %p565 = pneg %p335
      %p566 = pneg %p364
      %p567 = pneg %p361
      %p568 = scmp.lt.s32.totalorder %s29, 1
      %s569 = scalar_select %p568, %s29, 1
      %s570 = smul.addr %s569, 8
      %s571 = scalar_lea.vmem %s14, %s570
      %p572 = pneg %p390
      %p573 = pneg %p387
      %p574 = scmp.lt.s32.totalorder %s29, 1
      %s575 = scalar_select %p574, %s29, 1
      %s576 = smul.addr %s575, 8
      %s577 = scalar_lea.vmem %s15, %s576
      %p578 = pneg %p416
      %p579 = pneg %p413
      %p580 = scmp.lt.s32.totalorder %s29, 1
      %s581 = scalar_select %p580, %s29, 1
      %s582 = smul.addr %s581, 8
      %s583 = scalar_lea.vmem %s16, %s582
      %p584 = pneg %p442
      %p585 = pneg %p439
      %p586 = scmp.lt.s32.totalorder %s29, 1
      %s587 = scalar_select %p586, %s29, 1
      %s588 = smul.addr %s587, 8
      %s589 = scalar_lea.vmem %s17, %s588
      %p590 = scmp.lt.s32.totalorder %s29, 1
      %s591 = scalar_select %p590, %s29, 1
      %s592 = smul.addr %s591, 8
      %s593 = scalar_lea.vmem %s0, %s592
      %p594 = scmp.lt.s32.totalorder %s29, 1
      %s595 = scalar_select %p594, %s29, 1
      %s596 = smul.addr %s595, 8
      %s597 = scalar_lea.vmem %s1, %s596
      %p598 = scmp.lt.s32.totalorder %s29, 1
      %s599 = scalar_select %p598, %s29, 1
      %s600 = scalar_lea.vmem %s2, %s599
      %p601 = scmp.lt.s32.totalorder %s29, 1
      %s602 = scalar_select %p601, %s29, 1
      %s603 = scalar_lea.vmem %s3, %s602
      %p604 = scmp.lt.s32.totalorder %s29, 1
      %s605 = scalar_select %p604, %s29, 1
      %s606 = smul.addr %s605, 8
      %s607 = scalar_lea.vmem %s14, %s606
      %p608 = scmp.lt.s32.totalorder %s29, 1
      %s609 = scalar_select %p608, %s29, 1
      %s610 = smul.addr %s609, 8
      %s611 = scalar_lea.vmem %s15, %s610
      %p612 = scmp.lt.s32.totalorder %s29, 1
      %s613 = scalar_select %p612, %s29, 1
      %s614 = smul.addr %s613, 8
      %s615 = scalar_lea.vmem %s16, %s614
      %p616 = scmp.lt.s32.totalorder %s29, 1
      %s617 = scalar_select %p616, %s29, 1
      %s618 = smul.addr %s617, 8
      %s619 = scalar_lea.vmem %s17, %s618
      %v621 = vld [vmem:[%s593] sm:$0xff]
      %v622 = vld [vmem:[%s597] sm:$0xff]
      %v623 = vld [vmem:[%s600] sm:$0x1]
      %v624 = vld [vmem:[%s603] sm:$0x1]
      %v625 = vlaneseq
      %v626 = vand.u32 %v625, 127
      %vm627 = vcmp.ge.s32.totalorder %v626, 0
      %vm628 = vcmp.lt.s32.totalorder %v626, 4
      %vm629 = vmand %vm627, %vm628
      %v630 = vsel %vm629, 1, 0
      %v631 = vcvt.s32.f32 %v630
      %vm632 = vcmp.ge.s32.totalorder %v626, 4
      %vm633 = vcmp.lt.s32.totalorder %v626, 8
      %vm634 = vmand %vm632, %vm633
      %v635 = vsel %vm634, 1, 0
      %v636 = vcvt.s32.f32 %v635
      %vm637 = vcmp.ge.s32.totalorder %v626, 8
      %vm638 = vcmp.lt.s32.totalorder %v626, 12
      %vm639 = vmand %vm637, %vm638
      %v640 = vsel %vm639, 1, 0
      %v641 = vcvt.s32.f32 %v640
      %vm642 = vcmp.ge.s32.totalorder %v626, 12
      %vm643 = vcmp.lt.s32.totalorder %v626, 16
      %vm644 = vmand %vm642, %vm643
      %v645 = vsel %vm644, 1, 0
      %v646 = vcvt.s32.f32 %v645
      %vm647 = vcmp.ge.s32.totalorder %v626, 16
      %vm648 = vcmp.lt.s32.totalorder %v626, 20
      %vm649 = vmand %vm647, %vm648
      %v650 = vsel %vm649, 1, 0
      %v651 = vcvt.s32.f32 %v650
      %vm652 = vcmp.ge.s32.totalorder %v626, 20
      %vm653 = vcmp.lt.s32.totalorder %v626, 24
      %vm654 = vmand %vm652, %vm653
      %v655 = vsel %vm654, 1, 0
      %v656 = vcvt.s32.f32 %v655
      %vm657 = vcmp.ge.s32.totalorder %v626, 24
      %vm658 = vcmp.lt.s32.totalorder %v626, 28
      %vm659 = vmand %vm657, %vm658
      %v660 = vsel %vm659, 1, 0
      %v661 = vcvt.s32.f32 %v660
      %vm662 = vcmp.ge.s32.totalorder %v626, 28
      %vm663 = vcmp.lt.s32.totalorder %v626, 32
      %vm664 = vmand %vm662, %vm663
      %v665 = vsel %vm664, 1, 0
      %v666 = vcvt.s32.f32 %v665
      %v667 = vld [vmem:[%s8] sm:$0x1]
      %v668 = vld [vmem:[%s9] sm:$0x1]
      %vm669 = vcmask 261120
      %v670 = vsel %vm669, %v621, 0.0
      %671 = vadd.xlane.f32.xlu0 %v670
      %v672 = vpop.xlane.xlu0 %671
      %v673 = vrcp.pop 32.0
      %v674 = vmul.f32 %v672, %v673
      %v675 = vsub.f32 %v621, %v674
      %v676 = vmul.f32 %v675, %v675
      %v677 = vsel %vm669, %v676, 0.0
      %678 = vadd.xlane.f32.xlu0 %v677
      %v679 = vpop.xlane.xlu0 %678
      %v680 = vmul.f32 %v679, 0.032258064
      %v681 = vrsqrt.pop %v680
      %v682 = vmul.f32 %v680, %v681
      %vm683 = vcmp.eq.f32.partialorder %v680, inf
      %v684 = vsel %vm683, %v680, %v682
      %vm685 = vcmp.eq.f32.partialorder %v680, 0.0
      %v686 = vand.u32 %v680, 2147483648
      %v687 = vsel %vm685, %v686, %v684
      %v688 = vadd.f32 %v687, 1e-06
      %v689 = vrcp.pop %v688
      %v690 = vmul.f32 %v675, %v689
      %v692 = vlaneseq
      %v693 = vshrl.u32 %v692, 7
      %v694 = vsub.s32 0, %v693
      %v695 = vrot.slane %v667, %v694
      %v697 = vmul.f32 %v695, %v690
      %v699 = vlaneseq
      %v700 = vshrl.u32 %v699, 7
      %v701 = vsub.s32 0, %v700
      %v702 = vrot.slane %v668, %v701
      %v704 = vadd.f32 %v697, %v702
      %705 = vst.msk [vmem:[%s615] sm:$0xff] %vm669, %v704
      %v706 = vlaneseq
      %v707 = vshrl.u32 %v706, 7
      %vm708 = vcmp.gt.s32.totalorder %v626, %v707
      %v709 = vsel %vm708, 1, 0
      %v710 = vcvt.s32.f32 %v709
      %v712 = vlaneseq
      %v713 = vshrl.u32 %v712, 7
      %v714 = vsub.s32 0, %v713
      %v715 = vrot.slane %v623, %v714
      %v717 = vadd.f32 %v715, %v710
      %vm718 = vcmp.gt.f32.partialorder %v717, 0.0
      %v719 = vld [vmem:[%s4] sm:$0xf]
      %v720 = vld [vmem:[%s4 + $0x4] sm:$0xf]
      %v721 = vld [vmem:[%s4 + $0x8] sm:$0xf]
      %v722 = vld [vmem:[%s4 + $0xc] sm:$0xf]
      %v723 = vpack.c.bf16 %v704, %v704
      %v724 = vld [vmem:[%s5] sm:$0x1]
      %v726 = vlaneseq
      %v727 = vshrl.u32 %v726, 7
      %v728 = vsub.s32 0, %v727
      %v729 = vrot.slane %v724, %v728
      %v735 = vunpack.c.l.b16 %v719
      %v736 = vunpack.c.l.b16 %v720
      %v737 = vunpack.c.l.b16 %v721
      %v738 = vunpack.c.l.b16 %v722
      %v739 = vpack.c.b16 %v736, %v735
      %v740 = vpack.c.b16 %v738, %v737
      %v744 = vsel %vm669, %v723, 0
      %746 = vmatprep.subr.bf16.mxu0 0
      %747 = vmatpush1.bf16.msra.mxu0 %v739
      %748 = vmatprep.subr.bf16.mxu0 0
      %749 = vmatpush1.bf16.msra.mxu0 %v740
      %750 = vmatprep.subr.bf16.mxu0 0
      %751 = vmatpush1.bf16.msra.mxu0 0
      %752 = vmatprep.subr.bf16.mxu0 0
      %753 = vmatpush1.bf16.msra.mxu0 0
      %754 = vmatprep.subr.bf16.mxu0 0
      %755 = vmatpush1.bf16.msra.mxu0 0
      %756 = vmatprep.subr.bf16.mxu0 0
      %757 = vmatpush1.bf16.msra.mxu0 0
      %758 = vmatprep.subr.bf16.mxu0 0
      %759 = vmatpush1.bf16.msra.mxu0 0
      %760 = vmatprep.subr.bf16.mxu0 0
      %761 = vmatpush1.bf16.msra.mxu0 0
      %762 = vmatprep.subr.bf16.mxu0 0
      %763 = vmatpush1.bf16.msra.mxu0 0
      %764 = vmatprep.subr.bf16.mxu0 0
      %765 = vmatpush1.bf16.msra.mxu0 0
      %766 = vmatprep.subr.bf16.mxu0 0
      %767 = vmatpush1.bf16.msra.mxu0 0
      %768 = vmatprep.subr.bf16.mxu0 0
      %769 = vmatpush1.bf16.msra.mxu0 0
      %770 = vmatprep.subr.bf16.mxu0 0
      %771 = vmatpush1.bf16.msra.mxu0 0
      %772 = vmatprep.subr.bf16.mxu0 0
      %773 = vmatpush1.bf16.msra.mxu0 0
      %774 = vmatprep.subr.bf16.mxu0 0
      %775 = vmatpush1.bf16.msra.mxu0 0
      %776 = vmatprep.subr.bf16.mxu0 0
      %777 = vmatpush1.bf16.msra.mxu0 0
      %778 = vmatprep.mubr.bf16.mxu0 0
      %779 = vmatmul.mubr.bf16.gmra.mrb[0].mxu0 %v744
      %v780 = vpop.f32.mrb[0].mxu0
      %v781 = vadd.f32 %v729, %v780
      %v782 = vpop.f32.mrb[0].mxu0
      %v783 = vpop.f32.mrb[0].mxu0
      %v784 = vpop.f32.mrb[0].mxu0
      %785 = vdwg.mxu0
      %v786 = vmul.f32 %v781, 0.5
      %s787 = scalar_lea.vmem %s4, 16
      %v788 = vld [vmem:[%s787] sm:$0xf]
      %v789 = vld [vmem:[%s787 + $0x4] sm:$0xf]
      %v790 = vld [vmem:[%s787 + $0x8] sm:$0xf]
      %v791 = vld [vmem:[%s787 + $0xc] sm:$0xf]
      %s792 = scalar_lea.vmem %s5, 1
      %v793 = vld [vmem:[%s792] sm:$0x1]
      %v795 = vlaneseq
      %v796 = vshrl.u32 %v795, 7
      %v797 = vsub.s32 0, %v796
      %v798 = vrot.slane %v793, %v797
      %v804 = vunpack.c.l.b16 %v788
      %v805 = vunpack.c.l.b16 %v789
      %v806 = vunpack.c.l.b16 %v790
      %v807 = vunpack.c.l.b16 %v791
      %v808 = vpack.c.b16 %v805, %v804
      %v809 = vpack.c.b16 %v807, %v806
      %812 = vmatprep.subr.bf16.mxu0 0
      %813 = vmatpush1.bf16.msra.mxu0 %v808
      %814 = vmatprep.subr.bf16.mxu0 0
      %815 = vmatpush1.bf16.msra.mxu0 %v809
      %816 = vmatprep.subr.bf16.mxu0 0
      %817 = vmatpush1.bf16.msra.mxu0 0
      %818 = vmatprep.subr.bf16.mxu0 0
      %819 = vmatpush1.bf16.msra.mxu0 0
      %820 = vmatprep.subr.bf16.mxu0 0
      %821 = vmatpush1.bf16.msra.mxu0 0
      %822 = vmatprep.subr.bf16.mxu0 0
      %823 = vmatpush1.bf16.msra.mxu0 0
      %824 = vmatprep.subr.bf16.mxu0 0
      %825 = vmatpush1.bf16.msra.mxu0 0
      %826 = vmatprep.subr.bf16.mxu0 0
      %827 = vmatpush1.bf16.msra.mxu0 0
      %828 = vmatprep.subr.bf16.mxu0 0
      %829 = vmatpush1.bf16.msra.mxu0 0
      %830 = vmatprep.subr.bf16.mxu0 0
      %831 = vmatpush1.bf16.msra.mxu0 0
      %832 = vmatprep.subr.bf16.mxu0 0
      %833 = vmatpush1.bf16.msra.mxu0 0
      %834 = vmatprep.subr.bf16.mxu0 0
      %835 = vmatpush1.bf16.msra.mxu0 0
      %836 = vmatprep.subr.bf16.mxu0 0
      %837 = vmatpush1.bf16.msra.mxu0 0
      %838 = vmatprep.subr.bf16.mxu0 0
      %839 = vmatpush1.bf16.msra.mxu0 0
      %840 = vmatprep.subr.bf16.mxu0 0
      %841 = vmatpush1.bf16.msra.mxu0 0
      %842 = vmatprep.subr.bf16.mxu0 0
      %843 = vmatpush1.bf16.msra.mxu0 0
      %844 = vmatprep.mubr.bf16.mxu0 0
      %845 = vmatmul.mubr.bf16.gmra.mrb[0].mxu0 %v744
      %v846 = vpop.f32.mrb[0].mxu0
      %v847 = vadd.f32 %v798, %v846
      %v848 = vpop.f32.mrb[0].mxu0
      %v849 = vpop.f32.mrb[0].mxu0
      %v850 = vpop.f32.mrb[0].mxu0
      %851 = vdwg.mxu0
      %s852 = scalar_lea.vmem %s4, 32
      %v853 = vld [vmem:[%s852] sm:$0xf]
      %v854 = vld [vmem:[%s852 + $0x4] sm:$0xf]
      %v855 = vld [vmem:[%s852 + $0x8] sm:$0xf]
      %v856 = vld [vmem:[%s852 + $0xc] sm:$0xf]
      %s857 = scalar_lea.vmem %s5, 2
      %v858 = vld [vmem:[%s857] sm:$0x1]
      %v860 = vlaneseq
      %v861 = vshrl.u32 %v860, 7
      %v862 = vsub.s32 0, %v861
      %v863 = vrot.slane %v858, %v862
      %v869 = vunpack.c.l.b16 %v853
      %v870 = vunpack.c.l.b16 %v854
      %v871 = vunpack.c.l.b16 %v855
      %v872 = vunpack.c.l.b16 %v856
      %v873 = vpack.c.b16 %v870, %v869
      %v874 = vpack.c.b16 %v872, %v871
      %877 = vmatprep.subr.bf16.mxu0 0
      %878 = vmatpush1.bf16.msra.mxu0 %v873
      %879 = vmatprep.subr.bf16.mxu0 0
      %880 = vmatpush1.bf16.msra.mxu0 %v874
      %881 = vmatprep.subr.bf16.mxu0 0
      %882 = vmatpush1.bf16.msra.mxu0 0
      %883 = vmatprep.subr.bf16.mxu0 0
      %884 = vmatpush1.bf16.msra.mxu0 0
      %885 = vmatprep.subr.bf16.mxu0 0
      %886 = vmatpush1.bf16.msra.mxu0 0
      %887 = vmatprep.subr.bf16.mxu0 0
      %888 = vmatpush1.bf16.msra.mxu0 0
      %889 = vmatprep.subr.bf16.mxu0 0
      %890 = vmatpush1.bf16.msra.mxu0 0
      %891 = vmatprep.subr.bf16.mxu0 0
      %892 = vmatpush1.bf16.msra.mxu0 0
      %893 = vmatprep.subr.bf16.mxu0 0
      %894 = vmatpush1.bf16.msra.mxu0 0
      %895 = vmatprep.subr.bf16.mxu0 0
      %896 = vmatpush1.bf16.msra.mxu0 0
      %897 = vmatprep.subr.bf16.mxu0 0
      %898 = vmatpush1.bf16.msra.mxu0 0
      %899 = vmatprep.subr.bf16.mxu0 0
      %900 = vmatpush1.bf16.msra.mxu0 0
      %901 = vmatprep.subr.bf16.mxu0 0
      %902 = vmatpush1.bf16.msra.mxu0 0
      %903 = vmatprep.subr.bf16.mxu0 0
      %904 = vmatpush1.bf16.msra.mxu0 0
      %905 = vmatprep.subr.bf16.mxu0 0
      %906 = vmatpush1.bf16.msra.mxu0 0
      %907 = vmatprep.subr.bf16.mxu0 0
      %908 = vmatpush1.bf16.msra.mxu0 0
      %909 = vmatprep.mubr.bf16.mxu0 0
      %910 = vmatmul.mubr.bf16.gmra.mrb[0].mxu0 %v744
      %v911 = vpop.f32.mrb[0].mxu0
      %v912 = vadd.f32 %v863, %v911
      %v913 = vpop.f32.mrb[0].mxu0
      %v914 = vpop.f32.mrb[0].mxu0
      %v915 = vpop.f32.mrb[0].mxu0
      %916 = vdwg.mxu0
      %v917 = vpack.c.bf16 %v786, %v786
      %v918 = vmul.f32 %v847, %v631
      %v919 = vpack.c.bf16 %v918, %v918
      %v921 = vsel %vm669, %v917, 0
      %v924 = vsel %vm669, %v919, 0
      %926 = vmatprep.subr.bf16.mxu0 0
      %927 = vmatpush1.bf16.xpose.msra.mxu0 %v924
      %928 = vmatprep.subr.bf16.mxu0 0
      %929 = vmatpush1.bf16.xpose.msra.mxu0 0
      %930 = vmatprep.subr.bf16.mxu0 0
      %931 = vmatpush1.bf16.xpose.msra.mxu0 0
      %932 = vmatprep.subr.bf16.mxu0 0
      %933 = vmatpush1.bf16.xpose.msra.mxu0 0
      %934 = vmatprep.subr.bf16.mxu0 0
      %935 = vmatpush1.bf16.xpose.msra.mxu0 0
      %936 = vmatprep.subr.bf16.mxu0 0
      %937 = vmatpush1.bf16.xpose.msra.mxu0 0
      %938 = vmatprep.subr.bf16.mxu0 0
      %939 = vmatpush1.bf16.xpose.msra.mxu0 0
      %940 = vmatprep.subr.bf16.mxu0 0
      %941 = vmatpush1.bf16.xpose.msra.mxu0 0
      %942 = vmatprep.subr.bf16.mxu0 0
      %943 = vmatpush1.bf16.xpose.msra.mxu0 0
      %944 = vmatprep.subr.bf16.mxu0 0
      %945 = vmatpush1.bf16.xpose.msra.mxu0 0
      %946 = vmatprep.subr.bf16.mxu0 0
      %947 = vmatpush1.bf16.xpose.msra.mxu0 0
      %948 = vmatprep.subr.bf16.mxu0 0
      %949 = vmatpush1.bf16.xpose.msra.mxu0 0
      %950 = vmatprep.subr.bf16.mxu0 0
      %951 = vmatpush1.bf16.xpose.msra.mxu0 0
      %952 = vmatprep.subr.bf16.mxu0 0
      %953 = vmatpush1.bf16.xpose.msra.mxu0 0
      %954 = vmatprep.subr.bf16.mxu0 0
      %955 = vmatpush1.bf16.xpose.msra.mxu0 0
      %956 = vmatprep.subr.bf16.mxu0 0
      %957 = vmatpush1.bf16.xpose.msra.mxu0 0
      %958 = vmatprep.mubr.bf16.mxu0 0
      %959 = vmatmul.mubr.bf16.gmra.mrb[0].mxu0 %v921
      %v960 = vpop.f32.mrb[0].mxu0
      %v961 = vadd.f32 0.0, %v960
      %v962 = vpop.f32.mrb[0].mxu0
      %v963 = vpop.f32.mrb[0].mxu0
      %v964 = vpop.f32.mrb[0].mxu0
      %965 = vdwg.mxu0
      %v966 = vsel %vm718, -1e+18, %v961
      %vm967 = vcmask 64512
      %v968 = vsel %vm967, %v966, -inf
      %969 = vmax.xlane.f32.xlu0 %v968
      %v970 = vpop.xlane.xlu0 %969
      %v971 = vsub.f32 %v966, %v970
      %v972 = vmul.f32 %v971, 1.442695
      %v973 = vpow.pop %v972
      %v974 = vsel %vm967, %v973, 0.0
      %975 = vadd.xlane.f32.xlu0 %v974
      %v976 = vpop.xlane.xlu0 %975
      %v977 = vrcp.pop %v976
      %v978 = vmul.f32 %v973, %v977
      %v979 = vpack.c.bf16 %v978, %v978
      %v980 = vmul.f32 %v912, %v631
      %v981 = vpack.c.bf16 %v980, %v980
      %v982 = vmul.f32 %v847, %v636
      %v983 = vpack.c.bf16 %v982, %v982
      %v985 = vsel %vm669, %v983, 0
      %987 = vmatprep.subr.bf16.mxu0 0
      %988 = vmatpush1.bf16.xpose.msra.mxu0 %v985
      %989 = vmatprep.subr.bf16.mxu0 0
      %990 = vmatpush1.bf16.xpose.msra.mxu0 0
      %991 = vmatprep.subr.bf16.mxu0 0
      %992 = vmatpush1.bf16.xpose.msra.mxu0 0
      %993 = vmatprep.subr.bf16.mxu0 0
      %994 = vmatpush1.bf16.xpose.msra.mxu0 0
      %995 = vmatprep.subr.bf16.mxu0 0
      %996 = vmatpush1.bf16.xpose.msra.mxu0 0
      %997 = vmatprep.subr.bf16.mxu0 0
      %998 = vmatpush1.bf16.xpose.msra.mxu0 0
      %999 = vmatprep.subr.bf16.mxu0 0
      %1000 = vmatpush1.bf16.xpose.msra.mxu0 0
      %1001 = vmatprep.subr.bf16.mxu0 0
      %1002 = vmatpush1.bf16.xpose.msra.mxu0 0
      %1003 = vmatprep.subr.bf16.mxu0 0
      %1004 = vmatpush1.bf16.xpose.msra.mxu0 0
      %1005 = vmatprep.subr.bf16.mxu0 0
      %1006 = vmatpush1.bf16.xpose.msra.mxu0 0
      %1007 = vmatprep.subr.bf16.mxu0 0
      %1008 = vmatpush1.bf16.xpose.msra.mxu0 0
      %1009 = vmatprep.subr.bf16.mxu0 0
      %1010 = vmatpush1.bf16.xpose.msra.mxu0 0
      %1011 = vmatprep.subr.bf16.mxu0 0
      %1012 = vmatpush1.bf16.xpose.msra.mxu0 0
      %1013 = vmatprep.subr.bf16.mxu0 0
      %1014 = vmatpush1.bf16.xpose.msra.mxu0 0
      %1015 = vmatprep.subr.bf16.mxu0 0
      %1016 = vmatpush1.bf16.xpose.msra.mxu0 0
      %1017 = vmatprep.subr.bf16.mxu0 0
      %1018 = vmatpush1.bf16.xpose.msra.mxu0 0
      %1019 = vmatprep.mubr.bf16.mxu0 0
      %1020 = vmatmul.mubr.bf16.gmra.mrb[0].mxu0 %v921
      %v1021 = vpop.f32.mrb[0].mxu0
      %v1022 = vadd.f32 0.0, %v1021
      %v1023 = vpop.f32.mrb[0].mxu0
      %v1024 = vpop.f32.mrb[0].mxu0
      %v1025 = vpop.f32.mrb[0].mxu0
      %1026 = vdwg.mxu0
      %v1027 = vsel %vm718, -1e+18, %v1022
      %v1028 = vsel %vm967, %v1027, -inf
      %1029 = vmax.xlane.f32.xlu0 %v1028
      %v1030 = vpop.xlane.xlu0 %1029
      %v1031 = vsub.f32 %v1027, %v1030
      %v1032 = vmul.f32 %v1031, 1.442695
      %v1033 = vpow.pop %v1032
      %v1034 = vsel %vm967, %v1033, 0.0
      %1035 = vadd.xlane.f32.xlu0 %v1034
      %v1036 = vpop.xlane.xlu0 %1035
      %v1037 = vrcp.pop %v1036
      %v1038 = vmul.f32 %v1033, %v1037
      %v1039 = vpack.c.bf16 %v1038, %v1038
      %v1040 = vmul.f32 %v912, %v636
      %v1041 = vpack.c.bf16 %v1040, %v1040
      %v1043 = vsel %vm967, %v1039, 0
      %vm1045 = vcmask 1043456
      %v1047 = vsel %vm1045, %v1041, 0
      %1049 = vmatprep.subr.bf16.mxu0 0
      %1050 = vmatpush1.bf16.msra.mxu0 %v1047
      %1051 = vmatprep.subr.bf16.mxu0 0
      %1052 = vmatpush1.bf16.msra.mxu0 0
      %1053 = vmatprep.subr.bf16.mxu0 0
      %1054 = vmatpush1.bf16.msra.mxu0 0
      %1055 = vmatprep.subr.bf16.mxu0 0
      %1056 = vmatpush1.bf16.msra.mxu0 0
      %1057 = vmatprep.subr.bf16.mxu0 0
      %1058 = vmatpush1.bf16.msra.mxu0 0
      %1059 = vmatprep.subr.bf16.mxu0 0
      %1060 = vmatpush1.bf16.msra.mxu0 0
      %1061 = vmatprep.subr.bf16.mxu0 0
      %1062 = vmatpush1.bf16.msra.mxu0 0
      %1063 = vmatprep.subr.bf16.mxu0 0
      %1064 = vmatpush1.bf16.msra.mxu0 0
      %1065 = vmatprep.subr.bf16.mxu0 0
      %1066 = vmatpush1.bf16.msra.mxu0 0
      %1067 = vmatprep.subr.bf16.mxu0 0
      %1068 = vmatpush1.bf16.msra.mxu0 0
      %1069 = vmatprep.subr.bf16.mxu0 0
      %1070 = vmatpush1.bf16.msra.mxu0 0
      %1071 = vmatprep.subr.bf16.mxu0 0
      %1072 = vmatpush1.bf16.msra.mxu0 0
      %1073 = vmatprep.subr.bf16.mxu0 0
      %1074 = vmatpush1.bf16.msra.mxu0 0
      %1075 = vmatprep.subr.bf16.mxu0 0
      %1076 = vmatpush1.bf16.msra.mxu0 0
      %1077 = vmatprep.subr.bf16.mxu0 0
      %1078 = vmatpush1.bf16.msra.mxu0 0
      %1079 = vmatprep.subr.bf16.mxu0 0
      %1080 = vmatpush1.bf16.msra.mxu0 0
      %1081 = vmatprep.mubr.bf16.mxu0 0
      %1082 = vmatmul.mubr.bf16.gmra.mrb[0].mxu0 %v1043
      %v1083 = vpop.f32.mrb[0].mxu0
      %v1084 = vadd.f32 0.0, %v1083
      %v1085 = vpop.f32.mrb[0].mxu0
      %v1086 = vpop.f32.mrb[0].mxu0
      %v1087 = vpop.f32.mrb[0].mxu0
      %1088 = vdwg.mxu0
      %v1090 = vsel %vm967, %v979, 0
      %v1093 = vsel %vm1045, %v981, 0
      %1095 = vmatprep.subr.bf16.mxu0 0
      %1096 = vmatpush1.bf16.msra.mxu0 %v1093
      %1097 = vmatprep.subr.bf16.mxu0 0
      %1098 = vmatpush1.bf16.msra.mxu0 0
      %1099 = vmatprep.subr.bf16.mxu0 0
      %1100 = vmatpush1.bf16.msra.mxu0 0
      %1101 = vmatprep.subr.bf16.mxu0 0
      %1102 = vmatpush1.bf16.msra.mxu0 0
      %1103 = vmatprep.subr.bf16.mxu0 0
      %1104 = vmatpush1.bf16.msra.mxu0 0
      %1105 = vmatprep.subr.bf16.mxu0 0
      %1106 = vmatpush1.bf16.msra.mxu0 0
      %1107 = vmatprep.subr.bf16.mxu0 0
      %1108 = vmatpush1.bf16.msra.mxu0 0
      %1109 = vmatprep.subr.bf16.mxu0 0
      %1110 = vmatpush1.bf16.msra.mxu0 0
      %1111 = vmatprep.subr.bf16.mxu0 0
      %1112 = vmatpush1.bf16.msra.mxu0 0
      %1113 = vmatprep.subr.bf16.mxu0 0
      %1114 = vmatpush1.bf16.msra.mxu0 0
      %1115 = vmatprep.subr.bf16.mxu0 0
      %1116 = vmatpush1.bf16.msra.mxu0 0
      %1117 = vmatprep.subr.bf16.mxu0 0
      %1118 = vmatpush1.bf16.msra.mxu0 0
      %1119 = vmatprep.subr.bf16.mxu0 0
      %1120 = vmatpush1.bf16.msra.mxu0 0
      %1121 = vmatprep.subr.bf16.mxu0 0
      %1122 = vmatpush1.bf16.msra.mxu0 0
      %1123 = vmatprep.subr.bf16.mxu0 0
      %1124 = vmatpush1.bf16.msra.mxu0 0
      %1125 = vmatprep.subr.bf16.mxu0 0
      %1126 = vmatpush1.bf16.msra.mxu0 0
      %1127 = vmatprep.mubr.bf16.mxu0 0
      %1128 = vmatmul.mubr.bf16.gmra.mrb[0].mxu0 %v1090
      %v1129 = vpop.f32.mrb[0].mxu0
      %v1130 = vadd.f32 %v1084, %v1129
      %v1131 = vpop.f32.mrb[0].mxu0
      %v1132 = vpop.f32.mrb[0].mxu0
      %v1133 = vpop.f32.mrb[0].mxu0
      %1134 = vdwg.mxu0
      %v1135 = vmul.f32 %v847, %v641
      %v1136 = vpack.c.bf16 %v1135, %v1135
      %v1138 = vsel %vm669, %v1136, 0
      %1140 = vmatprep.subr.bf16.mxu0 0
      %1141 = vmatpush1.bf16.xpose.msra.mxu0 %v1138
      %1142 = vmatprep.subr.bf16.mxu0 0
      %1143 = vmatpush1.bf16.xpose.msra.mxu0 0
      %1144 = vmatprep.subr.bf16.mxu0 0
      %1145 = vmatpush1.bf16.xpose.msra.mxu0 0
      %1146 = vmatprep.subr.bf16.mxu0 0
      %1147 = vmatpush1.bf16.xpose.msra.mxu0 0
      %1148 = vmatprep.subr.bf16.mxu0 0
      %1149 = vmatpush1.bf16.xpose.msra.mxu0 0
      %1150 = vmatprep.subr.bf16.mxu0 0
      %1151 = vmatpush1.bf16.xpose.msra.mxu0 0
      %1152 = vmatprep.subr.bf16.mxu0 0
      %1153 = vmatpush1.bf16.xpose.msra.mxu0 0
      %1154 = vmatprep.subr.bf16.mxu0 0
      %1155 = vmatpush1.bf16.xpose.msra.mxu0 0
      %1156 = vmatprep.subr.bf16.mxu0 0
      %1157 = vmatpush1.bf16.xpose.msra.mxu0 0
      %1158 = vmatprep.subr.bf16.mxu0 0
      %1159 = vmatpush1.bf16.xpose.msra.mxu0 0
      %1160 = vmatprep.subr.bf16.mxu0 0
      %1161 = vmatpush1.bf16.xpose.msra.mxu0 0
      %1162 = vmatprep.subr.bf16.mxu0 0
      %1163 = vmatpush1.bf16.xpose.msra.mxu0 0
      %1164 = vmatprep.subr.bf16.mxu0 0
      %1165 = vmatpush1.bf16.xpose.msra.mxu0 0
      %1166 = vmatprep.subr.bf16.mxu0 0
      %1167 = vmatpush1.bf16.xpose.msra.mxu0 0
      %1168 = vmatprep.subr.bf16.mxu0 0
      %1169 = vmatpush1.bf16.xpose.msra.mxu0 0
      %1170 = vmatprep.subr.bf16.mxu0 0
      %1171 = vmatpush1.bf16.xpose.msra.mxu0 0
      %1172 = vmatprep.mubr.bf16.mxu0 0
      %1173 = vmatmul.mubr.bf16.gmra.mrb[0].mxu0 %v921
      %v1174 = vpop.f32.mrb[0].mxu0
      %v1175 = vadd.f32 0.0, %v1174
      %v1176 = vpop.f32.mrb[0].mxu0
      %v1177 = vpop.f32.mrb[0].mxu0
      %v1178 = vpop.f32.mrb[0].mxu0
      %1179 = vdwg.mxu0
      %v1180 = vsel %vm718, -1e+18, %v1175
      %v1181 = vsel %vm967, %v1180, -inf
      %1182 = vmax.xlane.f32.xlu0 %v1181
      %v1183 = vpop.xlane.xlu0 %1182
      %v1184 = vsub.f32 %v1180, %v1183
      %v1185 = vmul.f32 %v1184, 1.442695
      %v1186 = vpow.pop %v1185
      %v1187 = vsel %vm967, %v1186, 0.0
      %1188 = vadd.xlane.f32.xlu0 %v1187
      %v1189 = vpop.xlane.xlu0 %1188
      %v1190 = vrcp.pop %v1189
      %v1191 = vmul.f32 %v1186, %v1190
      %v1192 = vpack.c.bf16 %v1191, %v1191
      %v1193 = vmul.f32 %v912, %v641
      %v1194 = vpack.c.bf16 %v1193, %v1193
      %v1196 = vsel %vm967, %v1192, 0
      %v1199 = vsel %vm1045, %v1194, 0
      %1201 = vmatprep.subr.bf16.mxu0 0
      %1202 = vmatpush1.bf16.msra.mxu0 %v1199
      %1203 = vmatprep.subr.bf16.mxu0 0
      %1204 = vmatpush1.bf16.msra.mxu0 0
      %1205 = vmatprep.subr.bf16.mxu0 0
      %1206 = vmatpush1.bf16.msra.mxu0 0
      %1207 = vmatprep.subr.bf16.mxu0 0
      %1208 = vmatpush1.bf16.msra.mxu0 0
      %1209 = vmatprep.subr.bf16.mxu0 0
      %1210 = vmatpush1.bf16.msra.mxu0 0
      %1211 = vmatprep.subr.bf16.mxu0 0
      %1212 = vmatpush1.bf16.msra.mxu0 0
      %1213 = vmatprep.subr.bf16.mxu0 0
      %1214 = vmatpush1.bf16.msra.mxu0 0
      %1215 = vmatprep.subr.bf16.mxu0 0
      %1216 = vmatpush1.bf16.msra.mxu0 0
      %1217 = vmatprep.subr.bf16.mxu0 0
      %1218 = vmatpush1.bf16.msra.mxu0 0
      %1219 = vmatprep.subr.bf16.mxu0 0
      %1220 = vmatpush1.bf16.msra.mxu0 0
      %1221 = vmatprep.subr.bf16.mxu0 0
      %1222 = vmatpush1.bf16.msra.mxu0 0
      %1223 = vmatprep.subr.bf16.mxu0 0
      %1224 = vmatpush1.bf16.msra.mxu0 0
      %1225 = vmatprep.subr.bf16.mxu0 0
      %1226 = vmatpush1.bf16.msra.mxu0 0
      %1227 = vmatprep.subr.bf16.mxu0 0
      %1228 = vmatpush1.bf16.msra.mxu0 0
      %1229 = vmatprep.subr.bf16.mxu0 0
      %1230 = vmatpush1.bf16.msra.mxu0 0
      %1231 = vmatprep.subr.bf16.mxu0 0
      %1232 = vmatpush1.bf16.msra.mxu0 0
      %1233 = vmatprep.mubr.bf16.mxu0 0
      %1234 = vmatmul.mubr.bf16.gmra.mrb[0].mxu0 %v1196
      %v1235 = vpop.f32.mrb[0].mxu0
      %v1236 = vadd.f32 0.0, %v1235
      %v1237 = vpop.f32.mrb[0].mxu0
      %v1238 = vpop.f32.mrb[0].mxu0
      %v1239 = vpop.f32.mrb[0].mxu0
      %1240 = vdwg.mxu0
      %v1241 = vadd.f32 %v1130, %v1236
      %v1242 = vmul.f32 %v847, %v646
      %v1243 = vpack.c.bf16 %v1242, %v1242
      %v1245 = vsel %vm669, %v1243, 0
      %1247 = vmatprep.subr.bf16.mxu0 0
      %1248 = vmatpush1.bf16.xpose.msra.mxu0 %v1245
      %1249 = vmatprep.subr.bf16.mxu0 0
      %1250 = vmatpush1.bf16.xpose.msra.mxu0 0
      %1251 = vmatprep.subr.bf16.mxu0 0
      %1252 = vmatpush1.bf16.xpose.msra.mxu0 0
      %1253 = vmatprep.subr.bf16.mxu0 0
      %1254 = vmatpush1.bf16.xpose.msra.mxu0 0
      %1255 = vmatprep.subr.bf16.mxu0 0
      %1256 = vmatpush1.bf16.xpose.msra.mxu0 0
      %1257 = vmatprep.subr.bf16.mxu0 0
      %1258 = vmatpush1.bf16.xpose.msra.mxu0 0
      %1259 = vmatprep.subr.bf16.mxu0 0
      %1260 = vmatpush1.bf16.xpose.msra.mxu0 0
      %1261 = vmatprep.subr.bf16.mxu0 0
      %1262 = vmatpush1.bf16.xpose.msra.mxu0 0
      %1263 = vmatprep.subr.bf16.mxu0 0
      %1264 = vmatpush1.bf16.xpose.msra.mxu0 0
      %1265 = vmatprep.subr.bf16.mxu0 0
      %1266 = vmatpush1.bf16.xpose.msra.mxu0 0
      %1267 = vmatprep.subr.bf16.mxu0 0
      %1268 = vmatpush1.bf16.xpose.msra.mxu0 0
      %1269 = vmatprep.subr.bf16.mxu0 0
      %1270 = vmatpush1.bf16.xpose.msra.mxu0 0
      %1271 = vmatprep.subr.bf16.mxu0 0
      %1272 = vmatpush1.bf16.xpose.msra.mxu0 0
      %1273 = vmatprep.subr.bf16.mxu0 0
      %1274 = vmatpush1.bf16.xpose.msra.mxu0 0
      %1275 = vmatprep.subr.bf16.mxu0 0
      %1276 = vmatpush1.bf16.xpose.msra.mxu0 0
      %1277 = vmatprep.subr.bf16.mxu0 0
      %1278 = vmatpush1.bf16.xpose.msra.mxu0 0
      %1279 = vmatprep.mubr.bf16.mxu0 0
      %1280 = vmatmul.mubr.bf16.gmra.mrb[0].mxu0 %v921
      %v1281 = vpop.f32.mrb[0].mxu0
      %v1282 = vadd.f32 0.0, %v1281
      %v1283 = vpop.f32.mrb[0].mxu0
      %v1284 = vpop.f32.mrb[0].mxu0
      %v1285 = vpop.f32.mrb[0].mxu0
      %1286 = vdwg.mxu0
      %v1287 = vsel %vm718, -1e+18, %v1282
      %v1288 = vsel %vm967, %v1287, -inf
      %1289 = vmax.xlane.f32.xlu0 %v1288
      %v1290 = vpop.xlane.xlu0 %1289
      %v1291 = vsub.f32 %v1287, %v1290
      %v1292 = vmul.f32 %v1291, 1.442695
      %v1293 = vpow.pop %v1292
      %v1294 = vsel %vm967, %v1293, 0.0
      %1295 = vadd.xlane.f32.xlu0 %v1294
      %v1296 = vpop.xlane.xlu0 %1295
      %v1297 = vrcp.pop %v1296
      %v1298 = vmul.f32 %v1293, %v1297
      %v1299 = vpack.c.bf16 %v1298, %v1298
      %v1300 = vmul.f32 %v912, %v646
      %v1301 = vpack.c.bf16 %v1300, %v1300
      %v1303 = vsel %vm967, %v1299, 0
      %v1306 = vsel %vm1045, %v1301, 0
      %1308 = vmatprep.subr.bf16.mxu0 0
      %1309 = vmatpush1.bf16.msra.mxu0 %v1306
      %1310 = vmatprep.subr.bf16.mxu0 0
      %1311 = vmatpush1.bf16.msra.mxu0 0
      %1312 = vmatprep.subr.bf16.mxu0 0
      %1313 = vmatpush1.bf16.msra.mxu0 0
      %1314 = vmatprep.subr.bf16.mxu0 0
      %1315 = vmatpush1.bf16.msra.mxu0 0
      %1316 = vmatprep.subr.bf16.mxu0 0
      %1317 = vmatpush1.bf16.msra.mxu0 0
      %1318 = vmatprep.subr.bf16.mxu0 0
      %1319 = vmatpush1.bf16.msra.mxu0 0
      %1320 = vmatprep.subr.bf16.mxu0 0
      %1321 = vmatpush1.bf16.msra.mxu0 0
      %1322 = vmatprep.subr.bf16.mxu0 0
      %1323 = vmatpush1.bf16.msra.mxu0 0
      %1324 = vmatprep.subr.bf16.mxu0 0
      %1325 = vmatpush1.bf16.msra.mxu0 0
      %1326 = vmatprep.subr.bf16.mxu0 0
      %1327 = vmatpush1.bf16.msra.mxu0 0
      %1328 = vmatprep.subr.bf16.mxu0 0
      %1329 = vmatpush1.bf16.msra.mxu0 0
      %1330 = vmatprep.subr.bf16.mxu0 0
      %1331 = vmatpush1.bf16.msra.mxu0 0
      %1332 = vmatprep.subr.bf16.mxu0 0
      %1333 = vmatpush1.bf16.msra.mxu0 0
      %1334 = vmatprep.subr.bf16.mxu0 0
      %1335 = vmatpush1.bf16.msra.mxu0 0
      %1336 = vmatprep.subr.bf16.mxu0 0
      %1337 = vmatpush1.bf16.msra.mxu0 0
      %1338 = vmatprep.subr.bf16.mxu0 0
      %1339 = vmatpush1.bf16.msra.mxu0 0
      %1340 = vmatprep.mubr.bf16.mxu0 0
      %1341 = vmatmul.mubr.bf16.gmra.mrb[0].mxu0 %v1303
      %v1342 = vpop.f32.mrb[0].mxu0
      %v1343 = vadd.f32 0.0, %v1342
      %v1344 = vpop.f32.mrb[0].mxu0
      %v1345 = vpop.f32.mrb[0].mxu0
      %v1346 = vpop.f32.mrb[0].mxu0
      %1347 = vdwg.mxu0
      %v1348 = vadd.f32 %v1241, %v1343
      %v1349 = vmul.f32 %v847, %v651
      %v1350 = vpack.c.bf16 %v1349, %v1349
      %v1352 = vsel %vm669, %v1350, 0
      %1354 = vmatprep.subr.bf16.mxu0 0
      %1355 = vmatpush1.bf16.xpose.msra.mxu0 %v1352
      %1356 = vmatprep.subr.bf16.mxu0 0
      %1357 = vmatpush1.bf16.xpose.msra.mxu0 0
      %1358 = vmatprep.subr.bf16.mxu0 0
      %1359 = vmatpush1.bf16.xpose.msra.mxu0 0
      %1360 = vmatprep.subr.bf16.mxu0 0
      %1361 = vmatpush1.bf16.xpose.msra.mxu0 0
      %1362 = vmatprep.subr.bf16.mxu0 0
      %1363 = vmatpush1.bf16.xpose.msra.mxu0 0
      %1364 = vmatprep.subr.bf16.mxu0 0
      %1365 = vmatpush1.bf16.xpose.msra.mxu0 0
      %1366 = vmatprep.subr.bf16.mxu0 0
      %1367 = vmatpush1.bf16.xpose.msra.mxu0 0
      %1368 = vmatprep.subr.bf16.mxu0 0
      %1369 = vmatpush1.bf16.xpose.msra.mxu0 0
      %1370 = vmatprep.subr.bf16.mxu0 0
      %1371 = vmatpush1.bf16.xpose.msra.mxu0 0
      %1372 = vmatprep.subr.bf16.mxu0 0
      %1373 = vmatpush1.bf16.xpose.msra.mxu0 0
      %1374 = vmatprep.subr.bf16.mxu0 0
      %1375 = vmatpush1.bf16.xpose.msra.mxu0 0
      %1376 = vmatprep.subr.bf16.mxu0 0
      %1377 = vmatpush1.bf16.xpose.msra.mxu0 0
      %1378 = vmatprep.subr.bf16.mxu0 0
      %1379 = vmatpush1.bf16.xpose.msra.mxu0 0
      %1380 = vmatprep.subr.bf16.mxu0 0
      %1381 = vmatpush1.bf16.xpose.msra.mxu0 0
      %1382 = vmatprep.subr.bf16.mxu0 0
      %1383 = vmatpush1.bf16.xpose.msra.mxu0 0
      %1384 = vmatprep.subr.bf16.mxu0 0
      %1385 = vmatpush1.bf16.xpose.msra.mxu0 0
      %1386 = vmatprep.mubr.bf16.mxu0 0
      %1387 = vmatmul.mubr.bf16.gmra.mrb[0].mxu0 %v921
      %v1388 = vpop.f32.mrb[0].mxu0
      %v1389 = vadd.f32 0.0, %v1388
      %v1390 = vpop.f32.mrb[0].mxu0
      %v1391 = vpop.f32.mrb[0].mxu0
      %v1392 = vpop.f32.mrb[0].mxu0
      %1393 = vdwg.mxu0
      %v1394 = vsel %vm718, -1e+18, %v1389
      %v1395 = vsel %vm967, %v1394, -inf
      %1396 = vmax.xlane.f32.xlu0 %v1395
      %v1397 = vpop.xlane.xlu0 %1396
      %v1398 = vsub.f32 %v1394, %v1397
      %v1399 = vmul.f32 %v1398, 1.442695
      %v1400 = vpow.pop %v1399
      %v1401 = vsel %vm967, %v1400, 0.0
      %1402 = vadd.xlane.f32.xlu0 %v1401
      %v1403 = vpop.xlane.xlu0 %1402
      %v1404 = vrcp.pop %v1403
      %v1405 = vmul.f32 %v1400, %v1404
      %v1406 = vpack.c.bf16 %v1405, %v1405
      %v1407 = vmul.f32 %v912, %v651
      %v1408 = vpack.c.bf16 %v1407, %v1407
      %v1410 = vsel %vm967, %v1406, 0
      %v1413 = vsel %vm1045, %v1408, 0
      %1415 = vmatprep.subr.bf16.mxu0 0
      %1416 = vmatpush1.bf16.msra.mxu0 %v1413
      %1417 = vmatprep.subr.bf16.mxu0 0
      %1418 = vmatpush1.bf16.msra.mxu0 0
      %1419 = vmatprep.subr.bf16.mxu0 0
      %1420 = vmatpush1.bf16.msra.mxu0 0
      %1421 = vmatprep.subr.bf16.mxu0 0
      %1422 = vmatpush1.bf16.msra.mxu0 0
      %1423 = vmatprep.subr.bf16.mxu0 0
      %1424 = vmatpush1.bf16.msra.mxu0 0
      %1425 = vmatprep.subr.bf16.mxu0 0
      %1426 = vmatpush1.bf16.msra.mxu0 0
      %1427 = vmatprep.subr.bf16.mxu0 0
      %1428 = vmatpush1.bf16.msra.mxu0 0
      %1429 = vmatprep.subr.bf16.mxu0 0
      %1430 = vmatpush1.bf16.msra.mxu0 0
      %1431 = vmatprep.subr.bf16.mxu0 0
      %1432 = vmatpush1.bf16.msra.mxu0 0
      %1433 = vmatprep.subr.bf16.mxu0 0
      %1434 = vmatpush1.bf16.msra.mxu0 0
      %1435 = vmatprep.subr.bf16.mxu0 0
      %1436 = vmatpush1.bf16.msra.mxu0 0
      %1437 = vmatprep.subr.bf16.mxu0 0
      %1438 = vmatpush1.bf16.msra.mxu0 0
      %1439 = vmatprep.subr.bf16.mxu0 0
      %1440 = vmatpush1.bf16.msra.mxu0 0
      %1441 = vmatprep.subr.bf16.mxu0 0
      %1442 = vmatpush1.bf16.msra.mxu0 0
      %1443 = vmatprep.subr.bf16.mxu0 0
      %1444 = vmatpush1.bf16.msra.mxu0 0
      %1445 = vmatprep.subr.bf16.mxu0 0
      %1446 = vmatpush1.bf16.msra.mxu0 0
      %1447 = vmatprep.mubr.bf16.mxu0 0
      %1448 = vmatmul.mubr.bf16.gmra.mrb[0].mxu0 %v1410
      %v1449 = vpop.f32.mrb[0].mxu0
      %v1450 = vadd.f32 0.0, %v1449
      %v1451 = vpop.f32.mrb[0].mxu0
      %v1452 = vpop.f32.mrb[0].mxu0
      %v1453 = vpop.f32.mrb[0].mxu0
      %1454 = vdwg.mxu0
      %v1455 = vadd.f32 %v1348, %v1450
      %v1456 = vmul.f32 %v847, %v656
      %v1457 = vpack.c.bf16 %v1456, %v1456
      %v1459 = vsel %vm669, %v1457, 0
      %1461 = vmatprep.subr.bf16.mxu0 0
      %1462 = vmatpush1.bf16.xpose.msra.mxu0 %v1459
      %1463 = vmatprep.subr.bf16.mxu0 0
      %1464 = vmatpush1.bf16.xpose.msra.mxu0 0
      %1465 = vmatprep.subr.bf16.mxu0 0
      %1466 = vmatpush1.bf16.xpose.msra.mxu0 0
      %1467 = vmatprep.subr.bf16.mxu0 0
      %1468 = vmatpush1.bf16.xpose.msra.mxu0 0
      %1469 = vmatprep.subr.bf16.mxu0 0
      %1470 = vmatpush1.bf16.xpose.msra.mxu0 0
      %1471 = vmatprep.subr.bf16.mxu0 0
      %1472 = vmatpush1.bf16.xpose.msra.mxu0 0
      %1473 = vmatprep.subr.bf16.mxu0 0
      %1474 = vmatpush1.bf16.xpose.msra.mxu0 0
      %1475 = vmatprep.subr.bf16.mxu0 0
      %1476 = vmatpush1.bf16.xpose.msra.mxu0 0
      %1477 = vmatprep.subr.bf16.mxu0 0
      %1478 = vmatpush1.bf16.xpose.msra.mxu0 0
      %1479 = vmatprep.subr.bf16.mxu0 0
      %1480 = vmatpush1.bf16.xpose.msra.mxu0 0
      %1481 = vmatprep.subr.bf16.mxu0 0
      %1482 = vmatpush1.bf16.xpose.msra.mxu0 0
      %1483 = vmatprep.subr.bf16.mxu0 0
      %1484 = vmatpush1.bf16.xpose.msra.mxu0 0
      %1485 = vmatprep.subr.bf16.mxu0 0
      %1486 = vmatpush1.bf16.xpose.msra.mxu0 0
      %1487 = vmatprep.subr.bf16.mxu0 0
      %1488 = vmatpush1.bf16.xpose.msra.mxu0 0
      %1489 = vmatprep.subr.bf16.mxu0 0
      %1490 = vmatpush1.bf16.xpose.msra.mxu0 0
      %1491 = vmatprep.subr.bf16.mxu0 0
      %1492 = vmatpush1.bf16.xpose.msra.mxu0 0
      %1493 = vmatprep.mubr.bf16.mxu0 0
      %1494 = vmatmul.mubr.bf16.gmra.mrb[0].mxu0 %v921
      %v1495 = vpop.f32.mrb[0].mxu0
      %v1496 = vadd.f32 0.0, %v1495
      %v1497 = vpop.f32.mrb[0].mxu0
      %v1498 = vpop.f32.mrb[0].mxu0
      %v1499 = vpop.f32.mrb[0].mxu0
      %1500 = vdwg.mxu0
      %v1501 = vsel %vm718, -1e+18, %v1496
      %v1502 = vsel %vm967, %v1501, -inf
      %1503 = vmax.xlane.f32.xlu0 %v1502
      %v1504 = vpop.xlane.xlu0 %1503
      %v1505 = vsub.f32 %v1501, %v1504
      %v1506 = vmul.f32 %v1505, 1.442695
      %v1507 = vpow.pop %v1506
      %v1508 = vsel %vm967, %v1507, 0.0
      %1509 = vadd.xlane.f32.xlu0 %v1508
      %v1510 = vpop.xlane.xlu0 %1509
      %v1511 = vrcp.pop %v1510
      %v1512 = vmul.f32 %v1507, %v1511
      %v1513 = vpack.c.bf16 %v1512, %v1512
      %v1514 = vmul.f32 %v912, %v656
      %v1515 = vpack.c.bf16 %v1514, %v1514
      %v1517 = vsel %vm967, %v1513, 0
      %v1520 = vsel %vm1045, %v1515, 0
      %1522 = vmatprep.subr.bf16.mxu0 0
      %1523 = vmatpush1.bf16.msra.mxu0 %v1520
      %1524 = vmatprep.subr.bf16.mxu0 0
      %1525 = vmatpush1.bf16.msra.mxu0 0
      %1526 = vmatprep.subr.bf16.mxu0 0
      %1527 = vmatpush1.bf16.msra.mxu0 0
      %1528 = vmatprep.subr.bf16.mxu0 0
      %1529 = vmatpush1.bf16.msra.mxu0 0
      %1530 = vmatprep.subr.bf16.mxu0 0
      %1531 = vmatpush1.bf16.msra.mxu0 0
      %1532 = vmatprep.subr.bf16.mxu0 0
      %1533 = vmatpush1.bf16.msra.mxu0 0
      %1534 = vmatprep.subr.bf16.mxu0 0
      %1535 = vmatpush1.bf16.msra.mxu0 0
      %1536 = vmatprep.subr.bf16.mxu0 0
      %1537 = vmatpush1.bf16.msra.mxu0 0
      %1538 = vmatprep.subr.bf16.mxu0 0
      %1539 = vmatpush1.bf16.msra.mxu0 0
      %1540 = vmatprep.subr.bf16.mxu0 0
      %1541 = vmatpush1.bf16.msra.mxu0 0
      %1542 = vmatprep.subr.bf16.mxu0 0
      %1543 = vmatpush1.bf16.msra.mxu0 0
      %1544 = vmatprep.subr.bf16.mxu0 0
      %1545 = vmatpush1.bf16.msra.mxu0 0
      %1546 = vmatprep.subr.bf16.mxu0 0
      %1547 = vmatpush1.bf16.msra.mxu0 0
      %1548 = vmatprep.subr.bf16.mxu0 0
      %1549 = vmatpush1.bf16.msra.mxu0 0
      %1550 = vmatprep.subr.bf16.mxu0 0
      %1551 = vmatpush1.bf16.msra.mxu0 0
      %1552 = vmatprep.subr.bf16.mxu0 0
      %1553 = vmatpush1.bf16.msra.mxu0 0
      %1554 = vmatprep.mubr.bf16.mxu0 0
      %1555 = vmatmul.mubr.bf16.gmra.mrb[0].mxu0 %v1517
      %v1556 = vpop.f32.mrb[0].mxu0
      %v1557 = vadd.f32 0.0, %v1556
      %v1558 = vpop.f32.mrb[0].mxu0
      %v1559 = vpop.f32.mrb[0].mxu0
      %v1560 = vpop.f32.mrb[0].mxu0
      %1561 = vdwg.mxu0
      %v1562 = vadd.f32 %v1455, %v1557
      %v1563 = vmul.f32 %v847, %v661
      %v1564 = vpack.c.bf16 %v1563, %v1563
      %v1566 = vsel %vm669, %v1564, 0
      %1568 = vmatprep.subr.bf16.mxu0 0
      %1569 = vmatpush1.bf16.xpose.msra.mxu0 %v1566
      %1570 = vmatprep.subr.bf16.mxu0 0
      %1571 = vmatpush1.bf16.xpose.msra.mxu0 0
      %1572 = vmatprep.subr.bf16.mxu0 0
      %1573 = vmatpush1.bf16.xpose.msra.mxu0 0
      %1574 = vmatprep.subr.bf16.mxu0 0
      %1575 = vmatpush1.bf16.xpose.msra.mxu0 0
      %1576 = vmatprep.subr.bf16.mxu0 0
      %1577 = vmatpush1.bf16.xpose.msra.mxu0 0
      %1578 = vmatprep.subr.bf16.mxu0 0
      %1579 = vmatpush1.bf16.xpose.msra.mxu0 0
      %1580 = vmatprep.subr.bf16.mxu0 0
      %1581 = vmatpush1.bf16.xpose.msra.mxu0 0
      %1582 = vmatprep.subr.bf16.mxu0 0
      %1583 = vmatpush1.bf16.xpose.msra.mxu0 0
      %1584 = vmatprep.subr.bf16.mxu0 0
      %1585 = vmatpush1.bf16.xpose.msra.mxu0 0
      %1586 = vmatprep.subr.bf16.mxu0 0
      %1587 = vmatpush1.bf16.xpose.msra.mxu0 0
      %1588 = vmatprep.subr.bf16.mxu0 0
      %1589 = vmatpush1.bf16.xpose.msra.mxu0 0
      %1590 = vmatprep.subr.bf16.mxu0 0
      %1591 = vmatpush1.bf16.xpose.msra.mxu0 0
      %1592 = vmatprep.subr.bf16.mxu0 0
      %1593 = vmatpush1.bf16.xpose.msra.mxu0 0
      %1594 = vmatprep.subr.bf16.mxu0 0
      %1595 = vmatpush1.bf16.xpose.msra.mxu0 0
      %1596 = vmatprep.subr.bf16.mxu0 0
      %1597 = vmatpush1.bf16.xpose.msra.mxu0 0
      %1598 = vmatprep.subr.bf16.mxu0 0
      %1599 = vmatpush1.bf16.xpose.msra.mxu0 0
      %1600 = vmatprep.mubr.bf16.mxu0 0
      %1601 = vmatmul.mubr.bf16.gmra.mrb[0].mxu0 %v921
      %v1602 = vpop.f32.mrb[0].mxu0
      %v1603 = vadd.f32 0.0, %v1602
      %v1604 = vpop.f32.mrb[0].mxu0
      %v1605 = vpop.f32.mrb[0].mxu0
      %v1606 = vpop.f32.mrb[0].mxu0
      %1607 = vdwg.mxu0
      %v1608 = vsel %vm718, -1e+18, %v1603
      %v1609 = vsel %vm967, %v1608, -inf
      %1610 = vmax.xlane.f32.xlu0 %v1609
      %v1611 = vpop.xlane.xlu0 %1610
      %v1612 = vsub.f32 %v1608, %v1611
      %v1613 = vmul.f32 %v1612, 1.442695
      %v1614 = vpow.pop %v1613
      %v1615 = vsel %vm967, %v1614, 0.0
      %1616 = vadd.xlane.f32.xlu0 %v1615
      %v1617 = vpop.xlane.xlu0 %1616
      %v1618 = vrcp.pop %v1617
      %v1619 = vmul.f32 %v1614, %v1618
      %v1620 = vpack.c.bf16 %v1619, %v1619
      %v1621 = vmul.f32 %v912, %v661
      %v1622 = vpack.c.bf16 %v1621, %v1621
      %v1624 = vsel %vm967, %v1620, 0
      %v1627 = vsel %vm1045, %v1622, 0
      %1629 = vmatprep.subr.bf16.mxu0 0
      %1630 = vmatpush1.bf16.msra.mxu0 %v1627
      %1631 = vmatprep.subr.bf16.mxu0 0
      %1632 = vmatpush1.bf16.msra.mxu0 0
      %1633 = vmatprep.subr.bf16.mxu0 0
      %1634 = vmatpush1.bf16.msra.mxu0 0
      %1635 = vmatprep.subr.bf16.mxu0 0
      %1636 = vmatpush1.bf16.msra.mxu0 0
      %1637 = vmatprep.subr.bf16.mxu0 0
      %1638 = vmatpush1.bf16.msra.mxu0 0
      %1639 = vmatprep.subr.bf16.mxu0 0
      %1640 = vmatpush1.bf16.msra.mxu0 0
      %1641 = vmatprep.subr.bf16.mxu0 0
      %1642 = vmatpush1.bf16.msra.mxu0 0
      %1643 = vmatprep.subr.bf16.mxu0 0
      %1644 = vmatpush1.bf16.msra.mxu0 0
      %1645 = vmatprep.subr.bf16.mxu0 0
      %1646 = vmatpush1.bf16.msra.mxu0 0
      %1647 = vmatprep.subr.bf16.mxu0 0
      %1648 = vmatpush1.bf16.msra.mxu0 0
      %1649 = vmatprep.subr.bf16.mxu0 0
      %1650 = vmatpush1.bf16.msra.mxu0 0
      %1651 = vmatprep.subr.bf16.mxu0 0
      %1652 = vmatpush1.bf16.msra.mxu0 0
      %1653 = vmatprep.subr.bf16.mxu0 0
      %1654 = vmatpush1.bf16.msra.mxu0 0
      %1655 = vmatprep.subr.bf16.mxu0 0
      %1656 = vmatpush1.bf16.msra.mxu0 0
      %1657 = vmatprep.subr.bf16.mxu0 0
      %1658 = vmatpush1.bf16.msra.mxu0 0
      %1659 = vmatprep.subr.bf16.mxu0 0
      %1660 = vmatpush1.bf16.msra.mxu0 0
      %1661 = vmatprep.mubr.bf16.mxu0 0
      %1662 = vmatmul.mubr.bf16.gmra.mrb[0].mxu0 %v1624
      %v1663 = vpop.f32.mrb[0].mxu0
      %v1664 = vadd.f32 0.0, %v1663
      %v1665 = vpop.f32.mrb[0].mxu0
      %v1666 = vpop.f32.mrb[0].mxu0
      %v1667 = vpop.f32.mrb[0].mxu0
      %1668 = vdwg.mxu0
      %v1669 = vadd.f32 %v1562, %v1664
      %v1670 = vmul.f32 %v847, %v666
      %v1671 = vpack.c.bf16 %v1670, %v1670
      %v1673 = vsel %vm669, %v1671, 0
      %1675 = vmatprep.subr.bf16.mxu0 0
      %1676 = vmatpush1.bf16.xpose.msra.mxu0 %v1673
      %1677 = vmatprep.subr.bf16.mxu0 0
      %1678 = vmatpush1.bf16.xpose.msra.mxu0 0
      %1679 = vmatprep.subr.bf16.mxu0 0
      %1680 = vmatpush1.bf16.xpose.msra.mxu0 0
      %1681 = vmatprep.subr.bf16.mxu0 0
      %1682 = vmatpush1.bf16.xpose.msra.mxu0 0
      %1683 = vmatprep.subr.bf16.mxu0 0
      %1684 = vmatpush1.bf16.xpose.msra.mxu0 0
      %1685 = vmatprep.subr.bf16.mxu0 0
      %1686 = vmatpush1.bf16.xpose.msra.mxu0 0
      %1687 = vmatprep.subr.bf16.mxu0 0
      %1688 = vmatpush1.bf16.xpose.msra.mxu0 0
      %1689 = vmatprep.subr.bf16.mxu0 0
      %1690 = vmatpush1.bf16.xpose.msra.mxu0 0
      %1691 = vmatprep.subr.bf16.mxu0 0
      %1692 = vmatpush1.bf16.xpose.msra.mxu0 0
      %1693 = vmatprep.subr.bf16.mxu0 0
      %1694 = vmatpush1.bf16.xpose.msra.mxu0 0
      %1695 = vmatprep.subr.bf16.mxu0 0
      %1696 = vmatpush1.bf16.xpose.msra.mxu0 0
      %1697 = vmatprep.subr.bf16.mxu0 0
      %1698 = vmatpush1.bf16.xpose.msra.mxu0 0
      %1699 = vmatprep.subr.bf16.mxu0 0
      %1700 = vmatpush1.bf16.xpose.msra.mxu0 0
      %1701 = vmatprep.subr.bf16.mxu0 0
      %1702 = vmatpush1.bf16.xpose.msra.mxu0 0
      %1703 = vmatprep.subr.bf16.mxu0 0
      %1704 = vmatpush1.bf16.xpose.msra.mxu0 0
      %1705 = vmatprep.subr.bf16.mxu0 0
      %1706 = vmatpush1.bf16.xpose.msra.mxu0 0
      %1707 = vmatprep.mubr.bf16.mxu0 0
      %1708 = vmatmul.mubr.bf16.gmra.mrb[0].mxu0 %v921
      %v1709 = vpop.f32.mrb[0].mxu0
      %v1710 = vadd.f32 0.0, %v1709
      %v1711 = vpop.f32.mrb[0].mxu0
      %v1712 = vpop.f32.mrb[0].mxu0
      %v1713 = vpop.f32.mrb[0].mxu0
      %1714 = vdwg.mxu0
      %v1715 = vsel %vm718, -1e+18, %v1710
      %v1716 = vsel %vm967, %v1715, -inf
      %1717 = vmax.xlane.f32.xlu0 %v1716
      %v1718 = vpop.xlane.xlu0 %1717
      %v1719 = vsub.f32 %v1715, %v1718
      %v1720 = vmul.f32 %v1719, 1.442695
      %v1721 = vpow.pop %v1720
      %v1722 = vsel %vm967, %v1721, 0.0
      %1723 = vadd.xlane.f32.xlu0 %v1722
      %v1724 = vpop.xlane.xlu0 %1723
      %v1725 = vrcp.pop %v1724
      %v1726 = vmul.f32 %v1721, %v1725
      %v1727 = vpack.c.bf16 %v1726, %v1726
      %v1728 = vmul.f32 %v912, %v666
      %v1729 = vpack.c.bf16 %v1728, %v1728
      %v1731 = vsel %vm967, %v1727, 0
      %v1734 = vsel %vm1045, %v1729, 0
      %1736 = vmatprep.subr.bf16.mxu0 0
      %1737 = vmatpush1.bf16.msra.mxu0 %v1734
      %1738 = vmatprep.subr.bf16.mxu0 0
      %1739 = vmatpush1.bf16.msra.mxu0 0
      %1740 = vmatprep.subr.bf16.mxu0 0
      %1741 = vmatpush1.bf16.msra.mxu0 0
      %1742 = vmatprep.subr.bf16.mxu0 0
      %1743 = vmatpush1.bf16.msra.mxu0 0
      %1744 = vmatprep.subr.bf16.mxu0 0
      %1745 = vmatpush1.bf16.msra.mxu0 0
      %1746 = vmatprep.subr.bf16.mxu0 0
      %1747 = vmatpush1.bf16.msra.mxu0 0
      %1748 = vmatprep.subr.bf16.mxu0 0
      %1749 = vmatpush1.bf16.msra.mxu0 0
      %1750 = vmatprep.subr.bf16.mxu0 0
      %1751 = vmatpush1.bf16.msra.mxu0 0
      %1752 = vmatprep.subr.bf16.mxu0 0
      %1753 = vmatpush1.bf16.msra.mxu0 0
      %1754 = vmatprep.subr.bf16.mxu0 0
      %1755 = vmatpush1.bf16.msra.mxu0 0
      %1756 = vmatprep.subr.bf16.mxu0 0
      %1757 = vmatpush1.bf16.msra.mxu0 0
      %1758 = vmatprep.subr.bf16.mxu0 0
      %1759 = vmatpush1.bf16.msra.mxu0 0
      %1760 = vmatprep.subr.bf16.mxu0 0
      %1761 = vmatpush1.bf16.msra.mxu0 0
      %1762 = vmatprep.subr.bf16.mxu0 0
      %1763 = vmatpush1.bf16.msra.mxu0 0
      %1764 = vmatprep.subr.bf16.mxu0 0
      %1765 = vmatpush1.bf16.msra.mxu0 0
      %1766 = vmatprep.subr.bf16.mxu0 0
      %1767 = vmatpush1.bf16.msra.mxu0 0
      %1768 = vmatprep.mubr.bf16.mxu0 0
      %1769 = vmatmul.mubr.bf16.gmra.mrb[0].mxu0 %v1731
      %v1770 = vpop.f32.mrb[0].mxu0
      %v1771 = vadd.f32 0.0, %v1770
      %v1772 = vpop.f32.mrb[0].mxu0
      %v1773 = vpop.f32.mrb[0].mxu0
      %v1774 = vpop.f32.mrb[0].mxu0
      %1775 = vdwg.mxu0
      %v1776 = vadd.f32 %v1669, %v1771
      %s1777 = scalar_lea.vmem %s4, 48
      %v1778 = vld [vmem:[%s1777] sm:$0xf]
      %v1779 = vld [vmem:[%s1777 + $0x4] sm:$0xf]
      %v1780 = vld [vmem:[%s1777 + $0x8] sm:$0xf]
      %v1781 = vld [vmem:[%s1777 + $0xc] sm:$0xf]
      %v1782 = vpack.c.bf16 %v1776, %v1776
      %s1783 = scalar_lea.vmem %s5, 3
      %v1784 = vld [vmem:[%s1783] sm:$0x1]
      %v1786 = vlaneseq
      %v1787 = vshrl.u32 %v1786, 7
      %v1788 = vsub.s32 0, %v1787
      %v1789 = vrot.slane %v1784, %v1788
      %v1795 = vunpack.c.l.b16 %v1778
      %v1796 = vunpack.c.l.b16 %v1779
      %v1797 = vunpack.c.l.b16 %v1780
      %v1798 = vunpack.c.l.b16 %v1781
      %v1799 = vpack.c.b16 %v1796, %v1795
      %v1800 = vpack.c.b16 %v1798, %v1797
      %v1804 = vsel %vm669, %v1782, 0
      %1806 = vmatprep.subr.bf16.mxu0 0
      %1807 = vmatpush1.bf16.msra.mxu0 %v1799
      %1808 = vmatprep.subr.bf16.mxu0 0
      %1809 = vmatpush1.bf16.msra.mxu0 %v1800
      %1810 = vmatprep.subr.bf16.mxu0 0
      %1811 = vmatpush1.bf16.msra.mxu0 0
      %1812 = vmatprep.subr.bf16.mxu0 0
      %1813 = vmatpush1.bf16.msra.mxu0 0
      %1814 = vmatprep.subr.bf16.mxu0 0
      %1815 = vmatpush1.bf16.msra.mxu0 0
      %1816 = vmatprep.subr.bf16.mxu0 0
      %1817 = vmatpush1.bf16.msra.mxu0 0
      %1818 = vmatprep.subr.bf16.mxu0 0
      %1819 = vmatpush1.bf16.msra.mxu0 0
      %1820 = vmatprep.subr.bf16.mxu0 0
      %1821 = vmatpush1.bf16.msra.mxu0 0
      %1822 = vmatprep.subr.bf16.mxu0 0
      %1823 = vmatpush1.bf16.msra.mxu0 0
      %1824 = vmatprep.subr.bf16.mxu0 0
      %1825 = vmatpush1.bf16.msra.mxu0 0
      %1826 = vmatprep.subr.bf16.mxu0 0
      %1827 = vmatpush1.bf16.msra.mxu0 0
      %1828 = vmatprep.subr.bf16.mxu0 0
      %1829 = vmatpush1.bf16.msra.mxu0 0
      %1830 = vmatprep.subr.bf16.mxu0 0
      %1831 = vmatpush1.bf16.msra.mxu0 0
      %1832 = vmatprep.subr.bf16.mxu0 0
      %1833 = vmatpush1.bf16.msra.mxu0 0
      %1834 = vmatprep.subr.bf16.mxu0 0
      %1835 = vmatpush1.bf16.msra.mxu0 0
      %1836 = vmatprep.subr.bf16.mxu0 0
      %1837 = vmatpush1.bf16.msra.mxu0 0
      %1838 = vmatprep.mubr.bf16.mxu0 0
      %1839 = vmatmul.mubr.bf16.gmra.mrb[0].mxu0 %v1804
      %v1840 = vpop.f32.mrb[0].mxu0
      %v1841 = vadd.f32 %v1789, %v1840
      %v1842 = vpop.f32.mrb[0].mxu0
      %v1843 = vpop.f32.mrb[0].mxu0
      %v1844 = vpop.f32.mrb[0].mxu0
      %1845 = vdwg.mxu0
      %v1846 = vadd.f32 %v1841, %v621
      %s1847 = scalar_lea.vmem %s8, 1
      %v1848 = vld [vmem:[%s1847] sm:$0x1]
      %s1849 = scalar_lea.vmem %s9, 1
      %v1850 = vld [vmem:[%s1849] sm:$0x1]
      %v1851 = vsel %vm669, %v1846, 0.0
      %1852 = vadd.xlane.f32.xlu0 %v1851
      %v1853 = vpop.xlane.xlu0 %1852
      %v1854 = vmul.f32 %v1853, %v673
      %v1855 = vsub.f32 %v1846, %v1854
      %v1856 = vmul.f32 %v1855, %v1855
      %v1857 = vsel %vm669, %v1856, 0.0
      %1858 = vadd.xlane.f32.xlu0 %v1857
      %v1859 = vpop.xlane.xlu0 %1858
      %v1860 = vmul.f32 %v1859, 0.032258064
      %v1861 = vrsqrt.pop %v1860
      %v1862 = vmul.f32 %v1860, %v1861
      %vm1863 = vcmp.eq.f32.partialorder %v1860, inf
      %v1864 = vsel %vm1863, %v1860, %v1862
      %vm1865 = vcmp.eq.f32.partialorder %v1860, 0.0
      %v1866 = vand.u32 %v1860, 2147483648
      %v1867 = vsel %vm1865, %v1866, %v1864
      %v1868 = vadd.f32 %v1867, 1e-06
      %v1869 = vrcp.pop %v1868
      %v1870 = vmul.f32 %v1855, %v1869
      %v1872 = vlaneseq
      %v1873 = vshrl.u32 %v1872, 7
      %v1874 = vsub.s32 0, %v1873
      %v1875 = vrot.slane %v1848, %v1874
      %v1877 = vmul.f32 %v1875, %v1870
      %v1879 = vlaneseq
      %v1880 = vshrl.u32 %v1879, 7
      %v1881 = vsub.s32 0, %v1880
      %v1882 = vrot.slane %v1850, %v1881
      %v1884 = vadd.f32 %v1877, %v1882
      %v1886 = vlaneseq
      %v1887 = vshrl.u32 %v1886, 7
      %v1888 = vsub.s32 0, %v1887
      %v1889 = vrot.slane %v624, %v1888
      %vm1891 = vcmp.gt.f32.partialorder %v1889, 0.0
      %v1892 = vld [vmem:[%s6] sm:$0xf]
      %v1893 = vld [vmem:[%s6 + $0x4] sm:$0xf]
      %v1894 = vld [vmem:[%s6 + $0x8] sm:$0xf]
      %v1895 = vld [vmem:[%s6 + $0xc] sm:$0xf]
      %v1896 = vpack.c.bf16 %v1884, %v1884
      %v1897 = vld [vmem:[%s7] sm:$0x1]
      %v1899 = vlaneseq
      %v1900 = vshrl.u32 %v1899, 7
      %v1901 = vsub.s32 0, %v1900
      %v1902 = vrot.slane %v1897, %v1901
      %v1908 = vunpack.c.l.b16 %v1892
      %v1909 = vunpack.c.l.b16 %v1893
      %v1910 = vunpack.c.l.b16 %v1894
      %v1911 = vunpack.c.l.b16 %v1895
      %v1912 = vpack.c.b16 %v1909, %v1908
      %v1913 = vpack.c.b16 %v1911, %v1910
      %v1917 = vsel %vm669, %v1896, 0
      %1919 = vmatprep.subr.bf16.mxu0 0
      %1920 = vmatpush1.bf16.msra.mxu0 %v1912
      %1921 = vmatprep.subr.bf16.mxu0 0
      %1922 = vmatpush1.bf16.msra.mxu0 %v1913
      %1923 = vmatprep.subr.bf16.mxu0 0
      %1924 = vmatpush1.bf16.msra.mxu0 0
      %1925 = vmatprep.subr.bf16.mxu0 0
      %1926 = vmatpush1.bf16.msra.mxu0 0
      %1927 = vmatprep.subr.bf16.mxu0 0
      %1928 = vmatpush1.bf16.msra.mxu0 0
      %1929 = vmatprep.subr.bf16.mxu0 0
      %1930 = vmatpush1.bf16.msra.mxu0 0
      %1931 = vmatprep.subr.bf16.mxu0 0
      %1932 = vmatpush1.bf16.msra.mxu0 0
      %1933 = vmatprep.subr.bf16.mxu0 0
      %1934 = vmatpush1.bf16.msra.mxu0 0
      %1935 = vmatprep.subr.bf16.mxu0 0
      %1936 = vmatpush1.bf16.msra.mxu0 0
      %1937 = vmatprep.subr.bf16.mxu0 0
      %1938 = vmatpush1.bf16.msra.mxu0 0
      %1939 = vmatprep.subr.bf16.mxu0 0
      %1940 = vmatpush1.bf16.msra.mxu0 0
      %1941 = vmatprep.subr.bf16.mxu0 0
      %1942 = vmatpush1.bf16.msra.mxu0 0
      %1943 = vmatprep.subr.bf16.mxu0 0
      %1944 = vmatpush1.bf16.msra.mxu0 0
      %1945 = vmatprep.subr.bf16.mxu0 0
      %1946 = vmatpush1.bf16.msra.mxu0 0
      %1947 = vmatprep.subr.bf16.mxu0 0
      %1948 = vmatpush1.bf16.msra.mxu0 0
      %1949 = vmatprep.subr.bf16.mxu0 0
      %1950 = vmatpush1.bf16.msra.mxu0 0
      %1951 = vmatprep.mubr.bf16.mxu0 0
      %1952 = vmatmul.mubr.bf16.gmra.mrb[0].mxu0 %v1917
      %v1953 = vpop.f32.mrb[0].mxu0
      %v1954 = vadd.f32 %v1902, %v1953
      %v1955 = vpop.f32.mrb[0].mxu0
      %v1956 = vpop.f32.mrb[0].mxu0
      %v1957 = vpop.f32.mrb[0].mxu0
      %1958 = vdwg.mxu0
      %v1959 = vmul.f32 %v1954, 0.5
      %s1960 = scalar_lea.vmem %s6, 16
      %v1961 = vld [vmem:[%s1960] sm:$0xf]
      %v1962 = vld [vmem:[%s1960 + $0x4] sm:$0xf]
      %v1963 = vld [vmem:[%s1960 + $0x8] sm:$0xf]
      %v1964 = vld [vmem:[%s1960 + $0xc] sm:$0xf]
      %v1965 = vpack.c.bf16 %v622, %v622
      %s1966 = scalar_lea.vmem %s7, 1
      %v1967 = vld [vmem:[%s1966] sm:$0x1]
      %v1969 = vlaneseq
      %v1970 = vshrl.u32 %v1969, 7
      %v1971 = vsub.s32 0, %v1970
      %v1972 = vrot.slane %v1967, %v1971
      %v1978 = vunpack.c.l.b16 %v1961
      %v1979 = vunpack.c.l.b16 %v1962
      %v1980 = vunpack.c.l.b16 %v1963
      %v1981 = vunpack.c.l.b16 %v1964
      %v1982 = vpack.c.b16 %v1979, %v1978
      %v1983 = vpack.c.b16 %v1981, %v1980
      %v1987 = vsel %vm669, %v1965, 0
      %1989 = vmatprep.subr.bf16.mxu0 0
      %1990 = vmatpush1.bf16.msra.mxu0 %v1982
      %1991 = vmatprep.subr.bf16.mxu0 0
      %1992 = vmatpush1.bf16.msra.mxu0 %v1983
      %1993 = vmatprep.subr.bf16.mxu0 0
      %1994 = vmatpush1.bf16.msra.mxu0 0
      %1995 = vmatprep.subr.bf16.mxu0 0
      %1996 = vmatpush1.bf16.msra.mxu0 0
      %1997 = vmatprep.subr.bf16.mxu0 0
      %1998 = vmatpush1.bf16.msra.mxu0 0
      %1999 = vmatprep.subr.bf16.mxu0 0
      %2000 = vmatpush1.bf16.msra.mxu0 0
      %2001 = vmatprep.subr.bf16.mxu0 0
      %2002 = vmatpush1.bf16.msra.mxu0 0
      %2003 = vmatprep.subr.bf16.mxu0 0
      %2004 = vmatpush1.bf16.msra.mxu0 0
      %2005 = vmatprep.subr.bf16.mxu0 0
      %2006 = vmatpush1.bf16.msra.mxu0 0
      %2007 = vmatprep.subr.bf16.mxu0 0
      %2008 = vmatpush1.bf16.msra.mxu0 0
      %2009 = vmatprep.subr.bf16.mxu0 0
      %2010 = vmatpush1.bf16.msra.mxu0 0
      %2011 = vmatprep.subr.bf16.mxu0 0
      %2012 = vmatpush1.bf16.msra.mxu0 0
      %2013 = vmatprep.subr.bf16.mxu0 0
      %2014 = vmatpush1.bf16.msra.mxu0 0
      %2015 = vmatprep.subr.bf16.mxu0 0
      %2016 = vmatpush1.bf16.msra.mxu0 0
      %2017 = vmatprep.subr.bf16.mxu0 0
      %2018 = vmatpush1.bf16.msra.mxu0 0
      %2019 = vmatprep.subr.bf16.mxu0 0
      %2020 = vmatpush1.bf16.msra.mxu0 0
      %2021 = vmatprep.mubr.bf16.mxu0 0
      %2022 = vmatmul.mubr.bf16.gmra.mrb[0].mxu0 %v1987
      %v2023 = vpop.f32.mrb[0].mxu0
      %v2024 = vadd.f32 %v1972, %v2023
      %v2025 = vpop.f32.mrb[0].mxu0
      %v2026 = vpop.f32.mrb[0].mxu0
      %v2027 = vpop.f32.mrb[0].mxu0
      %2028 = vdwg.mxu0
      %s2029 = scalar_lea.vmem %s6, 32
      %v2030 = vld [vmem:[%s2029] sm:$0xf]
      %v2031 = vld [vmem:[%s2029 + $0x4] sm:$0xf]
      %v2032 = vld [vmem:[%s2029 + $0x8] sm:$0xf]
      %v2033 = vld [vmem:[%s2029 + $0xc] sm:$0xf]
      %s2034 = scalar_lea.vmem %s7, 2
      %v2035 = vld [vmem:[%s2034] sm:$0x1]
      %v2037 = vlaneseq
      %v2038 = vshrl.u32 %v2037, 7
      %v2039 = vsub.s32 0, %v2038
      %v2040 = vrot.slane %v2035, %v2039
      %v2046 = vunpack.c.l.b16 %v2030
      %v2047 = vunpack.c.l.b16 %v2031
      %v2048 = vunpack.c.l.b16 %v2032
      %v2049 = vunpack.c.l.b16 %v2033
      %v2050 = vpack.c.b16 %v2047, %v2046
      %v2051 = vpack.c.b16 %v2049, %v2048
      %2054 = vmatprep.subr.bf16.mxu0 0
      %2055 = vmatpush1.bf16.msra.mxu0 %v2050
      %2056 = vmatprep.subr.bf16.mxu0 0
      %2057 = vmatpush1.bf16.msra.mxu0 %v2051
      %2058 = vmatprep.subr.bf16.mxu0 0
      %2059 = vmatpush1.bf16.msra.mxu0 0
      %2060 = vmatprep.subr.bf16.mxu0 0
      %2061 = vmatpush1.bf16.msra.mxu0 0
      %2062 = vmatprep.subr.bf16.mxu0 0
      %2063 = vmatpush1.bf16.msra.mxu0 0
      %2064 = vmatprep.subr.bf16.mxu0 0
      %2065 = vmatpush1.bf16.msra.mxu0 0
      %2066 = vmatprep.subr.bf16.mxu0 0
      %2067 = vmatpush1.bf16.msra.mxu0 0
      %2068 = vmatprep.subr.bf16.mxu0 0
      %2069 = vmatpush1.bf16.msra.mxu0 0
      %2070 = vmatprep.subr.bf16.mxu0 0
      %2071 = vmatpush1.bf16.msra.mxu0 0
      %2072 = vmatprep.subr.bf16.mxu0 0
      %2073 = vmatpush1.bf16.msra.mxu0 0
      %2074 = vmatprep.subr.bf16.mxu0 0
      %2075 = vmatpush1.bf16.msra.mxu0 0
      %2076 = vmatprep.subr.bf16.mxu0 0
      %2077 = vmatpush1.bf16.msra.mxu0 0
      %2078 = vmatprep.subr.bf16.mxu0 0
      %2079 = vmatpush1.bf16.msra.mxu0 0
      %2080 = vmatprep.subr.bf16.mxu0 0
      %2081 = vmatpush1.bf16.msra.mxu0 0
      %2082 = vmatprep.subr.bf16.mxu0 0
      %2083 = vmatpush1.bf16.msra.mxu0 0
      %2084 = vmatprep.subr.bf16.mxu0 0
      %2085 = vmatpush1.bf16.msra.mxu0 0
      %2086 = vmatprep.mubr.bf16.mxu0 0
      %2087 = vmatmul.mubr.bf16.gmra.mrb[0].mxu0 %v1987
      %v2088 = vpop.f32.mrb[0].mxu0
      %v2089 = vadd.f32 %v2040, %v2088
      %v2090 = vpop.f32.mrb[0].mxu0
      %v2091 = vpop.f32.mrb[0].mxu0
      %v2092 = vpop.f32.mrb[0].mxu0
      %2093 = vdwg.mxu0
      %v2094 = vpack.c.bf16 %v1959, %v1959
      %v2095 = vmul.f32 %v2024, %v631
      %v2096 = vpack.c.bf16 %v2095, %v2095
      %v2098 = vsel %vm669, %v2094, 0
      %v2101 = vsel %vm669, %v2096, 0
      %2103 = vmatprep.subr.bf16.mxu0 0
      %2104 = vmatpush1.bf16.xpose.msra.mxu0 %v2101
      %2105 = vmatprep.subr.bf16.mxu0 0
      %2106 = vmatpush1.bf16.xpose.msra.mxu0 0
      %2107 = vmatprep.subr.bf16.mxu0 0
      %2108 = vmatpush1.bf16.xpose.msra.mxu0 0
      %2109 = vmatprep.subr.bf16.mxu0 0
      %2110 = vmatpush1.bf16.xpose.msra.mxu0 0
      %2111 = vmatprep.subr.bf16.mxu0 0
      %2112 = vmatpush1.bf16.xpose.msra.mxu0 0
      %2113 = vmatprep.subr.bf16.mxu0 0
      %2114 = vmatpush1.bf16.xpose.msra.mxu0 0
      %2115 = vmatprep.subr.bf16.mxu0 0
      %2116 = vmatpush1.bf16.xpose.msra.mxu0 0
      %2117 = vmatprep.subr.bf16.mxu0 0
      %2118 = vmatpush1.bf16.xpose.msra.mxu0 0
      %2119 = vmatprep.subr.bf16.mxu0 0
      %2120 = vmatpush1.bf16.xpose.msra.mxu0 0
      %2121 = vmatprep.subr.bf16.mxu0 0
      %2122 = vmatpush1.bf16.xpose.msra.mxu0 0
      %2123 = vmatprep.subr.bf16.mxu0 0
      %2124 = vmatpush1.bf16.xpose.msra.mxu0 0
      %2125 = vmatprep.subr.bf16.mxu0 0
      %2126 = vmatpush1.bf16.xpose.msra.mxu0 0
      %2127 = vmatprep.subr.bf16.mxu0 0
      %2128 = vmatpush1.bf16.xpose.msra.mxu0 0
      %2129 = vmatprep.subr.bf16.mxu0 0
      %2130 = vmatpush1.bf16.xpose.msra.mxu0 0
      %2131 = vmatprep.subr.bf16.mxu0 0
      %2132 = vmatpush1.bf16.xpose.msra.mxu0 0
      %2133 = vmatprep.subr.bf16.mxu0 0
      %2134 = vmatpush1.bf16.xpose.msra.mxu0 0
      %2135 = vmatprep.mubr.bf16.mxu0 0
      %2136 = vmatmul.mubr.bf16.gmra.mrb[0].mxu0 %v2098
      %v2137 = vpop.f32.mrb[0].mxu0
      %v2138 = vadd.f32 0.0, %v2137
      %v2139 = vpop.f32.mrb[0].mxu0
      %v2140 = vpop.f32.mrb[0].mxu0
      %v2141 = vpop.f32.mrb[0].mxu0
      %2142 = vdwg.mxu0
      %v2143 = vsel %vm1891, -1e+18, %v2138
      %v2144 = vsel %vm967, %v2143, -inf
      %2145 = vmax.xlane.f32.xlu0 %v2144
      %v2146 = vpop.xlane.xlu0 %2145
      %v2147 = vsub.f32 %v2143, %v2146
      %v2148 = vmul.f32 %v2147, 1.442695
      %v2149 = vpow.pop %v2148
      %v2150 = vsel %vm967, %v2149, 0.0
      %2151 = vadd.xlane.f32.xlu0 %v2150
      %v2152 = vpop.xlane.xlu0 %2151
      %v2153 = vrcp.pop %v2152
      %v2154 = vmul.f32 %v2149, %v2153
      %2155 = vst.msk [vmem:[%s611] sm:$0xff] %vm967, %v2154
      %v2156 = vpack.c.bf16 %v2154, %v2154
      %v2157 = vmul.f32 %v2089, %v631
      %v2158 = vpack.c.bf16 %v2157, %v2157
      %v2159 = vmul.f32 %v2024, %v636
      %v2160 = vpack.c.bf16 %v2159, %v2159
      %v2162 = vsel %vm669, %v2160, 0
      %2164 = vmatprep.subr.bf16.mxu0 0
      %2165 = vmatpush1.bf16.xpose.msra.mxu0 %v2162
      %2166 = vmatprep.subr.bf16.mxu0 0
      %2167 = vmatpush1.bf16.xpose.msra.mxu0 0
      %2168 = vmatprep.subr.bf16.mxu0 0
      %2169 = vmatpush1.bf16.xpose.msra.mxu0 0
      %2170 = vmatprep.subr.bf16.mxu0 0
      %2171 = vmatpush1.bf16.xpose.msra.mxu0 0
      %2172 = vmatprep.subr.bf16.mxu0 0
      %2173 = vmatpush1.bf16.xpose.msra.mxu0 0
      %2174 = vmatprep.subr.bf16.mxu0 0
      %2175 = vmatpush1.bf16.xpose.msra.mxu0 0
      %2176 = vmatprep.subr.bf16.mxu0 0
      %2177 = vmatpush1.bf16.xpose.msra.mxu0 0
      %2178 = vmatprep.subr.bf16.mxu0 0
      %2179 = vmatpush1.bf16.xpose.msra.mxu0 0
      %2180 = vmatprep.subr.bf16.mxu0 0
      %2181 = vmatpush1.bf16.xpose.msra.mxu0 0
      %2182 = vmatprep.subr.bf16.mxu0 0
      %2183 = vmatpush1.bf16.xpose.msra.mxu0 0
      %2184 = vmatprep.subr.bf16.mxu0 0
      %2185 = vmatpush1.bf16.xpose.msra.mxu0 0
      %2186 = vmatprep.subr.bf16.mxu0 0
      %2187 = vmatpush1.bf16.xpose.msra.mxu0 0
      %2188 = vmatprep.subr.bf16.mxu0 0
      %2189 = vmatpush1.bf16.xpose.msra.mxu0 0
      %2190 = vmatprep.subr.bf16.mxu0 0
      %2191 = vmatpush1.bf16.xpose.msra.mxu0 0
      %2192 = vmatprep.subr.bf16.mxu0 0
      %2193 = vmatpush1.bf16.xpose.msra.mxu0 0
      %2194 = vmatprep.subr.bf16.mxu0 0
      %2195 = vmatpush1.bf16.xpose.msra.mxu0 0
      %2196 = vmatprep.mubr.bf16.mxu0 0
      %2197 = vmatmul.mubr.bf16.gmra.mrb[0].mxu0 %v2098
      %v2198 = vpop.f32.mrb[0].mxu0
      %v2199 = vadd.f32 0.0, %v2198
      %v2200 = vpop.f32.mrb[0].mxu0
      %v2201 = vpop.f32.mrb[0].mxu0
      %v2202 = vpop.f32.mrb[0].mxu0
      %2203 = vdwg.mxu0
      %v2204 = vsel %vm1891, -1e+18, %v2199
      %v2205 = vsel %vm967, %v2204, -inf
      %2206 = vmax.xlane.f32.xlu0 %v2205
      %v2207 = vpop.xlane.xlu0 %2206
      %v2208 = vsub.f32 %v2204, %v2207
      %v2209 = vmul.f32 %v2208, 1.442695
      %v2210 = vpow.pop %v2209
      %v2211 = vsel %vm967, %v2210, 0.0
      %2212 = vadd.xlane.f32.xlu0 %v2211
      %v2213 = vpop.xlane.xlu0 %2212
      %v2214 = vrcp.pop %v2213
      %v2215 = vmul.f32 %v2210, %v2214
      %v2216 = vpack.c.bf16 %v2215, %v2215
      %v2217 = vmul.f32 %v2089, %v636
      %v2218 = vpack.c.bf16 %v2217, %v2217
      %v2220 = vsel %vm967, %v2216, 0
      %v2223 = vsel %vm1045, %v2218, 0
      %2225 = vmatprep.subr.bf16.mxu0 0
      %2226 = vmatpush1.bf16.msra.mxu0 %v2223
      %2227 = vmatprep.subr.bf16.mxu0 0
      %2228 = vmatpush1.bf16.msra.mxu0 0
      %2229 = vmatprep.subr.bf16.mxu0 0
      %2230 = vmatpush1.bf16.msra.mxu0 0
      %2231 = vmatprep.subr.bf16.mxu0 0
      %2232 = vmatpush1.bf16.msra.mxu0 0
      %2233 = vmatprep.subr.bf16.mxu0 0
      %2234 = vmatpush1.bf16.msra.mxu0 0
      %2235 = vmatprep.subr.bf16.mxu0 0
      %2236 = vmatpush1.bf16.msra.mxu0 0
      %2237 = vmatprep.subr.bf16.mxu0 0
      %2238 = vmatpush1.bf16.msra.mxu0 0
      %2239 = vmatprep.subr.bf16.mxu0 0
      %2240 = vmatpush1.bf16.msra.mxu0 0
      %2241 = vmatprep.subr.bf16.mxu0 0
      %2242 = vmatpush1.bf16.msra.mxu0 0
      %2243 = vmatprep.subr.bf16.mxu0 0
      %2244 = vmatpush1.bf16.msra.mxu0 0
      %2245 = vmatprep.subr.bf16.mxu0 0
      %2246 = vmatpush1.bf16.msra.mxu0 0
      %2247 = vmatprep.subr.bf16.mxu0 0
      %2248 = vmatpush1.bf16.msra.mxu0 0
      %2249 = vmatprep.subr.bf16.mxu0 0
      %2250 = vmatpush1.bf16.msra.mxu0 0
      %2251 = vmatprep.subr.bf16.mxu0 0
      %2252 = vmatpush1.bf16.msra.mxu0 0
      %2253 = vmatprep.subr.bf16.mxu0 0
      %2254 = vmatpush1.bf16.msra.mxu0 0
      %2255 = vmatprep.subr.bf16.mxu0 0
      %2256 = vmatpush1.bf16.msra.mxu0 0
      %2257 = vmatprep.mubr.bf16.mxu0 0
      %2258 = vmatmul.mubr.bf16.gmra.mrb[0].mxu0 %v2220
      %v2259 = vpop.f32.mrb[0].mxu0
      %v2260 = vadd.f32 0.0, %v2259
      %v2261 = vpop.f32.mrb[0].mxu0
      %v2262 = vpop.f32.mrb[0].mxu0
      %v2263 = vpop.f32.mrb[0].mxu0
      %2264 = vdwg.mxu0
      %v2266 = vsel %vm967, %v2156, 0
      %v2269 = vsel %vm1045, %v2158, 0
      %2271 = vmatprep.subr.bf16.mxu0 0
      %2272 = vmatpush1.bf16.msra.mxu0 %v2269
      %2273 = vmatprep.subr.bf16.mxu0 0
      %2274 = vmatpush1.bf16.msra.mxu0 0
      %2275 = vmatprep.subr.bf16.mxu0 0
      %2276 = vmatpush1.bf16.msra.mxu0 0
      %2277 = vmatprep.subr.bf16.mxu0 0
      %2278 = vmatpush1.bf16.msra.mxu0 0
      %2279 = vmatprep.subr.bf16.mxu0 0
      %2280 = vmatpush1.bf16.msra.mxu0 0
      %2281 = vmatprep.subr.bf16.mxu0 0
      %2282 = vmatpush1.bf16.msra.mxu0 0
      %2283 = vmatprep.subr.bf16.mxu0 0
      %2284 = vmatpush1.bf16.msra.mxu0 0
      %2285 = vmatprep.subr.bf16.mxu0 0
      %2286 = vmatpush1.bf16.msra.mxu0 0
      %2287 = vmatprep.subr.bf16.mxu0 0
      %2288 = vmatpush1.bf16.msra.mxu0 0
      %2289 = vmatprep.subr.bf16.mxu0 0
      %2290 = vmatpush1.bf16.msra.mxu0 0
      %2291 = vmatprep.subr.bf16.mxu0 0
      %2292 = vmatpush1.bf16.msra.mxu0 0
      %2293 = vmatprep.subr.bf16.mxu0 0
      %2294 = vmatpush1.bf16.msra.mxu0 0
      %2295 = vmatprep.subr.bf16.mxu0 0
      %2296 = vmatpush1.bf16.msra.mxu0 0
      %2297 = vmatprep.subr.bf16.mxu0 0
      %2298 = vmatpush1.bf16.msra.mxu0 0
      %2299 = vmatprep.subr.bf16.mxu0 0
      %2300 = vmatpush1.bf16.msra.mxu0 0
      %2301 = vmatprep.subr.bf16.mxu0 0
      %2302 = vmatpush1.bf16.msra.mxu0 0
      %2303 = vmatprep.mubr.bf16.mxu0 0
      %2304 = vmatmul.mubr.bf16.gmra.mrb[0].mxu0 %v2266
      %v2305 = vpop.f32.mrb[0].mxu0
      %v2306 = vadd.f32 %v2260, %v2305
      %v2307 = vpop.f32.mrb[0].mxu0
      %v2308 = vpop.f32.mrb[0].mxu0
      %v2309 = vpop.f32.mrb[0].mxu0
      %2310 = vdwg.mxu0
      %v2311 = vmul.f32 %v2024, %v641
      %v2312 = vpack.c.bf16 %v2311, %v2311
      %v2314 = vsel %vm669, %v2312, 0
      %2316 = vmatprep.subr.bf16.mxu0 0
      %2317 = vmatpush1.bf16.xpose.msra.mxu0 %v2314
      %2318 = vmatprep.subr.bf16.mxu0 0
      %2319 = vmatpush1.bf16.xpose.msra.mxu0 0
      %2320 = vmatprep.subr.bf16.mxu0 0
      %2321 = vmatpush1.bf16.xpose.msra.mxu0 0
      %2322 = vmatprep.subr.bf16.mxu0 0
      %2323 = vmatpush1.bf16.xpose.msra.mxu0 0
      %2324 = vmatprep.subr.bf16.mxu0 0
      %2325 = vmatpush1.bf16.xpose.msra.mxu0 0
      %2326 = vmatprep.subr.bf16.mxu0 0
      %2327 = vmatpush1.bf16.xpose.msra.mxu0 0
      %2328 = vmatprep.subr.bf16.mxu0 0
      %2329 = vmatpush1.bf16.xpose.msra.mxu0 0
      %2330 = vmatprep.subr.bf16.mxu0 0
      %2331 = vmatpush1.bf16.xpose.msra.mxu0 0
      %2332 = vmatprep.subr.bf16.mxu0 0
      %2333 = vmatpush1.bf16.xpose.msra.mxu0 0
      %2334 = vmatprep.subr.bf16.mxu0 0
      %2335 = vmatpush1.bf16.xpose.msra.mxu0 0
      %2336 = vmatprep.subr.bf16.mxu0 0
      %2337 = vmatpush1.bf16.xpose.msra.mxu0 0
      %2338 = vmatprep.subr.bf16.mxu0 0
      %2339 = vmatpush1.bf16.xpose.msra.mxu0 0
      %2340 = vmatprep.subr.bf16.mxu0 0
      %2341 = vmatpush1.bf16.xpose.msra.mxu0 0
      %2342 = vmatprep.subr.bf16.mxu0 0
      %2343 = vmatpush1.bf16.xpose.msra.mxu0 0
      %2344 = vmatprep.subr.bf16.mxu0 0
      %2345 = vmatpush1.bf16.xpose.msra.mxu0 0
      %2346 = vmatprep.subr.bf16.mxu0 0
      %2347 = vmatpush1.bf16.xpose.msra.mxu0 0
      %2348 = vmatprep.mubr.bf16.mxu0 0
      %2349 = vmatmul.mubr.bf16.gmra.mrb[0].mxu0 %v2098
      %v2350 = vpop.f32.mrb[0].mxu0
      %v2351 = vadd.f32 0.0, %v2350
      %v2352 = vpop.f32.mrb[0].mxu0
      %v2353 = vpop.f32.mrb[0].mxu0
      %v2354 = vpop.f32.mrb[0].mxu0
      %2355 = vdwg.mxu0
      %v2356 = vsel %vm1891, -1e+18, %v2351
      %v2357 = vsel %vm967, %v2356, -inf
      %2358 = vmax.xlane.f32.xlu0 %v2357
      %v2359 = vpop.xlane.xlu0 %2358
      %v2360 = vsub.f32 %v2356, %v2359
      %v2361 = vmul.f32 %v2360, 1.442695
      %v2362 = vpow.pop %v2361
      %v2363 = vsel %vm967, %v2362, 0.0
      %2364 = vadd.xlane.f32.xlu0 %v2363
      %v2365 = vpop.xlane.xlu0 %2364
      %v2366 = vrcp.pop %v2365
      %v2367 = vmul.f32 %v2362, %v2366
      %v2368 = vpack.c.bf16 %v2367, %v2367
      %v2369 = vmul.f32 %v2089, %v641
      %v2370 = vpack.c.bf16 %v2369, %v2369
      %v2372 = vsel %vm967, %v2368, 0
      %v2375 = vsel %vm1045, %v2370, 0
      %2377 = vmatprep.subr.bf16.mxu0 0
      %2378 = vmatpush1.bf16.msra.mxu0 %v2375
      %2379 = vmatprep.subr.bf16.mxu0 0
      %2380 = vmatpush1.bf16.msra.mxu0 0
      %2381 = vmatprep.subr.bf16.mxu0 0
      %2382 = vmatpush1.bf16.msra.mxu0 0
      %2383 = vmatprep.subr.bf16.mxu0 0
      %2384 = vmatpush1.bf16.msra.mxu0 0
      %2385 = vmatprep.subr.bf16.mxu0 0
      %2386 = vmatpush1.bf16.msra.mxu0 0
      %2387 = vmatprep.subr.bf16.mxu0 0
      %2388 = vmatpush1.bf16.msra.mxu0 0
      %2389 = vmatprep.subr.bf16.mxu0 0
      %2390 = vmatpush1.bf16.msra.mxu0 0
      %2391 = vmatprep.subr.bf16.mxu0 0
      %2392 = vmatpush1.bf16.msra.mxu0 0
      %2393 = vmatprep.subr.bf16.mxu0 0
      %2394 = vmatpush1.bf16.msra.mxu0 0
      %2395 = vmatprep.subr.bf16.mxu0 0
      %2396 = vmatpush1.bf16.msra.mxu0 0
      %2397 = vmatprep.subr.bf16.mxu0 0
      %2398 = vmatpush1.bf16.msra.mxu0 0
      %2399 = vmatprep.subr.bf16.mxu0 0
      %2400 = vmatpush1.bf16.msra.mxu0 0
      %2401 = vmatprep.subr.bf16.mxu0 0
      %2402 = vmatpush1.bf16.msra.mxu0 0
      %2403 = vmatprep.subr.bf16.mxu0 0
      %2404 = vmatpush1.bf16.msra.mxu0 0
      %2405 = vmatprep.subr.bf16.mxu0 0
      %2406 = vmatpush1.bf16.msra.mxu0 0
      %2407 = vmatprep.subr.bf16.mxu0 0
      %2408 = vmatpush1.bf16.msra.mxu0 0
      %2409 = vmatprep.mubr.bf16.mxu0 0
      %2410 = vmatmul.mubr.bf16.gmra.mrb[0].mxu0 %v2372
      %v2411 = vpop.f32.mrb[0].mxu0
      %v2412 = vadd.f32 0.0, %v2411
      %v2413 = vpop.f32.mrb[0].mxu0
      %v2414 = vpop.f32.mrb[0].mxu0
      %v2415 = vpop.f32.mrb[0].mxu0
      %2416 = vdwg.mxu0
      %v2417 = vadd.f32 %v2306, %v2412
      %v2418 = vmul.f32 %v2024, %v646
      %v2419 = vpack.c.bf16 %v2418, %v2418
      %v2421 = vsel %vm669, %v2419, 0
      %2423 = vmatprep.subr.bf16.mxu0 0
      %2424 = vmatpush1.bf16.xpose.msra.mxu0 %v2421
      %2425 = vmatprep.subr.bf16.mxu0 0
      %2426 = vmatpush1.bf16.xpose.msra.mxu0 0
      %2427 = vmatprep.subr.bf16.mxu0 0
      %2428 = vmatpush1.bf16.xpose.msra.mxu0 0
      %2429 = vmatprep.subr.bf16.mxu0 0
      %2430 = vmatpush1.bf16.xpose.msra.mxu0 0
      %2431 = vmatprep.subr.bf16.mxu0 0
      %2432 = vmatpush1.bf16.xpose.msra.mxu0 0
      %2433 = vmatprep.subr.bf16.mxu0 0
      %2434 = vmatpush1.bf16.xpose.msra.mxu0 0
      %2435 = vmatprep.subr.bf16.mxu0 0
      %2436 = vmatpush1.bf16.xpose.msra.mxu0 0
      %2437 = vmatprep.subr.bf16.mxu0 0
      %2438 = vmatpush1.bf16.xpose.msra.mxu0 0
      %2439 = vmatprep.subr.bf16.mxu0 0
      %2440 = vmatpush1.bf16.xpose.msra.mxu0 0
      %2441 = vmatprep.subr.bf16.mxu0 0
      %2442 = vmatpush1.bf16.xpose.msra.mxu0 0
      %2443 = vmatprep.subr.bf16.mxu0 0
      %2444 = vmatpush1.bf16.xpose.msra.mxu0 0
      %2445 = vmatprep.subr.bf16.mxu0 0
      %2446 = vmatpush1.bf16.xpose.msra.mxu0 0
      %2447 = vmatprep.subr.bf16.mxu0 0
      %2448 = vmatpush1.bf16.xpose.msra.mxu0 0
      %2449 = vmatprep.subr.bf16.mxu0 0
      %2450 = vmatpush1.bf16.xpose.msra.mxu0 0
      %2451 = vmatprep.subr.bf16.mxu0 0
      %2452 = vmatpush1.bf16.xpose.msra.mxu0 0
      %2453 = vmatprep.subr.bf16.mxu0 0
      %2454 = vmatpush1.bf16.xpose.msra.mxu0 0
      %2455 = vmatprep.mubr.bf16.mxu0 0
      %2456 = vmatmul.mubr.bf16.gmra.mrb[0].mxu0 %v2098
      %v2457 = vpop.f32.mrb[0].mxu0
      %v2458 = vadd.f32 0.0, %v2457
      %v2459 = vpop.f32.mrb[0].mxu0
      %v2460 = vpop.f32.mrb[0].mxu0
      %v2461 = vpop.f32.mrb[0].mxu0
      %2462 = vdwg.mxu0
      %v2463 = vsel %vm1891, -1e+18, %v2458
      %v2464 = vsel %vm967, %v2463, -inf
      %2465 = vmax.xlane.f32.xlu0 %v2464
      %v2466 = vpop.xlane.xlu0 %2465
      %v2467 = vsub.f32 %v2463, %v2466
      %v2468 = vmul.f32 %v2467, 1.442695
      %v2469 = vpow.pop %v2468
      %v2470 = vsel %vm967, %v2469, 0.0
      %2471 = vadd.xlane.f32.xlu0 %v2470
      %v2472 = vpop.xlane.xlu0 %2471
      %v2473 = vrcp.pop %v2472
      %v2474 = vmul.f32 %v2469, %v2473
      %v2475 = vpack.c.bf16 %v2474, %v2474
      %v2476 = vmul.f32 %v2089, %v646
      %v2477 = vpack.c.bf16 %v2476, %v2476
      %v2479 = vsel %vm967, %v2475, 0
      %v2482 = vsel %vm1045, %v2477, 0
      %2484 = vmatprep.subr.bf16.mxu0 0
      %2485 = vmatpush1.bf16.msra.mxu0 %v2482
      %2486 = vmatprep.subr.bf16.mxu0 0
      %2487 = vmatpush1.bf16.msra.mxu0 0
      %2488 = vmatprep.subr.bf16.mxu0 0
      %2489 = vmatpush1.bf16.msra.mxu0 0
      %2490 = vmatprep.subr.bf16.mxu0 0
      %2491 = vmatpush1.bf16.msra.mxu0 0
      %2492 = vmatprep.subr.bf16.mxu0 0
      %2493 = vmatpush1.bf16.msra.mxu0 0
      %2494 = vmatprep.subr.bf16.mxu0 0
      %2495 = vmatpush1.bf16.msra.mxu0 0
      %2496 = vmatprep.subr.bf16.mxu0 0
      %2497 = vmatpush1.bf16.msra.mxu0 0
      %2498 = vmatprep.subr.bf16.mxu0 0
      %2499 = vmatpush1.bf16.msra.mxu0 0
      %2500 = vmatprep.subr.bf16.mxu0 0
      %2501 = vmatpush1.bf16.msra.mxu0 0
      %2502 = vmatprep.subr.bf16.mxu0 0
      %2503 = vmatpush1.bf16.msra.mxu0 0
      %2504 = vmatprep.subr.bf16.mxu0 0
      %2505 = vmatpush1.bf16.msra.mxu0 0
      %2506 = vmatprep.subr.bf16.mxu0 0
      %2507 = vmatpush1.bf16.msra.mxu0 0
      %2508 = vmatprep.subr.bf16.mxu0 0
      %2509 = vmatpush1.bf16.msra.mxu0 0
      %2510 = vmatprep.subr.bf16.mxu0 0
      %2511 = vmatpush1.bf16.msra.mxu0 0
      %2512 = vmatprep.subr.bf16.mxu0 0
      %2513 = vmatpush1.bf16.msra.mxu0 0
      %2514 = vmatprep.subr.bf16.mxu0 0
      %2515 = vmatpush1.bf16.msra.mxu0 0
      %2516 = vmatprep.mubr.bf16.mxu0 0
      %2517 = vmatmul.mubr.bf16.gmra.mrb[0].mxu0 %v2479
      %v2518 = vpop.f32.mrb[0].mxu0
      %v2519 = vadd.f32 0.0, %v2518
      %v2520 = vpop.f32.mrb[0].mxu0
      %v2521 = vpop.f32.mrb[0].mxu0
      %v2522 = vpop.f32.mrb[0].mxu0
      %2523 = vdwg.mxu0
      %v2524 = vadd.f32 %v2417, %v2519
      %v2525 = vmul.f32 %v2024, %v651
      %v2526 = vpack.c.bf16 %v2525, %v2525
      %v2528 = vsel %vm669, %v2526, 0
      %2530 = vmatprep.subr.bf16.mxu0 0
      %2531 = vmatpush1.bf16.xpose.msra.mxu0 %v2528
      %2532 = vmatprep.subr.bf16.mxu0 0
      %2533 = vmatpush1.bf16.xpose.msra.mxu0 0
      %2534 = vmatprep.subr.bf16.mxu0 0
      %2535 = vmatpush1.bf16.xpose.msra.mxu0 0
      %2536 = vmatprep.subr.bf16.mxu0 0
      %2537 = vmatpush1.bf16.xpose.msra.mxu0 0
      %2538 = vmatprep.subr.bf16.mxu0 0
      %2539 = vmatpush1.bf16.xpose.msra.mxu0 0
      %2540 = vmatprep.subr.bf16.mxu0 0
      %2541 = vmatpush1.bf16.xpose.msra.mxu0 0
      %2542 = vmatprep.subr.bf16.mxu0 0
      %2543 = vmatpush1.bf16.xpose.msra.mxu0 0
      %2544 = vmatprep.subr.bf16.mxu0 0
      %2545 = vmatpush1.bf16.xpose.msra.mxu0 0
      %2546 = vmatprep.subr.bf16.mxu0 0
      %2547 = vmatpush1.bf16.xpose.msra.mxu0 0
      %2548 = vmatprep.subr.bf16.mxu0 0
      %2549 = vmatpush1.bf16.xpose.msra.mxu0 0
      %2550 = vmatprep.subr.bf16.mxu0 0
      %2551 = vmatpush1.bf16.xpose.msra.mxu0 0
      %2552 = vmatprep.subr.bf16.mxu0 0
      %2553 = vmatpush1.bf16.xpose.msra.mxu0 0
      %2554 = vmatprep.subr.bf16.mxu0 0
      %2555 = vmatpush1.bf16.xpose.msra.mxu0 0
      %2556 = vmatprep.subr.bf16.mxu0 0
      %2557 = vmatpush1.bf16.xpose.msra.mxu0 0
      %2558 = vmatprep.subr.bf16.mxu0 0
      %2559 = vmatpush1.bf16.xpose.msra.mxu0 0
      %2560 = vmatprep.subr.bf16.mxu0 0
      %2561 = vmatpush1.bf16.xpose.msra.mxu0 0
      %2562 = vmatprep.mubr.bf16.mxu0 0
      %2563 = vmatmul.mubr.bf16.gmra.mrb[0].mxu0 %v2098
      %v2564 = vpop.f32.mrb[0].mxu0
      %v2565 = vadd.f32 0.0, %v2564
      %v2566 = vpop.f32.mrb[0].mxu0
      %v2567 = vpop.f32.mrb[0].mxu0
      %v2568 = vpop.f32.mrb[0].mxu0
      %2569 = vdwg.mxu0
      %v2570 = vsel %vm1891, -1e+18, %v2565
      %v2571 = vsel %vm967, %v2570, -inf
      %2572 = vmax.xlane.f32.xlu0 %v2571
      %v2573 = vpop.xlane.xlu0 %2572
      %v2574 = vsub.f32 %v2570, %v2573
      %v2575 = vmul.f32 %v2574, 1.442695
      %v2576 = vpow.pop %v2575
      %v2577 = vsel %vm967, %v2576, 0.0
      %2578 = vadd.xlane.f32.xlu0 %v2577
      %v2579 = vpop.xlane.xlu0 %2578
      %v2580 = vrcp.pop %v2579
      %v2581 = vmul.f32 %v2576, %v2580
      %v2582 = vpack.c.bf16 %v2581, %v2581
      %v2583 = vmul.f32 %v2089, %v651
      %v2584 = vpack.c.bf16 %v2583, %v2583
      %v2586 = vsel %vm967, %v2582, 0
      %v2589 = vsel %vm1045, %v2584, 0
      %2591 = vmatprep.subr.bf16.mxu0 0
      %2592 = vmatpush1.bf16.msra.mxu0 %v2589
      %2593 = vmatprep.subr.bf16.mxu0 0
      %2594 = vmatpush1.bf16.msra.mxu0 0
      %2595 = vmatprep.subr.bf16.mxu0 0
      %2596 = vmatpush1.bf16.msra.mxu0 0
      %2597 = vmatprep.subr.bf16.mxu0 0
      %2598 = vmatpush1.bf16.msra.mxu0 0
      %2599 = vmatprep.subr.bf16.mxu0 0
      %2600 = vmatpush1.bf16.msra.mxu0 0
      %2601 = vmatprep.subr.bf16.mxu0 0
      %2602 = vmatpush1.bf16.msra.mxu0 0
      %2603 = vmatprep.subr.bf16.mxu0 0
      %2604 = vmatpush1.bf16.msra.mxu0 0
      %2605 = vmatprep.subr.bf16.mxu0 0
      %2606 = vmatpush1.bf16.msra.mxu0 0
      %2607 = vmatprep.subr.bf16.mxu0 0
      %2608 = vmatpush1.bf16.msra.mxu0 0
      %2609 = vmatprep.subr.bf16.mxu0 0
      %2610 = vmatpush1.bf16.msra.mxu0 0
      %2611 = vmatprep.subr.bf16.mxu0 0
      %2612 = vmatpush1.bf16.msra.mxu0 0
      %2613 = vmatprep.subr.bf16.mxu0 0
      %2614 = vmatpush1.bf16.msra.mxu0 0
      %2615 = vmatprep.subr.bf16.mxu0 0
      %2616 = vmatpush1.bf16.msra.mxu0 0
      %2617 = vmatprep.subr.bf16.mxu0 0
      %2618 = vmatpush1.bf16.msra.mxu0 0
      %2619 = vmatprep.subr.bf16.mxu0 0
      %2620 = vmatpush1.bf16.msra.mxu0 0
      %2621 = vmatprep.subr.bf16.mxu0 0
      %2622 = vmatpush1.bf16.msra.mxu0 0
      %2623 = vmatprep.mubr.bf16.mxu0 0
      %2624 = vmatmul.mubr.bf16.gmra.mrb[0].mxu0 %v2586
      %v2625 = vpop.f32.mrb[0].mxu0
      %v2626 = vadd.f32 0.0, %v2625
      %v2627 = vpop.f32.mrb[0].mxu0
      %v2628 = vpop.f32.mrb[0].mxu0
      %v2629 = vpop.f32.mrb[0].mxu0
      %2630 = vdwg.mxu0
      %v2631 = vadd.f32 %v2524, %v2626
      %v2632 = vmul.f32 %v2024, %v656
      %v2633 = vpack.c.bf16 %v2632, %v2632
      %v2635 = vsel %vm669, %v2633, 0
      %2637 = vmatprep.subr.bf16.mxu0 0
      %2638 = vmatpush1.bf16.xpose.msra.mxu0 %v2635
      %2639 = vmatprep.subr.bf16.mxu0 0
      %2640 = vmatpush1.bf16.xpose.msra.mxu0 0
      %2641 = vmatprep.subr.bf16.mxu0 0
      %2642 = vmatpush1.bf16.xpose.msra.mxu0 0
      %2643 = vmatprep.subr.bf16.mxu0 0
      %2644 = vmatpush1.bf16.xpose.msra.mxu0 0
      %2645 = vmatprep.subr.bf16.mxu0 0
      %2646 = vmatpush1.bf16.xpose.msra.mxu0 0
      %2647 = vmatprep.subr.bf16.mxu0 0
      %2648 = vmatpush1.bf16.xpose.msra.mxu0 0
      %2649 = vmatprep.subr.bf16.mxu0 0
      %2650 = vmatpush1.bf16.xpose.msra.mxu0 0
      %2651 = vmatprep.subr.bf16.mxu0 0
      %2652 = vmatpush1.bf16.xpose.msra.mxu0 0
      %2653 = vmatprep.subr.bf16.mxu0 0
      %2654 = vmatpush1.bf16.xpose.msra.mxu0 0
      %2655 = vmatprep.subr.bf16.mxu0 0
      %2656 = vmatpush1.bf16.xpose.msra.mxu0 0
      %2657 = vmatprep.subr.bf16.mxu0 0
      %2658 = vmatpush1.bf16.xpose.msra.mxu0 0
      %2659 = vmatprep.subr.bf16.mxu0 0
      %2660 = vmatpush1.bf16.xpose.msra.mxu0 0
      %2661 = vmatprep.subr.bf16.mxu0 0
      %2662 = vmatpush1.bf16.xpose.msra.mxu0 0
      %2663 = vmatprep.subr.bf16.mxu0 0
      %2664 = vmatpush1.bf16.xpose.msra.mxu0 0
      %2665 = vmatprep.subr.bf16.mxu0 0
      %2666 = vmatpush1.bf16.xpose.msra.mxu0 0
      %2667 = vmatprep.subr.bf16.mxu0 0
      %2668 = vmatpush1.bf16.xpose.msra.mxu0 0
      %2669 = vmatprep.mubr.bf16.mxu0 0
      %2670 = vmatmul.mubr.bf16.gmra.mrb[0].mxu0 %v2098
      %v2671 = vpop.f32.mrb[0].mxu0
      %v2672 = vadd.f32 0.0, %v2671
      %v2673 = vpop.f32.mrb[0].mxu0
      %v2674 = vpop.f32.mrb[0].mxu0
      %v2675 = vpop.f32.mrb[0].mxu0
      %2676 = vdwg.mxu0
      %v2677 = vsel %vm1891, -1e+18, %v2672
      %v2678 = vsel %vm967, %v2677, -inf
      %2679 = vmax.xlane.f32.xlu0 %v2678
      %v2680 = vpop.xlane.xlu0 %2679
      %v2681 = vsub.f32 %v2677, %v2680
      %v2682 = vmul.f32 %v2681, 1.442695
      %v2683 = vpow.pop %v2682
      %v2684 = vsel %vm967, %v2683, 0.0
      %2685 = vadd.xlane.f32.xlu0 %v2684
      %v2686 = vpop.xlane.xlu0 %2685
      %v2687 = vrcp.pop %v2686
      %v2688 = vmul.f32 %v2683, %v2687
      %v2689 = vpack.c.bf16 %v2688, %v2688
      %v2690 = vmul.f32 %v2089, %v656
      %v2691 = vpack.c.bf16 %v2690, %v2690
      %v2693 = vsel %vm967, %v2689, 0
      %v2696 = vsel %vm1045, %v2691, 0
      %2698 = vmatprep.subr.bf16.mxu0 0
      %2699 = vmatpush1.bf16.msra.mxu0 %v2696
      %2700 = vmatprep.subr.bf16.mxu0 0
      %2701 = vmatpush1.bf16.msra.mxu0 0
      %2702 = vmatprep.subr.bf16.mxu0 0
      %2703 = vmatpush1.bf16.msra.mxu0 0
      %2704 = vmatprep.subr.bf16.mxu0 0
      %2705 = vmatpush1.bf16.msra.mxu0 0
      %2706 = vmatprep.subr.bf16.mxu0 0
      %2707 = vmatpush1.bf16.msra.mxu0 0
      %2708 = vmatprep.subr.bf16.mxu0 0
      %2709 = vmatpush1.bf16.msra.mxu0 0
      %2710 = vmatprep.subr.bf16.mxu0 0
      %2711 = vmatpush1.bf16.msra.mxu0 0
      %2712 = vmatprep.subr.bf16.mxu0 0
      %2713 = vmatpush1.bf16.msra.mxu0 0
      %2714 = vmatprep.subr.bf16.mxu0 0
      %2715 = vmatpush1.bf16.msra.mxu0 0
      %2716 = vmatprep.subr.bf16.mxu0 0
      %2717 = vmatpush1.bf16.msra.mxu0 0
      %2718 = vmatprep.subr.bf16.mxu0 0
      %2719 = vmatpush1.bf16.msra.mxu0 0
      %2720 = vmatprep.subr.bf16.mxu0 0
      %2721 = vmatpush1.bf16.msra.mxu0 0
      %2722 = vmatprep.subr.bf16.mxu0 0
      %2723 = vmatpush1.bf16.msra.mxu0 0
      %2724 = vmatprep.subr.bf16.mxu0 0
      %2725 = vmatpush1.bf16.msra.mxu0 0
      %2726 = vmatprep.subr.bf16.mxu0 0
      %2727 = vmatpush1.bf16.msra.mxu0 0
      %2728 = vmatprep.subr.bf16.mxu0 0
      %2729 = vmatpush1.bf16.msra.mxu0 0
      %2730 = vmatprep.mubr.bf16.mxu0 0
      %2731 = vmatmul.mubr.bf16.gmra.mrb[0].mxu0 %v2693
      %v2732 = vpop.f32.mrb[0].mxu0
      %v2733 = vadd.f32 0.0, %v2732
      %v2734 = vpop.f32.mrb[0].mxu0
      %v2735 = vpop.f32.mrb[0].mxu0
      %v2736 = vpop.f32.mrb[0].mxu0
      %2737 = vdwg.mxu0
      %v2738 = vadd.f32 %v2631, %v2733
      %v2739 = vmul.f32 %v2024, %v661
      %v2740 = vpack.c.bf16 %v2739, %v2739
      %v2742 = vsel %vm669, %v2740, 0
      %2744 = vmatprep.subr.bf16.mxu0 0
      %2745 = vmatpush1.bf16.xpose.msra.mxu0 %v2742
      %2746 = vmatprep.subr.bf16.mxu0 0
      %2747 = vmatpush1.bf16.xpose.msra.mxu0 0
      %2748 = vmatprep.subr.bf16.mxu0 0
      %2749 = vmatpush1.bf16.xpose.msra.mxu0 0
      %2750 = vmatprep.subr.bf16.mxu0 0
      %2751 = vmatpush1.bf16.xpose.msra.mxu0 0
      %2752 = vmatprep.subr.bf16.mxu0 0
      %2753 = vmatpush1.bf16.xpose.msra.mxu0 0
      %2754 = vmatprep.subr.bf16.mxu0 0
      %2755 = vmatpush1.bf16.xpose.msra.mxu0 0
      %2756 = vmatprep.subr.bf16.mxu0 0
      %2757 = vmatpush1.bf16.xpose.msra.mxu0 0
      %2758 = vmatprep.subr.bf16.mxu0 0
      %2759 = vmatpush1.bf16.xpose.msra.mxu0 0
      %2760 = vmatprep.subr.bf16.mxu0 0
      %2761 = vmatpush1.bf16.xpose.msra.mxu0 0
      %2762 = vmatprep.subr.bf16.mxu0 0
      %2763 = vmatpush1.bf16.xpose.msra.mxu0 0
      %2764 = vmatprep.subr.bf16.mxu0 0
      %2765 = vmatpush1.bf16.xpose.msra.mxu0 0
      %2766 = vmatprep.subr.bf16.mxu0 0
      %2767 = vmatpush1.bf16.xpose.msra.mxu0 0
      %2768 = vmatprep.subr.bf16.mxu0 0
      %2769 = vmatpush1.bf16.xpose.msra.mxu0 0
      %2770 = vmatprep.subr.bf16.mxu0 0
      %2771 = vmatpush1.bf16.xpose.msra.mxu0 0
      %2772 = vmatprep.subr.bf16.mxu0 0
      %2773 = vmatpush1.bf16.xpose.msra.mxu0 0
      %2774 = vmatprep.subr.bf16.mxu0 0
      %2775 = vmatpush1.bf16.xpose.msra.mxu0 0
      %2776 = vmatprep.mubr.bf16.mxu0 0
      %2777 = vmatmul.mubr.bf16.gmra.mrb[0].mxu0 %v2098
      %v2778 = vpop.f32.mrb[0].mxu0
      %v2779 = vadd.f32 0.0, %v2778
      %v2780 = vpop.f32.mrb[0].mxu0
      %v2781 = vpop.f32.mrb[0].mxu0
      %v2782 = vpop.f32.mrb[0].mxu0
      %2783 = vdwg.mxu0
      %v2784 = vsel %vm1891, -1e+18, %v2779
      %v2785 = vsel %vm967, %v2784, -inf
      %2786 = vmax.xlane.f32.xlu0 %v2785
      %v2787 = vpop.xlane.xlu0 %2786
      %v2788 = vsub.f32 %v2784, %v2787
      %v2789 = vmul.f32 %v2788, 1.442695
      %v2790 = vpow.pop %v2789
      %v2791 = vsel %vm967, %v2790, 0.0
      %2792 = vadd.xlane.f32.xlu0 %v2791
      %v2793 = vpop.xlane.xlu0 %2792
      %v2794 = vrcp.pop %v2793
      %v2795 = vmul.f32 %v2790, %v2794
      %v2796 = vpack.c.bf16 %v2795, %v2795
      %v2797 = vmul.f32 %v2089, %v661
      %v2798 = vpack.c.bf16 %v2797, %v2797
      %v2800 = vsel %vm967, %v2796, 0
      %v2803 = vsel %vm1045, %v2798, 0
      %2805 = vmatprep.subr.bf16.mxu0 0
      %2806 = vmatpush1.bf16.msra.mxu0 %v2803
      %2807 = vmatprep.subr.bf16.mxu0 0
      %2808 = vmatpush1.bf16.msra.mxu0 0
      %2809 = vmatprep.subr.bf16.mxu0 0
      %2810 = vmatpush1.bf16.msra.mxu0 0
      %2811 = vmatprep.subr.bf16.mxu0 0
      %2812 = vmatpush1.bf16.msra.mxu0 0
      %2813 = vmatprep.subr.bf16.mxu0 0
      %2814 = vmatpush1.bf16.msra.mxu0 0
      %2815 = vmatprep.subr.bf16.mxu0 0
      %2816 = vmatpush1.bf16.msra.mxu0 0
      %2817 = vmatprep.subr.bf16.mxu0 0
      %2818 = vmatpush1.bf16.msra.mxu0 0
      %2819 = vmatprep.subr.bf16.mxu0 0
      %2820 = vmatpush1.bf16.msra.mxu0 0
      %2821 = vmatprep.subr.bf16.mxu0 0
      %2822 = vmatpush1.bf16.msra.mxu0 0
      %2823 = vmatprep.subr.bf16.mxu0 0
      %2824 = vmatpush1.bf16.msra.mxu0 0
      %2825 = vmatprep.subr.bf16.mxu0 0
      %2826 = vmatpush1.bf16.msra.mxu0 0
      %2827 = vmatprep.subr.bf16.mxu0 0
      %2828 = vmatpush1.bf16.msra.mxu0 0
      %2829 = vmatprep.subr.bf16.mxu0 0
      %2830 = vmatpush1.bf16.msra.mxu0 0
      %2831 = vmatprep.subr.bf16.mxu0 0
      %2832 = vmatpush1.bf16.msra.mxu0 0
      %2833 = vmatprep.subr.bf16.mxu0 0
      %2834 = vmatpush1.bf16.msra.mxu0 0
      %2835 = vmatprep.subr.bf16.mxu0 0
      %2836 = vmatpush1.bf16.msra.mxu0 0
      %2837 = vmatprep.mubr.bf16.mxu0 0
      %2838 = vmatmul.mubr.bf16.gmra.mrb[0].mxu0 %v2800
      %v2839 = vpop.f32.mrb[0].mxu0
      %v2840 = vadd.f32 0.0, %v2839
      %v2841 = vpop.f32.mrb[0].mxu0
      %v2842 = vpop.f32.mrb[0].mxu0
      %v2843 = vpop.f32.mrb[0].mxu0
      %2844 = vdwg.mxu0
      %v2845 = vadd.f32 %v2738, %v2840
      %v2846 = vmul.f32 %v2024, %v666
      %v2847 = vpack.c.bf16 %v2846, %v2846
      %v2849 = vsel %vm669, %v2847, 0
      %2851 = vmatprep.subr.bf16.mxu0 0
      %2852 = vmatpush1.bf16.xpose.msra.mxu0 %v2849
      %2853 = vmatprep.subr.bf16.mxu0 0
      %2854 = vmatpush1.bf16.xpose.msra.mxu0 0
      %2855 = vmatprep.subr.bf16.mxu0 0
      %2856 = vmatpush1.bf16.xpose.msra.mxu0 0
      %2857 = vmatprep.subr.bf16.mxu0 0
      %2858 = vmatpush1.bf16.xpose.msra.mxu0 0
      %2859 = vmatprep.subr.bf16.mxu0 0
      %2860 = vmatpush1.bf16.xpose.msra.mxu0 0
      %2861 = vmatprep.subr.bf16.mxu0 0
      %2862 = vmatpush1.bf16.xpose.msra.mxu0 0
      %2863 = vmatprep.subr.bf16.mxu0 0
      %2864 = vmatpush1.bf16.xpose.msra.mxu0 0
      %2865 = vmatprep.subr.bf16.mxu0 0
      %2866 = vmatpush1.bf16.xpose.msra.mxu0 0
      %2867 = vmatprep.subr.bf16.mxu0 0
      %2868 = vmatpush1.bf16.xpose.msra.mxu0 0
      %2869 = vmatprep.subr.bf16.mxu0 0
      %2870 = vmatpush1.bf16.xpose.msra.mxu0 0
      %2871 = vmatprep.subr.bf16.mxu0 0
      %2872 = vmatpush1.bf16.xpose.msra.mxu0 0
      %2873 = vmatprep.subr.bf16.mxu0 0
      %2874 = vmatpush1.bf16.xpose.msra.mxu0 0
      %2875 = vmatprep.subr.bf16.mxu0 0
      %2876 = vmatpush1.bf16.xpose.msra.mxu0 0
      %2877 = vmatprep.subr.bf16.mxu0 0
      %2878 = vmatpush1.bf16.xpose.msra.mxu0 0
      %2879 = vmatprep.subr.bf16.mxu0 0
      %2880 = vmatpush1.bf16.xpose.msra.mxu0 0
      %2881 = vmatprep.subr.bf16.mxu0 0
      %2882 = vmatpush1.bf16.xpose.msra.mxu0 0
      %2883 = vmatprep.mubr.bf16.mxu0 0
      %2884 = vmatmul.mubr.bf16.gmra.mrb[0].mxu0 %v2098
      %v2885 = vpop.f32.mrb[0].mxu0
      %v2886 = vadd.f32 0.0, %v2885
      %v2887 = vpop.f32.mrb[0].mxu0
      %v2888 = vpop.f32.mrb[0].mxu0
      %v2889 = vpop.f32.mrb[0].mxu0
      %2890 = vdwg.mxu0
      %v2891 = vsel %vm1891, -1e+18, %v2886
      %v2892 = vsel %vm967, %v2891, -inf
      %2893 = vmax.xlane.f32.xlu0 %v2892
      %v2894 = vpop.xlane.xlu0 %2893
      %v2895 = vsub.f32 %v2891, %v2894
      %v2896 = vmul.f32 %v2895, 1.442695
      %v2897 = vpow.pop %v2896
      %v2898 = vsel %vm967, %v2897, 0.0
      %2899 = vadd.xlane.f32.xlu0 %v2898
      %v2900 = vpop.xlane.xlu0 %2899
      %v2901 = vrcp.pop %v2900
      %v2902 = vmul.f32 %v2897, %v2901
      %v2903 = vpack.c.bf16 %v2902, %v2902
      %v2904 = vmul.f32 %v2089, %v666
      %v2905 = vpack.c.bf16 %v2904, %v2904
      %v2907 = vsel %vm967, %v2903, 0
      %v2910 = vsel %vm1045, %v2905, 0
      %2912 = vmatprep.subr.bf16.mxu0 0
      %2913 = vmatpush1.bf16.msra.mxu0 %v2910
      %2914 = vmatprep.subr.bf16.mxu0 0
      %2915 = vmatpush1.bf16.msra.mxu0 0
      %2916 = vmatprep.subr.bf16.mxu0 0
      %2917 = vmatpush1.bf16.msra.mxu0 0
      %2918 = vmatprep.subr.bf16.mxu0 0
      %2919 = vmatpush1.bf16.msra.mxu0 0
      %2920 = vmatprep.subr.bf16.mxu0 0
      %2921 = vmatpush1.bf16.msra.mxu0 0
      %2922 = vmatprep.subr.bf16.mxu0 0
      %2923 = vmatpush1.bf16.msra.mxu0 0
      %2924 = vmatprep.subr.bf16.mxu0 0
      %2925 = vmatpush1.bf16.msra.mxu0 0
      %2926 = vmatprep.subr.bf16.mxu0 0
      %2927 = vmatpush1.bf16.msra.mxu0 0
      %2928 = vmatprep.subr.bf16.mxu0 0
      %2929 = vmatpush1.bf16.msra.mxu0 0
      %2930 = vmatprep.subr.bf16.mxu0 0
      %2931 = vmatpush1.bf16.msra.mxu0 0
      %2932 = vmatprep.subr.bf16.mxu0 0
      %2933 = vmatpush1.bf16.msra.mxu0 0
      %2934 = vmatprep.subr.bf16.mxu0 0
      %2935 = vmatpush1.bf16.msra.mxu0 0
      %2936 = vmatprep.subr.bf16.mxu0 0
      %2937 = vmatpush1.bf16.msra.mxu0 0
      %2938 = vmatprep.subr.bf16.mxu0 0
      %2939 = vmatpush1.bf16.msra.mxu0 0
      %2940 = vmatprep.subr.bf16.mxu0 0
      %2941 = vmatpush1.bf16.msra.mxu0 0
      %2942 = vmatprep.subr.bf16.mxu0 0
      %2943 = vmatpush1.bf16.msra.mxu0 0
      %2944 = vmatprep.mubr.bf16.mxu0 0
      %2945 = vmatmul.mubr.bf16.gmra.mrb[0].mxu0 %v2907
      %v2946 = vpop.f32.mrb[0].mxu0
      %v2947 = vadd.f32 0.0, %v2946
      %v2948 = vpop.f32.mrb[0].mxu0
      %v2949 = vpop.f32.mrb[0].mxu0
      %v2950 = vpop.f32.mrb[0].mxu0
      %2951 = vdwg.mxu0
      %v2952 = vadd.f32 %v2845, %v2947
      %s2953 = scalar_lea.vmem %s6, 48
      %v2954 = vld [vmem:[%s2953] sm:$0xf]
      %v2955 = vld [vmem:[%s2953 + $0x4] sm:$0xf]
      %v2956 = vld [vmem:[%s2953 + $0x8] sm:$0xf]
      %v2957 = vld [vmem:[%s2953 + $0xc] sm:$0xf]
      %v2958 = vpack.c.bf16 %v2952, %v2952
      %s2959 = scalar_lea.vmem %s7, 3
      %v2960 = vld [vmem:[%s2959] sm:$0x1]
      %v2962 = vlaneseq
      %v2963 = vshrl.u32 %v2962, 7
      %v2964 = vsub.s32 0, %v2963
      %v2965 = vrot.slane %v2960, %v2964
      %v2971 = vunpack.c.l.b16 %v2954
      %v2972 = vunpack.c.l.b16 %v2955
      %v2973 = vunpack.c.l.b16 %v2956
      %v2974 = vunpack.c.l.b16 %v2957
      %v2975 = vpack.c.b16 %v2972, %v2971
      %v2976 = vpack.c.b16 %v2974, %v2973
      %v2980 = vsel %vm669, %v2958, 0
      %2982 = vmatprep.subr.bf16.mxu0 0
      %2983 = vmatpush1.bf16.msra.mxu0 %v2975
      %2984 = vmatprep.subr.bf16.mxu0 0
      %2985 = vmatpush1.bf16.msra.mxu0 %v2976
      %2986 = vmatprep.subr.bf16.mxu0 0
      %2987 = vmatpush1.bf16.msra.mxu0 0
      %2988 = vmatprep.subr.bf16.mxu0 0
      %2989 = vmatpush1.bf16.msra.mxu0 0
      %2990 = vmatprep.subr.bf16.mxu0 0
      %2991 = vmatpush1.bf16.msra.mxu0 0
      %2992 = vmatprep.subr.bf16.mxu0 0
      %2993 = vmatpush1.bf16.msra.mxu0 0
      %2994 = vmatprep.subr.bf16.mxu0 0
      %2995 = vmatpush1.bf16.msra.mxu0 0
      %2996 = vmatprep.subr.bf16.mxu0 0
      %2997 = vmatpush1.bf16.msra.mxu0 0
      %2998 = vmatprep.subr.bf16.mxu0 0
      %2999 = vmatpush1.bf16.msra.mxu0 0
      %3000 = vmatprep.subr.bf16.mxu0 0
      %3001 = vmatpush1.bf16.msra.mxu0 0
      %3002 = vmatprep.subr.bf16.mxu0 0
      %3003 = vmatpush1.bf16.msra.mxu0 0
      %3004 = vmatprep.subr.bf16.mxu0 0
      %3005 = vmatpush1.bf16.msra.mxu0 0
      %3006 = vmatprep.subr.bf16.mxu0 0
      %3007 = vmatpush1.bf16.msra.mxu0 0
      %3008 = vmatprep.subr.bf16.mxu0 0
      %3009 = vmatpush1.bf16.msra.mxu0 0
      %3010 = vmatprep.subr.bf16.mxu0 0
      %3011 = vmatpush1.bf16.msra.mxu0 0
      %3012 = vmatprep.subr.bf16.mxu0 0
      %3013 = vmatpush1.bf16.msra.mxu0 0
      %3014 = vmatprep.mubr.bf16.mxu0 0
      %3015 = vmatmul.mubr.bf16.gmra.mrb[0].mxu0 %v2980
      %v3016 = vpop.f32.mrb[0].mxu0
      %v3017 = vadd.f32 %v2965, %v3016
      %v3018 = vpop.f32.mrb[0].mxu0
      %v3019 = vpop.f32.mrb[0].mxu0
      %v3020 = vpop.f32.mrb[0].mxu0
      %3021 = vdwg.mxu0
      %3022 = vst.msk [vmem:[%s619] sm:$0xff] %vm669, %v3017
      %v3023 = vadd.f32 %v3017, %v1846
      %s3024 = scalar_lea.vmem %s8, 2
      %v3025 = vld [vmem:[%s3024] sm:$0x1]
      %s3026 = scalar_lea.vmem %s9, 2
      %v3027 = vld [vmem:[%s3026] sm:$0x1]
      %v3028 = vsel %vm669, %v3023, 0.0
      %3029 = vadd.xlane.f32.xlu0 %v3028
      %v3030 = vpop.xlane.xlu0 %3029
      %v3031 = vmul.f32 %v3030, %v673
      %v3032 = vsub.f32 %v3023, %v3031
      %v3033 = vmul.f32 %v3032, %v3032
      %v3034 = vsel %vm669, %v3033, 0.0
      %3035 = vadd.xlane.f32.xlu0 %v3034
      %v3036 = vpop.xlane.xlu0 %3035
      %v3037 = vmul.f32 %v3036, 0.032258064
      %v3038 = vrsqrt.pop %v3037
      %v3039 = vmul.f32 %v3037, %v3038
      %vm3040 = vcmp.eq.f32.partialorder %v3037, inf
      %v3041 = vsel %vm3040, %v3037, %v3039
      %vm3042 = vcmp.eq.f32.partialorder %v3037, 0.0
      %v3043 = vand.u32 %v3037, 2147483648
      %v3044 = vsel %vm3042, %v3043, %v3041
      %v3045 = vadd.f32 %v3044, 1e-06
      %v3046 = vrcp.pop %v3045
      %v3047 = vmul.f32 %v3032, %v3046
      %v3049 = vlaneseq
      %v3050 = vshrl.u32 %v3049, 7
      %v3051 = vsub.s32 0, %v3050
      %v3052 = vrot.slane %v3025, %v3051
      %v3054 = vmul.f32 %v3052, %v3047
      %v3056 = vlaneseq
      %v3057 = vshrl.u32 %v3056, 7
      %v3058 = vsub.s32 0, %v3057
      %v3059 = vrot.slane %v3027, %v3058
      %v3061 = vadd.f32 %v3054, %v3059
      %v3062 = vld [vmem:[%s10] sm:$0xf]
      %v3063 = vld [vmem:[%s10 + $0x4] sm:$0xf]
      %v3064 = vld [vmem:[%s10 + $0x8] sm:$0xf]
      %v3065 = vld [vmem:[%s10 + $0xc] sm:$0xf]
      %v3066 = vpack.c.bf16 %v3061, %v3061
      %v3067 = vld [vmem:[%s11] sm:$0x1]
      %v3069 = vlaneseq
      %v3070 = vshrl.u32 %v3069, 7
      %v3071 = vsub.s32 0, %v3070
      %v3072 = vrot.slane %v3067, %v3071
      %v3078 = vunpack.c.l.b16 %v3062
      %v3079 = vunpack.c.l.b16 %v3063
      %v3080 = vunpack.c.l.b16 %v3064
      %v3081 = vunpack.c.l.b16 %v3065
      %v3082 = vpack.c.b16 %v3079, %v3078
      %v3083 = vpack.c.b16 %v3081, %v3080
      %v3087 = vsel %vm669, %v3066, 0
      %3089 = vmatprep.subr.bf16.mxu0 0
      %3090 = vmatpush1.bf16.msra.mxu0 %v3082
      %3091 = vmatprep.subr.bf16.mxu0 0
      %3092 = vmatpush1.bf16.msra.mxu0 %v3083
      %3093 = vmatprep.subr.bf16.mxu0 0
      %3094 = vmatpush1.bf16.msra.mxu0 0
      %3095 = vmatprep.subr.bf16.mxu0 0
      %3096 = vmatpush1.bf16.msra.mxu0 0
      %3097 = vmatprep.subr.bf16.mxu0 0
      %3098 = vmatpush1.bf16.msra.mxu0 0
      %3099 = vmatprep.subr.bf16.mxu0 0
      %3100 = vmatpush1.bf16.msra.mxu0 0
      %3101 = vmatprep.subr.bf16.mxu0 0
      %3102 = vmatpush1.bf16.msra.mxu0 0
      %3103 = vmatprep.subr.bf16.mxu0 0
      %3104 = vmatpush1.bf16.msra.mxu0 0
      %3105 = vmatprep.subr.bf16.mxu0 0
      %3106 = vmatpush1.bf16.msra.mxu0 0
      %3107 = vmatprep.subr.bf16.mxu0 0
      %3108 = vmatpush1.bf16.msra.mxu0 0
      %3109 = vmatprep.subr.bf16.mxu0 0
      %3110 = vmatpush1.bf16.msra.mxu0 0
      %3111 = vmatprep.subr.bf16.mxu0 0
      %3112 = vmatpush1.bf16.msra.mxu0 0
      %3113 = vmatprep.subr.bf16.mxu0 0
      %3114 = vmatpush1.bf16.msra.mxu0 0
      %3115 = vmatprep.subr.bf16.mxu0 0
      %3116 = vmatpush1.bf16.msra.mxu0 0
      %3117 = vmatprep.subr.bf16.mxu0 0
      %3118 = vmatpush1.bf16.msra.mxu0 0
      %3119 = vmatprep.subr.bf16.mxu0 0
      %3120 = vmatpush1.bf16.msra.mxu0 0
      %3121 = vmatprep.mubr.bf16.mxu0 0
      %3122 = vmatmul.mubr.bf16.gmra.mrb[0].mxu0 %v3087
      %v3123 = vpop.f32.mrb[0].mxu0
      %v3124 = vadd.f32 %v3072, %v3123
      %v3125 = vpop.f32.mrb[0].mxu0
      %v3126 = vpop.f32.mrb[0].mxu0
      %v3127 = vpop.f32.mrb[0].mxu0
      %3128 = vdwg.mxu0
      %v3129 = vmax.f32 %v3124, 0.0
      %v3130 = vld [vmem:[%s12] sm:$0xf]
      %v3131 = vld [vmem:[%s12 + $0x4] sm:$0xf]
      %v3132 = vld [vmem:[%s12 + $0x8] sm:$0xf]
      %v3133 = vld [vmem:[%s12 + $0xc] sm:$0xf]
      %v3134 = vld [vmem:[%s12 + $0x10] sm:$0xf]
      %v3135 = vld [vmem:[%s12 + $0x14] sm:$0xf]
      %v3136 = vld [vmem:[%s12 + $0x18] sm:$0xf]
      %v3137 = vld [vmem:[%s12 + $0x1c] sm:$0xf]
      %v3138 = vpack.c.bf16 %v3129, %v3129
      %v3139 = vld [vmem:[%s13] sm:$0x1]
      %v3141 = vlaneseq
      %v3142 = vshrl.u32 %v3141, 7
      %v3143 = vsub.s32 0, %v3142
      %v3144 = vrot.slane %v3139, %v3143
      %v3154 = vunpack.c.l.b16 %v3130
      %v3155 = vunpack.c.l.b16 %v3131
      %v3156 = vunpack.c.l.b16 %v3132
      %v3157 = vunpack.c.l.b16 %v3133
      %v3158 = vunpack.c.l.b16 %v3134
      %v3159 = vunpack.c.l.b16 %v3135
      %v3160 = vunpack.c.l.b16 %v3136
      %v3161 = vunpack.c.l.b16 %v3137
      %v3162 = vpack.c.b16 %v3155, %v3154
      %v3163 = vpack.c.b16 %v3157, %v3156
      %v3164 = vpack.c.b16 %v3159, %v3158
      %v3165 = vpack.c.b16 %v3161, %v3160
      %vm3170 = vcmask 523264
      %v3172 = vsel %vm3170, %v3138, 0
      %3174 = vmatprep.subr.bf16.mxu0 0
      %3175 = vmatpush1.bf16.msra.mxu0 %v3162
      %3176 = vmatprep.subr.bf16.mxu0 0
      %3177 = vmatpush1.bf16.msra.mxu0 %v3163
      %3178 = vmatprep.subr.bf16.mxu0 0
      %3179 = vmatpush1.bf16.msra.mxu0 %v3164
      %3180 = vmatprep.subr.bf16.mxu0 0
      %3181 = vmatpush1.bf16.msra.mxu0 %v3165
      %3182 = vmatprep.subr.bf16.mxu0 0
      %3183 = vmatpush1.bf16.msra.mxu0 0
      %3184 = vmatprep.subr.bf16.mxu0 0
      %3185 = vmatpush1.bf16.msra.mxu0 0
      %3186 = vmatprep.subr.bf16.mxu0 0
      %3187 = vmatpush1.bf16.msra.mxu0 0
      %3188 = vmatprep.subr.bf16.mxu0 0
      %3189 = vmatpush1.bf16.msra.mxu0 0
      %3190 = vmatprep.subr.bf16.mxu0 0
      %3191 = vmatpush1.bf16.msra.mxu0 0
      %3192 = vmatprep.subr.bf16.mxu0 0
      %3193 = vmatpush1.bf16.msra.mxu0 0
      %3194 = vmatprep.subr.bf16.mxu0 0
      %3195 = vmatpush1.bf16.msra.mxu0 0
      %3196 = vmatprep.subr.bf16.mxu0 0
      %3197 = vmatpush1.bf16.msra.mxu0 0
      %3198 = vmatprep.subr.bf16.mxu0 0
      %3199 = vmatpush1.bf16.msra.mxu0 0
      %3200 = vmatprep.subr.bf16.mxu0 0
      %3201 = vmatpush1.bf16.msra.mxu0 0
      %3202 = vmatprep.subr.bf16.mxu0 0
      %3203 = vmatpush1.bf16.msra.mxu0 0
      %3204 = vmatprep.subr.bf16.mxu0 0
      %3205 = vmatpush1.bf16.msra.mxu0 0
      %3206 = vmatprep.mubr.bf16.mxu0 0
      %3207 = vmatmul.mubr.bf16.gmra.mrb[0].mxu0 %v3172
      %v3208 = vpop.f32.mrb[0].mxu0
      %v3209 = vadd.f32 %v3144, %v3208
      %v3210 = vpop.f32.mrb[0].mxu0
      %v3211 = vpop.f32.mrb[0].mxu0
      %v3212 = vpop.f32.mrb[0].mxu0
      %3213 = vdwg.mxu0
      %v3214 = vadd.f32 %v3209, %v3023
      %3215 = vst.msk [vmem:[%s607] sm:$0xff] %vm669, %v3214
      %p3216 = scmp.lt.s32.totalorder %s29, 1
      %s3217 = scalar_select %p3216, %s29, 1
      %s3218 = smul.addr %s3217, 8
      %s3219 = scalar_lea.vmem %s14, %s3218
      %p3220 = scmp.lt.s32.totalorder %s29, 1
      %s3221 = scalar_select %p3220, %s29, 1
      %s3222 = smul.addr %s3221, 8
      %s3223 = scalar_lea.vmem %s15, %s3222
      %p3224 = scmp.lt.s32.totalorder %s29, 1
      %s3225 = scalar_select %p3224, %s29, 1
      %s3226 = smul.addr %s3225, 8
      %s3227 = scalar_lea.vmem %s16, %s3226
      %p3228 = scmp.lt.s32.totalorder %s29, 1
      %s3229 = scalar_select %p3228, %s29, 1
      %s3230 = smul.addr %s3229, 8
      %s3231 = scalar_lea.vmem %s17, %s3230
      // Predicated region
      $region77: #{transformer_decoder_forward.4} parent=75 // pred_check
        %p3232 = pneg %p361
      $region78: #{transformer_decoder_forward.4} parent=75 // pred_check_branch
        %3234 = sbr.rel (%p3232) target = $region80
      $region79: #{transformer_decoder_forward.4} parent=75 // pred_region
        _
      $region80: #{transformer_decoder_forward.4} parent=75 // pred_fallthru
        _
      // Predicated region
      $region81: #{transformer_decoder_forward.4} parent=75 // pred_check
        %p3235 = pneg %p387
      $region82: #{transformer_decoder_forward.4} parent=75 // pred_check_branch
        %3237 = sbr.rel (%p3235) target = $region84
      $region83: #{transformer_decoder_forward.4} parent=75 // pred_region
        _
      $region84: #{transformer_decoder_forward.4} parent=75 // pred_fallthru
        _
      // Predicated region
      $region85: #{transformer_decoder_forward.4} parent=75 // pred_check
        %p3238 = pneg %p413
      $region86: #{transformer_decoder_forward.4} parent=75 // pred_check_branch
        %3240 = sbr.rel (%p3238) target = $region88
      $region87: #{transformer_decoder_forward.4} parent=75 // pred_region
        _
      $region88: #{transformer_decoder_forward.4} parent=75 // pred_fallthru
        _
      // Predicated region
      $region89: #{transformer_decoder_forward.4} parent=75 // pred_check
        %p3241 = pneg %p439
      $region90: #{transformer_decoder_forward.4} parent=75 // pred_check_branch
        %3243 = sbr.rel (%p3241) target = $region92
      $region91: #{transformer_decoder_forward.4} parent=75 // pred_region
        _
      $region92: #{transformer_decoder_forward.4} parent=75 // pred_fallthru
        _
    $region76: #{transformer_decoder_forward.4} parent=5 // pred_fallthru
      _
    %p3244 = scmp.le.s32.totalorder 2, %s24
    // Predicated region
    $region93: #{transformer_decoder_forward.4} parent=5 // pred_check
      %p3245 = pneg %p3244
    $region94: #{transformer_decoder_forward.4} parent=5 // pred_check_branch
      %3247 = sbr.rel (%p3245) target = $region96
    $region95: #{transformer_decoder_forward.4} parent=5 // pred_region
      %s3248 = ssub.s32 %s24, 2
      // Predicated region
      $region97: #{transformer_decoder_forward.4} parent=95 // pred_check
        %p3249 = pneg %p367
      $region98: #{transformer_decoder_forward.4} parent=95 // pred_check_branch
        %3251 = sbr.rel (%p3249) target = $region100
      $region99: #{transformer_decoder_forward.4} parent=95 // pred_region
        %p3252 = scmp.lt.s32.totalorder %s30, 1
        %s3253 = scalar_select %p3252, %s30, 1
        %s3254 = smul.addr %s3253, 8
        %s3255 = scalar_lea.vmem %s14, %s3254
      $region100: #{transformer_decoder_forward.4} parent=95 // pred_fallthru
        _
      // Predicated region
      $region101: #{transformer_decoder_forward.4} parent=95 // pred_check
        %p3256 = pneg %p393
      $region102: #{transformer_decoder_forward.4} parent=95 // pred_check_branch
        %3258 = sbr.rel (%p3256) target = $region104
      $region103: #{transformer_decoder_forward.4} parent=95 // pred_region
        %p3259 = scmp.lt.s32.totalorder %s30, 1
        %s3260 = scalar_select %p3259, %s30, 1
        %s3261 = smul.addr %s3260, 8
        %s3262 = scalar_lea.vmem %s15, %s3261
      $region104: #{transformer_decoder_forward.4} parent=95 // pred_fallthru
        _
      // Predicated region
      $region105: #{transformer_decoder_forward.4} parent=95 // pred_check
        %p3263 = pneg %p419
      $region106: #{transformer_decoder_forward.4} parent=95 // pred_check_branch
        %3265 = sbr.rel (%p3263) target = $region108
      $region107: #{transformer_decoder_forward.4} parent=95 // pred_region
        %p3266 = scmp.lt.s32.totalorder %s30, 1
        %s3267 = scalar_select %p3266, %s30, 1
        %s3268 = smul.addr %s3267, 8
        %s3269 = scalar_lea.vmem %s16, %s3268
      $region108: #{transformer_decoder_forward.4} parent=95 // pred_fallthru
        _
      // Predicated region
      $region109: #{transformer_decoder_forward.4} parent=95 // pred_check
        %p3270 = pneg %p445
      $region110: #{transformer_decoder_forward.4} parent=95 // pred_check_branch
        %3272 = sbr.rel (%p3270) target = $region112
      $region111: #{transformer_decoder_forward.4} parent=95 // pred_region
        %p3273 = scmp.lt.s32.totalorder %s30, 1
        %s3274 = scalar_select %p3273, %s30, 1
        %s3275 = smul.addr %s3274, 8
        %s3276 = scalar_lea.vmem %s17, %s3275
      $region112: #{transformer_decoder_forward.4} parent=95 // pred_fallthru
        _
    $region96: #{transformer_decoder_forward.4} parent=5 // pred_fallthru
      _
  $region6: #{transformer_decoder_forward.4} parent=0 // loop_footer
    %s28 = sadd.s32 1, %s24
  $region7: #{transformer_decoder_forward.4} parent=0 // loop_footer_branch
    %23 = sbr.rel target = $region3
  $region8: #{transformer_decoder_forward.4} parent=0 // loop_exit
    _

// kernel: transformer_decoder_forward.3
$region0: #{transformer_decoder_forward.3}
  #allocation0 [shape = 'u32[]', space=smem, size = 0x4, offset = 0x4, fixed_abs, tag = 'smem constant byte address 0x4 - core index']
  #allocation1 [shape = 'u32[144,128]{1,0:T(1,128)}', space=vmem, size = 0x12000, scoped, tag = 'internal scratch']
  %s0 = inlined_call_operand.vmem [shape: f32[2,8,32], index: 0, kind: input, shape index: {}]
  %s1 = inlined_call_operand.vmem [shape: f32[2,8,32], index: 1, kind: input, shape index: {}]
  %s2 = inlined_call_operand.vmem [shape: f32[2,1,8], index: 2, kind: input, shape index: {}]
  %s3 = inlined_call_operand.vmem [shape: f32[2,1,8], index: 3, kind: input, shape index: {}]
  %s4 = inlined_call_operand.vmem [shape: bf16[4,32,32], index: 4, kind: input, shape index: {}]
  %s5 = inlined_call_operand.vmem [shape: f32[4,1,32], index: 5, kind: input, shape index: {}]
  %s6 = inlined_call_operand.vmem [shape: bf16[4,32,32], index: 6, kind: input, shape index: {}]
  %s7 = inlined_call_operand.vmem [shape: f32[4,1,32], index: 7, kind: input, shape index: {}]
  %s8 = inlined_call_operand.vmem [shape: f32[3,1,32], index: 8, kind: input, shape index: {}]
  %s9 = inlined_call_operand.vmem [shape: f32[3,1,32], index: 9, kind: input, shape index: {}]
  %s10 = inlined_call_operand.vmem [shape: bf16[32,64], index: 10, kind: input, shape index: {}]
  %s11 = inlined_call_operand.vmem [shape: f32[1,64], index: 11, kind: input, shape index: {}]
  %s12 = inlined_call_operand.vmem [shape: bf16[64,32], index: 12, kind: input, shape index: {}]
  %s13 = inlined_call_operand.vmem [shape: f32[1,32], index: 13, kind: input, shape index: {}]
  %s14 = inlined_call_operand.vmem [shape: f32[2,8,32], index: 14, kind: output, shape index: {0}]
  %s15 = inlined_call_operand.hbm [shape: f32[2,8,8], index: 15, kind: output, shape index: {1}]
  %s16 = inlined_call_operand.vmem [shape: f32[2,8,32], index: 16, kind: output, shape index: {2}]
  %s17 = inlined_call_operand.hbm [shape: f32[2,8,32], index: 17, kind: output, shape index: {3}]
  %18 = xla_tuple %s14, %s15, %s16, %s17
  %s19 = sld [smem:[#allocation0]]
  $region113: #{transformer_decoder_forward.3} parent=0
    _
  %s21 = ssub.s32 1, %s19
  %s22 = scalar_select 0, %s21, %s19
  $region1: #{transformer_decoder_forward.3} parent=0
    #allocation2 [shape = 'u8[8192]{0}', space=vmem, size = 0x2000, scoped, tag = 'output window, operand 1']
    #allocation3 [shape = 's32[2]{0}', space=sflag, size = 0x8, scoped, tag = 'scoped memory for transformer_decoder_forward.3']
    #allocation4 [shape = 'u8[8192]{0}', space=vmem, size = 0x2000, scoped, tag = 'output window, operand 3']
    #allocation5 [shape = 's32[2]{0}', space=sflag, size = 0x8, scoped, tag = 'scoped memory for transformer_decoder_forward.3']
    %23 = vsyncpa [#allocation3], 0
    %s24 = scalar_lea.sflag [#allocation3], 1
    %25 = vsyncpa %s24, 0
    %26 = vsyncpa [#allocation5], 0
    %s27 = scalar_lea.sflag [#allocation5], 1
    %28 = vsyncpa %s27, 0
    loop: start=0, step=1, limit=4
    $region2: #{transformer_decoder_forward.3} parent=1 // loop_pre_header
      _
    $region3: #{transformer_decoder_forward.3} parent=1 // loop_header
      %s30 = sphi 0, %s34
      %p31 = scmp.ge.s32.totalorder %s30, 4
      %s40 = sphi 0, %s42
      %s43 = sphi 0, %s40
      %s44 = sphi 0, %s43
      %s60 = sphi 0, %s44
      %s66 = sphi 0, %s68
      %s69 = sphi 0, %s66
      %s70 = sphi 0, %s69
      %s86 = sphi 0, %s70
      %s92 = sphi 0, %s94
      %s95 = sphi 0, %s92
      %s96 = sphi 0, %s95
      %s112 = sphi 0, %s96
      %s118 = sphi 0, %s120
      %s121 = sphi 0, %s118
      %s122 = sphi 0, %s121
      %s138 = sphi 0, %s122
      %s142 = sphi 0, %s142
      %s144 = sphi 0, %s142
      %s145 = sphi 0, %s144
      %s159 = sphi 0, %s145
      %s163 = sphi 0, %s163
      %s165 = sphi 0, %s163
      %s166 = sphi 0, %s165
      %s180 = sphi 0, %s166
      %s184 = sphi 0, %s184
      %s186 = sphi 0, %s184
      %s187 = sphi 0, %s186
      %s201 = sphi 0, %s187
      %s205 = sphi 0, %s205
      %s207 = sphi 0, %s205
      %s208 = sphi 0, %s207
      %s222 = sphi 0, %s208
      %s226 = sphi 0, %s226
      %s228 = sphi 0, %s226
      %s229 = sphi 0, %s228
      %s243 = sphi 0, %s229
      %s247 = sphi 0, %s247
      %s249 = sphi 0, %s247
      %s250 = sphi 0, %s249
      %s264 = sphi 0, %s250
      %s268 = sphi 0, %s268
      %s270 = sphi 0, %s268
      %s271 = sphi 0, %s270
      %s285 = sphi 0, %s271
      %s289 = sphi 0, %s289
      %s291 = sphi 0, %s289
      %s292 = sphi 0, %s291
      %s306 = sphi 0, %s292
      %s310 = sphi 0, %s310
      %s312 = sphi 0, %s310
      %s313 = sphi 0, %s312
      %s327 = sphi 0, %s313
      %s331 = sphi 0, %s331
      %s333 = sphi 0, %s331
      %s334 = sphi 0, %s333
      %s348 = sphi 0, %s334
      %s354 = sphi 0, %s356
      %s357 = sphi 0, %s354
      %s358 = sphi 0, %s357
      %s374 = sphi 0, %s358
      %s380 = sphi 0, %s382
      %s383 = sphi 0, %s380
      %s384 = sphi 0, %s383
      %s400 = sphi 0, %s384
      %s406 = sphi 0, %s408
      %s409 = sphi 0, %s406
      %s410 = sphi 0, %s409
      %s426 = sphi 0, %s410
      %s432 = sphi 0, %s434
      %s435 = sphi 0, %s432
      %s436 = sphi 0, %s435
      %s452 = sphi 0, %s436
    $region4: #{transformer_decoder_forward.3} parent=1 // loop_header_branch
      %33 = sbr.rel (%p31) target = $region8
    $region5: #{transformer_decoder_forward.3} parent=1 // loop_body
      %s35 = ssub.s32 %s30, 1
      %s36 = ssub.s32 %s30, 2
      %s37 = sadd.s32 %s30, 1
      %s38 = ssub.s32 %s30, %s37
      %p39 = scmp.eq.s32.totalorder %s38, 0
      %s41 = sadd.s32 %s40, 1
      %s42 = scalar_select %p39, %s40, %s41
      %p45 = pneg %p39
      %p46 = scmp.eq.s32.totalorder %s30, 1
      %p47 = por %p45, %p46
      %p48 = scmp.ne.s32.totalorder %s40, %s43
      %p49 = scmp.eq.s32.totalorder %s30, 0
      %p50 = por %p48, %p49
      %p51 = scmp.ne.s32.totalorder %s40, %s43
      %p52 = scmp.eq.s32.totalorder %s35, 1
      %p53 = por %p51, %p52
      %p54 = scmp.ne.s32.totalorder %s43, %s44
      %p55 = scmp.eq.s32.totalorder %s35, 0
      %p56 = por %p54, %p55
      %p57 = scmp.ne.s32.totalorder %s43, %s44
      %p58 = scmp.eq.s32.totalorder %s36, 1
      %p59 = por %p57, %p58
      %p61 = scmp.ne.s32.totalorder %s44, %s60
      %p62 = scmp.eq.s32.totalorder %s36, 0
      %p63 = por %p61, %p62
      %s64 = ssub.s32 %s30, %s37
      %p65 = scmp.eq.s32.totalorder %s64, 0
      %s67 = sadd.s32 %s66, 1
      %s68 = scalar_select %p65, %s66, %s67
      %p71 = pneg %p65
      %p72 = scmp.eq.s32.totalorder %s30, 1
      %p73 = por %p71, %p72
      %p74 = scmp.ne.s32.totalorder %s66, %s69
      %p75 = scmp.eq.s32.totalorder %s30, 0
      %p76 = por %p74, %p75
      %p77 = scmp.ne.s32.totalorder %s66, %s69
      %p78 = scmp.eq.s32.totalorder %s35, 1
      %p79 = por %p77, %p78
      %p80 = scmp.ne.s32.totalorder %s69, %s70
      %p81 = scmp.eq.s32.totalorder %s35, 0
      %p82 = por %p80, %p81
      %p83 = scmp.ne.s32.totalorder %s69, %s70
      %p84 = scmp.eq.s32.totalorder %s36, 1
      %p85 = por %p83, %p84
      %p87 = scmp.ne.s32.totalorder %s70, %s86
      %p88 = scmp.eq.s32.totalorder %s36, 0
      %p89 = por %p87, %p88
      %s90 = ssub.s32 %s30, %s37
      %p91 = scmp.eq.s32.totalorder %s90, 0
      %s93 = sadd.s32 %s92, 1
      %s94 = scalar_select %p91, %s92, %s93
      %p97 = pneg %p91
      %p98 = scmp.eq.s32.totalorder %s30, 1
      %p99 = por %p97, %p98
      %p100 = scmp.ne.s32.totalorder %s92, %s95
      %p101 = scmp.eq.s32.totalorder %s30, 0
      %p102 = por %p100, %p101
      %p103 = scmp.ne.s32.totalorder %s92, %s95
      %p104 = scmp.eq.s32.totalorder %s35, 1
      %p105 = por %p103, %p104
      %p106 = scmp.ne.s32.totalorder %s95, %s96
      %p107 = scmp.eq.s32.totalorder %s35, 0
      %p108 = por %p106, %p107
      %p109 = scmp.ne.s32.totalorder %s95, %s96
      %p110 = scmp.eq.s32.totalorder %s36, 1
      %p111 = por %p109, %p110
      %p113 = scmp.ne.s32.totalorder %s96, %s112
      %p114 = scmp.eq.s32.totalorder %s36, 0
      %p115 = por %p113, %p114
      %s116 = ssub.s32 %s30, %s37
      %p117 = scmp.eq.s32.totalorder %s116, 0
      %s119 = sadd.s32 %s118, 1
      %s120 = scalar_select %p117, %s118, %s119
      %p123 = pneg %p117
      %p124 = scmp.eq.s32.totalorder %s30, 1
      %p125 = por %p123, %p124
      %p126 = scmp.ne.s32.totalorder %s118, %s121
      %p127 = scmp.eq.s32.totalorder %s30, 0
      %p128 = por %p126, %p127
      %p129 = scmp.ne.s32.totalorder %s118, %s121
      %p130 = scmp.eq.s32.totalorder %s35, 1
      %p131 = por %p129, %p130
      %p132 = scmp.ne.s32.totalorder %s121, %s122
      %p133 = scmp.eq.s32.totalorder %s35, 0
      %p134 = por %p132, %p133
      %p135 = scmp.ne.s32.totalorder %s121, %s122
      %p136 = scmp.eq.s32.totalorder %s36, 1
      %p137 = por %p135, %p136
      %p139 = scmp.ne.s32.totalorder %s122, %s138
      %p140 = scmp.eq.s32.totalorder %s36, 0
      %p141 = por %p139, %p140
      %s143 = sadd.s32 %s142, 1
      %p146 = scmp.eq.s32.totalorder %s30, 1
      %p147 = scmp.ne.s32.totalorder %s142, %s144
      %p148 = scmp.eq.s32.totalorder %s30, 0
      %p149 = por %p147, %p148
      %p150 = scmp.ne.s32.totalorder %s142, %s144
      %p151 = scmp.eq.s32.totalorder %s35, 1
      %p152 = por %p150, %p151
      %p153 = scmp.ne.s32.totalorder %s144, %s145
      %p154 = scmp.eq.s32.totalorder %s35, 0
      %p155 = por %p153, %p154
      %p156 = scmp.ne.s32.totalorder %s144, %s145
      %p157 = scmp.eq.s32.totalorder %s36, 1
      %p158 = por %p156, %p157
      %p160 = scmp.ne.s32.totalorder %s145, %s159
      %p161 = scmp.eq.s32.totalorder %s36, 0
      %p162 = por %p160, %p161
      %s164 = sadd.s32 %s163, 1
      %p167 = scmp.eq.s32.totalorder %s30, 1
      %p168 = scmp.ne.s32.totalorder %s163, %s165
      %p169 = scmp.eq.s32.totalorder %s30, 0
      %p170 = por %p168, %p169
      %p171 = scmp.ne.s32.totalorder %s163, %s165
      %p172 = scmp.eq.s32.totalorder %s35, 1
      %p173 = por %p171, %p172
      %p174 = scmp.ne.s32.totalorder %s165, %s166
      %p175 = scmp.eq.s32.totalorder %s35, 0
      %p176 = por %p174, %p175
      %p177 = scmp.ne.s32.totalorder %s165, %s166
      %p178 = scmp.eq.s32.totalorder %s36, 1
      %p179 = por %p177, %p178
      %p181 = scmp.ne.s32.totalorder %s166, %s180
      %p182 = scmp.eq.s32.totalorder %s36, 0
      %p183 = por %p181, %p182
      %s185 = sadd.s32 %s184, 1
      %p188 = scmp.eq.s32.totalorder %s30, 1
      %p189 = scmp.ne.s32.totalorder %s184, %s186
      %p190 = scmp.eq.s32.totalorder %s30, 0
      %p191 = por %p189, %p190
      %p192 = scmp.ne.s32.totalorder %s184, %s186
      %p193 = scmp.eq.s32.totalorder %s35, 1
      %p194 = por %p192, %p193
      %p195 = scmp.ne.s32.totalorder %s186, %s187
      %p196 = scmp.eq.s32.totalorder %s35, 0
      %p197 = por %p195, %p196
      %p198 = scmp.ne.s32.totalorder %s186, %s187
      %p199 = scmp.eq.s32.totalorder %s36, 1
      %p200 = por %p198, %p199
      %p202 = scmp.ne.s32.totalorder %s187, %s201
      %p203 = scmp.eq.s32.totalorder %s36, 0
      %p204 = por %p202, %p203
      %s206 = sadd.s32 %s205, 1
      %p209 = scmp.eq.s32.totalorder %s30, 1
      %p210 = scmp.ne.s32.totalorder %s205, %s207
      %p211 = scmp.eq.s32.totalorder %s30, 0
      %p212 = por %p210, %p211
      %p213 = scmp.ne.s32.totalorder %s205, %s207
      %p214 = scmp.eq.s32.totalorder %s35, 1
      %p215 = por %p213, %p214
      %p216 = scmp.ne.s32.totalorder %s207, %s208
      %p217 = scmp.eq.s32.totalorder %s35, 0
      %p218 = por %p216, %p217
      %p219 = scmp.ne.s32.totalorder %s207, %s208
      %p220 = scmp.eq.s32.totalorder %s36, 1
      %p221 = por %p219, %p220
      %p223 = scmp.ne.s32.totalorder %s208, %s222
      %p224 = scmp.eq.s32.totalorder %s36, 0
      %p225 = por %p223, %p224
      %s227 = sadd.s32 %s226, 1
      %p230 = scmp.eq.s32.totalorder %s30, 1
      %p231 = scmp.ne.s32.totalorder %s226, %s228
      %p232 = scmp.eq.s32.totalorder %s30, 0
      %p233 = por %p231, %p232
      %p234 = scmp.ne.s32.totalorder %s226, %s228
      %p235 = scmp.eq.s32.totalorder %s35, 1
      %p236 = por %p234, %p235
      %p237 = scmp.ne.s32.totalorder %s228, %s229
      %p238 = scmp.eq.s32.totalorder %s35, 0
      %p239 = por %p237, %p238
      %p240 = scmp.ne.s32.totalorder %s228, %s229
      %p241 = scmp.eq.s32.totalorder %s36, 1
      %p242 = por %p240, %p241
      %p244 = scmp.ne.s32.totalorder %s229, %s243
      %p245 = scmp.eq.s32.totalorder %s36, 0
      %p246 = por %p244, %p245
      %s248 = sadd.s32 %s247, 1
      %p251 = scmp.eq.s32.totalorder %s30, 1
      %p252 = scmp.ne.s32.totalorder %s247, %s249
      %p253 = scmp.eq.s32.totalorder %s30, 0
      %p254 = por %p252, %p253
      %p255 = scmp.ne.s32.totalorder %s247, %s249
      %p256 = scmp.eq.s32.totalorder %s35, 1
      %p257 = por %p255, %p256
      %p258 = scmp.ne.s32.totalorder %s249, %s250
      %p259 = scmp.eq.s32.totalorder %s35, 0
      %p260 = por %p258, %p259
      %p261 = scmp.ne.s32.totalorder %s249, %s250
      %p262 = scmp.eq.s32.totalorder %s36, 1
      %p263 = por %p261, %p262
      %p265 = scmp.ne.s32.totalorder %s250, %s264
      %p266 = scmp.eq.s32.totalorder %s36, 0
      %p267 = por %p265, %p266
      %s269 = sadd.s32 %s268, 1
      %p272 = scmp.eq.s32.totalorder %s30, 1
      %p273 = scmp.ne.s32.totalorder %s268, %s270
      %p274 = scmp.eq.s32.totalorder %s30, 0
      %p275 = por %p273, %p274
      %p276 = scmp.ne.s32.totalorder %s268, %s270
      %p277 = scmp.eq.s32.totalorder %s35, 1
      %p278 = por %p276, %p277
      %p279 = scmp.ne.s32.totalorder %s270, %s271
      %p280 = scmp.eq.s32.totalorder %s35, 0
      %p281 = por %p279, %p280
      %p282 = scmp.ne.s32.totalorder %s270, %s271
      %p283 = scmp.eq.s32.totalorder %s36, 1
      %p284 = por %p282, %p283
      %p286 = scmp.ne.s32.totalorder %s271, %s285
      %p287 = scmp.eq.s32.totalorder %s36, 0
      %p288 = por %p286, %p287
      %s290 = sadd.s32 %s289, 1
      %p293 = scmp.eq.s32.totalorder %s30, 1
      %p294 = scmp.ne.s32.totalorder %s289, %s291
      %p295 = scmp.eq.s32.totalorder %s30, 0
      %p296 = por %p294, %p295
      %p297 = scmp.ne.s32.totalorder %s289, %s291
      %p298 = scmp.eq.s32.totalorder %s35, 1
      %p299 = por %p297, %p298
      %p300 = scmp.ne.s32.totalorder %s291, %s292
      %p301 = scmp.eq.s32.totalorder %s35, 0
      %p302 = por %p300, %p301
      %p303 = scmp.ne.s32.totalorder %s291, %s292
      %p304 = scmp.eq.s32.totalorder %s36, 1
      %p305 = por %p303, %p304
      %p307 = scmp.ne.s32.totalorder %s292, %s306
      %p308 = scmp.eq.s32.totalorder %s36, 0
      %p309 = por %p307, %p308
      %s311 = sadd.s32 %s310, 1
      %p314 = scmp.eq.s32.totalorder %s30, 1
      %p315 = scmp.ne.s32.totalorder %s310, %s312
      %p316 = scmp.eq.s32.totalorder %s30, 0
      %p317 = por %p315, %p316
      %p318 = scmp.ne.s32.totalorder %s310, %s312
      %p319 = scmp.eq.s32.totalorder %s35, 1
      %p320 = por %p318, %p319
      %p321 = scmp.ne.s32.totalorder %s312, %s313
      %p322 = scmp.eq.s32.totalorder %s35, 0
      %p323 = por %p321, %p322
      %p324 = scmp.ne.s32.totalorder %s312, %s313
      %p325 = scmp.eq.s32.totalorder %s36, 1
      %p326 = por %p324, %p325
      %p328 = scmp.ne.s32.totalorder %s313, %s327
      %p329 = scmp.eq.s32.totalorder %s36, 0
      %p330 = por %p328, %p329
      %s332 = sadd.s32 %s331, 1
      %p335 = scmp.eq.s32.totalorder %s30, 1
      %p336 = scmp.ne.s32.totalorder %s331, %s333
      %p337 = scmp.eq.s32.totalorder %s30, 0
      %p338 = por %p336, %p337
      %p339 = scmp.ne.s32.totalorder %s331, %s333
      %p340 = scmp.eq.s32.totalorder %s35, 1
      %p341 = por %p339, %p340
      %p342 = scmp.ne.s32.totalorder %s333, %s334
      %p343 = scmp.eq.s32.totalorder %s35, 0
      %p344 = por %p342, %p343
      %p345 = scmp.ne.s32.totalorder %s333, %s334
      %p346 = scmp.eq.s32.totalorder %s36, 1
      %p347 = por %p345, %p346
      %p349 = scmp.ne.s32.totalorder %s334, %s348
      %p350 = scmp.eq.s32.totalorder %s36, 0
      %p351 = por %p349, %p350
      %s352 = ssub.s32 %s30, %s37
      %p353 = scmp.eq.s32.totalorder %s352, 0
      %s355 = sadd.s32 %s354, 1
      %s356 = scalar_select %p353, %s354, %s355
      %p359 = pneg %p353
      %p360 = scmp.eq.s32.totalorder %s30, 1
      %p361 = por %p359, %p360
      %p362 = scmp.ne.s32.totalorder %s354, %s357
      %p363 = scmp.eq.s32.totalorder %s30, 0
      %p364 = por %p362, %p363
      %p365 = scmp.ne.s32.totalorder %s354, %s357
      %p366 = scmp.eq.s32.totalorder %s35, 1
      %p367 = por %p365, %p366
      %p368 = scmp.ne.s32.totalorder %s357, %s358
      %p369 = scmp.eq.s32.totalorder %s35, 0
      %p370 = por %p368, %p369
      %p371 = scmp.ne.s32.totalorder %s357, %s358
      %p372 = scmp.eq.s32.totalorder %s36, 1
      %p373 = por %p371, %p372
      %p375 = scmp.ne.s32.totalorder %s358, %s374
      %p376 = scmp.eq.s32.totalorder %s36, 0
      %p377 = por %p375, %p376
      %s378 = ssub.s32 %s30, %s37
      %p379 = scmp.eq.s32.totalorder %s378, 0
      %s381 = sadd.s32 %s380, 1
      %s382 = scalar_select %p379, %s380, %s381
      %p385 = pneg %p379
      %p386 = scmp.eq.s32.totalorder %s30, 1
      %p387 = por %p385, %p386
      %p388 = scmp.ne.s32.totalorder %s380, %s383
      %p389 = scmp.eq.s32.totalorder %s30, 0
      %p390 = por %p388, %p389
      %p391 = scmp.ne.s32.totalorder %s380, %s383
      %p392 = scmp.eq.s32.totalorder %s35, 1
      %p393 = por %p391, %p392
      %p394 = scmp.ne.s32.totalorder %s383, %s384
      %p395 = scmp.eq.s32.totalorder %s35, 0
      %p396 = por %p394, %p395
      %p397 = scmp.ne.s32.totalorder %s383, %s384
      %p398 = scmp.eq.s32.totalorder %s36, 1
      %p399 = por %p397, %p398
      %p401 = scmp.ne.s32.totalorder %s384, %s400
      %p402 = scmp.eq.s32.totalorder %s36, 0
      %p403 = por %p401, %p402
      %s404 = ssub.s32 %s30, %s37
      %p405 = scmp.eq.s32.totalorder %s404, 0
      %s407 = sadd.s32 %s406, 1
      %s408 = scalar_select %p405, %s406, %s407
      %p411 = pneg %p405
      %p412 = scmp.eq.s32.totalorder %s30, 1
      %p413 = por %p411, %p412
      %p414 = scmp.ne.s32.totalorder %s406, %s409
      %p415 = scmp.eq.s32.totalorder %s30, 0
      %p416 = por %p414, %p415
      %p417 = scmp.ne.s32.totalorder %s406, %s409
      %p418 = scmp.eq.s32.totalorder %s35, 1
      %p419 = por %p417, %p418
      %p420 = scmp.ne.s32.totalorder %s409, %s410
      %p421 = scmp.eq.s32.totalorder %s35, 0
      %p422 = por %p420, %p421
      %p423 = scmp.ne.s32.totalorder %s409, %s410
      %p424 = scmp.eq.s32.totalorder %s36, 1
      %p425 = por %p423, %p424
      %p427 = scmp.ne.s32.totalorder %s410, %s426
      %p428 = scmp.eq.s32.totalorder %s36, 0
      %p429 = por %p427, %p428
      %s430 = ssub.s32 %s30, %s37
      %p431 = scmp.eq.s32.totalorder %s430, 0
      %s433 = sadd.s32 %s432, 1
      %s434 = scalar_select %p431, %s432, %s433
      %p437 = pneg %p431
      %p438 = scmp.eq.s32.totalorder %s30, 1
      %p439 = por %p437, %p438
      %p440 = scmp.ne.s32.totalorder %s432, %s435
      %p441 = scmp.eq.s32.totalorder %s30, 0
      %p442 = por %p440, %p441
      %p443 = scmp.ne.s32.totalorder %s432, %s435
      %p444 = scmp.eq.s32.totalorder %s35, 1
      %p445 = por %p443, %p444
      %p446 = scmp.ne.s32.totalorder %s435, %s436
      %p447 = scmp.eq.s32.totalorder %s35, 0
      %p448 = por %p446, %p447
      %p449 = scmp.ne.s32.totalorder %s435, %s436
      %p450 = scmp.eq.s32.totalorder %s36, 1
      %p451 = por %p449, %p450
      %p453 = scmp.ne.s32.totalorder %s436, %s452
      %p454 = scmp.eq.s32.totalorder %s36, 0
      %p455 = por %p453, %p454
      %p456 = scmp.le.s32.totalorder 1, %s30
      %p457 = scmp.lt.s32.totalorder %s30, 3
      %p458 = pnand %p456, %p457
      %p459 = pneg %p458
      // Predicated region
      $region9: #{transformer_decoder_forward.3} parent=5 // pred_check
        _
      $region10: #{transformer_decoder_forward.3} parent=5 // pred_check_branch
        %461 = sbr.rel (%p458) target = $region12
      $region11: #{transformer_decoder_forward.3} parent=5 // pred_region
        %s462 = ssub.s32 %s30, 1
        // Predicated region
        $region13: #{transformer_decoder_forward.3} parent=11 // pred_check
          %p463 = pneg %p155
        $region14: #{transformer_decoder_forward.3} parent=11 // pred_check_branch
          %465 = sbr.rel (%p463) target = $region16
        $region15: #{transformer_decoder_forward.3} parent=11 // pred_region
          _
        $region16: #{transformer_decoder_forward.3} parent=11 // pred_fallthru
          _
        // Predicated region
        $region17: #{transformer_decoder_forward.3} parent=11 // pred_check
          %p466 = pneg %p176
        $region18: #{transformer_decoder_forward.3} parent=11 // pred_check_branch
          %468 = sbr.rel (%p466) target = $region20
        $region19: #{transformer_decoder_forward.3} parent=11 // pred_region
          _
        $region20: #{transformer_decoder_forward.3} parent=11 // pred_fallthru
          _
        // Predicated region
        $region21: #{transformer_decoder_forward.3} parent=11 // pred_check
          %p469 = pneg %p197
        $region22: #{transformer_decoder_forward.3} parent=11 // pred_check_branch
          %471 = sbr.rel (%p469) target = $region24
        $region23: #{transformer_decoder_forward.3} parent=11 // pred_region
          _
        $region24: #{transformer_decoder_forward.3} parent=11 // pred_fallthru
          _
        // Predicated region
        $region25: #{transformer_decoder_forward.3} parent=11 // pred_check
          %p472 = pneg %p218
        $region26: #{transformer_decoder_forward.3} parent=11 // pred_check_branch
          %474 = sbr.rel (%p472) target = $region28
        $region27: #{transformer_decoder_forward.3} parent=11 // pred_region
          _
        $region28: #{transformer_decoder_forward.3} parent=11 // pred_fallthru
          _
        // Predicated region
        $region29: #{transformer_decoder_forward.3} parent=11 // pred_check
          %p475 = pneg %p239
        $region30: #{transformer_decoder_forward.3} parent=11 // pred_check_branch
          %477 = sbr.rel (%p475) target = $region32
        $region31: #{transformer_decoder_forward.3} parent=11 // pred_region
          _
        $region32: #{transformer_decoder_forward.3} parent=11 // pred_fallthru
          _
        // Predicated region
        $region33: #{transformer_decoder_forward.3} parent=11 // pred_check
          %p478 = pneg %p260
        $region34: #{transformer_decoder_forward.3} parent=11 // pred_check_branch
          %480 = sbr.rel (%p478) target = $region36
        $region35: #{transformer_decoder_forward.3} parent=11 // pred_region
          _
        $region36: #{transformer_decoder_forward.3} parent=11 // pred_fallthru
          _
        // Predicated region
        $region37: #{transformer_decoder_forward.3} parent=11 // pred_check
          %p481 = pneg %p281
        $region38: #{transformer_decoder_forward.3} parent=11 // pred_check_branch
          %483 = sbr.rel (%p481) target = $region40
        $region39: #{transformer_decoder_forward.3} parent=11 // pred_region
          _
        $region40: #{transformer_decoder_forward.3} parent=11 // pred_fallthru
          _
        // Predicated region
        $region41: #{transformer_decoder_forward.3} parent=11 // pred_check
          %p484 = pneg %p302
        $region42: #{transformer_decoder_forward.3} parent=11 // pred_check_branch
          %486 = sbr.rel (%p484) target = $region44
        $region43: #{transformer_decoder_forward.3} parent=11 // pred_region
          _
        $region44: #{transformer_decoder_forward.3} parent=11 // pred_fallthru
          _
        // Predicated region
        $region45: #{transformer_decoder_forward.3} parent=11 // pred_check
          %p487 = pneg %p323
        $region46: #{transformer_decoder_forward.3} parent=11 // pred_check_branch
          %489 = sbr.rel (%p487) target = $region48
        $region47: #{transformer_decoder_forward.3} parent=11 // pred_region
          _
        $region48: #{transformer_decoder_forward.3} parent=11 // pred_fallthru
          _
        // Predicated region
        $region49: #{transformer_decoder_forward.3} parent=11 // pred_check
          %p490 = pneg %p344
        $region50: #{transformer_decoder_forward.3} parent=11 // pred_check_branch
          %492 = sbr.rel (%p490) target = $region52
        $region51: #{transformer_decoder_forward.3} parent=11 // pred_region
          _
        $region52: #{transformer_decoder_forward.3} parent=11 // pred_fallthru
          _
      $region12: #{transformer_decoder_forward.3} parent=5 // pred_fallthru
        _
      %p493 = scmp.lt.s32.totalorder %s30, 2
      // Predicated region
      $region53: #{transformer_decoder_forward.3} parent=5 // pred_check
        %p494 = pneg %p493
      $region54: #{transformer_decoder_forward.3} parent=5 // pred_check_branch
        %496 = sbr.rel (%p494) target = $region56
      $region55: #{transformer_decoder_forward.3} parent=5 // pred_region
        // Predicated region
        $region57: #{transformer_decoder_forward.3} parent=55 // pred_check
          %p497 = pneg %p50
        $region58: #{transformer_decoder_forward.3} parent=55 // pred_check_branch
          %499 = sbr.rel (%p497) target = $region60
        $region59: #{transformer_decoder_forward.3} parent=55 // pred_region
          %p500 = scmp.lt.s32.totalorder %s30, 1
          %s501 = scalar_select %p500, %s30, 1
          %s502 = smul.addr %s501, 8
          %s503 = scalar_lea.vmem %s0, %s502
        $region60: #{transformer_decoder_forward.3} parent=55 // pred_fallthru
          _
        // Predicated region
        $region61: #{transformer_decoder_forward.3} parent=55 // pred_check
          %p504 = pneg %p76
        $region62: #{transformer_decoder_forward.3} parent=55 // pred_check_branch
          %506 = sbr.rel (%p504) target = $region64
        $region63: #{transformer_decoder_forward.3} parent=55 // pred_region
          %p507 = scmp.lt.s32.totalorder %s30, 1
          %s508 = scalar_select %p507, %s30, 1
          %s509 = smul.addr %s508, 8
          %s510 = scalar_lea.vmem %s1, %s509
        $region64: #{transformer_decoder_forward.3} parent=55 // pred_fallthru
          _
        // Predicated region
        $region65: #{transformer_decoder_forward.3} parent=55 // pred_check
          %p511 = pneg %p102
        $region66: #{transformer_decoder_forward.3} parent=55 // pred_check_branch
          %513 = sbr.rel (%p511) target = $region68
        $region67: #{transformer_decoder_forward.3} parent=55 // pred_region
          %p514 = scmp.lt.s32.totalorder %s30, 1
          %s515 = scalar_select %p514, %s30, 1
          %s516 = scalar_lea.vmem %s2, %s515
        $region68: #{transformer_decoder_forward.3} parent=55 // pred_fallthru
          _
        // Predicated region
        $region69: #{transformer_decoder_forward.3} parent=55 // pred_check
          %p517 = pneg %p128
        $region70: #{transformer_decoder_forward.3} parent=55 // pred_check_branch
          %519 = sbr.rel (%p517) target = $region72
        $region71: #{transformer_decoder_forward.3} parent=55 // pred_region
          %p520 = scmp.lt.s32.totalorder %s30, 1
          %s521 = scalar_select %p520, %s30, 1
          %s522 = scalar_lea.vmem %s3, %s521
        $region72: #{transformer_decoder_forward.3} parent=55 // pred_fallthru
          _
      $region56: #{transformer_decoder_forward.3} parent=5 // pred_fallthru
        _
      %p523 = scmp.le.s32.totalorder 1, %s30
      %p524 = scmp.lt.s32.totalorder %s30, 3
      %p525 = pnand %p523, %p524
      %p526 = pneg %p525
      // Predicated region
      $region73: #{transformer_decoder_forward.3} parent=5 // pred_check
        _
      $region74: #{transformer_decoder_forward.3} parent=5 // pred_check_branch
        %528 = sbr.rel (%p525) target = $region76
      $region75: #{transformer_decoder_forward.3} parent=5 // pred_region
        %s529 = ssub.s32 %s30, 1
        %p530 = scmp.lt.s32.totalorder %s35, 1
        %s531 = scalar_select %p530, %s35, 1
        %s532 = smul.addr %s531, 8
        %s533 = scalar_lea.vmem %s0, %s532
        %p534 = pneg %p56
        %p535 = pneg %p53
        %p536 = scmp.lt.s32.totalorder %s35, 1
        %s537 = scalar_select %p536, %s35, 1
        %s538 = smul.addr %s537, 8
        %s539 = scalar_lea.vmem %s1, %s538
        %p540 = pneg %p82
        %p541 = pneg %p79
        %p542 = scmp.lt.s32.totalorder %s35, 1
        %s543 = scalar_select %p542, %s35, 1
        %s544 = scalar_lea.vmem %s2, %s543
        %p545 = pneg %p108
        %p546 = pneg %p105
        %p547 = scmp.lt.s32.totalorder %s35, 1
        %s548 = scalar_select %p547, %s35, 1
        %s549 = scalar_lea.vmem %s3, %s548
        %p550 = pneg %p134
        %p551 = pneg %p131
        %p552 = pneg %p155
        %p553 = pneg %p152
        %p554 = pneg %p176
        %p555 = pneg %p173
        %p556 = pneg %p197
        %p557 = pneg %p194
        %p558 = pneg %p218
        %p559 = pneg %p215
        %p560 = pneg %p239
        %p561 = pneg %p236
        %p562 = pneg %p260
        %p563 = pneg %p257
        %p564 = pneg %p281
        %p565 = pneg %p278
        %p566 = pneg %p302
        %p567 = pneg %p299
        %p568 = pneg %p323
        %p569 = pneg %p320
        %p570 = pneg %p344
        %p571 = pneg %p341
        %p572 = pneg %p370
        %p573 = pneg %p367
        %p574 = scmp.lt.s32.totalorder %s35, 1
        %s575 = scalar_select %p574, %s35, 1
        %s576 = smul.addr %s575, 8
        %s577 = scalar_lea.vmem %s14, %s576
        %p578 = pneg %p396
        %p579 = pneg %p393
        %s580 = sand.u32 %s383, 1
        %s581 = scalar_lea.sflag [#allocation3], %s580
        %s582 = sand.u32 %s383, 1
        %s583 = smul.addr %s582, 8
        %s584 = scalar_lea.vmem [#allocation2], %s583
        %p585 = pneg %p422
        %p586 = pneg %p419
        %p587 = scmp.lt.s32.totalorder %s35, 1
        %s588 = scalar_select %p587, %s35, 1
        %s589 = smul.addr %s588, 8
        %s590 = scalar_lea.vmem %s16, %s589
        %p591 = pneg %p448
        %p592 = pneg %p445
        %s593 = sand.u32 %s435, 1
        %s594 = scalar_lea.sflag [#allocation5], %s593
        %s595 = sand.u32 %s435, 1
        %s596 = smul.addr %s595, 8
        %s597 = scalar_lea.vmem [#allocation4], %s596
        %p598 = scmp.lt.s32.totalorder %s35, 1
        %s599 = scalar_select %p598, %s35, 1
        %s600 = smul.addr %s599, 8
        %s601 = scalar_lea.vmem %s0, %s600
        %p602 = scmp.lt.s32.totalorder %s35, 1
        %s603 = scalar_select %p602, %s35, 1
        %s604 = smul.addr %s603, 8
        %s605 = scalar_lea.vmem %s1, %s604
        %p606 = scmp.lt.s32.totalorder %s35, 1
        %s607 = scalar_select %p606, %s35, 1
        %s608 = scalar_lea.vmem %s2, %s607
        %p609 = scmp.lt.s32.totalorder %s35, 1
        %s610 = scalar_select %p609, %s35, 1
        %s611 = scalar_lea.vmem %s3, %s610
        %p612 = scmp.lt.s32.totalorder %s35, 1
        %s613 = scalar_select %p612, %s35, 1
        %s614 = smul.addr %s613, 8
        %s615 = scalar_lea.vmem %s14, %s614
        %p616 = scmp.lt.s32.totalorder %s35, 1
        %s617 = scalar_select %p616, %s35, 1
        %s618 = smul.addr %s617, 8
        %s619 = scalar_lea.vmem %s16, %s618
        %v621 = vld [vmem:[%s601] sm:$0xff]
        %v622 = vld [vmem:[%s605] sm:$0xff]
        %v623 = vld [vmem:[%s608] sm:$0x1]
        %v624 = vld [vmem:[%s611] sm:$0x1]
        %v625 = vlaneseq
        %v626 = vand.u32 %v625, 127
        %vm627 = vcmp.ge.s32.totalorder %v626, 0
        %vm628 = vcmp.lt.s32.totalorder %v626, 4
        %vm629 = vmand %vm627, %vm628
        %v630 = vsel %vm629, 1, 0
        %v631 = vcvt.s32.f32 %v630
        %vm632 = vcmp.ge.s32.totalorder %v626, 4
        %vm633 = vcmp.lt.s32.totalorder %v626, 8
        %vm634 = vmand %vm632, %vm633
        %v635 = vsel %vm634, 1, 0
        %v636 = vcvt.s32.f32 %v635
        %vm637 = vcmp.ge.s32.totalorder %v626, 8
        %vm638 = vcmp.lt.s32.totalorder %v626, 12
        %vm639 = vmand %vm637, %vm638
        %v640 = vsel %vm639, 1, 0
        %v641 = vcvt.s32.f32 %v640
        %vm642 = vcmp.ge.s32.totalorder %v626, 12
        %vm643 = vcmp.lt.s32.totalorder %v626, 16
        %vm644 = vmand %vm642, %vm643
        %v645 = vsel %vm644, 1, 0
        %v646 = vcvt.s32.f32 %v645
        %vm647 = vcmp.ge.s32.totalorder %v626, 16
        %vm648 = vcmp.lt.s32.totalorder %v626, 20
        %vm649 = vmand %vm647, %vm648
        %v650 = vsel %vm649, 1, 0
        %v651 = vcvt.s32.f32 %v650
        %vm652 = vcmp.ge.s32.totalorder %v626, 20
        %vm653 = vcmp.lt.s32.totalorder %v626, 24
        %vm654 = vmand %vm652, %vm653
        %v655 = vsel %vm654, 1, 0
        %v656 = vcvt.s32.f32 %v655
        %vm657 = vcmp.ge.s32.totalorder %v626, 24
        %vm658 = vcmp.lt.s32.totalorder %v626, 28
        %vm659 = vmand %vm657, %vm658
        %v660 = vsel %vm659, 1, 0
        %v661 = vcvt.s32.f32 %v660
        %vm662 = vcmp.ge.s32.totalorder %v626, 28
        %vm663 = vcmp.lt.s32.totalorder %v626, 32
        %vm664 = vmand %vm662, %vm663
        %v665 = vsel %vm664, 1, 0
        %v666 = vcvt.s32.f32 %v665
        %v667 = vld [vmem:[%s8] sm:$0x1]
        %v668 = vld [vmem:[%s9] sm:$0x1]
        %vm669 = vcmask 261120
        %v670 = vsel %vm669, %v621, 0.0
        %671 = vadd.xlane.f32.xlu0 %v670
        %v672 = vpop.xlane.xlu0 %671
        %v673 = vrcp.pop 32.0
        %v674 = vmul.f32 %v672, %v673
        %v675 = vsub.f32 %v621, %v674
        %v676 = vmul.f32 %v675, %v675
        %v677 = vsel %vm669, %v676, 0.0
        %678 = vadd.xlane.f32.xlu0 %v677
        %v679 = vpop.xlane.xlu0 %678
        %v680 = vmul.f32 %v679, 0.032258064
        %v681 = vrsqrt.pop %v680
        %v682 = vmul.f32 %v680, %v681
        %vm683 = vcmp.eq.f32.partialorder %v680, inf
        %v684 = vsel %vm683, %v680, %v682
        %vm685 = vcmp.eq.f32.partialorder %v680, 0.0
        %v686 = vand.u32 %v680, 2147483648
        %v687 = vsel %vm685, %v686, %v684
        %v688 = vadd.f32 %v687, 1e-06
        %v689 = vrcp.pop %v688
        %v690 = vmul.f32 %v675, %v689
        %v692 = vlaneseq
        %v693 = vshrl.u32 %v692, 7
        %v694 = vsub.s32 0, %v693
        %v695 = vrot.slane %v667, %v694
        %v697 = vmul.f32 %v695, %v690
        %v699 = vlaneseq
        %v700 = vshrl.u32 %v699, 7
        %v701 = vsub.s32 0, %v700
        %v702 = vrot.slane %v668, %v701
        %v704 = vadd.f32 %v697, %v702
        %705 = vst.msk [vmem:[%s619] sm:$0xff] %vm669, %v704
        %v706 = vlaneseq
        %v707 = vshrl.u32 %v706, 7
        %vm708 = vcmp.gt.s32.totalorder %v626, %v707
        %v709 = vsel %vm708, 1, 0
        %v710 = vcvt.s32.f32 %v709
        %v712 = vlaneseq
        %v713 = vshrl.u32 %v712, 7
        %v714 = vsub.s32 0, %v713
        %v715 = vrot.slane %v623, %v714
        %v717 = vadd.f32 %v715, %v710
        %vm718 = vcmp.gt.f32.partialorder %v717, 0.0
        %v719 = vld [vmem:[%s4] sm:$0xf]
        %v720 = vld [vmem:[%s4 + $0x4] sm:$0xf]
        %v721 = vld [vmem:[%s4 + $0x8] sm:$0xf]
        %v722 = vld [vmem:[%s4 + $0xc] sm:$0xf]
        %v723 = vpack.c.bf16 %v704, %v704
        %v724 = vld [vmem:[%s5] sm:$0x1]
        %v726 = vlaneseq
        %v727 = vshrl.u32 %v726, 7
        %v728 = vsub.s32 0, %v727
        %v729 = vrot.slane %v724, %v728
        %v735 = vunpack.c.l.b16 %v719
        %v736 = vunpack.c.l.b16 %v720
        %v737 = vunpack.c.l.b16 %v721
        %v738 = vunpack.c.l.b16 %v722
        %v739 = vpack.c.b16 %v736, %v735
        %v740 = vpack.c.b16 %v738, %v737
        %v744 = vsel %vm669, %v723, 0
        %746 = vmatprep.subr.bf16.mxu0 0
        %747 = vmatpush1.bf16.msra.mxu0 %v739
        %748 = vmatprep.subr.bf16.mxu0 0
        %749 = vmatpush1.bf16.msra.mxu0 %v740
        %750 = vmatprep.subr.bf16.mxu0 0
        %751 = vmatpush1.bf16.msra.mxu0 0
        %752 = vmatprep.subr.bf16.mxu0 0
        %753 = vmatpush1.bf16.msra.mxu0 0
        %754 = vmatprep.subr.bf16.mxu0 0
        %755 = vmatpush1.bf16.msra.mxu0 0
        %756 = vmatprep.subr.bf16.mxu0 0
        %757 = vmatpush1.bf16.msra.mxu0 0
        %758 = vmatprep.subr.bf16.mxu0 0
        %759 = vmatpush1.bf16.msra.mxu0 0
        %760 = vmatprep.subr.bf16.mxu0 0
        %761 = vmatpush1.bf16.msra.mxu0 0
        %762 = vmatprep.subr.bf16.mxu0 0
        %763 = vmatpush1.bf16.msra.mxu0 0
        %764 = vmatprep.subr.bf16.mxu0 0
        %765 = vmatpush1.bf16.msra.mxu0 0
        %766 = vmatprep.subr.bf16.mxu0 0
        %767 = vmatpush1.bf16.msra.mxu0 0
        %768 = vmatprep.subr.bf16.mxu0 0
        %769 = vmatpush1.bf16.msra.mxu0 0
        %770 = vmatprep.subr.bf16.mxu0 0
        %771 = vmatpush1.bf16.msra.mxu0 0
        %772 = vmatprep.subr.bf16.mxu0 0
        %773 = vmatpush1.bf16.msra.mxu0 0
        %774 = vmatprep.subr.bf16.mxu0 0
        %775 = vmatpush1.bf16.msra.mxu0 0
        %776 = vmatprep.subr.bf16.mxu0 0
        %777 = vmatpush1.bf16.msra.mxu0 0
        %778 = vmatprep.mubr.bf16.mxu0 0
        %779 = vmatmul.mubr.bf16.gmra.mrb[0].mxu0 %v744
        %v780 = vpop.f32.mrb[0].mxu0
        %v781 = vadd.f32 %v729, %v780
        %v782 = vpop.f32.mrb[0].mxu0
        %v783 = vpop.f32.mrb[0].mxu0
        %v784 = vpop.f32.mrb[0].mxu0
        %785 = vdwg.mxu0
        %v786 = vmul.f32 %v781, 0.5
        %s787 = scalar_lea.vmem %s4, 16
        %v788 = vld [vmem:[%s787] sm:$0xf]
        %v789 = vld [vmem:[%s787 + $0x4] sm:$0xf]
        %v790 = vld [vmem:[%s787 + $0x8] sm:$0xf]
        %v791 = vld [vmem:[%s787 + $0xc] sm:$0xf]
        %s792 = scalar_lea.vmem %s5, 1
        %v793 = vld [vmem:[%s792] sm:$0x1]
        %v795 = vlaneseq
        %v796 = vshrl.u32 %v795, 7
        %v797 = vsub.s32 0, %v796
        %v798 = vrot.slane %v793, %v797
        %v804 = vunpack.c.l.b16 %v788
        %v805 = vunpack.c.l.b16 %v789
        %v806 = vunpack.c.l.b16 %v790
        %v807 = vunpack.c.l.b16 %v791
        %v808 = vpack.c.b16 %v805, %v804
        %v809 = vpack.c.b16 %v807, %v806
        %812 = vmatprep.subr.bf16.mxu0 0
        %813 = vmatpush1.bf16.msra.mxu0 %v808
        %814 = vmatprep.subr.bf16.mxu0 0
        %815 = vmatpush1.bf16.msra.mxu0 %v809
        %816 = vmatprep.subr.bf16.mxu0 0
        %817 = vmatpush1.bf16.msra.mxu0 0
        %818 = vmatprep.subr.bf16.mxu0 0
        %819 = vmatpush1.bf16.msra.mxu0 0
        %820 = vmatprep.subr.bf16.mxu0 0
        %821 = vmatpush1.bf16.msra.mxu0 0
        %822 = vmatprep.subr.bf16.mxu0 0
        %823 = vmatpush1.bf16.msra.mxu0 0
        %824 = vmatprep.subr.bf16.mxu0 0
        %825 = vmatpush1.bf16.msra.mxu0 0
        %826 = vmatprep.subr.bf16.mxu0 0
        %827 = vmatpush1.bf16.msra.mxu0 0
        %828 = vmatprep.subr.bf16.mxu0 0
        %829 = vmatpush1.bf16.msra.mxu0 0
        %830 = vmatprep.subr.bf16.mxu0 0
        %831 = vmatpush1.bf16.msra.mxu0 0
        %832 = vmatprep.subr.bf16.mxu0 0
        %833 = vmatpush1.bf16.msra.mxu0 0
        %834 = vmatprep.subr.bf16.mxu0 0
        %835 = vmatpush1.bf16.msra.mxu0 0
        %836 = vmatprep.subr.bf16.mxu0 0
        %837 = vmatpush1.bf16.msra.mxu0 0
        %838 = vmatprep.subr.bf16.mxu0 0
        %839 = vmatpush1.bf16.msra.mxu0 0
        %840 = vmatprep.subr.bf16.mxu0 0
        %841 = vmatpush1.bf16.msra.mxu0 0
        %842 = vmatprep.subr.bf16.mxu0 0
        %843 = vmatpush1.bf16.msra.mxu0 0
        %844 = vmatprep.mubr.bf16.mxu0 0
        %845 = vmatmul.mubr.bf16.gmra.mrb[0].mxu0 %v744
        %v846 = vpop.f32.mrb[0].mxu0
        %v847 = vadd.f32 %v798, %v846
        %v848 = vpop.f32.mrb[0].mxu0
        %v849 = vpop.f32.mrb[0].mxu0
        %v850 = vpop.f32.mrb[0].mxu0
        %851 = vdwg.mxu0
        %s852 = scalar_lea.vmem %s4, 32
        %v853 = vld [vmem:[%s852] sm:$0xf]
        %v854 = vld [vmem:[%s852 + $0x4] sm:$0xf]
        %v855 = vld [vmem:[%s852 + $0x8] sm:$0xf]
        %v856 = vld [vmem:[%s852 + $0xc] sm:$0xf]
        %s857 = scalar_lea.vmem %s5, 2
        %v858 = vld [vmem:[%s857] sm:$0x1]
        %v860 = vlaneseq
        %v861 = vshrl.u32 %v860, 7
        %v862 = vsub.s32 0, %v861
        %v863 = vrot.slane %v858, %v862
        %v869 = vunpack.c.l.b16 %v853
        %v870 = vunpack.c.l.b16 %v854
        %v871 = vunpack.c.l.b16 %v855
        %v872 = vunpack.c.l.b16 %v856
        %v873 = vpack.c.b16 %v870, %v869
        %v874 = vpack.c.b16 %v872, %v871
        %877 = vmatprep.subr.bf16.mxu0 0
        %878 = vmatpush1.bf16.msra.mxu0 %v873
        %879 = vmatprep.subr.bf16.mxu0 0
        %880 = vmatpush1.bf16.msra.mxu0 %v874
        %881 = vmatprep.subr.bf16.mxu0 0
        %882 = vmatpush1.bf16.msra.mxu0 0
        %883 = vmatprep.subr.bf16.mxu0 0
        %884 = vmatpush1.bf16.msra.mxu0 0
        %885 = vmatprep.subr.bf16.mxu0 0
        %886 = vmatpush1.bf16.msra.mxu0 0
        %887 = vmatprep.subr.bf16.mxu0 0
        %888 = vmatpush1.bf16.msra.mxu0 0
        %889 = vmatprep.subr.bf16.mxu0 0
        %890 = vmatpush1.bf16.msra.mxu0 0
        %891 = vmatprep.subr.bf16.mxu0 0
        %892 = vmatpush1.bf16.msra.mxu0 0
        %893 = vmatprep.subr.bf16.mxu0 0
        %894 = vmatpush1.bf16.msra.mxu0 0
        %895 = vmatprep.subr.bf16.mxu0 0
        %896 = vmatpush1.bf16.msra.mxu0 0
        %897 = vmatprep.subr.bf16.mxu0 0
        %898 = vmatpush1.bf16.msra.mxu0 0
        %899 = vmatprep.subr.bf16.mxu0 0
        %900 = vmatpush1.bf16.msra.mxu0 0
        %901 = vmatprep.subr.bf16.mxu0 0
        %902 = vmatpush1.bf16.msra.mxu0 0
        %903 = vmatprep.subr.bf16.mxu0 0
        %904 = vmatpush1.bf16.msra.mxu0 0
        %905 = vmatprep.subr.bf16.mxu0 0
        %906 = vmatpush1.bf16.msra.mxu0 0
        %907 = vmatprep.subr.bf16.mxu0 0
        %908 = vmatpush1.bf16.msra.mxu0 0
        %909 = vmatprep.mubr.bf16.mxu0 0
        %910 = vmatmul.mubr.bf16.gmra.mrb[0].mxu0 %v744
        %v911 = vpop.f32.mrb[0].mxu0
        %v912 = vadd.f32 %v863, %v911
        %v913 = vpop.f32.mrb[0].mxu0
        %v914 = vpop.f32.mrb[0].mxu0
        %v915 = vpop.f32.mrb[0].mxu0
        %916 = vdwg.mxu0
        %v917 = vpack.c.bf16 %v786, %v786
        %v918 = vmul.f32 %v847, %v631
        %v919 = vpack.c.bf16 %v918, %v918
        %v921 = vsel %vm669, %v917, 0
        %v924 = vsel %vm669, %v919, 0
        %926 = vmatprep.subr.bf16.mxu0 0
        %927 = vmatpush1.bf16.xpose.msra.mxu0 %v924
        %928 = vmatprep.subr.bf16.mxu0 0
        %929 = vmatpush1.bf16.xpose.msra.mxu0 0
        %930 = vmatprep.subr.bf16.mxu0 0
        %931 = vmatpush1.bf16.xpose.msra.mxu0 0
        %932 = vmatprep.subr.bf16.mxu0 0
        %933 = vmatpush1.bf16.xpose.msra.mxu0 0
        %934 = vmatprep.subr.bf16.mxu0 0
        %935 = vmatpush1.bf16.xpose.msra.mxu0 0
        %936 = vmatprep.subr.bf16.mxu0 0
        %937 = vmatpush1.bf16.xpose.msra.mxu0 0
        %938 = vmatprep.subr.bf16.mxu0 0
        %939 = vmatpush1.bf16.xpose.msra.mxu0 0
        %940 = vmatprep.subr.bf16.mxu0 0
        %941 = vmatpush1.bf16.xpose.msra.mxu0 0
        %942 = vmatprep.subr.bf16.mxu0 0
        %943 = vmatpush1.bf16.xpose.msra.mxu0 0
        %944 = vmatprep.subr.bf16.mxu0 0
        %945 = vmatpush1.bf16.xpose.msra.mxu0 0
        %946 = vmatprep.subr.bf16.mxu0 0
        %947 = vmatpush1.bf16.xpose.msra.mxu0 0
        %948 = vmatprep.subr.bf16.mxu0 0
        %949 = vmatpush1.bf16.xpose.msra.mxu0 0
        %950 = vmatprep.subr.bf16.mxu0 0
        %951 = vmatpush1.bf16.xpose.msra.mxu0 0
        %952 = vmatprep.subr.bf16.mxu0 0
        %953 = vmatpush1.bf16.xpose.msra.mxu0 0
        %954 = vmatprep.subr.bf16.mxu0 0
        %955 = vmatpush1.bf16.xpose.msra.mxu0 0
        %956 = vmatprep.subr.bf16.mxu0 0
        %957 = vmatpush1.bf16.xpose.msra.mxu0 0
        %958 = vmatprep.mubr.bf16.mxu0 0
        %959 = vmatmul.mubr.bf16.gmra.mrb[0].mxu0 %v921
        %v960 = vpop.f32.mrb[0].mxu0
        %v961 = vadd.f32 0.0, %v960
        %v962 = vpop.f32.mrb[0].mxu0
        %v963 = vpop.f32.mrb[0].mxu0
        %v964 = vpop.f32.mrb[0].mxu0
        %965 = vdwg.mxu0
        %v966 = vsel %vm718, -1e+18, %v961
        %vm967 = vcmask 64512
        %v968 = vsel %vm967, %v966, -inf
        %969 = vmax.xlane.f32.xlu0 %v968
        %v970 = vpop.xlane.xlu0 %969
        %v971 = vsub.f32 %v966, %v970
        %v972 = vmul.f32 %v971, 1.442695
        %v973 = vpow.pop %v972
        %v974 = vsel %vm967, %v973, 0.0
        %975 = vadd.xlane.f32.xlu0 %v974
        %v976 = vpop.xlane.xlu0 %975
        %v977 = vrcp.pop %v976
        %v978 = vmul.f32 %v973, %v977
        %v979 = vpack.c.bf16 %v978, %v978
        %v980 = vmul.f32 %v912, %v631
        %v981 = vpack.c.bf16 %v980, %v980
        %v982 = vmul.f32 %v847, %v636
        %v983 = vpack.c.bf16 %v982, %v982
        %v985 = vsel %vm669, %v983, 0
        %987 = vmatprep.subr.bf16.mxu0 0
        %988 = vmatpush1.bf16.xpose.msra.mxu0 %v985
        %989 = vmatprep.subr.bf16.mxu0 0
        %990 = vmatpush1.bf16.xpose.msra.mxu0 0
        %991 = vmatprep.subr.bf16.mxu0 0
        %992 = vmatpush1.bf16.xpose.msra.mxu0 0
        %993 = vmatprep.subr.bf16.mxu0 0
        %994 = vmatpush1.bf16.xpose.msra.mxu0 0
        %995 = vmatprep.subr.bf16.mxu0 0
        %996 = vmatpush1.bf16.xpose.msra.mxu0 0
        %997 = vmatprep.subr.bf16.mxu0 0
        %998 = vmatpush1.bf16.xpose.msra.mxu0 0
        %999 = vmatprep.subr.bf16.mxu0 0
        %1000 = vmatpush1.bf16.xpose.msra.mxu0 0
        %1001 = vmatprep.subr.bf16.mxu0 0
        %1002 = vmatpush1.bf16.xpose.msra.mxu0 0
        %1003 = vmatprep.subr.bf16.mxu0 0
        %1004 = vmatpush1.bf16.xpose.msra.mxu0 0
        %1005 = vmatprep.subr.bf16.mxu0 0
        %1006 = vmatpush1.bf16.xpose.msra.mxu0 0
        %1007 = vmatprep.subr.bf16.mxu0 0
        %1008 = vmatpush1.bf16.xpose.msra.mxu0 0
        %1009 = vmatprep.subr.bf16.mxu0 0
        %1010 = vmatpush1.bf16.xpose.msra.mxu0 0
        %1011 = vmatprep.subr.bf16.mxu0 0
        %1012 = vmatpush1.bf16.xpose.msra.mxu0 0
        %1013 = vmatprep.subr.bf16.mxu0 0
        %1014 = vmatpush1.bf16.xpose.msra.mxu0 0
        %1015 = vmatprep.subr.bf16.mxu0 0
        %1016 = vmatpush1.bf16.xpose.msra.mxu0 0
        %1017 = vmatprep.subr.bf16.mxu0 0
        %1018 = vmatpush1.bf16.xpose.msra.mxu0 0
        %1019 = vmatprep.mubr.bf16.mxu0 0
        %1020 = vmatmul.mubr.bf16.gmra.mrb[0].mxu0 %v921
        %v1021 = vpop.f32.mrb[0].mxu0
        %v1022 = vadd.f32 0.0, %v1021
        %v1023 = vpop.f32.mrb[0].mxu0
        %v1024 = vpop.f32.mrb[0].mxu0
        %v1025 = vpop.f32.mrb[0].mxu0
        %1026 = vdwg.mxu0
        %v1027 = vsel %vm718, -1e+18, %v1022
        %v1028 = vsel %vm967, %v1027, -inf
        %1029 = vmax.xlane.f32.xlu0 %v1028
        %v1030 = vpop.xlane.xlu0 %1029
        %v1031 = vsub.f32 %v1027, %v1030
        %v1032 = vmul.f32 %v1031, 1.442695
        %v1033 = vpow.pop %v1032
        %v1034 = vsel %vm967, %v1033, 0.0
        %1035 = vadd.xlane.f32.xlu0 %v1034
        %v1036 = vpop.xlane.xlu0 %1035
        %v1037 = vrcp.pop %v1036
        %v1038 = vmul.f32 %v1033, %v1037
        %v1039 = vpack.c.bf16 %v1038, %v1038
        %v1040 = vmul.f32 %v912, %v636
        %v1041 = vpack.c.bf16 %v1040, %v1040
        %v1043 = vsel %vm967, %v1039, 0
        %vm1045 = vcmask 1043456
        %v1047 = vsel %vm1045, %v1041, 0
        %1049 = vmatprep.subr.bf16.mxu0 0
        %1050 = vmatpush1.bf16.msra.mxu0 %v1047
        %1051 = vmatprep.subr.bf16.mxu0 0
        %1052 = vmatpush1.bf16.msra.mxu0 0
        %1053 = vmatprep.subr.bf16.mxu0 0
        %1054 = vmatpush1.bf16.msra.mxu0 0
        %1055 = vmatprep.subr.bf16.mxu0 0
        %1056 = vmatpush1.bf16.msra.mxu0 0
        %1057 = vmatprep.subr.bf16.mxu0 0
        %1058 = vmatpush1.bf16.msra.mxu0 0
        %1059 = vmatprep.subr.bf16.mxu0 0
        %1060 = vmatpush1.bf16.msra.mxu0 0
        %1061 = vmatprep.subr.bf16.mxu0 0
        %1062 = vmatpush1.bf16.msra.mxu0 0
        %1063 = vmatprep.subr.bf16.mxu0 0
        %1064 = vmatpush1.bf16.msra.mxu0 0
        %1065 = vmatprep.subr.bf16.mxu0 0
        %1066 = vmatpush1.bf16.msra.mxu0 0
        %1067 = vmatprep.subr.bf16.mxu0 0
        %1068 = vmatpush1.bf16.msra.mxu0 0
        %1069 = vmatprep.subr.bf16.mxu0 0
        %1070 = vmatpush1.bf16.msra.mxu0 0
        %1071 = vmatprep.subr.bf16.mxu0 0
        %1072 = vmatpush1.bf16.msra.mxu0 0
        %1073 = vmatprep.subr.bf16.mxu0 0
        %1074 = vmatpush1.bf16.msra.mxu0 0
        %1075 = vmatprep.subr.bf16.mxu0 0
        %1076 = vmatpush1.bf16.msra.mxu0 0
        %1077 = vmatprep.subr.bf16.mxu0 0
        %1078 = vmatpush1.bf16.msra.mxu0 0
        %1079 = vmatprep.subr.bf16.mxu0 0
        %1080 = vmatpush1.bf16.msra.mxu0 0
        %1081 = vmatprep.mubr.bf16.mxu0 0
        %1082 = vmatmul.mubr.bf16.gmra.mrb[0].mxu0 %v1043
        %v1083 = vpop.f32.mrb[0].mxu0
        %v1084 = vadd.f32 0.0, %v1083
        %v1085 = vpop.f32.mrb[0].mxu0
        %v1086 = vpop.f32.mrb[0].mxu0
        %v1087 = vpop.f32.mrb[0].mxu0
        %1088 = vdwg.mxu0
        %v1090 = vsel %vm967, %v979, 0
        %v1093 = vsel %vm1045, %v981, 0
        %1095 = vmatprep.subr.bf16.mxu0 0
        %1096 = vmatpush1.bf16.msra.mxu0 %v1093
        %1097 = vmatprep.subr.bf16.mxu0 0
        %1098 = vmatpush1.bf16.msra.mxu0 0
        %1099 = vmatprep.subr.bf16.mxu0 0
        %1100 = vmatpush1.bf16.msra.mxu0 0
        %1101 = vmatprep.subr.bf16.mxu0 0
        %1102 = vmatpush1.bf16.msra.mxu0 0
        %1103 = vmatprep.subr.bf16.mxu0 0
        %1104 = vmatpush1.bf16.msra.mxu0 0
        %1105 = vmatprep.subr.bf16.mxu0 0
        %1106 = vmatpush1.bf16.msra.mxu0 0
        %1107 = vmatprep.subr.bf16.mxu0 0
        %1108 = vmatpush1.bf16.msra.mxu0 0
        %1109 = vmatprep.subr.bf16.mxu0 0
        %1110 = vmatpush1.bf16.msra.mxu0 0
        %1111 = vmatprep.subr.bf16.mxu0 0
        %1112 = vmatpush1.bf16.msra.mxu0 0
        %1113 = vmatprep.subr.bf16.mxu0 0
        %1114 = vmatpush1.bf16.msra.mxu0 0
        %1115 = vmatprep.subr.bf16.mxu0 0
        %1116 = vmatpush1.bf16.msra.mxu0 0
        %1117 = vmatprep.subr.bf16.mxu0 0
        %1118 = vmatpush1.bf16.msra.mxu0 0
        %1119 = vmatprep.subr.bf16.mxu0 0
        %1120 = vmatpush1.bf16.msra.mxu0 0
        %1121 = vmatprep.subr.bf16.mxu0 0
        %1122 = vmatpush1.bf16.msra.mxu0 0
        %1123 = vmatprep.subr.bf16.mxu0 0
        %1124 = vmatpush1.bf16.msra.mxu0 0
        %1125 = vmatprep.subr.bf16.mxu0 0
        %1126 = vmatpush1.bf16.msra.mxu0 0
        %1127 = vmatprep.mubr.bf16.mxu0 0
        %1128 = vmatmul.mubr.bf16.gmra.mrb[0].mxu0 %v1090
        %v1129 = vpop.f32.mrb[0].mxu0
        %v1130 = vadd.f32 %v1084, %v1129
        %v1131 = vpop.f32.mrb[0].mxu0
        %v1132 = vpop.f32.mrb[0].mxu0
        %v1133 = vpop.f32.mrb[0].mxu0
        %1134 = vdwg.mxu0
        %v1135 = vmul.f32 %v847, %v641
        %v1136 = vpack.c.bf16 %v1135, %v1135
        %v1138 = vsel %vm669, %v1136, 0
        %1140 = vmatprep.subr.bf16.mxu0 0
        %1141 = vmatpush1.bf16.xpose.msra.mxu0 %v1138
        %1142 = vmatprep.subr.bf16.mxu0 0
        %1143 = vmatpush1.bf16.xpose.msra.mxu0 0
        %1144 = vmatprep.subr.bf16.mxu0 0
        %1145 = vmatpush1.bf16.xpose.msra.mxu0 0
        %1146 = vmatprep.subr.bf16.mxu0 0
        %1147 = vmatpush1.bf16.xpose.msra.mxu0 0
        %1148 = vmatprep.subr.bf16.mxu0 0
        %1149 = vmatpush1.bf16.xpose.msra.mxu0 0
        %1150 = vmatprep.subr.bf16.mxu0 0
        %1151 = vmatpush1.bf16.xpose.msra.mxu0 0
        %1152 = vmatprep.subr.bf16.mxu0 0
        %1153 = vmatpush1.bf16.xpose.msra.mxu0 0
        %1154 = vmatprep.subr.bf16.mxu0 0
        %1155 = vmatpush1.bf16.xpose.msra.mxu0 0
        %1156 = vmatprep.subr.bf16.mxu0 0
        %1157 = vmatpush1.bf16.xpose.msra.mxu0 0
        %1158 = vmatprep.subr.bf16.mxu0 0
        %1159 = vmatpush1.bf16.xpose.msra.mxu0 0
        %1160 = vmatprep.subr.bf16.mxu0 0
        %1161 = vmatpush1.bf16.xpose.msra.mxu0 0
        %1162 = vmatprep.subr.bf16.mxu0 0
        %1163 = vmatpush1.bf16.xpose.msra.mxu0 0
        %1164 = vmatprep.subr.bf16.mxu0 0
        %1165 = vmatpush1.bf16.xpose.msra.mxu0 0
        %1166 = vmatprep.subr.bf16.mxu0 0
        %1167 = vmatpush1.bf16.xpose.msra.mxu0 0
        %1168 = vmatprep.subr.bf16.mxu0 0
        %1169 = vmatpush1.bf16.xpose.msra.mxu0 0
        %1170 = vmatprep.subr.bf16.mxu0 0
        %1171 = vmatpush1.bf16.xpose.msra.mxu0 0
        %1172 = vmatprep.mubr.bf16.mxu0 0
        %1173 = vmatmul.mubr.bf16.gmra.mrb[0].mxu0 %v921
        %v1174 = vpop.f32.mrb[0].mxu0
        %v1175 = vadd.f32 0.0, %v1174
        %v1176 = vpop.f32.mrb[0].mxu0
        %v1177 = vpop.f32.mrb[0].mxu0
        %v1178 = vpop.f32.mrb[0].mxu0
        %1179 = vdwg.mxu0
        %v1180 = vsel %vm718, -1e+18, %v1175
        %v1181 = vsel %vm967, %v1180, -inf
        %1182 = vmax.xlane.f32.xlu0 %v1181
        %v1183 = vpop.xlane.xlu0 %1182
        %v1184 = vsub.f32 %v1180, %v1183
        %v1185 = vmul.f32 %v1184, 1.442695
        %v1186 = vpow.pop %v1185
        %v1187 = vsel %vm967, %v1186, 0.0
        %1188 = vadd.xlane.f32.xlu0 %v1187
        %v1189 = vpop.xlane.xlu0 %1188
        %v1190 = vrcp.pop %v1189
        %v1191 = vmul.f32 %v1186, %v1190
        %v1192 = vpack.c.bf16 %v1191, %v1191
        %v1193 = vmul.f32 %v912, %v641
        %v1194 = vpack.c.bf16 %v1193, %v1193
        %v1196 = vsel %vm967, %v1192, 0
        %v1199 = vsel %vm1045, %v1194, 0
        %1201 = vmatprep.subr.bf16.mxu0 0
        %1202 = vmatpush1.bf16.msra.mxu0 %v1199
        %1203 = vmatprep.subr.bf16.mxu0 0
        %1204 = vmatpush1.bf16.msra.mxu0 0
        %1205 = vmatprep.subr.bf16.mxu0 0
        %1206 = vmatpush1.bf16.msra.mxu0 0
        %1207 = vmatprep.subr.bf16.mxu0 0
        %1208 = vmatpush1.bf16.msra.mxu0 0
        %1209 = vmatprep.subr.bf16.mxu0 0
        %1210 = vmatpush1.bf16.msra.mxu0 0
        %1211 = vmatprep.subr.bf16.mxu0 0
        %1212 = vmatpush1.bf16.msra.mxu0 0
        %1213 = vmatprep.subr.bf16.mxu0 0
        %1214 = vmatpush1.bf16.msra.mxu0 0
        %1215 = vmatprep.subr.bf16.mxu0 0
        %1216 = vmatpush1.bf16.msra.mxu0 0
        %1217 = vmatprep.subr.bf16.mxu0 0
        %1218 = vmatpush1.bf16.msra.mxu0 0
        %1219 = vmatprep.subr.bf16.mxu0 0
        %1220 = vmatpush1.bf16.msra.mxu0 0
        %1221 = vmatprep.subr.bf16.mxu0 0
        %1222 = vmatpush1.bf16.msra.mxu0 0
        %1223 = vmatprep.subr.bf16.mxu0 0
        %1224 = vmatpush1.bf16.msra.mxu0 0
        %1225 = vmatprep.subr.bf16.mxu0 0
        %1226 = vmatpush1.bf16.msra.mxu0 0
        %1227 = vmatprep.subr.bf16.mxu0 0
        %1228 = vmatpush1.bf16.msra.mxu0 0
        %1229 = vmatprep.subr.bf16.mxu0 0
        %1230 = vmatpush1.bf16.msra.mxu0 0
        %1231 = vmatprep.subr.bf16.mxu0 0
        %1232 = vmatpush1.bf16.msra.mxu0 0
        %1233 = vmatprep.mubr.bf16.mxu0 0
        %1234 = vmatmul.mubr.bf16.gmra.mrb[0].mxu0 %v1196
        %v1235 = vpop.f32.mrb[0].mxu0
        %v1236 = vadd.f32 0.0, %v1235
        %v1237 = vpop.f32.mrb[0].mxu0
        %v1238 = vpop.f32.mrb[0].mxu0
        %v1239 = vpop.f32.mrb[0].mxu0
        %1240 = vdwg.mxu0
        %v1241 = vadd.f32 %v1130, %v1236
        %v1242 = vmul.f32 %v847, %v646
        %v1243 = vpack.c.bf16 %v1242, %v1242
        %v1245 = vsel %vm669, %v1243, 0
        %1247 = vmatprep.subr.bf16.mxu0 0
        %1248 = vmatpush1.bf16.xpose.msra.mxu0 %v1245
        %1249 = vmatprep.subr.bf16.mxu0 0
        %1250 = vmatpush1.bf16.xpose.msra.mxu0 0
        %1251 = vmatprep.subr.bf16.mxu0 0
        %1252 = vmatpush1.bf16.xpose.msra.mxu0 0
        %1253 = vmatprep.subr.bf16.mxu0 0
        %1254 = vmatpush1.bf16.xpose.msra.mxu0 0
        %1255 = vmatprep.subr.bf16.mxu0 0
        %1256 = vmatpush1.bf16.xpose.msra.mxu0 0
        %1257 = vmatprep.subr.bf16.mxu0 0
        %1258 = vmatpush1.bf16.xpose.msra.mxu0 0
        %1259 = vmatprep.subr.bf16.mxu0 0
        %1260 = vmatpush1.bf16.xpose.msra.mxu0 0
        %1261 = vmatprep.subr.bf16.mxu0 0
        %1262 = vmatpush1.bf16.xpose.msra.mxu0 0
        %1263 = vmatprep.subr.bf16.mxu0 0
        %1264 = vmatpush1.bf16.xpose.msra.mxu0 0
        %1265 = vmatprep.subr.bf16.mxu0 0
        %1266 = vmatpush1.bf16.xpose.msra.mxu0 0
        %1267 = vmatprep.subr.bf16.mxu0 0
        %1268 = vmatpush1.bf16.xpose.msra.mxu0 0
        %1269 = vmatprep.subr.bf16.mxu0 0
        %1270 = vmatpush1.bf16.xpose.msra.mxu0 0
        %1271 = vmatprep.subr.bf16.mxu0 0
        %1272 = vmatpush1.bf16.xpose.msra.mxu0 0
        %1273 = vmatprep.subr.bf16.mxu0 0
        %1274 = vmatpush1.bf16.xpose.msra.mxu0 0
        %1275 = vmatprep.subr.bf16.mxu0 0
        %1276 = vmatpush1.bf16.xpose.msra.mxu0 0
        %1277 = vmatprep.subr.bf16.mxu0 0
        %1278 = vmatpush1.bf16.xpose.msra.mxu0 0
        %1279 = vmatprep.mubr.bf16.mxu0 0
        %1280 = vmatmul.mubr.bf16.gmra.mrb[0].mxu0 %v921
        %v1281 = vpop.f32.mrb[0].mxu0
        %v1282 = vadd.f32 0.0, %v1281
        %v1283 = vpop.f32.mrb[0].mxu0
        %v1284 = vpop.f32.mrb[0].mxu0
        %v1285 = vpop.f32.mrb[0].mxu0
        %1286 = vdwg.mxu0
        %v1287 = vsel %vm718, -1e+18, %v1282
        %v1288 = vsel %vm967, %v1287, -inf
        %1289 = vmax.xlane.f32.xlu0 %v1288
        %v1290 = vpop.xlane.xlu0 %1289
        %v1291 = vsub.f32 %v1287, %v1290
        %v1292 = vmul.f32 %v1291, 1.442695
        %v1293 = vpow.pop %v1292
        %v1294 = vsel %vm967, %v1293, 0.0
        %1295 = vadd.xlane.f32.xlu0 %v1294
        %v1296 = vpop.xlane.xlu0 %1295
        %v1297 = vrcp.pop %v1296
        %v1298 = vmul.f32 %v1293, %v1297
        %v1299 = vpack.c.bf16 %v1298, %v1298
        %v1300 = vmul.f32 %v912, %v646
        %v1301 = vpack.c.bf16 %v1300, %v1300
        %v1303 = vsel %vm967, %v1299, 0
        %v1306 = vsel %vm1045, %v1301, 0
        %1308 = vmatprep.subr.bf16.mxu0 0
        %1309 = vmatpush1.bf16.msra.mxu0 %v1306
        %1310 = vmatprep.subr.bf16.mxu0 0
        %1311 = vmatpush1.bf16.msra.mxu0 0
        %1312 = vmatprep.subr.bf16.mxu0 0
        %1313 = vmatpush1.bf16.msra.mxu0 0
        %1314 = vmatprep.subr.bf16.mxu0 0
        %1315 = vmatpush1.bf16.msra.mxu0 0
        %1316 = vmatprep.subr.bf16.mxu0 0
        %1317 = vmatpush1.bf16.msra.mxu0 0
        %1318 = vmatprep.subr.bf16.mxu0 0
        %1319 = vmatpush1.bf16.msra.mxu0 0
        %1320 = vmatprep.subr.bf16.mxu0 0
        %1321 = vmatpush1.bf16.msra.mxu0 0
        %1322 = vmatprep.subr.bf16.mxu0 0
        %1323 = vmatpush1.bf16.msra.mxu0 0
        %1324 = vmatprep.subr.bf16.mxu0 0
        %1325 = vmatpush1.bf16.msra.mxu0 0
        %1326 = vmatprep.subr.bf16.mxu0 0
        %1327 = vmatpush1.bf16.msra.mxu0 0
        %1328 = vmatprep.subr.bf16.mxu0 0
        %1329 = vmatpush1.bf16.msra.mxu0 0
        %1330 = vmatprep.subr.bf16.mxu0 0
        %1331 = vmatpush1.bf16.msra.mxu0 0
        %1332 = vmatprep.subr.bf16.mxu0 0
        %1333 = vmatpush1.bf16.msra.mxu0 0
        %1334 = vmatprep.subr.bf16.mxu0 0
        %1335 = vmatpush1.bf16.msra.mxu0 0
        %1336 = vmatprep.subr.bf16.mxu0 0
        %1337 = vmatpush1.bf16.msra.mxu0 0
        %1338 = vmatprep.subr.bf16.mxu0 0
        %1339 = vmatpush1.bf16.msra.mxu0 0
        %1340 = vmatprep.mubr.bf16.mxu0 0
        %1341 = vmatmul.mubr.bf16.gmra.mrb[0].mxu0 %v1303
        %v1342 = vpop.f32.mrb[0].mxu0
        %v1343 = vadd.f32 0.0, %v1342
        %v1344 = vpop.f32.mrb[0].mxu0
        %v1345 = vpop.f32.mrb[0].mxu0
        %v1346 = vpop.f32.mrb[0].mxu0
        %1347 = vdwg.mxu0
        %v1348 = vadd.f32 %v1241, %v1343
        %v1349 = vmul.f32 %v847, %v651
        %v1350 = vpack.c.bf16 %v1349, %v1349
        %v1352 = vsel %vm669, %v1350, 0
        %1354 = vmatprep.subr.bf16.mxu0 0
        %1355 = vmatpush1.bf16.xpose.msra.mxu0 %v1352
        %1356 = vmatprep.subr.bf16.mxu0 0
        %1357 = vmatpush1.bf16.xpose.msra.mxu0 0
        %1358 = vmatprep.subr.bf16.mxu0 0
        %1359 = vmatpush1.bf16.xpose.msra.mxu0 0
        %1360 = vmatprep.subr.bf16.mxu0 0
        %1361 = vmatpush1.bf16.xpose.msra.mxu0 0
        %1362 = vmatprep.subr.bf16.mxu0 0
        %1363 = vmatpush1.bf16.xpose.msra.mxu0 0
        %1364 = vmatprep.subr.bf16.mxu0 0
        %1365 = vmatpush1.bf16.xpose.msra.mxu0 0
        %1366 = vmatprep.subr.bf16.mxu0 0
        %1367 = vmatpush1.bf16.xpose.msra.mxu0 0
        %1368 = vmatprep.subr.bf16.mxu0 0
        %1369 = vmatpush1.bf16.xpose.msra.mxu0 0
        %1370 = vmatprep.subr.bf16.mxu0 0
        %1371 = vmatpush1.bf16.xpose.msra.mxu0 0
        %1372 = vmatprep.subr.bf16.mxu0 0
        %1373 = vmatpush1.bf16.xpose.msra.mxu0 0
        %1374 = vmatprep.subr.bf16.mxu0 0
        %1375 = vmatpush1.bf16.xpose.msra.mxu0 0
        %1376 = vmatprep.subr.bf16.mxu0 0
        %1377 = vmatpush1.bf16.xpose.msra.mxu0 0
        %1378 = vmatprep.subr.bf16.mxu0 0
        %1379 = vmatpush1.bf16.xpose.msra.mxu0 0
        %1380 = vmatprep.subr.bf16.mxu0 0
        %1381 = vmatpush1.bf16.xpose.msra.mxu0 0
        %1382 = vmatprep.subr.bf16.mxu0 0
        %1383 = vmatpush1.bf16.xpose.msra.mxu0 0
        %1384 = vmatprep.subr.bf16.mxu0 0
        %1385 = vmatpush1.bf16.xpose.msra.mxu0 0
        %1386 = vmatprep.mubr.bf16.mxu0 0
        %1387 = vmatmul.mubr.bf16.gmra.mrb[0].mxu0 %v921
        %v1388 = vpop.f32.mrb[0].mxu0
        %v1389 = vadd.f32 0.0, %v1388
        %v1390 = vpop.f32.mrb[0].mxu0
        %v1391 = vpop.f32.mrb[0].mxu0
        %v1392 = vpop.f32.mrb[0].mxu0
        %1393 = vdwg.mxu0
        %v1394 = vsel %vm718, -1e+18, %v1389
        %v1395 = vsel %vm967, %v1394, -inf
        %1396 = vmax.xlane.f32.xlu0 %v1395
        %v1397 = vpop.xlane.xlu0 %1396
        %v1398 = vsub.f32 %v1394, %v1397
        %v1399 = vmul.f32 %v1398, 1.442695
        %v1400 = vpow.pop %v1399
        %v1401 = vsel %vm967, %v1400, 0.0
        %1402 = vadd.xlane.f32.xlu0 %v1401
        %v1403 = vpop.xlane.xlu0 %1402
        %v1404 = vrcp.pop %v1403
        %v1405 = vmul.f32 %v1400, %v1404
        %v1406 = vpack.c.bf16 %v1405, %v1405
        %v1407 = vmul.f32 %v912, %v651
        %v1408 = vpack.c.bf16 %v1407, %v1407
        %v1410 = vsel %vm967, %v1406, 0
        %v1413 = vsel %vm1045, %v1408, 0
        %1415 = vmatprep.subr.bf16.mxu0 0
        %1416 = vmatpush1.bf16.msra.mxu0 %v1413
        %1417 = vmatprep.subr.bf16.mxu0 0
        %1418 = vmatpush1.bf16.msra.mxu0 0
        %1419 = vmatprep.subr.bf16.mxu0 0
        %1420 = vmatpush1.bf16.msra.mxu0 0
        %1421 = vmatprep.subr.bf16.mxu0 0
        %1422 = vmatpush1.bf16.msra.mxu0 0
        %1423 = vmatprep.subr.bf16.mxu0 0
        %1424 = vmatpush1.bf16.msra.mxu0 0
        %1425 = vmatprep.subr.bf16.mxu0 0
        %1426 = vmatpush1.bf16.msra.mxu0 0
        %1427 = vmatprep.subr.bf16.mxu0 0
        %1428 = vmatpush1.bf16.msra.mxu0 0
        %1429 = vmatprep.subr.bf16.mxu0 0
        %1430 = vmatpush1.bf16.msra.mxu0 0
        %1431 = vmatprep.subr.bf16.mxu0 0
        %1432 = vmatpush1.bf16.msra.mxu0 0
        %1433 = vmatprep.subr.bf16.mxu0 0
        %1434 = vmatpush1.bf16.msra.mxu0 0
        %1435 = vmatprep.subr.bf16.mxu0 0
        %1436 = vmatpush1.bf16.msra.mxu0 0
        %1437 = vmatprep.subr.bf16.mxu0 0
        %1438 = vmatpush1.bf16.msra.mxu0 0
        %1439 = vmatprep.subr.bf16.mxu0 0
        %1440 = vmatpush1.bf16.msra.mxu0 0
        %1441 = vmatprep.subr.bf16.mxu0 0
        %1442 = vmatpush1.bf16.msra.mxu0 0
        %1443 = vmatprep.subr.bf16.mxu0 0
        %1444 = vmatpush1.bf16.msra.mxu0 0
        %1445 = vmatprep.subr.bf16.mxu0 0
        %1446 = vmatpush1.bf16.msra.mxu0 0
        %1447 = vmatprep.mubr.bf16.mxu0 0
        %1448 = vmatmul.mubr.bf16.gmra.mrb[0].mxu0 %v1410
        %v1449 = vpop.f32.mrb[0].mxu0
        %v1450 = vadd.f32 0.0, %v1449
        %v1451 = vpop.f32.mrb[0].mxu0
        %v1452 = vpop.f32.mrb[0].mxu0
        %v1453 = vpop.f32.mrb[0].mxu0
        %1454 = vdwg.mxu0
        %v1455 = vadd.f32 %v1348, %v1450
        %v1456 = vmul.f32 %v847, %v656
        %v1457 = vpack.c.bf16 %v1456, %v1456
        %v1459 = vsel %vm669, %v1457, 0
        %1461 = vmatprep.subr.bf16.mxu0 0
        %1462 = vmatpush1.bf16.xpose.msra.mxu0 %v1459
        %1463 = vmatprep.subr.bf16.mxu0 0
        %1464 = vmatpush1.bf16.xpose.msra.mxu0 0
        %1465 = vmatprep.subr.bf16.mxu0 0
        %1466 = vmatpush1.bf16.xpose.msra.mxu0 0
        %1467 = vmatprep.subr.bf16.mxu0 0
        %1468 = vmatpush1.bf16.xpose.msra.mxu0 0
        %1469 = vmatprep.subr.bf16.mxu0 0
        %1470 = vmatpush1.bf16.xpose.msra.mxu0 0
        %1471 = vmatprep.subr.bf16.mxu0 0
        %1472 = vmatpush1.bf16.xpose.msra.mxu0 0
        %1473 = vmatprep.subr.bf16.mxu0 0
        %1474 = vmatpush1.bf16.xpose.msra.mxu0 0
        %1475 = vmatprep.subr.bf16.mxu0 0
        %1476 = vmatpush1.bf16.xpose.msra.mxu0 0
        %1477 = vmatprep.subr.bf16.mxu0 0
        %1478 = vmatpush1.bf16.xpose.msra.mxu0 0
        %1479 = vmatprep.subr.bf16.mxu0 0
        %1480 = vmatpush1.bf16.xpose.msra.mxu0 0
        %1481 = vmatprep.subr.bf16.mxu0 0
        %1482 = vmatpush1.bf16.xpose.msra.mxu0 0
        %1483 = vmatprep.subr.bf16.mxu0 0
        %1484 = vmatpush1.bf16.xpose.msra.mxu0 0
        %1485 = vmatprep.subr.bf16.mxu0 0
        %1486 = vmatpush1.bf16.xpose.msra.mxu0 0
        %1487 = vmatprep.subr.bf16.mxu0 0
        %1488 = vmatpush1.bf16.xpose.msra.mxu0 0
        %1489 = vmatprep.subr.bf16.mxu0 0
        %1490 = vmatpush1.bf16.xpose.msra.mxu0 0
        %1491 = vmatprep.subr.bf16.mxu0 0
        %1492 = vmatpush1.bf16.xpose.msra.mxu0 0
        %1493 = vmatprep.mubr.bf16.mxu0 0
        %1494 = vmatmul.mubr.bf16.gmra.mrb[0].mxu0 %v921
        %v1495 = vpop.f32.mrb[0].mxu0
        %v1496 = vadd.f32 0.0, %v1495
        %v1497 = vpop.f32.mrb[0].mxu0
        %v1498 = vpop.f32.mrb[0].mxu0
        %v1499 = vpop.f32.mrb[0].mxu0
        %1500 = vdwg.mxu0
        %v1501 = vsel %vm718, -1e+18, %v1496
        %v1502 = vsel %vm967, %v1501, -inf
        %1503 = vmax.xlane.f32.xlu0 %v1502
        %v1504 = vpop.xlane.xlu0 %1503
        %v1505 = vsub.f32 %v1501, %v1504
        %v1506 = vmul.f32 %v1505, 1.442695
        %v1507 = vpow.pop %v1506
        %v1508 = vsel %vm967, %v1507, 0.0
        %1509 = vadd.xlane.f32.xlu0 %v1508
        %v1510 = vpop.xlane.xlu0 %1509
        %v1511 = vrcp.pop %v1510
        %v1512 = vmul.f32 %v1507, %v1511
        %v1513 = vpack.c.bf16 %v1512, %v1512
        %v1514 = vmul.f32 %v912, %v656
        %v1515 = vpack.c.bf16 %v1514, %v1514
        %v1517 = vsel %vm967, %v1513, 0
        %v1520 = vsel %vm1045, %v1515, 0
        %1522 = vmatprep.subr.bf16.mxu0 0
        %1523 = vmatpush1.bf16.msra.mxu0 %v1520
        %1524 = vmatprep.subr.bf16.mxu0 0
        %1525 = vmatpush1.bf16.msra.mxu0 0
        %1526 = vmatprep.subr.bf16.mxu0 0
        %1527 = vmatpush1.bf16.msra.mxu0 0
        %1528 = vmatprep.subr.bf16.mxu0 0
        %1529 = vmatpush1.bf16.msra.mxu0 0
        %1530 = vmatprep.subr.bf16.mxu0 0
        %1531 = vmatpush1.bf16.msra.mxu0 0
        %1532 = vmatprep.subr.bf16.mxu0 0
        %1533 = vmatpush1.bf16.msra.mxu0 0
        %1534 = vmatprep.subr.bf16.mxu0 0
        %1535 = vmatpush1.bf16.msra.mxu0 0
        %1536 = vmatprep.subr.bf16.mxu0 0
        %1537 = vmatpush1.bf16.msra.mxu0 0
        %1538 = vmatprep.subr.bf16.mxu0 0
        %1539 = vmatpush1.bf16.msra.mxu0 0
        %1540 = vmatprep.subr.bf16.mxu0 0
        %1541 = vmatpush1.bf16.msra.mxu0 0
        %1542 = vmatprep.subr.bf16.mxu0 0
        %1543 = vmatpush1.bf16.msra.mxu0 0
        %1544 = vmatprep.subr.bf16.mxu0 0
        %1545 = vmatpush1.bf16.msra.mxu0 0
        %1546 = vmatprep.subr.bf16.mxu0 0
        %1547 = vmatpush1.bf16.msra.mxu0 0
        %1548 = vmatprep.subr.bf16.mxu0 0
        %1549 = vmatpush1.bf16.msra.mxu0 0
        %1550 = vmatprep.subr.bf16.mxu0 0
        %1551 = vmatpush1.bf16.msra.mxu0 0
        %1552 = vmatprep.subr.bf16.mxu0 0
        %1553 = vmatpush1.bf16.msra.mxu0 0
        %1554 = vmatprep.mubr.bf16.mxu0 0
        %1555 = vmatmul.mubr.bf16.gmra.mrb[0].mxu0 %v1517
        %v1556 = vpop.f32.mrb[0].mxu0
        %v1557 = vadd.f32 0.0, %v1556
        %v1558 = vpop.f32.mrb[0].mxu0
        %v1559 = vpop.f32.mrb[0].mxu0
        %v1560 = vpop.f32.mrb[0].mxu0
        %1561 = vdwg.mxu0
        %v1562 = vadd.f32 %v1455, %v1557
        %v1563 = vmul.f32 %v847, %v661
        %v1564 = vpack.c.bf16 %v1563, %v1563
        %v1566 = vsel %vm669, %v1564, 0
        %1568 = vmatprep.subr.bf16.mxu0 0
        %1569 = vmatpush1.bf16.xpose.msra.mxu0 %v1566
        %1570 = vmatprep.subr.bf16.mxu0 0
        %1571 = vmatpush1.bf16.xpose.msra.mxu0 0
        %1572 = vmatprep.subr.bf16.mxu0 0
        %1573 = vmatpush1.bf16.xpose.msra.mxu0 0
        %1574 = vmatprep.subr.bf16.mxu0 0
        %1575 = vmatpush1.bf16.xpose.msra.mxu0 0
        %1576 = vmatprep.subr.bf16.mxu0 0
        %1577 = vmatpush1.bf16.xpose.msra.mxu0 0
        %1578 = vmatprep.subr.bf16.mxu0 0
        %1579 = vmatpush1.bf16.xpose.msra.mxu0 0
        %1580 = vmatprep.subr.bf16.mxu0 0
        %1581 = vmatpush1.bf16.xpose.msra.mxu0 0
        %1582 = vmatprep.subr.bf16.mxu0 0
        %1583 = vmatpush1.bf16.xpose.msra.mxu0 0
        %1584 = vmatprep.subr.bf16.mxu0 0
        %1585 = vmatpush1.bf16.xpose.msra.mxu0 0
        %1586 = vmatprep.subr.bf16.mxu0 0
        %1587 = vmatpush1.bf16.xpose.msra.mxu0 0
        %1588 = vmatprep.subr.bf16.mxu0 0
        %1589 = vmatpush1.bf16.xpose.msra.mxu0 0
        %1590 = vmatprep.subr.bf16.mxu0 0
        %1591 = vmatpush1.bf16.xpose.msra.mxu0 0
        %1592 = vmatprep.subr.bf16.mxu0 0
        %1593 = vmatpush1.bf16.xpose.msra.mxu0 0
        %1594 = vmatprep.subr.bf16.mxu0 0
        %1595 = vmatpush1.bf16.xpose.msra.mxu0 0
        %1596 = vmatprep.subr.bf16.mxu0 0
        %1597 = vmatpush1.bf16.xpose.msra.mxu0 0
        %1598 = vmatprep.subr.bf16.mxu0 0
        %1599 = vmatpush1.bf16.xpose.msra.mxu0 0
        %1600 = vmatprep.mubr.bf16.mxu0 0
        %1601 = vmatmul.mubr.bf16.gmra.mrb[0].mxu0 %v921
        %v1602 = vpop.f32.mrb[0].mxu0
        %v1603 = vadd.f32 0.0, %v1602
        %v1604 = vpop.f32.mrb[0].mxu0
        %v1605 = vpop.f32.mrb[0].mxu0
        %v1606 = vpop.f32.mrb[0].mxu0
        %1607 = vdwg.mxu0
        %v1608 = vsel %vm718, -1e+18, %v1603
        %v1609 = vsel %vm967, %v1608, -inf
        %1610 = vmax.xlane.f32.xlu0 %v1609
        %v1611 = vpop.xlane.xlu0 %1610
        %v1612 = vsub.f32 %v1608, %v1611
        %v1613 = vmul.f32 %v1612, 1.442695
        %v1614 = vpow.pop %v1613
        %v1615 = vsel %vm967, %v1614, 0.0
        %1616 = vadd.xlane.f32.xlu0 %v1615
        %v1617 = vpop.xlane.xlu0 %1616
        %v1618 = vrcp.pop %v1617
        %v1619 = vmul.f32 %v1614, %v1618
        %v1620 = vpack.c.bf16 %v1619, %v1619
        %v1621 = vmul.f32 %v912, %v661
        %v1622 = vpack.c.bf16 %v1621, %v1621
        %v1624 = vsel %vm967, %v1620, 0
        %v1627 = vsel %vm1045, %v1622, 0
        %1629 = vmatprep.subr.bf16.mxu0 0
        %1630 = vmatpush1.bf16.msra.mxu0 %v1627
        %1631 = vmatprep.subr.bf16.mxu0 0
        %1632 = vmatpush1.bf16.msra.mxu0 0
        %1633 = vmatprep.subr.bf16.mxu0 0
        %1634 = vmatpush1.bf16.msra.mxu0 0
        %1635 = vmatprep.subr.bf16.mxu0 0
        %1636 = vmatpush1.bf16.msra.mxu0 0
        %1637 = vmatprep.subr.bf16.mxu0 0
        %1638 = vmatpush1.bf16.msra.mxu0 0
        %1639 = vmatprep.subr.bf16.mxu0 0
        %1640 = vmatpush1.bf16.msra.mxu0 0
        %1641 = vmatprep.subr.bf16.mxu0 0
        %1642 = vmatpush1.bf16.msra.mxu0 0
        %1643 = vmatprep.subr.bf16.mxu0 0
        %1644 = vmatpush1.bf16.msra.mxu0 0
        %1645 = vmatprep.subr.bf16.mxu0 0
        %1646 = vmatpush1.bf16.msra.mxu0 0
        %1647 = vmatprep.subr.bf16.mxu0 0
        %1648 = vmatpush1.bf16.msra.mxu0 0
        %1649 = vmatprep.subr.bf16.mxu0 0
        %1650 = vmatpush1.bf16.msra.mxu0 0
        %1651 = vmatprep.subr.bf16.mxu0 0
        %1652 = vmatpush1.bf16.msra.mxu0 0
        %1653 = vmatprep.subr.bf16.mxu0 0
        %1654 = vmatpush1.bf16.msra.mxu0 0
        %1655 = vmatprep.subr.bf16.mxu0 0
        %1656 = vmatpush1.bf16.msra.mxu0 0
        %1657 = vmatprep.subr.bf16.mxu0 0
        %1658 = vmatpush1.bf16.msra.mxu0 0
        %1659 = vmatprep.subr.bf16.mxu0 0
        %1660 = vmatpush1.bf16.msra.mxu0 0
        %1661 = vmatprep.mubr.bf16.mxu0 0
        %1662 = vmatmul.mubr.bf16.gmra.mrb[0].mxu0 %v1624
        %v1663 = vpop.f32.mrb[0].mxu0
        %v1664 = vadd.f32 0.0, %v1663
        %v1665 = vpop.f32.mrb[0].mxu0
        %v1666 = vpop.f32.mrb[0].mxu0
        %v1667 = vpop.f32.mrb[0].mxu0
        %1668 = vdwg.mxu0
        %v1669 = vadd.f32 %v1562, %v1664
        %v1670 = vmul.f32 %v847, %v666
        %v1671 = vpack.c.bf16 %v1670, %v1670
        %v1673 = vsel %vm669, %v1671, 0
        %1675 = vmatprep.subr.bf16.mxu0 0
        %1676 = vmatpush1.bf16.xpose.msra.mxu0 %v1673
        %1677 = vmatprep.subr.bf16.mxu0 0
        %1678 = vmatpush1.bf16.xpose.msra.mxu0 0
        %1679 = vmatprep.subr.bf16.mxu0 0
        %1680 = vmatpush1.bf16.xpose.msra.mxu0 0
        %1681 = vmatprep.subr.bf16.mxu0 0
        %1682 = vmatpush1.bf16.xpose.msra.mxu0 0
        %1683 = vmatprep.subr.bf16.mxu0 0
        %1684 = vmatpush1.bf16.xpose.msra.mxu0 0
        %1685 = vmatprep.subr.bf16.mxu0 0
        %1686 = vmatpush1.bf16.xpose.msra.mxu0 0
        %1687 = vmatprep.subr.bf16.mxu0 0
        %1688 = vmatpush1.bf16.xpose.msra.mxu0 0
        %1689 = vmatprep.subr.bf16.mxu0 0
        %1690 = vmatpush1.bf16.xpose.msra.mxu0 0
        %1691 = vmatprep.subr.bf16.mxu0 0
        %1692 = vmatpush1.bf16.xpose.msra.mxu0 0
        %1693 = vmatprep.subr.bf16.mxu0 0
        %1694 = vmatpush1.bf16.xpose.msra.mxu0 0
        %1695 = vmatprep.subr.bf16.mxu0 0
        %1696 = vmatpush1.bf16.xpose.msra.mxu0 0
        %1697 = vmatprep.subr.bf16.mxu0 0
        %1698 = vmatpush1.bf16.xpose.msra.mxu0 0
        %1699 = vmatprep.subr.bf16.mxu0 0
        %1700 = vmatpush1.bf16.xpose.msra.mxu0 0
        %1701 = vmatprep.subr.bf16.mxu0 0
        %1702 = vmatpush1.bf16.xpose.msra.mxu0 0
        %1703 = vmatprep.subr.bf16.mxu0 0
        %1704 = vmatpush1.bf16.xpose.msra.mxu0 0
        %1705 = vmatprep.subr.bf16.mxu0 0
        %1706 = vmatpush1.bf16.xpose.msra.mxu0 0
        %1707 = vmatprep.mubr.bf16.mxu0 0
        %1708 = vmatmul.mubr.bf16.gmra.mrb[0].mxu0 %v921
        %v1709 = vpop.f32.mrb[0].mxu0
        %v1710 = vadd.f32 0.0, %v1709
        %v1711 = vpop.f32.mrb[0].mxu0
        %v1712 = vpop.f32.mrb[0].mxu0
        %v1713 = vpop.f32.mrb[0].mxu0
        %1714 = vdwg.mxu0
        %v1715 = vsel %vm718, -1e+18, %v1710
        %v1716 = vsel %vm967, %v1715, -inf
        %1717 = vmax.xlane.f32.xlu0 %v1716
        %v1718 = vpop.xlane.xlu0 %1717
        %v1719 = vsub.f32 %v1715, %v1718
        %v1720 = vmul.f32 %v1719, 1.442695
        %v1721 = vpow.pop %v1720
        %v1722 = vsel %vm967, %v1721, 0.0
        %1723 = vadd.xlane.f32.xlu0 %v1722
        %v1724 = vpop.xlane.xlu0 %1723
        %v1725 = vrcp.pop %v1724
        %v1726 = vmul.f32 %v1721, %v1725
        %v1727 = vpack.c.bf16 %v1726, %v1726
        %v1728 = vmul.f32 %v912, %v666
        %v1729 = vpack.c.bf16 %v1728, %v1728
        %v1731 = vsel %vm967, %v1727, 0
        %v1734 = vsel %vm1045, %v1729, 0
        %1736 = vmatprep.subr.bf16.mxu0 0
        %1737 = vmatpush1.bf16.msra.mxu0 %v1734
        %1738 = vmatprep.subr.bf16.mxu0 0
        %1739 = vmatpush1.bf16.msra.mxu0 0
        %1740 = vmatprep.subr.bf16.mxu0 0
        %1741 = vmatpush1.bf16.msra.mxu0 0
        %1742 = vmatprep.subr.bf16.mxu0 0
        %1743 = vmatpush1.bf16.msra.mxu0 0
        %1744 = vmatprep.subr.bf16.mxu0 0
        %1745 = vmatpush1.bf16.msra.mxu0 0
        %1746 = vmatprep.subr.bf16.mxu0 0
        %1747 = vmatpush1.bf16.msra.mxu0 0
        %1748 = vmatprep.subr.bf16.mxu0 0
        %1749 = vmatpush1.bf16.msra.mxu0 0
        %1750 = vmatprep.subr.bf16.mxu0 0
        %1751 = vmatpush1.bf16.msra.mxu0 0
        %1752 = vmatprep.subr.bf16.mxu0 0
        %1753 = vmatpush1.bf16.msra.mxu0 0
        %1754 = vmatprep.subr.bf16.mxu0 0
        %1755 = vmatpush1.bf16.msra.mxu0 0
        %1756 = vmatprep.subr.bf16.mxu0 0
        %1757 = vmatpush1.bf16.msra.mxu0 0
        %1758 = vmatprep.subr.bf16.mxu0 0
        %1759 = vmatpush1.bf16.msra.mxu0 0
        %1760 = vmatprep.subr.bf16.mxu0 0
        %1761 = vmatpush1.bf16.msra.mxu0 0
        %1762 = vmatprep.subr.bf16.mxu0 0
        %1763 = vmatpush1.bf16.msra.mxu0 0
        %1764 = vmatprep.subr.bf16.mxu0 0
        %1765 = vmatpush1.bf16.msra.mxu0 0
        %1766 = vmatprep.subr.bf16.mxu0 0
        %1767 = vmatpush1.bf16.msra.mxu0 0
        %1768 = vmatprep.mubr.bf16.mxu0 0
        %1769 = vmatmul.mubr.bf16.gmra.mrb[0].mxu0 %v1731
        %v1770 = vpop.f32.mrb[0].mxu0
        %v1771 = vadd.f32 0.0, %v1770
        %v1772 = vpop.f32.mrb[0].mxu0
        %v1773 = vpop.f32.mrb[0].mxu0
        %v1774 = vpop.f32.mrb[0].mxu0
        %1775 = vdwg.mxu0
        %v1776 = vadd.f32 %v1669, %v1771
        %s1777 = scalar_lea.vmem %s4, 48
        %v1778 = vld [vmem:[%s1777] sm:$0xf]
        %v1779 = vld [vmem:[%s1777 + $0x4] sm:$0xf]
        %v1780 = vld [vmem:[%s1777 + $0x8] sm:$0xf]
        %v1781 = vld [vmem:[%s1777 + $0xc] sm:$0xf]
        %v1782 = vpack.c.bf16 %v1776, %v1776
        %s1783 = scalar_lea.vmem %s5, 3
        %v1784 = vld [vmem:[%s1783] sm:$0x1]
        %v1786 = vlaneseq
        %v1787 = vshrl.u32 %v1786, 7
        %v1788 = vsub.s32 0, %v1787
        %v1789 = vrot.slane %v1784, %v1788
        %v1795 = vunpack.c.l.b16 %v1778
        %v1796 = vunpack.c.l.b16 %v1779
        %v1797 = vunpack.c.l.b16 %v1780
        %v1798 = vunpack.c.l.b16 %v1781
        %v1799 = vpack.c.b16 %v1796, %v1795
        %v1800 = vpack.c.b16 %v1798, %v1797
        %v1804 = vsel %vm669, %v1782, 0
        %1806 = vmatprep.subr.bf16.mxu0 0
        %1807 = vmatpush1.bf16.msra.mxu0 %v1799
        %1808 = vmatprep.subr.bf16.mxu0 0
        %1809 = vmatpush1.bf16.msra.mxu0 %v1800
        %1810 = vmatprep.subr.bf16.mxu0 0
        %1811 = vmatpush1.bf16.msra.mxu0 0
        %1812 = vmatprep.subr.bf16.mxu0 0
        %1813 = vmatpush1.bf16.msra.mxu0 0
        %1814 = vmatprep.subr.bf16.mxu0 0
        %1815 = vmatpush1.bf16.msra.mxu0 0
        %1816 = vmatprep.subr.bf16.mxu0 0
        %1817 = vmatpush1.bf16.msra.mxu0 0
        %1818 = vmatprep.subr.bf16.mxu0 0
        %1819 = vmatpush1.bf16.msra.mxu0 0
        %1820 = vmatprep.subr.bf16.mxu0 0
        %1821 = vmatpush1.bf16.msra.mxu0 0
        %1822 = vmatprep.subr.bf16.mxu0 0
        %1823 = vmatpush1.bf16.msra.mxu0 0
        %1824 = vmatprep.subr.bf16.mxu0 0
        %1825 = vmatpush1.bf16.msra.mxu0 0
        %1826 = vmatprep.subr.bf16.mxu0 0
        %1827 = vmatpush1.bf16.msra.mxu0 0
        %1828 = vmatprep.subr.bf16.mxu0 0
        %1829 = vmatpush1.bf16.msra.mxu0 0
        %1830 = vmatprep.subr.bf16.mxu0 0
        %1831 = vmatpush1.bf16.msra.mxu0 0
        %1832 = vmatprep.subr.bf16.mxu0 0
        %1833 = vmatpush1.bf16.msra.mxu0 0
        %1834 = vmatprep.subr.bf16.mxu0 0
        %1835 = vmatpush1.bf16.msra.mxu0 0
        %1836 = vmatprep.subr.bf16.mxu0 0
        %1837 = vmatpush1.bf16.msra.mxu0 0
        %1838 = vmatprep.mubr.bf16.mxu0 0
        %1839 = vmatmul.mubr.bf16.gmra.mrb[0].mxu0 %v1804
        %v1840 = vpop.f32.mrb[0].mxu0
        %v1841 = vadd.f32 %v1789, %v1840
        %v1842 = vpop.f32.mrb[0].mxu0
        %v1843 = vpop.f32.mrb[0].mxu0
        %v1844 = vpop.f32.mrb[0].mxu0
        %1845 = vdwg.mxu0
        %v1846 = vadd.f32 %v1841, %v621
        %s1847 = scalar_lea.vmem %s8, 1
        %v1848 = vld [vmem:[%s1847] sm:$0x1]
        %s1849 = scalar_lea.vmem %s9, 1
        %v1850 = vld [vmem:[%s1849] sm:$0x1]
        %v1851 = vsel %vm669, %v1846, 0.0
        %1852 = vadd.xlane.f32.xlu0 %v1851
        %v1853 = vpop.xlane.xlu0 %1852
        %v1854 = vmul.f32 %v1853, %v673
        %v1855 = vsub.f32 %v1846, %v1854
        %v1856 = vmul.f32 %v1855, %v1855
        %v1857 = vsel %vm669, %v1856, 0.0
        %1858 = vadd.xlane.f32.xlu0 %v1857
        %v1859 = vpop.xlane.xlu0 %1858
        %v1860 = vmul.f32 %v1859, 0.032258064
        %v1861 = vrsqrt.pop %v1860
        %v1862 = vmul.f32 %v1860, %v1861
        %vm1863 = vcmp.eq.f32.partialorder %v1860, inf
        %v1864 = vsel %vm1863, %v1860, %v1862
        %vm1865 = vcmp.eq.f32.partialorder %v1860, 0.0
        %v1866 = vand.u32 %v1860, 2147483648
        %v1867 = vsel %vm1865, %v1866, %v1864
        %v1868 = vadd.f32 %v1867, 1e-06
        %v1869 = vrcp.pop %v1868
        %v1870 = vmul.f32 %v1855, %v1869
        %v1872 = vlaneseq
        %v1873 = vshrl.u32 %v1872, 7
        %v1874 = vsub.s32 0, %v1873
        %v1875 = vrot.slane %v1848, %v1874
        %v1877 = vmul.f32 %v1875, %v1870
        %v1879 = vlaneseq
        %v1880 = vshrl.u32 %v1879, 7
        %v1881 = vsub.s32 0, %v1880
        %v1882 = vrot.slane %v1850, %v1881
        %v1884 = vadd.f32 %v1877, %v1882
        %v1886 = vlaneseq
        %v1887 = vshrl.u32 %v1886, 7
        %v1888 = vsub.s32 0, %v1887
        %v1889 = vrot.slane %v624, %v1888
        %vm1891 = vcmp.gt.f32.partialorder %v1889, 0.0
        %v1892 = vld [vmem:[%s6] sm:$0xf]
        %v1893 = vld [vmem:[%s6 + $0x4] sm:$0xf]
        %v1894 = vld [vmem:[%s6 + $0x8] sm:$0xf]
        %v1895 = vld [vmem:[%s6 + $0xc] sm:$0xf]
        %v1896 = vpack.c.bf16 %v1884, %v1884
        %v1897 = vld [vmem:[%s7] sm:$0x1]
        %v1899 = vlaneseq
        %v1900 = vshrl.u32 %v1899, 7
        %v1901 = vsub.s32 0, %v1900
        %v1902 = vrot.slane %v1897, %v1901
        %v1908 = vunpack.c.l.b16 %v1892
        %v1909 = vunpack.c.l.b16 %v1893
        %v1910 = vunpack.c.l.b16 %v1894
        %v1911 = vunpack.c.l.b16 %v1895
        %v1912 = vpack.c.b16 %v1909, %v1908
        %v1913 = vpack.c.b16 %v1911, %v1910
        %v1917 = vsel %vm669, %v1896, 0
        %1919 = vmatprep.subr.bf16.mxu0 0
        %1920 = vmatpush1.bf16.msra.mxu0 %v1912
        %1921 = vmatprep.subr.bf16.mxu0 0
        %1922 = vmatpush1.bf16.msra.mxu0 %v1913
        %1923 = vmatprep.subr.bf16.mxu0 0
        %1924 = vmatpush1.bf16.msra.mxu0 0
        %1925 = vmatprep.subr.bf16.mxu0 0
        %1926 = vmatpush1.bf16.msra.mxu0 0
        %1927 = vmatprep.subr.bf16.mxu0 0
        %1928 = vmatpush1.bf16.msra.mxu0 0
        %1929 = vmatprep.subr.bf16.mxu0 0
        %1930 = vmatpush1.bf16.msra.mxu0 0
        %1931 = vmatprep.subr.bf16.mxu0 0
        %1932 = vmatpush1.bf16.msra.mxu0 0
        %1933 = vmatprep.subr.bf16.mxu0 0
        %1934 = vmatpush1.bf16.msra.mxu0 0
        %1935 = vmatprep.subr.bf16.mxu0 0
        %1936 = vmatpush1.bf16.msra.mxu0 0
        %1937 = vmatprep.subr.bf16.mxu0 0
        %1938 = vmatpush1.bf16.msra.mxu0 0
        %1939 = vmatprep.subr.bf16.mxu0 0
        %1940 = vmatpush1.bf16.msra.mxu0 0
        %1941 = vmatprep.subr.bf16.mxu0 0
        %1942 = vmatpush1.bf16.msra.mxu0 0
        %1943 = vmatprep.subr.bf16.mxu0 0
        %1944 = vmatpush1.bf16.msra.mxu0 0
        %1945 = vmatprep.subr.bf16.mxu0 0
        %1946 = vmatpush1.bf16.msra.mxu0 0
        %1947 = vmatprep.subr.bf16.mxu0 0
        %1948 = vmatpush1.bf16.msra.mxu0 0
        %1949 = vmatprep.subr.bf16.mxu0 0
        %1950 = vmatpush1.bf16.msra.mxu0 0
        %1951 = vmatprep.mubr.bf16.mxu0 0
        %1952 = vmatmul.mubr.bf16.gmra.mrb[0].mxu0 %v1917
        %v1953 = vpop.f32.mrb[0].mxu0
        %v1954 = vadd.f32 %v1902, %v1953
        %v1955 = vpop.f32.mrb[0].mxu0
        %v1956 = vpop.f32.mrb[0].mxu0
        %v1957 = vpop.f32.mrb[0].mxu0
        %1958 = vdwg.mxu0
        %v1959 = vmul.f32 %v1954, 0.5
        %s1960 = scalar_lea.vmem %s6, 16
        %v1961 = vld [vmem:[%s1960] sm:$0xf]
        %v1962 = vld [vmem:[%s1960 + $0x4] sm:$0xf]
        %v1963 = vld [vmem:[%s1960 + $0x8] sm:$0xf]
        %v1964 = vld [vmem:[%s1960 + $0xc] sm:$0xf]
        %v1965 = vpack.c.bf16 %v622, %v622
        %s1966 = scalar_lea.vmem %s7, 1
        %v1967 = vld [vmem:[%s1966] sm:$0x1]
        %v1969 = vlaneseq
        %v1970 = vshrl.u32 %v1969, 7
        %v1971 = vsub.s32 0, %v1970
        %v1972 = vrot.slane %v1967, %v1971
        %v1978 = vunpack.c.l.b16 %v1961
        %v1979 = vunpack.c.l.b16 %v1962
        %v1980 = vunpack.c.l.b16 %v1963
        %v1981 = vunpack.c.l.b16 %v1964
        %v1982 = vpack.c.b16 %v1979, %v1978
        %v1983 = vpack.c.b16 %v1981, %v1980
        %v1987 = vsel %vm669, %v1965, 0
        %1989 = vmatprep.subr.bf16.mxu0 0
        %1990 = vmatpush1.bf16.msra.mxu0 %v1982
        %1991 = vmatprep.subr.bf16.mxu0 0
        %1992 = vmatpush1.bf16.msra.mxu0 %v1983
        %1993 = vmatprep.subr.bf16.mxu0 0
        %1994 = vmatpush1.bf16.msra.mxu0 0
        %1995 = vmatprep.subr.bf16.mxu0 0
        %1996 = vmatpush1.bf16.msra.mxu0 0
        %1997 = vmatprep.subr.bf16.mxu0 0
        %1998 = vmatpush1.bf16.msra.mxu0 0
        %1999 = vmatprep.subr.bf16.mxu0 0
        %2000 = vmatpush1.bf16.msra.mxu0 0
        %2001 = vmatprep.subr.bf16.mxu0 0
        %2002 = vmatpush1.bf16.msra.mxu0 0
        %2003 = vmatprep.subr.bf16.mxu0 0
        %2004 = vmatpush1.bf16.msra.mxu0 0
        %2005 = vmatprep.subr.bf16.mxu0 0
        %2006 = vmatpush1.bf16.msra.mxu0 0
        %2007 = vmatprep.subr.bf16.mxu0 0
        %2008 = vmatpush1.bf16.msra.mxu0 0
        %2009 = vmatprep.subr.bf16.mxu0 0
        %2010 = vmatpush1.bf16.msra.mxu0 0
        %2011 = vmatprep.subr.bf16.mxu0 0
        %2012 = vmatpush1.bf16.msra.mxu0 0
        %2013 = vmatprep.subr.bf16.mxu0 0
        %2014 = vmatpush1.bf16.msra.mxu0 0
        %2015 = vmatprep.subr.bf16.mxu0 0
        %2016 = vmatpush1.bf16.msra.mxu0 0
        %2017 = vmatprep.subr.bf16.mxu0 0
        %2018 = vmatpush1.bf16.msra.mxu0 0
        %2019 = vmatprep.subr.bf16.mxu0 0
        %2020 = vmatpush1.bf16.msra.mxu0 0
        %2021 = vmatprep.mubr.bf16.mxu0 0
        %2022 = vmatmul.mubr.bf16.gmra.mrb[0].mxu0 %v1987
        %v2023 = vpop.f32.mrb[0].mxu0
        %v2024 = vadd.f32 %v1972, %v2023
        %v2025 = vpop.f32.mrb[0].mxu0
        %v2026 = vpop.f32.mrb[0].mxu0
        %v2027 = vpop.f32.mrb[0].mxu0
        %2028 = vdwg.mxu0
        %s2029 = scalar_lea.vmem %s6, 32
        %v2030 = vld [vmem:[%s2029] sm:$0xf]
        %v2031 = vld [vmem:[%s2029 + $0x4] sm:$0xf]
        %v2032 = vld [vmem:[%s2029 + $0x8] sm:$0xf]
        %v2033 = vld [vmem:[%s2029 + $0xc] sm:$0xf]
        %s2034 = scalar_lea.vmem %s7, 2
        %v2035 = vld [vmem:[%s2034] sm:$0x1]
        %v2037 = vlaneseq
        %v2038 = vshrl.u32 %v2037, 7
        %v2039 = vsub.s32 0, %v2038
        %v2040 = vrot.slane %v2035, %v2039
        %v2046 = vunpack.c.l.b16 %v2030
        %v2047 = vunpack.c.l.b16 %v2031
        %v2048 = vunpack.c.l.b16 %v2032
        %v2049 = vunpack.c.l.b16 %v2033
        %v2050 = vpack.c.b16 %v2047, %v2046
        %v2051 = vpack.c.b16 %v2049, %v2048
        %2054 = vmatprep.subr.bf16.mxu0 0
        %2055 = vmatpush1.bf16.msra.mxu0 %v2050
        %2056 = vmatprep.subr.bf16.mxu0 0
        %2057 = vmatpush1.bf16.msra.mxu0 %v2051
        %2058 = vmatprep.subr.bf16.mxu0 0
        %2059 = vmatpush1.bf16.msra.mxu0 0
        %2060 = vmatprep.subr.bf16.mxu0 0
        %2061 = vmatpush1.bf16.msra.mxu0 0
        %2062 = vmatprep.subr.bf16.mxu0 0
        %2063 = vmatpush1.bf16.msra.mxu0 0
        %2064 = vmatprep.subr.bf16.mxu0 0
        %2065 = vmatpush1.bf16.msra.mxu0 0
        %2066 = vmatprep.subr.bf16.mxu0 0
        %2067 = vmatpush1.bf16.msra.mxu0 0
        %2068 = vmatprep.subr.bf16.mxu0 0
        %2069 = vmatpush1.bf16.msra.mxu0 0
        %2070 = vmatprep.subr.bf16.mxu0 0
        %2071 = vmatpush1.bf16.msra.mxu0 0
        %2072 = vmatprep.subr.bf16.mxu0 0
        %2073 = vmatpush1.bf16.msra.mxu0 0
        %2074 = vmatprep.subr.bf16.mxu0 0
        %2075 = vmatpush1.bf16.msra.mxu0 0
        %2076 = vmatprep.subr.bf16.mxu0 0
        %2077 = vmatpush1.bf16.msra.mxu0 0
        %2078 = vmatprep.subr.bf16.mxu0 0
        %2079 = vmatpush1.bf16.msra.mxu0 0
        %2080 = vmatprep.subr.bf16.mxu0 0
        %2081 = vmatpush1.bf16.msra.mxu0 0
        %2082 = vmatprep.subr.bf16.mxu0 0
        %2083 = vmatpush1.bf16.msra.mxu0 0
        %2084 = vmatprep.subr.bf16.mxu0 0
        %2085 = vmatpush1.bf16.msra.mxu0 0
        %2086 = vmatprep.mubr.bf16.mxu0 0
        %2087 = vmatmul.mubr.bf16.gmra.mrb[0].mxu0 %v1987
        %v2088 = vpop.f32.mrb[0].mxu0
        %v2089 = vadd.f32 %v2040, %v2088
        %v2090 = vpop.f32.mrb[0].mxu0
        %v2091 = vpop.f32.mrb[0].mxu0
        %v2092 = vpop.f32.mrb[0].mxu0
        %2093 = vdwg.mxu0
        %v2094 = vpack.c.bf16 %v1959, %v1959
        %v2095 = vmul.f32 %v2024, %v631
        %v2096 = vpack.c.bf16 %v2095, %v2095
        %v2098 = vsel %vm669, %v2094, 0
        %v2101 = vsel %vm669, %v2096, 0
        %2103 = vmatprep.subr.bf16.mxu0 0
        %2104 = vmatpush1.bf16.xpose.msra.mxu0 %v2101
        %2105 = vmatprep.subr.bf16.mxu0 0
        %2106 = vmatpush1.bf16.xpose.msra.mxu0 0
        %2107 = vmatprep.subr.bf16.mxu0 0
        %2108 = vmatpush1.bf16.xpose.msra.mxu0 0
        %2109 = vmatprep.subr.bf16.mxu0 0
        %2110 = vmatpush1.bf16.xpose.msra.mxu0 0
        %2111 = vmatprep.subr.bf16.mxu0 0
        %2112 = vmatpush1.bf16.xpose.msra.mxu0 0
        %2113 = vmatprep.subr.bf16.mxu0 0
        %2114 = vmatpush1.bf16.xpose.msra.mxu0 0
        %2115 = vmatprep.subr.bf16.mxu0 0
        %2116 = vmatpush1.bf16.xpose.msra.mxu0 0
        %2117 = vmatprep.subr.bf16.mxu0 0
        %2118 = vmatpush1.bf16.xpose.msra.mxu0 0
        %2119 = vmatprep.subr.bf16.mxu0 0
        %2120 = vmatpush1.bf16.xpose.msra.mxu0 0
        %2121 = vmatprep.subr.bf16.mxu0 0
        %2122 = vmatpush1.bf16.xpose.msra.mxu0 0
        %2123 = vmatprep.subr.bf16.mxu0 0
        %2124 = vmatpush1.bf16.xpose.msra.mxu0 0
        %2125 = vmatprep.subr.bf16.mxu0 0
        %2126 = vmatpush1.bf16.xpose.msra.mxu0 0
        %2127 = vmatprep.subr.bf16.mxu0 0
        %2128 = vmatpush1.bf16.xpose.msra.mxu0 0
        %2129 = vmatprep.subr.bf16.mxu0 0
        %2130 = vmatpush1.bf16.xpose.msra.mxu0 0
        %2131 = vmatprep.subr.bf16.mxu0 0
        %2132 = vmatpush1.bf16.xpose.msra.mxu0 0
        %2133 = vmatprep.subr.bf16.mxu0 0
        %2134 = vmatpush1.bf16.xpose.msra.mxu0 0
        %2135 = vmatprep.mubr.bf16.mxu0 0
        %2136 = vmatmul.mubr.bf16.gmra.mrb[0].mxu0 %v2098
        %v2137 = vpop.f32.mrb[0].mxu0
        %v2138 = vadd.f32 0.0, %v2137
        %v2139 = vpop.f32.mrb[0].mxu0
        %v2140 = vpop.f32.mrb[0].mxu0
        %v2141 = vpop.f32.mrb[0].mxu0
        %2142 = vdwg.mxu0
        %v2143 = vsel %vm1891, -1e+18, %v2138
        %v2144 = vsel %vm967, %v2143, -inf
        %2145 = vmax.xlane.f32.xlu0 %v2144
        %v2146 = vpop.xlane.xlu0 %2145
        %v2147 = vsub.f32 %v2143, %v2146
        %v2148 = vmul.f32 %v2147, 1.442695
        %v2149 = vpow.pop %v2148
        %v2150 = vsel %vm967, %v2149, 0.0
        %2151 = vadd.xlane.f32.xlu0 %v2150
        %v2152 = vpop.xlane.xlu0 %2151
        %v2153 = vrcp.pop %v2152
        %v2154 = vmul.f32 %v2149, %v2153
        %2155 = vst.msk [vmem:[%s584] sm:$0xff] %vm967, %v2154
        %v2156 = vpack.c.bf16 %v2154, %v2154
        %v2157 = vmul.f32 %v2089, %v631
        %v2158 = vpack.c.bf16 %v2157, %v2157
        %v2159 = vmul.f32 %v2024, %v636
        %v2160 = vpack.c.bf16 %v2159, %v2159
        %v2162 = vsel %vm669, %v2160, 0
        %2164 = vmatprep.subr.bf16.mxu0 0
        %2165 = vmatpush1.bf16.xpose.msra.mxu0 %v2162
        %2166 = vmatprep.subr.bf16.mxu0 0
        %2167 = vmatpush1.bf16.xpose.msra.mxu0 0
        %2168 = vmatprep.subr.bf16.mxu0 0
        %2169 = vmatpush1.bf16.xpose.msra.mxu0 0
        %2170 = vmatprep.subr.bf16.mxu0 0
        %2171 = vmatpush1.bf16.xpose.msra.mxu0 0
        %2172 = vmatprep.subr.bf16.mxu0 0
        %2173 = vmatpush1.bf16.xpose.msra.mxu0 0
        %2174 = vmatprep.subr.bf16.mxu0 0
        %2175 = vmatpush1.bf16.xpose.msra.mxu0 0
        %2176 = vmatprep.subr.bf16.mxu0 0
        %2177 = vmatpush1.bf16.xpose.msra.mxu0 0
        %2178 = vmatprep.subr.bf16.mxu0 0
        %2179 = vmatpush1.bf16.xpose.msra.mxu0 0
        %2180 = vmatprep.subr.bf16.mxu0 0
        %2181 = vmatpush1.bf16.xpose.msra.mxu0 0
        %2182 = vmatprep.subr.bf16.mxu0 0
        %2183 = vmatpush1.bf16.xpose.msra.mxu0 0
        %2184 = vmatprep.subr.bf16.mxu0 0
        %2185 = vmatpush1.bf16.xpose.msra.mxu0 0
        %2186 = vmatprep.subr.bf16.mxu0 0
        %2187 = vmatpush1.bf16.xpose.msra.mxu0 0
        %2188 = vmatprep.subr.bf16.mxu0 0
        %2189 = vmatpush1.bf16.xpose.msra.mxu0 0
        %2190 = vmatprep.subr.bf16.mxu0 0
        %2191 = vmatpush1.bf16.xpose.msra.mxu0 0
        %2192 = vmatprep.subr.bf16.mxu0 0
        %2193 = vmatpush1.bf16.xpose.msra.mxu0 0
        %2194 = vmatprep.subr.bf16.mxu0 0
        %2195 = vmatpush1.bf16.xpose.msra.mxu0 0
        %2196 = vmatprep.mubr.bf16.mxu0 0
        %2197 = vmatmul.mubr.bf16.gmra.mrb[0].mxu0 %v2098
        %v2198 = vpop.f32.mrb[0].mxu0
        %v2199 = vadd.f32 0.0, %v2198
        %v2200 = vpop.f32.mrb[0].mxu0
        %v2201 = vpop.f32.mrb[0].mxu0
        %v2202 = vpop.f32.mrb[0].mxu0
        %2203 = vdwg.mxu0
        %v2204 = vsel %vm1891, -1e+18, %v2199
        %v2205 = vsel %vm967, %v2204, -inf
        %2206 = vmax.xlane.f32.xlu0 %v2205
        %v2207 = vpop.xlane.xlu0 %2206
        %v2208 = vsub.f32 %v2204, %v2207
        %v2209 = vmul.f32 %v2208, 1.442695
        %v2210 = vpow.pop %v2209
        %v2211 = vsel %vm967, %v2210, 0.0
        %2212 = vadd.xlane.f32.xlu0 %v2211
        %v2213 = vpop.xlane.xlu0 %2212
        %v2214 = vrcp.pop %v2213
        %v2215 = vmul.f32 %v2210, %v2214
        %v2216 = vpack.c.bf16 %v2215, %v2215
        %v2217 = vmul.f32 %v2089, %v636
        %v2218 = vpack.c.bf16 %v2217, %v2217
        %v2220 = vsel %vm967, %v2216, 0
        %v2223 = vsel %vm1045, %v2218, 0
        %2225 = vmatprep.subr.bf16.mxu0 0
        %2226 = vmatpush1.bf16.msra.mxu0 %v2223
        %2227 = vmatprep.subr.bf16.mxu0 0
        %2228 = vmatpush1.bf16.msra.mxu0 0
        %2229 = vmatprep.subr.bf16.mxu0 0
        %2230 = vmatpush1.bf16.msra.mxu0 0
        %2231 = vmatprep.subr.bf16.mxu0 0
        %2232 = vmatpush1.bf16.msra.mxu0 0
        %2233 = vmatprep.subr.bf16.mxu0 0
        %2234 = vmatpush1.bf16.msra.mxu0 0
        %2235 = vmatprep.subr.bf16.mxu0 0
        %2236 = vmatpush1.bf16.msra.mxu0 0
        %2237 = vmatprep.subr.bf16.mxu0 0
        %2238 = vmatpush1.bf16.msra.mxu0 0
        %2239 = vmatprep.subr.bf16.mxu0 0
        %2240 = vmatpush1.bf16.msra.mxu0 0
        %2241 = vmatprep.subr.bf16.mxu0 0
        %2242 = vmatpush1.bf16.msra.mxu0 0
        %2243 = vmatprep.subr.bf16.mxu0 0
        %2244 = vmatpush1.bf16.msra.mxu0 0
        %2245 = vmatprep.subr.bf16.mxu0 0
        %2246 = vmatpush1.bf16.msra.mxu0 0
        %2247 = vmatprep.subr.bf16.mxu0 0
        %2248 = vmatpush1.bf16.msra.mxu0 0
        %2249 = vmatprep.subr.bf16.mxu0 0
        %2250 = vmatpush1.bf16.msra.mxu0 0
        %2251 = vmatprep.subr.bf16.mxu0 0
        %2252 = vmatpush1.bf16.msra.mxu0 0
        %2253 = vmatprep.subr.bf16.mxu0 0
        %2254 = vmatpush1.bf16.msra.mxu0 0
        %2255 = vmatprep.subr.bf16.mxu0 0
        %2256 = vmatpush1.bf16.msra.mxu0 0
        %2257 = vmatprep.mubr.bf16.mxu0 0
        %2258 = vmatmul.mubr.bf16.gmra.mrb[0].mxu0 %v2220
        %v2259 = vpop.f32.mrb[0].mxu0
        %v2260 = vadd.f32 0.0, %v2259
        %v2261 = vpop.f32.mrb[0].mxu0
        %v2262 = vpop.f32.mrb[0].mxu0
        %v2263 = vpop.f32.mrb[0].mxu0
        %2264 = vdwg.mxu0
        %v2266 = vsel %vm967, %v2156, 0
        %v2269 = vsel %vm1045, %v2158, 0
        %2271 = vmatprep.subr.bf16.mxu0 0
        %2272 = vmatpush1.bf16.msra.mxu0 %v2269
        %2273 = vmatprep.subr.bf16.mxu0 0
        %2274 = vmatpush1.bf16.msra.mxu0 0
        %2275 = vmatprep.subr.bf16.mxu0 0
        %2276 = vmatpush1.bf16.msra.mxu0 0
        %2277 = vmatprep.subr.bf16.mxu0 0
        %2278 = vmatpush1.bf16.msra.mxu0 0
        %2279 = vmatprep.subr.bf16.mxu0 0
        %2280 = vmatpush1.bf16.msra.mxu0 0
        %2281 = vmatprep.subr.bf16.mxu0 0
        %2282 = vmatpush1.bf16.msra.mxu0 0
        %2283 = vmatprep.subr.bf16.mxu0 0
        %2284 = vmatpush1.bf16.msra.mxu0 0
        %2285 = vmatprep.subr.bf16.mxu0 0
        %2286 = vmatpush1.bf16.msra.mxu0 0
        %2287 = vmatprep.subr.bf16.mxu0 0
        %2288 = vmatpush1.bf16.msra.mxu0 0
        %2289 = vmatprep.subr.bf16.mxu0 0
        %2290 = vmatpush1.bf16.msra.mxu0 0
        %2291 = vmatprep.subr.bf16.mxu0 0
        %2292 = vmatpush1.bf16.msra.mxu0 0
        %2293 = vmatprep.subr.bf16.mxu0 0
        %2294 = vmatpush1.bf16.msra.mxu0 0
        %2295 = vmatprep.subr.bf16.mxu0 0
        %2296 = vmatpush1.bf16.msra.mxu0 0
        %2297 = vmatprep.subr.bf16.mxu0 0
        %2298 = vmatpush1.bf16.msra.mxu0 0
        %2299 = vmatprep.subr.bf16.mxu0 0
        %2300 = vmatpush1.bf16.msra.mxu0 0
        %2301 = vmatprep.subr.bf16.mxu0 0
        %2302 = vmatpush1.bf16.msra.mxu0 0
        %2303 = vmatprep.mubr.bf16.mxu0 0
        %2304 = vmatmul.mubr.bf16.gmra.mrb[0].mxu0 %v2266
        %v2305 = vpop.f32.mrb[0].mxu0
        %v2306 = vadd.f32 %v2260, %v2305
        %v2307 = vpop.f32.mrb[0].mxu0
        %v2308 = vpop.f32.mrb[0].mxu0
        %v2309 = vpop.f32.mrb[0].mxu0
        %2310 = vdwg.mxu0
        %v2311 = vmul.f32 %v2024, %v641
        %v2312 = vpack.c.bf16 %v2311, %v2311
        %v2314 = vsel %vm669, %v2312, 0
        %2316 = vmatprep.subr.bf16.mxu0 0
        %2317 = vmatpush1.bf16.xpose.msra.mxu0 %v2314
        %2318 = vmatprep.subr.bf16.mxu0 0
        %2319 = vmatpush1.bf16.xpose.msra.mxu0 0
        %2320 = vmatprep.subr.bf16.mxu0 0
        %2321 = vmatpush1.bf16.xpose.msra.mxu0 0
        %2322 = vmatprep.subr.bf16.mxu0 0
        %2323 = vmatpush1.bf16.xpose.msra.mxu0 0
        %2324 = vmatprep.subr.bf16.mxu0 0
        %2325 = vmatpush1.bf16.xpose.msra.mxu0 0
        %2326 = vmatprep.subr.bf16.mxu0 0
        %2327 = vmatpush1.bf16.xpose.msra.mxu0 0
        %2328 = vmatprep.subr.bf16.mxu0 0
        %2329 = vmatpush1.bf16.xpose.msra.mxu0 0
        %2330 = vmatprep.subr.bf16.mxu0 0
        %2331 = vmatpush1.bf16.xpose.msra.mxu0 0
        %2332 = vmatprep.subr.bf16.mxu0 0
        %2333 = vmatpush1.bf16.xpose.msra.mxu0 0
        %2334 = vmatprep.subr.bf16.mxu0 0
        %2335 = vmatpush1.bf16.xpose.msra.mxu0 0
        %2336 = vmatprep.subr.bf16.mxu0 0
        %2337 = vmatpush1.bf16.xpose.msra.mxu0 0
        %2338 = vmatprep.subr.bf16.mxu0 0
        %2339 = vmatpush1.bf16.xpose.msra.mxu0 0
        %2340 = vmatprep.subr.bf16.mxu0 0
        %2341 = vmatpush1.bf16.xpose.msra.mxu0 0
        %2342 = vmatprep.subr.bf16.mxu0 0
        %2343 = vmatpush1.bf16.xpose.msra.mxu0 0
        %2344 = vmatprep.subr.bf16.mxu0 0
        %2345 = vmatpush1.bf16.xpose.msra.mxu0 0
        %2346 = vmatprep.subr.bf16.mxu0 0
        %2347 = vmatpush1.bf16.xpose.msra.mxu0 0
        %2348 = vmatprep.mubr.bf16.mxu0 0
        %2349 = vmatmul.mubr.bf16.gmra.mrb[0].mxu0 %v2098
        %v2350 = vpop.f32.mrb[0].mxu0
        %v2351 = vadd.f32 0.0, %v2350
        %v2352 = vpop.f32.mrb[0].mxu0
        %v2353 = vpop.f32.mrb[0].mxu0
        %v2354 = vpop.f32.mrb[0].mxu0
        %2355 = vdwg.mxu0
        %v2356 = vsel %vm1891, -1e+18, %v2351
        %v2357 = vsel %vm967, %v2356, -inf
        %2358 = vmax.xlane.f32.xlu0 %v2357
        %v2359 = vpop.xlane.xlu0 %2358
        %v2360 = vsub.f32 %v2356, %v2359
        %v2361 = vmul.f32 %v2360, 1.442695
        %v2362 = vpow.pop %v2361
        %v2363 = vsel %vm967, %v2362, 0.0
        %2364 = vadd.xlane.f32.xlu0 %v2363
        %v2365 = vpop.xlane.xlu0 %2364
        %v2366 = vrcp.pop %v2365
        %v2367 = vmul.f32 %v2362, %v2366
        %v2368 = vpack.c.bf16 %v2367, %v2367
        %v2369 = vmul.f32 %v2089, %v641
        %v2370 = vpack.c.bf16 %v2369, %v2369
        %v2372 = vsel %vm967, %v2368, 0
        %v2375 = vsel %vm1045, %v2370, 0
        %2377 = vmatprep.subr.bf16.mxu0 0
        %2378 = vmatpush1.bf16.msra.mxu0 %v2375
        %2379 = vmatprep.subr.bf16.mxu0 0
        %2380 = vmatpush1.bf16.msra.mxu0 0
        %2381 = vmatprep.subr.bf16.mxu0 0
        %2382 = vmatpush1.bf16.msra.mxu0 0
        %2383 = vmatprep.subr.bf16.mxu0 0
        %2384 = vmatpush1.bf16.msra.mxu0 0
        %2385 = vmatprep.subr.bf16.mxu0 0
        %2386 = vmatpush1.bf16.msra.mxu0 0
        %2387 = vmatprep.subr.bf16.mxu0 0
        %2388 = vmatpush1.bf16.msra.mxu0 0
        %2389 = vmatprep.subr.bf16.mxu0 0
        %2390 = vmatpush1.bf16.msra.mxu0 0
        %2391 = vmatprep.subr.bf16.mxu0 0
        %2392 = vmatpush1.bf16.msra.mxu0 0
        %2393 = vmatprep.subr.bf16.mxu0 0
        %2394 = vmatpush1.bf16.msra.mxu0 0
        %2395 = vmatprep.subr.bf16.mxu0 0
        %2396 = vmatpush1.bf16.msra.mxu0 0
        %2397 = vmatprep.subr.bf16.mxu0 0
        %2398 = vmatpush1.bf16.msra.mxu0 0
        %2399 = vmatprep.subr.bf16.mxu0 0
        %2400 = vmatpush1.bf16.msra.mxu0 0
        %2401 = vmatprep.subr.bf16.mxu0 0
        %2402 = vmatpush1.bf16.msra.mxu0 0
        %2403 = vmatprep.subr.bf16.mxu0 0
        %2404 = vmatpush1.bf16.msra.mxu0 0
        %2405 = vmatprep.subr.bf16.mxu0 0
        %2406 = vmatpush1.bf16.msra.mxu0 0
        %2407 = vmatprep.subr.bf16.mxu0 0
        %2408 = vmatpush1.bf16.msra.mxu0 0
        %2409 = vmatprep.mubr.bf16.mxu0 0
        %2410 = vmatmul.mubr.bf16.gmra.mrb[0].mxu0 %v2372
        %v2411 = vpop.f32.mrb[0].mxu0
        %v2412 = vadd.f32 0.0, %v2411
        %v2413 = vpop.f32.mrb[0].mxu0
        %v2414 = vpop.f32.mrb[0].mxu0
        %v2415 = vpop.f32.mrb[0].mxu0
        %2416 = vdwg.mxu0
        %v2417 = vadd.f32 %v2306, %v2412
        %v2418 = vmul.f32 %v2024, %v646
        %v2419 = vpack.c.bf16 %v2418, %v2418
        %v2421 = vsel %vm669, %v2419, 0
        %2423 = vmatprep.subr.bf16.mxu0 0
        %2424 = vmatpush1.bf16.xpose.msra.mxu0 %v2421
        %2425 = vmatprep.subr.bf16.mxu0 0
        %2426 = vmatpush1.bf16.xpose.msra.mxu0 0
        %2427 = vmatprep.subr.bf16.mxu0 0
        %2428 = vmatpush1.bf16.xpose.msra.mxu0 0
        %2429 = vmatprep.subr.bf16.mxu0 0
        %2430 = vmatpush1.bf16.xpose.msra.mxu0 0
        %2431 = vmatprep.subr.bf16.mxu0 0
        %2432 = vmatpush1.bf16.xpose.msra.mxu0 0
        %2433 = vmatprep.subr.bf16.mxu0 0
        %2434 = vmatpush1.bf16.xpose.msra.mxu0 0
        %2435 = vmatprep.subr.bf16.mxu0 0
        %2436 = vmatpush1.bf16.xpose.msra.mxu0 0
        %2437 = vmatprep.subr.bf16.mxu0 0
        %2438 = vmatpush1.bf16.xpose.msra.mxu0 0
        %2439 = vmatprep.subr.bf16.mxu0 0
        %2440 = vmatpush1.bf16.xpose.msra.mxu0 0
        %2441 = vmatprep.subr.bf16.mxu0 0
        %2442 = vmatpush1.bf16.xpose.msra.mxu0 0
        %2443 = vmatprep.subr.bf16.mxu0 0
        %2444 = vmatpush1.bf16.xpose.msra.mxu0 0
        %2445 = vmatprep.subr.bf16.mxu0 0
        %2446 = vmatpush1.bf16.xpose.msra.mxu0 0
        %2447 = vmatprep.subr.bf16.mxu0 0
        %2448 = vmatpush1.bf16.xpose.msra.mxu0 0
        %2449 = vmatprep.subr.bf16.mxu0 0
        %2450 = vmatpush1.bf16.xpose.msra.mxu0 0
        %2451 = vmatprep.subr.bf16.mxu0 0
        %2452 = vmatpush1.bf16.xpose.msra.mxu0 0
        %2453 = vmatprep.subr.bf16.mxu0 0
        %2454 = vmatpush1.bf16.xpose.msra.mxu0 0
        %2455 = vmatprep.mubr.bf16.mxu0 0
        %2456 = vmatmul.mubr.bf16.gmra.mrb[0].mxu0 %v2098
        %v2457 = vpop.f32.mrb[0].mxu0
        %v2458 = vadd.f32 0.0, %v2457
        %v2459 = vpop.f32.mrb[0].mxu0
        %v2460 = vpop.f32.mrb[0].mxu0
        %v2461 = vpop.f32.mrb[0].mxu0
        %2462 = vdwg.mxu0
        %v2463 = vsel %vm1891, -1e+18, %v2458
        %v2464 = vsel %vm967, %v2463, -inf
        %2465 = vmax.xlane.f32.xlu0 %v2464
        %v2466 = vpop.xlane.xlu0 %2465
        %v2467 = vsub.f32 %v2463, %v2466
        %v2468 = vmul.f32 %v2467, 1.442695
        %v2469 = vpow.pop %v2468
        %v2470 = vsel %vm967, %v2469, 0.0
        %2471 = vadd.xlane.f32.xlu0 %v2470
        %v2472 = vpop.xlane.xlu0 %2471
        %v2473 = vrcp.pop %v2472
        %v2474 = vmul.f32 %v2469, %v2473
        %v2475 = vpack.c.bf16 %v2474, %v2474
        %v2476 = vmul.f32 %v2089, %v646
        %v2477 = vpack.c.bf16 %v2476, %v2476
        %v2479 = vsel %vm967, %v2475, 0
        %v2482 = vsel %vm1045, %v2477, 0
        %2484 = vmatprep.subr.bf16.mxu0 0
        %2485 = vmatpush1.bf16.msra.mxu0 %v2482
        %2486 = vmatprep.subr.bf16.mxu0 0
        %2487 = vmatpush1.bf16.msra.mxu0 0
        %2488 = vmatprep.subr.bf16.mxu0 0
        %2489 = vmatpush1.bf16.msra.mxu0 0
        %2490 = vmatprep.subr.bf16.mxu0 0
        %2491 = vmatpush1.bf16.msra.mxu0 0
        %2492 = vmatprep.subr.bf16.mxu0 0
        %2493 = vmatpush1.bf16.msra.mxu0 0
        %2494 = vmatprep.subr.bf16.mxu0 0
        %2495 = vmatpush1.bf16.msra.mxu0 0
        %2496 = vmatprep.subr.bf16.mxu0 0
        %2497 = vmatpush1.bf16.msra.mxu0 0
        %2498 = vmatprep.subr.bf16.mxu0 0
        %2499 = vmatpush1.bf16.msra.mxu0 0
        %2500 = vmatprep.subr.bf16.mxu0 0
        %2501 = vmatpush1.bf16.msra.mxu0 0
        %2502 = vmatprep.subr.bf16.mxu0 0
        %2503 = vmatpush1.bf16.msra.mxu0 0
        %2504 = vmatprep.subr.bf16.mxu0 0
        %2505 = vmatpush1.bf16.msra.mxu0 0
        %2506 = vmatprep.subr.bf16.mxu0 0
        %2507 = vmatpush1.bf16.msra.mxu0 0
        %2508 = vmatprep.subr.bf16.mxu0 0
        %2509 = vmatpush1.bf16.msra.mxu0 0
        %2510 = vmatprep.subr.bf16.mxu0 0
        %2511 = vmatpush1.bf16.msra.mxu0 0
        %2512 = vmatprep.subr.bf16.mxu0 0
        %2513 = vmatpush1.bf16.msra.mxu0 0
        %2514 = vmatprep.subr.bf16.mxu0 0
        %2515 = vmatpush1.bf16.msra.mxu0 0
        %2516 = vmatprep.mubr.bf16.mxu0 0
        %2517 = vmatmul.mubr.bf16.gmra.mrb[0].mxu0 %v2479
        %v2518 = vpop.f32.mrb[0].mxu0
        %v2519 = vadd.f32 0.0, %v2518
        %v2520 = vpop.f32.mrb[0].mxu0
        %v2521 = vpop.f32.mrb[0].mxu0
        %v2522 = vpop.f32.mrb[0].mxu0
        %2523 = vdwg.mxu0
        %v2524 = vadd.f32 %v2417, %v2519
        %v2525 = vmul.f32 %v2024, %v651
        %v2526 = vpack.c.bf16 %v2525, %v2525
        %v2528 = vsel %vm669, %v2526, 0
        %2530 = vmatprep.subr.bf16.mxu0 0
        %2531 = vmatpush1.bf16.xpose.msra.mxu0 %v2528
        %2532 = vmatprep.subr.bf16.mxu0 0
        %2533 = vmatpush1.bf16.xpose.msra.mxu0 0
        %2534 = vmatprep.subr.bf16.mxu0 0
        %2535 = vmatpush1.bf16.xpose.msra.mxu0 0
        %2536 = vmatprep.subr.bf16.mxu0 0
        %2537 = vmatpush1.bf16.xpose.msra.mxu0 0
        %2538 = vmatprep.subr.bf16.mxu0 0
        %2539 = vmatpush1.bf16.xpose.msra.mxu0 0
        %2540 = vmatprep.subr.bf16.mxu0 0
        %2541 = vmatpush1.bf16.xpose.msra.mxu0 0
        %2542 = vmatprep.subr.bf16.mxu0 0
        %2543 = vmatpush1.bf16.xpose.msra.mxu0 0
        %2544 = vmatprep.subr.bf16.mxu0 0
        %2545 = vmatpush1.bf16.xpose.msra.mxu0 0
        %2546 = vmatprep.subr.bf16.mxu0 0
        %2547 = vmatpush1.bf16.xpose.msra.mxu0 0
        %2548 = vmatprep.subr.bf16.mxu0 0
        %2549 = vmatpush1.bf16.xpose.msra.mxu0 0
        %2550 = vmatprep.subr.bf16.mxu0 0
        %2551 = vmatpush1.bf16.xpose.msra.mxu0 0
        %2552 = vmatprep.subr.bf16.mxu0 0
        %2553 = vmatpush1.bf16.xpose.msra.mxu0 0
        %2554 = vmatprep.subr.bf16.mxu0 0
        %2555 = vmatpush1.bf16.xpose.msra.mxu0 0
        %2556 = vmatprep.subr.bf16.mxu0 0
        %2557 = vmatpush1.bf16.xpose.msra.mxu0 0
        %2558 = vmatprep.subr.bf16.mxu0 0
        %2559 = vmatpush1.bf16.xpose.msra.mxu0 0
        %2560 = vmatprep.subr.bf16.mxu0 0
        %2561 = vmatpush1.bf16.xpose.msra.mxu0 0
        %2562 = vmatprep.mubr.bf16.mxu0 0
        %2563 = vmatmul.mubr.bf16.gmra.mrb[0].mxu0 %v2098
        %v2564 = vpop.f32.mrb[0].mxu0
        %v2565 = vadd.f32 0.0, %v2564
        %v2566 = vpop.f32.mrb[0].mxu0
        %v2567 = vpop.f32.mrb[0].mxu0
        %v2568 = vpop.f32.mrb[0].mxu0
        %2569 = vdwg.mxu0
        %v2570 = vsel %vm1891, -1e+18, %v2565
        %v2571 = vsel %vm967, %v2570, -inf
        %2572 = vmax.xlane.f32.xlu0 %v2571
        %v2573 = vpop.xlane.xlu0 %2572
        %v2574 = vsub.f32 %v2570, %v2573
        %v2575 = vmul.f32 %v2574, 1.442695
        %v2576 = vpow.pop %v2575
        %v2577 = vsel %vm967, %v2576, 0.0
        %2578 = vadd.xlane.f32.xlu0 %v2577
        %v2579 = vpop.xlane.xlu0 %2578
        %v2580 = vrcp.pop %v2579
        %v2581 = vmul.f32 %v2576, %v2580
        %v2582 = vpack.c.bf16 %v2581, %v2581
        %v2583 = vmul.f32 %v2089, %v651
        %v2584 = vpack.c.bf16 %v2583, %v2583
        %v2586 = vsel %vm967, %v2582, 0
        %v2589 = vsel %vm1045, %v2584, 0
        %2591 = vmatprep.subr.bf16.mxu0 0
        %2592 = vmatpush1.bf16.msra.mxu0 %v2589
        %2593 = vmatprep.subr.bf16.mxu0 0
        %2594 = vmatpush1.bf16.msra.mxu0 0
        %2595 = vmatprep.subr.bf16.mxu0 0
        %2596 = vmatpush1.bf16.msra.mxu0 0
        %2597 = vmatprep.subr.bf16.mxu0 0
        %2598 = vmatpush1.bf16.msra.mxu0 0
        %2599 = vmatprep.subr.bf16.mxu0 0
        %2600 = vmatpush1.bf16.msra.mxu0 0
        %2601 = vmatprep.subr.bf16.mxu0 0
        %2602 = vmatpush1.bf16.msra.mxu0 0
        %2603 = vmatprep.subr.bf16.mxu0 0
        %2604 = vmatpush1.bf16.msra.mxu0 0
        %2605 = vmatprep.subr.bf16.mxu0 0
        %2606 = vmatpush1.bf16.msra.mxu0 0
        %2607 = vmatprep.subr.bf16.mxu0 0
        %2608 = vmatpush1.bf16.msra.mxu0 0
        %2609 = vmatprep.subr.bf16.mxu0 0
        %2610 = vmatpush1.bf16.msra.mxu0 0
        %2611 = vmatprep.subr.bf16.mxu0 0
        %2612 = vmatpush1.bf16.msra.mxu0 0
        %2613 = vmatprep.subr.bf16.mxu0 0
        %2614 = vmatpush1.bf16.msra.mxu0 0
        %2615 = vmatprep.subr.bf16.mxu0 0
        %2616 = vmatpush1.bf16.msra.mxu0 0
        %2617 = vmatprep.subr.bf16.mxu0 0
        %2618 = vmatpush1.bf16.msra.mxu0 0
        %2619 = vmatprep.subr.bf16.mxu0 0
        %2620 = vmatpush1.bf16.msra.mxu0 0
        %2621 = vmatprep.subr.bf16.mxu0 0
        %2622 = vmatpush1.bf16.msra.mxu0 0
        %2623 = vmatprep.mubr.bf16.mxu0 0
        %2624 = vmatmul.mubr.bf16.gmra.mrb[0].mxu0 %v2586
        %v2625 = vpop.f32.mrb[0].mxu0
        %v2626 = vadd.f32 0.0, %v2625
        %v2627 = vpop.f32.mrb[0].mxu0
        %v2628 = vpop.f32.mrb[0].mxu0
        %v2629 = vpop.f32.mrb[0].mxu0
        %2630 = vdwg.mxu0
        %v2631 = vadd.f32 %v2524, %v2626
        %v2632 = vmul.f32 %v2024, %v656
        %v2633 = vpack.c.bf16 %v2632, %v2632
        %v2635 = vsel %vm669, %v2633, 0
        %2637 = vmatprep.subr.bf16.mxu0 0
        %2638 = vmatpush1.bf16.xpose.msra.mxu0 %v2635
        %2639 = vmatprep.subr.bf16.mxu0 0
        %2640 = vmatpush1.bf16.xpose.msra.mxu0 0
        %2641 = vmatprep.subr.bf16.mxu0 0
        %2642 = vmatpush1.bf16.xpose.msra.mxu0 0
        %2643 = vmatprep.subr.bf16.mxu0 0
        %2644 = vmatpush1.bf16.xpose.msra.mxu0 0
        %2645 = vmatprep.subr.bf16.mxu0 0
        %2646 = vmatpush1.bf16.xpose.msra.mxu0 0
        %2647 = vmatprep.subr.bf16.mxu0 0
        %2648 = vmatpush1.bf16.xpose.msra.mxu0 0
        %2649 = vmatprep.subr.bf16.mxu0 0
        %2650 = vmatpush1.bf16.xpose.msra.mxu0 0
        %2651 = vmatprep.subr.bf16.mxu0 0
        %2652 = vmatpush1.bf16.xpose.msra.mxu0 0
        %2653 = vmatprep.subr.bf16.mxu0 0
        %2654 = vmatpush1.bf16.xpose.msra.mxu0 0
        %2655 = vmatprep.subr.bf16.mxu0 0
        %2656 = vmatpush1.bf16.xpose.msra.mxu0 0
        %2657 = vmatprep.subr.bf16.mxu0 0
        %2658 = vmatpush1.bf16.xpose.msra.mxu0 0
        %2659 = vmatprep.subr.bf16.mxu0 0
        %2660 = vmatpush1.bf16.xpose.msra.mxu0 0
        %2661 = vmatprep.subr.bf16.mxu0 0
        %2662 = vmatpush1.bf16.xpose.msra.mxu0 0
        %2663 = vmatprep.subr.bf16.mxu0 0
        %2664 = vmatpush1.bf16.xpose.msra.mxu0 0
        %2665 = vmatprep.subr.bf16.mxu0 0
        %2666 = vmatpush1.bf16.xpose.msra.mxu0 0
        %2667 = vmatprep.subr.bf16.mxu0 0
        %2668 = vmatpush1.bf16.xpose.msra.mxu0 0
        %2669 = vmatprep.mubr.bf16.mxu0 0
        %2670 = vmatmul.mubr.bf16.gmra.mrb[0].mxu0 %v2098
        %v2671 = vpop.f32.mrb[0].mxu0
        %v2672 = vadd.f32 0.0, %v2671
        %v2673 = vpop.f32.mrb[0].mxu0
        %v2674 = vpop.f32.mrb[0].mxu0
        %v2675 = vpop.f32.mrb[0].mxu0
        %2676 = vdwg.mxu0
        %v2677 = vsel %vm1891, -1e+18, %v2672
        %v2678 = vsel %vm967, %v2677, -inf
        %2679 = vmax.xlane.f32.xlu0 %v2678
        %v2680 = vpop.xlane.xlu0 %2679
        %v2681 = vsub.f32 %v2677, %v2680
        %v2682 = vmul.f32 %v2681, 1.442695
        %v2683 = vpow.pop %v2682
        %v2684 = vsel %vm967, %v2683, 0.0
        %2685 = vadd.xlane.f32.xlu0 %v2684
        %v2686 = vpop.xlane.xlu0 %2685
        %v2687 = vrcp.pop %v2686
        %v2688 = vmul.f32 %v2683, %v2687
        %v2689 = vpack.c.bf16 %v2688, %v2688
        %v2690 = vmul.f32 %v2089, %v656
        %v2691 = vpack.c.bf16 %v2690, %v2690
        %v2693 = vsel %vm967, %v2689, 0
        %v2696 = vsel %vm1045, %v2691, 0
        %2698 = vmatprep.subr.bf16.mxu0 0
        %2699 = vmatpush1.bf16.msra.mxu0 %v2696
        %2700 = vmatprep.subr.bf16.mxu0 0
        %2701 = vmatpush1.bf16.msra.mxu0 0
        %2702 = vmatprep.subr.bf16.mxu0 0
        %2703 = vmatpush1.bf16.msra.mxu0 0
        %2704 = vmatprep.subr.bf16.mxu0 0
        %2705 = vmatpush1.bf16.msra.mxu0 0
        %2706 = vmatprep.subr.bf16.mxu0 0
        %2707 = vmatpush1.bf16.msra.mxu0 0
        %2708 = vmatprep.subr.bf16.mxu0 0
        %2709 = vmatpush1.bf16.msra.mxu0 0
        %2710 = vmatprep.subr.bf16.mxu0 0
        %2711 = vmatpush1.bf16.msra.mxu0 0
        %2712 = vmatprep.subr.bf16.mxu0 0
        %2713 = vmatpush1.bf16.msra.mxu0 0
        %2714 = vmatprep.subr.bf16.mxu0 0
        %2715 = vmatpush1.bf16.msra.mxu0 0
        %2716 = vmatprep.subr.bf16.mxu0 0
        %2717 = vmatpush1.bf16.msra.mxu0 0
        %2718 = vmatprep.subr.bf16.mxu0 0
        %2719 = vmatpush1.bf16.msra.mxu0 0
        %2720 = vmatprep.subr.bf16.mxu0 0
        %2721 = vmatpush1.bf16.msra.mxu0 0
        %2722 = vmatprep.subr.bf16.mxu0 0
        %2723 = vmatpush1.bf16.msra.mxu0 0
        %2724 = vmatprep.subr.bf16.mxu0 0
        %2725 = vmatpush1.bf16.msra.mxu0 0
        %2726 = vmatprep.subr.bf16.mxu0 0
        %2727 = vmatpush1.bf16.msra.mxu0 0
        %2728 = vmatprep.subr.bf16.mxu0 0
        %2729 = vmatpush1.bf16.msra.mxu0 0
        %2730 = vmatprep.mubr.bf16.mxu0 0
        %2731 = vmatmul.mubr.bf16.gmra.mrb[0].mxu0 %v2693
        %v2732 = vpop.f32.mrb[0].mxu0
        %v2733 = vadd.f32 0.0, %v2732
        %v2734 = vpop.f32.mrb[0].mxu0
        %v2735 = vpop.f32.mrb[0].mxu0
        %v2736 = vpop.f32.mrb[0].mxu0
        %2737 = vdwg.mxu0
        %v2738 = vadd.f32 %v2631, %v2733
        %v2739 = vmul.f32 %v2024, %v661
        %v2740 = vpack.c.bf16 %v2739, %v2739
        %v2742 = vsel %vm669, %v2740, 0
        %2744 = vmatprep.subr.bf16.mxu0 0
        %2745 = vmatpush1.bf16.xpose.msra.mxu0 %v2742
        %2746 = vmatprep.subr.bf16.mxu0 0
        %2747 = vmatpush1.bf16.xpose.msra.mxu0 0
        %2748 = vmatprep.subr.bf16.mxu0 0
        %2749 = vmatpush1.bf16.xpose.msra.mxu0 0
        %2750 = vmatprep.subr.bf16.mxu0 0
        %2751 = vmatpush1.bf16.xpose.msra.mxu0 0
        %2752 = vmatprep.subr.bf16.mxu0 0
        %2753 = vmatpush1.bf16.xpose.msra.mxu0 0
        %2754 = vmatprep.subr.bf16.mxu0 0
        %2755 = vmatpush1.bf16.xpose.msra.mxu0 0
        %2756 = vmatprep.subr.bf16.mxu0 0
        %2757 = vmatpush1.bf16.xpose.msra.mxu0 0
        %2758 = vmatprep.subr.bf16.mxu0 0
        %2759 = vmatpush1.bf16.xpose.msra.mxu0 0
        %2760 = vmatprep.subr.bf16.mxu0 0
        %2761 = vmatpush1.bf16.xpose.msra.mxu0 0
        %2762 = vmatprep.subr.bf16.mxu0 0
        %2763 = vmatpush1.bf16.xpose.msra.mxu0 0
        %2764 = vmatprep.subr.bf16.mxu0 0
        %2765 = vmatpush1.bf16.xpose.msra.mxu0 0
        %2766 = vmatprep.subr.bf16.mxu0 0
        %2767 = vmatpush1.bf16.xpose.msra.mxu0 0
        %2768 = vmatprep.subr.bf16.mxu0 0
        %2769 = vmatpush1.bf16.xpose.msra.mxu0 0
        %2770 = vmatprep.subr.bf16.mxu0 0
        %2771 = vmatpush1.bf16.xpose.msra.mxu0 0
        %2772 = vmatprep.subr.bf16.mxu0 0
        %2773 = vmatpush1.bf16.xpose.msra.mxu0 0
        %2774 = vmatprep.subr.bf16.mxu0 0
        %2775 = vmatpush1.bf16.xpose.msra.mxu0 0
        %2776 = vmatprep.mubr.bf16.mxu0 0
        %2777 = vmatmul.mubr.bf16.gmra.mrb[0].mxu0 %v2098
        %v2778 = vpop.f32.mrb[0].mxu0
        %v2779 = vadd.f32 0.0, %v2778
        %v2780 = vpop.f32.mrb[0].mxu0
        %v2781 = vpop.f32.mrb[0].mxu0
        %v2782 = vpop.f32.mrb[0].mxu0
        %2783 = vdwg.mxu0
        %v2784 = vsel %vm1891, -1e+18, %v2779
        %v2785 = vsel %vm967, %v2784, -inf
        %2786 = vmax.xlane.f32.xlu0 %v2785
        %v2787 = vpop.xlane.xlu0 %2786
        %v2788 = vsub.f32 %v2784, %v2787
        %v2789 = vmul.f32 %v2788, 1.442695
        %v2790 = vpow.pop %v2789
        %v2791 = vsel %vm967, %v2790, 0.0
        %2792 = vadd.xlane.f32.xlu0 %v2791
        %v2793 = vpop.xlane.xlu0 %2792
        %v2794 = vrcp.pop %v2793
        %v2795 = vmul.f32 %v2790, %v2794
        %v2796 = vpack.c.bf16 %v2795, %v2795
        %v2797 = vmul.f32 %v2089, %v661
        %v2798 = vpack.c.bf16 %v2797, %v2797
        %v2800 = vsel %vm967, %v2796, 0
        %v2803 = vsel %vm1045, %v2798, 0
        %2805 = vmatprep.subr.bf16.mxu0 0
        %2806 = vmatpush1.bf16.msra.mxu0 %v2803
        %2807 = vmatprep.subr.bf16.mxu0 0
        %2808 = vmatpush1.bf16.msra.mxu0 0
        %2809 = vmatprep.subr.bf16.mxu0 0
        %2810 = vmatpush1.bf16.msra.mxu0 0
        %2811 = vmatprep.subr.bf16.mxu0 0
        %2812 = vmatpush1.bf16.msra.mxu0 0
        %2813 = vmatprep.subr.bf16.mxu0 0
        %2814 = vmatpush1.bf16.msra.mxu0 0
        %2815 = vmatprep.subr.bf16.mxu0 0
        %2816 = vmatpush1.bf16.msra.mxu0 0
        %2817 = vmatprep.subr.bf16.mxu0 0
        %2818 = vmatpush1.bf16.msra.mxu0 0
        %2819 = vmatprep.subr.bf16.mxu0 0
        %2820 = vmatpush1.bf16.msra.mxu0 0
        %2821 = vmatprep.subr.bf16.mxu0 0
        %2822 = vmatpush1.bf16.msra.mxu0 0
        %2823 = vmatprep.subr.bf16.mxu0 0
        %2824 = vmatpush1.bf16.msra.mxu0 0
        %2825 = vmatprep.subr.bf16.mxu0 0
        %2826 = vmatpush1.bf16.msra.mxu0 0
        %2827 = vmatprep.subr.bf16.mxu0 0
        %2828 = vmatpush1.bf16.msra.mxu0 0
        %2829 = vmatprep.subr.bf16.mxu0 0
        %2830 = vmatpush1.bf16.msra.mxu0 0
        %2831 = vmatprep.subr.bf16.mxu0 0
        %2832 = vmatpush1.bf16.msra.mxu0 0
        %2833 = vmatprep.subr.bf16.mxu0 0
        %2834 = vmatpush1.bf16.msra.mxu0 0
        %2835 = vmatprep.subr.bf16.mxu0 0
        %2836 = vmatpush1.bf16.msra.mxu0 0
        %2837 = vmatprep.mubr.bf16.mxu0 0
        %2838 = vmatmul.mubr.bf16.gmra.mrb[0].mxu0 %v2800
        %v2839 = vpop.f32.mrb[0].mxu0
        %v2840 = vadd.f32 0.0, %v2839
        %v2841 = vpop.f32.mrb[0].mxu0
        %v2842 = vpop.f32.mrb[0].mxu0
        %v2843 = vpop.f32.mrb[0].mxu0
        %2844 = vdwg.mxu0
        %v2845 = vadd.f32 %v2738, %v2840
        %v2846 = vmul.f32 %v2024, %v666
        %v2847 = vpack.c.bf16 %v2846, %v2846
        %v2849 = vsel %vm669, %v2847, 0
        %2851 = vmatprep.subr.bf16.mxu0 0
        %2852 = vmatpush1.bf16.xpose.msra.mxu0 %v2849
        %2853 = vmatprep.subr.bf16.mxu0 0
        %2854 = vmatpush1.bf16.xpose.msra.mxu0 0
        %2855 = vmatprep.subr.bf16.mxu0 0
        %2856 = vmatpush1.bf16.xpose.msra.mxu0 0
        %2857 = vmatprep.subr.bf16.mxu0 0
        %2858 = vmatpush1.bf16.xpose.msra.mxu0 0
        %2859 = vmatprep.subr.bf16.mxu0 0
        %2860 = vmatpush1.bf16.xpose.msra.mxu0 0
        %2861 = vmatprep.subr.bf16.mxu0 0
        %2862 = vmatpush1.bf16.xpose.msra.mxu0 0
        %2863 = vmatprep.subr.bf16.mxu0 0
        %2864 = vmatpush1.bf16.xpose.msra.mxu0 0
        %2865 = vmatprep.subr.bf16.mxu0 0
        %2866 = vmatpush1.bf16.xpose.msra.mxu0 0
        %2867 = vmatprep.subr.bf16.mxu0 0
        %2868 = vmatpush1.bf16.xpose.msra.mxu0 0
        %2869 = vmatprep.subr.bf16.mxu0 0
        %2870 = vmatpush1.bf16.xpose.msra.mxu0 0
        %2871 = vmatprep.subr.bf16.mxu0 0
        %2872 = vmatpush1.bf16.xpose.msra.mxu0 0
        %2873 = vmatprep.subr.bf16.mxu0 0
        %2874 = vmatpush1.bf16.xpose.msra.mxu0 0
        %2875 = vmatprep.subr.bf16.mxu0 0
        %2876 = vmatpush1.bf16.xpose.msra.mxu0 0
        %2877 = vmatprep.subr.bf16.mxu0 0
        %2878 = vmatpush1.bf16.xpose.msra.mxu0 0
        %2879 = vmatprep.subr.bf16.mxu0 0
        %2880 = vmatpush1.bf16.xpose.msra.mxu0 0
        %2881 = vmatprep.subr.bf16.mxu0 0
        %2882 = vmatpush1.bf16.xpose.msra.mxu0 0
        %2883 = vmatprep.mubr.bf16.mxu0 0
        %2884 = vmatmul.mubr.bf16.gmra.mrb[0].mxu0 %v2098
        %v2885 = vpop.f32.mrb[0].mxu0
        %v2886 = vadd.f32 0.0, %v2885
        %v2887 = vpop.f32.mrb[0].mxu0
        %v2888 = vpop.f32.mrb[0].mxu0
        %v2889 = vpop.f32.mrb[0].mxu0
        %2890 = vdwg.mxu0
        %v2891 = vsel %vm1891, -1e+18, %v2886
        %v2892 = vsel %vm967, %v2891, -inf
        %2893 = vmax.xlane.f32.xlu0 %v2892
        %v2894 = vpop.xlane.xlu0 %2893
        %v2895 = vsub.f32 %v2891, %v2894
        %v2896 = vmul.f32 %v2895, 1.442695
        %v2897 = vpow.pop %v2896
        %v2898 = vsel %vm967, %v2897, 0.0
        %2899 = vadd.xlane.f32.xlu0 %v2898
        %v2900 = vpop.xlane.xlu0 %2899
        %v2901 = vrcp.pop %v2900
        %v2902 = vmul.f32 %v2897, %v2901
        %v2903 = vpack.c.bf16 %v2902, %v2902
        %v2904 = vmul.f32 %v2089, %v666
        %v2905 = vpack.c.bf16 %v2904, %v2904
        %v2907 = vsel %vm967, %v2903, 0
        %v2910 = vsel %vm1045, %v2905, 0
        %2912 = vmatprep.subr.bf16.mxu0 0
        %2913 = vmatpush1.bf16.msra.mxu0 %v2910
        %2914 = vmatprep.subr.bf16.mxu0 0
        %2915 = vmatpush1.bf16.msra.mxu0 0
        %2916 = vmatprep.subr.bf16.mxu0 0
        %2917 = vmatpush1.bf16.msra.mxu0 0
        %2918 = vmatprep.subr.bf16.mxu0 0
        %2919 = vmatpush1.bf16.msra.mxu0 0
        %2920 = vmatprep.subr.bf16.mxu0 0
        %2921 = vmatpush1.bf16.msra.mxu0 0
        %2922 = vmatprep.subr.bf16.mxu0 0
        %2923 = vmatpush1.bf16.msra.mxu0 0
        %2924 = vmatprep.subr.bf16.mxu0 0
        %2925 = vmatpush1.bf16.msra.mxu0 0
        %2926 = vmatprep.subr.bf16.mxu0 0
        %2927 = vmatpush1.bf16.msra.mxu0 0
        %2928 = vmatprep.subr.bf16.mxu0 0
        %2929 = vmatpush1.bf16.msra.mxu0 0
        %2930 = vmatprep.subr.bf16.mxu0 0
        %2931 = vmatpush1.bf16.msra.mxu0 0
        %2932 = vmatprep.subr.bf16.mxu0 0
        %2933 = vmatpush1.bf16.msra.mxu0 0
        %2934 = vmatprep.subr.bf16.mxu0 0
        %2935 = vmatpush1.bf16.msra.mxu0 0
        %2936 = vmatprep.subr.bf16.mxu0 0
        %2937 = vmatpush1.bf16.msra.mxu0 0
        %2938 = vmatprep.subr.bf16.mxu0 0
        %2939 = vmatpush1.bf16.msra.mxu0 0
        %2940 = vmatprep.subr.bf16.mxu0 0
        %2941 = vmatpush1.bf16.msra.mxu0 0
        %2942 = vmatprep.subr.bf16.mxu0 0
        %2943 = vmatpush1.bf16.msra.mxu0 0
        %2944 = vmatprep.mubr.bf16.mxu0 0
        %2945 = vmatmul.mubr.bf16.gmra.mrb[0].mxu0 %v2907
        %v2946 = vpop.f32.mrb[0].mxu0
        %v2947 = vadd.f32 0.0, %v2946
        %v2948 = vpop.f32.mrb[0].mxu0
        %v2949 = vpop.f32.mrb[0].mxu0
        %v2950 = vpop.f32.mrb[0].mxu0
        %2951 = vdwg.mxu0
        %v2952 = vadd.f32 %v2845, %v2947
        %s2953 = scalar_lea.vmem %s6, 48
        %v2954 = vld [vmem:[%s2953] sm:$0xf]
        %v2955 = vld [vmem:[%s2953 + $0x4] sm:$0xf]
        %v2956 = vld [vmem:[%s2953 + $0x8] sm:$0xf]
        %v2957 = vld [vmem:[%s2953 + $0xc] sm:$0xf]
        %v2958 = vpack.c.bf16 %v2952, %v2952
        %s2959 = scalar_lea.vmem %s7, 3
        %v2960 = vld [vmem:[%s2959] sm:$0x1]
        %v2962 = vlaneseq
        %v2963 = vshrl.u32 %v2962, 7
        %v2964 = vsub.s32 0, %v2963
        %v2965 = vrot.slane %v2960, %v2964
        %v2971 = vunpack.c.l.b16 %v2954
        %v2972 = vunpack.c.l.b16 %v2955
        %v2973 = vunpack.c.l.b16 %v2956
        %v2974 = vunpack.c.l.b16 %v2957
        %v2975 = vpack.c.b16 %v2972, %v2971
        %v2976 = vpack.c.b16 %v2974, %v2973
        %v2980 = vsel %vm669, %v2958, 0
        %2982 = vmatprep.subr.bf16.mxu0 0
        %2983 = vmatpush1.bf16.msra.mxu0 %v2975
        %2984 = vmatprep.subr.bf16.mxu0 0
        %2985 = vmatpush1.bf16.msra.mxu0 %v2976
        %2986 = vmatprep.subr.bf16.mxu0 0
        %2987 = vmatpush1.bf16.msra.mxu0 0
        %2988 = vmatprep.subr.bf16.mxu0 0
        %2989 = vmatpush1.bf16.msra.mxu0 0
        %2990 = vmatprep.subr.bf16.mxu0 0
        %2991 = vmatpush1.bf16.msra.mxu0 0
        %2992 = vmatprep.subr.bf16.mxu0 0
        %2993 = vmatpush1.bf16.msra.mxu0 0
        %2994 = vmatprep.subr.bf16.mxu0 0
        %2995 = vmatpush1.bf16.msra.mxu0 0
        %2996 = vmatprep.subr.bf16.mxu0 0
        %2997 = vmatpush1.bf16.msra.mxu0 0
        %2998 = vmatprep.subr.bf16.mxu0 0
        %2999 = vmatpush1.bf16.msra.mxu0 0
        %3000 = vmatprep.subr.bf16.mxu0 0
        %3001 = vmatpush1.bf16.msra.mxu0 0
        %3002 = vmatprep.subr.bf16.mxu0 0
        %3003 = vmatpush1.bf16.msra.mxu0 0
        %3004 = vmatprep.subr.bf16.mxu0 0
        %3005 = vmatpush1.bf16.msra.mxu0 0
        %3006 = vmatprep.subr.bf16.mxu0 0
        %3007 = vmatpush1.bf16.msra.mxu0 0
        %3008 = vmatprep.subr.bf16.mxu0 0
        %3009 = vmatpush1.bf16.msra.mxu0 0
        %3010 = vmatprep.subr.bf16.mxu0 0
        %3011 = vmatpush1.bf16.msra.mxu0 0
        %3012 = vmatprep.subr.bf16.mxu0 0
        %3013 = vmatpush1.bf16.msra.mxu0 0
        %3014 = vmatprep.mubr.bf16.mxu0 0
        %3015 = vmatmul.mubr.bf16.gmra.mrb[0].mxu0 %v2980
        %v3016 = vpop.f32.mrb[0].mxu0
        %v3017 = vadd.f32 %v2965, %v3016
        %v3018 = vpop.f32.mrb[0].mxu0
        %v3019 = vpop.f32.mrb[0].mxu0
        %v3020 = vpop.f32.mrb[0].mxu0
        %3021 = vdwg.mxu0
        %3022 = vst.msk [vmem:[%s597] sm:$0xff] %vm669, %v3017
        %v3023 = vadd.f32 %v3017, %v1846
        %s3024 = scalar_lea.vmem %s8, 2
        %v3025 = vld [vmem:[%s3024] sm:$0x1]
        %s3026 = scalar_lea.vmem %s9, 2
        %v3027 = vld [vmem:[%s3026] sm:$0x1]
        %v3028 = vsel %vm669, %v3023, 0.0
        %3029 = vadd.xlane.f32.xlu0 %v3028
        %v3030 = vpop.xlane.xlu0 %3029
        %v3031 = vmul.f32 %v3030, %v673
        %v3032 = vsub.f32 %v3023, %v3031
        %v3033 = vmul.f32 %v3032, %v3032
        %v3034 = vsel %vm669, %v3033, 0.0
        %3035 = vadd.xlane.f32.xlu0 %v3034
        %v3036 = vpop.xlane.xlu0 %3035
        %v3037 = vmul.f32 %v3036, 0.032258064
        %v3038 = vrsqrt.pop %v3037
        %v3039 = vmul.f32 %v3037, %v3038
        %vm3040 = vcmp.eq.f32.partialorder %v3037, inf
        %v3041 = vsel %vm3040, %v3037, %v3039
        %vm3042 = vcmp.eq.f32.partialorder %v3037, 0.0
        %v3043 = vand.u32 %v3037, 2147483648
        %v3044 = vsel %vm3042, %v3043, %v3041
        %v3045 = vadd.f32 %v3044, 1e-06
        %v3046 = vrcp.pop %v3045
        %v3047 = vmul.f32 %v3032, %v3046
        %v3049 = vlaneseq
        %v3050 = vshrl.u32 %v3049, 7
        %v3051 = vsub.s32 0, %v3050
        %v3052 = vrot.slane %v3025, %v3051
        %v3054 = vmul.f32 %v3052, %v3047
        %v3056 = vlaneseq
        %v3057 = vshrl.u32 %v3056, 7
        %v3058 = vsub.s32 0, %v3057
        %v3059 = vrot.slane %v3027, %v3058
        %v3061 = vadd.f32 %v3054, %v3059
        %v3062 = vld [vmem:[%s10] sm:$0xf]
        %v3063 = vld [vmem:[%s10 + $0x4] sm:$0xf]
        %v3064 = vld [vmem:[%s10 + $0x8] sm:$0xf]
        %v3065 = vld [vmem:[%s10 + $0xc] sm:$0xf]
        %v3066 = vpack.c.bf16 %v3061, %v3061
        %v3067 = vld [vmem:[%s11] sm:$0x1]
        %v3069 = vlaneseq
        %v3070 = vshrl.u32 %v3069, 7
        %v3071 = vsub.s32 0, %v3070
        %v3072 = vrot.slane %v3067, %v3071
        %v3078 = vunpack.c.l.b16 %v3062
        %v3079 = vunpack.c.l.b16 %v3063
        %v3080 = vunpack.c.l.b16 %v3064
        %v3081 = vunpack.c.l.b16 %v3065
        %v3082 = vpack.c.b16 %v3079, %v3078
        %v3083 = vpack.c.b16 %v3081, %v3080
        %v3087 = vsel %vm669, %v3066, 0
        %3089 = vmatprep.subr.bf16.mxu0 0
        %3090 = vmatpush1.bf16.msra.mxu0 %v3082
        %3091 = vmatprep.subr.bf16.mxu0 0
        %3092 = vmatpush1.bf16.msra.mxu0 %v3083
        %3093 = vmatprep.subr.bf16.mxu0 0
        %3094 = vmatpush1.bf16.msra.mxu0 0
        %3095 = vmatprep.subr.bf16.mxu0 0
        %3096 = vmatpush1.bf16.msra.mxu0 0
        %3097 = vmatprep.subr.bf16.mxu0 0
        %3098 = vmatpush1.bf16.msra.mxu0 0
        %3099 = vmatprep.subr.bf16.mxu0 0
        %3100 = vmatpush1.bf16.msra.mxu0 0
        %3101 = vmatprep.subr.bf16.mxu0 0
        %3102 = vmatpush1.bf16.msra.mxu0 0
        %3103 = vmatprep.subr.bf16.mxu0 0
        %3104 = vmatpush1.bf16.msra.mxu0 0
        %3105 = vmatprep.subr.bf16.mxu0 0
        %3106 = vmatpush1.bf16.msra.mxu0 0
        %3107 = vmatprep.subr.bf16.mxu0 0
        %3108 = vmatpush1.bf16.msra.mxu0 0
        %3109 = vmatprep.subr.bf16.mxu0 0
        %3110 = vmatpush1.bf16.msra.mxu0 0
        %3111 = vmatprep.subr.bf16.mxu0 0
        %3112 = vmatpush1.bf16.msra.mxu0 0
        %3113 = vmatprep.subr.bf16.mxu0 0
        %3114 = vmatpush1.bf16.msra.mxu0 0
        %3115 = vmatprep.subr.bf16.mxu0 0
        %3116 = vmatpush1.bf16.msra.mxu0 0
        %3117 = vmatprep.subr.bf16.mxu0 0
        %3118 = vmatpush1.bf16.msra.mxu0 0
        %3119 = vmatprep.subr.bf16.mxu0 0
        %3120 = vmatpush1.bf16.msra.mxu0 0
        %3121 = vmatprep.mubr.bf16.mxu0 0
        %3122 = vmatmul.mubr.bf16.gmra.mrb[0].mxu0 %v3087
        %v3123 = vpop.f32.mrb[0].mxu0
        %v3124 = vadd.f32 %v3072, %v3123
        %v3125 = vpop.f32.mrb[0].mxu0
        %v3126 = vpop.f32.mrb[0].mxu0
        %v3127 = vpop.f32.mrb[0].mxu0
        %3128 = vdwg.mxu0
        %v3129 = vmax.f32 %v3124, 0.0
        %v3130 = vld [vmem:[%s12] sm:$0xf]
        %v3131 = vld [vmem:[%s12 + $0x4] sm:$0xf]
        %v3132 = vld [vmem:[%s12 + $0x8] sm:$0xf]
        %v3133 = vld [vmem:[%s12 + $0xc] sm:$0xf]
        %v3134 = vld [vmem:[%s12 + $0x10] sm:$0xf]
        %v3135 = vld [vmem:[%s12 + $0x14] sm:$0xf]
        %v3136 = vld [vmem:[%s12 + $0x18] sm:$0xf]
        %v3137 = vld [vmem:[%s12 + $0x1c] sm:$0xf]
        %v3138 = vpack.c.bf16 %v3129, %v3129
        %v3139 = vld [vmem:[%s13] sm:$0x1]
        %v3141 = vlaneseq
        %v3142 = vshrl.u32 %v3141, 7
        %v3143 = vsub.s32 0, %v3142
        %v3144 = vrot.slane %v3139, %v3143
        %v3154 = vunpack.c.l.b16 %v3130
        %v3155 = vunpack.c.l.b16 %v3131
        %v3156 = vunpack.c.l.b16 %v3132
        %v3157 = vunpack.c.l.b16 %v3133
        %v3158 = vunpack.c.l.b16 %v3134
        %v3159 = vunpack.c.l.b16 %v3135
        %v3160 = vunpack.c.l.b16 %v3136
        %v3161 = vunpack.c.l.b16 %v3137
        %v3162 = vpack.c.b16 %v3155, %v3154
        %v3163 = vpack.c.b16 %v3157, %v3156
        %v3164 = vpack.c.b16 %v3159, %v3158
        %v3165 = vpack.c.b16 %v3161, %v3160
        %vm3170 = vcmask 523264
        %v3172 = vsel %vm3170, %v3138, 0
        %3174 = vmatprep.subr.bf16.mxu0 0
        %3175 = vmatpush1.bf16.msra.mxu0 %v3162
        %3176 = vmatprep.subr.bf16.mxu0 0
        %3177 = vmatpush1.bf16.msra.mxu0 %v3163
        %3178 = vmatprep.subr.bf16.mxu0 0
        %3179 = vmatpush1.bf16.msra.mxu0 %v3164
        %3180 = vmatprep.subr.bf16.mxu0 0
        %3181 = vmatpush1.bf16.msra.mxu0 %v3165
        %3182 = vmatprep.subr.bf16.mxu0 0
        %3183 = vmatpush1.bf16.msra.mxu0 0
        %3184 = vmatprep.subr.bf16.mxu0 0
        %3185 = vmatpush1.bf16.msra.mxu0 0
        %3186 = vmatprep.subr.bf16.mxu0 0
        %3187 = vmatpush1.bf16.msra.mxu0 0
        %3188 = vmatprep.subr.bf16.mxu0 0
        %3189 = vmatpush1.bf16.msra.mxu0 0
        %3190 = vmatprep.subr.bf16.mxu0 0
        %3191 = vmatpush1.bf16.msra.mxu0 0
        %3192 = vmatprep.subr.bf16.mxu0 0
        %3193 = vmatpush1.bf16.msra.mxu0 0
        %3194 = vmatprep.subr.bf16.mxu0 0
        %3195 = vmatpush1.bf16.msra.mxu0 0
        %3196 = vmatprep.subr.bf16.mxu0 0
        %3197 = vmatpush1.bf16.msra.mxu0 0
        %3198 = vmatprep.subr.bf16.mxu0 0
        %3199 = vmatpush1.bf16.msra.mxu0 0
        %3200 = vmatprep.subr.bf16.mxu0 0
        %3201 = vmatpush1.bf16.msra.mxu0 0
        %3202 = vmatprep.subr.bf16.mxu0 0
        %3203 = vmatpush1.bf16.msra.mxu0 0
        %3204 = vmatprep.subr.bf16.mxu0 0
        %3205 = vmatpush1.bf16.msra.mxu0 0
        %3206 = vmatprep.mubr.bf16.mxu0 0
        %3207 = vmatmul.mubr.bf16.gmra.mrb[0].mxu0 %v3172
        %v3208 = vpop.f32.mrb[0].mxu0
        %v3209 = vadd.f32 %v3144, %v3208
        %v3210 = vpop.f32.mrb[0].mxu0
        %v3211 = vpop.f32.mrb[0].mxu0
        %v3212 = vpop.f32.mrb[0].mxu0
        %3213 = vdwg.mxu0
        %v3214 = vadd.f32 %v3209, %v3023
        %3215 = vst.msk [vmem:[%s615] sm:$0xff] %vm669, %v3214
        %p3216 = scmp.lt.s32.totalorder %s35, 1
        %s3217 = scalar_select %p3216, %s35, 1
        %s3218 = smul.addr %s3217, 8
        %s3219 = scalar_lea.vmem %s14, %s3218
        %s3220 = sand.u32 %s383, 1
        %s3221 = scalar_lea.sflag [#allocation3], %s3220
        %s3222 = sand.u32 %s383, 1
        %s3223 = smul.addr %s3222, 8
        %s3224 = scalar_lea.vmem [#allocation2], %s3223
        %p3225 = scmp.lt.s32.totalorder %s35, 1
        %s3226 = scalar_select %p3225, %s35, 1
        %s3227 = smul.addr %s3226, 8
        %s3228 = scalar_lea.vmem %s16, %s3227
        %s3229 = sand.u32 %s435, 1
        %s3230 = scalar_lea.sflag [#allocation5], %s3229
        %s3231 = sand.u32 %s435, 1
        %s3232 = smul.addr %s3231, 8
        %s3233 = scalar_lea.vmem [#allocation4], %s3232
        // Predicated region
        $region77: #{transformer_decoder_forward.3} parent=75 // pred_check
          %p3234 = pneg %p367
        $region78: #{transformer_decoder_forward.3} parent=75 // pred_check_branch
          %3236 = sbr.rel (%p3234) target = $region80
        $region79: #{transformer_decoder_forward.3} parent=75 // pred_region
          _
        $region80: #{transformer_decoder_forward.3} parent=75 // pred_fallthru
          _
        // Predicated region
        $region81: #{transformer_decoder_forward.3} parent=75 // pred_check
          %p3237 = pneg %p393
        $region82: #{transformer_decoder_forward.3} parent=75 // pred_check_branch
          %3239 = sbr.rel (%p3237) target = $region84
        $region83: #{transformer_decoder_forward.3} parent=75 // pred_region
          %s3241 = ssub.s32 128, 128
          %3242 = vsyncadd %s3221, %s3241
          %s3243 = smul.addr %s35, 128
          %s3244 = scalar_lea.hbm %s15, %s3243
          %s3246 = sshll.u32 %s3224, 4
          %s3247 = int_to_ptr.vmem [resolvable:$true] %s3246
          %3249 = dma.vmem_to_hbm [thread:$0]  %s3247, 128, %s3244, %s3221
        $region84: #{transformer_decoder_forward.3} parent=75 // pred_fallthru
          _
        // Predicated region
        $region85: #{transformer_decoder_forward.3} parent=75 // pred_check
          %p3250 = pneg %p419
        $region86: #{transformer_decoder_forward.3} parent=75 // pred_check_branch
          %3252 = sbr.rel (%p3250) target = $region88
        $region87: #{transformer_decoder_forward.3} parent=75 // pred_region
          _
        $region88: #{transformer_decoder_forward.3} parent=75 // pred_fallthru
          _
        // Predicated region
        $region89: #{transformer_decoder_forward.3} parent=75 // pred_check
          %p3253 = pneg %p445
        $region90: #{transformer_decoder_forward.3} parent=75 // pred_check_branch
          %3255 = sbr.rel (%p3253) target = $region92
        $region91: #{transformer_decoder_forward.3} parent=75 // pred_region
          %s3257 = ssub.s32 128, 128
          %3258 = vsyncadd %s3230, %s3257
          %s3259 = smul.addr %s35, 128
          %s3260 = scalar_lea.hbm %s17, %s3259
          %s3262 = sshll.u32 %s3233, 4
          %s3263 = int_to_ptr.vmem [resolvable:$true] %s3262
          %3265 = dma.vmem_to_hbm [thread:$0]  %s3263, 128, %s3260, %s3230
        $region92: #{transformer_decoder_forward.3} parent=75 // pred_fallthru
          _
      $region76: #{transformer_decoder_forward.3} parent=5 // pred_fallthru
        _
      %p3266 = scmp.le.s32.totalorder 2, %s30
      // Predicated region
      $region93: #{transformer_decoder_forward.3} parent=5 // pred_check
        %p3267 = pneg %p3266
      $region94: #{transformer_decoder_forward.3} parent=5 // pred_check_branch
        %3269 = sbr.rel (%p3267) target = $region96
      $region95: #{transformer_decoder_forward.3} parent=5 // pred_region
        %s3270 = ssub.s32 %s30, 2
        // Predicated region
        $region97: #{transformer_decoder_forward.3} parent=95 // pred_check
          %p3271 = pneg %p373
        $region98: #{transformer_decoder_forward.3} parent=95 // pred_check_branch
          %3273 = sbr.rel (%p3271) target = $region100
        $region99: #{transformer_decoder_forward.3} parent=95 // pred_region
          %p3274 = scmp.lt.s32.totalorder %s36, 1
          %s3275 = scalar_select %p3274, %s36, 1
          %s3276 = smul.addr %s3275, 8
          %s3277 = scalar_lea.vmem %s14, %s3276
        $region100: #{transformer_decoder_forward.3} parent=95 // pred_fallthru
          _
        // Predicated region
        $region101: #{transformer_decoder_forward.3} parent=95 // pred_check
          %p3278 = pneg %p399
        $region102: #{transformer_decoder_forward.3} parent=95 // pred_check_branch
          %3280 = sbr.rel (%p3278) target = $region104
        $region103: #{transformer_decoder_forward.3} parent=95 // pred_region
          %s3281 = sand.u32 %s384, 1
          %s3282 = scalar_lea.sflag [#allocation3], %s3281
          %s3283 = sand.u32 %s384, 1
          %s3284 = smul.addr %s3283, 8
          %s3285 = scalar_lea.vmem [#allocation2], %s3284
          %3286 = dma.done %s3282, 128
        $region104: #{transformer_decoder_forward.3} parent=95 // pred_fallthru
          _
        // Predicated region
        $region105: #{transformer_decoder_forward.3} parent=95 // pred_check
          %p3287 = pneg %p425
        $region106: #{transformer_decoder_forward.3} parent=95 // pred_check_branch
          %3289 = sbr.rel (%p3287) target = $region108
        $region107: #{transformer_decoder_forward.3} parent=95 // pred_region
          %p3290 = scmp.lt.s32.totalorder %s36, 1
          %s3291 = scalar_select %p3290, %s36, 1
          %s3292 = smul.addr %s3291, 8
          %s3293 = scalar_lea.vmem %s16, %s3292
        $region108: #{transformer_decoder_forward.3} parent=95 // pred_fallthru
          _
        // Predicated region
        $region109: #{transformer_decoder_forward.3} parent=95 // pred_check
          %p3294 = pneg %p451
        $region110: #{transformer_decoder_forward.3} parent=95 // pred_check_branch
          %3296 = sbr.rel (%p3294) target = $region112
        $region111: #{transformer_decoder_forward.3} parent=95 // pred_region
          %s3297 = sand.u32 %s436, 1
          %s3298 = scalar_lea.sflag [#allocation5], %s3297
          %s3299 = sand.u32 %s436, 1
          %s3300 = smul.addr %s3299, 8
          %s3301 = scalar_lea.vmem [#allocation4], %s3300
          %3302 = dma.done %s3298, 128
        $region112: #{transformer_decoder_forward.3} parent=95 // pred_fallthru
          _
      $region96: #{transformer_decoder_forward.3} parent=5 // pred_fallthru
        _
    $region6: #{transformer_decoder_forward.3} parent=1 // loop_footer
      %s34 = sadd.s32 1, %s30
    $region7: #{transformer_decoder_forward.3} parent=1 // loop_footer_branch
      %29 = sbr.rel target = $region3
    $region8: #{transformer_decoder_forward.3} parent=1 // loop_exit
      _
    %3303 = vsyncpa [#allocation3], 1
    %s3304 = scalar_lea.sflag [#allocation3], 1
    %3305 = vsyncpa %s3304, 1
    %3306 = vsyncpa [#allocation5], 1
    %s3307 = scalar_lea.sflag [#allocation5], 1
    %3308 = vsyncpa %s3307, 1

</llo_original>
